<compile_context>
chip_gen: v7x
topology: tpu7x:2x2x1
jax: 0.10.0
libtpu: 0.0.40
codegen_flags: <defaults>
</compile_context>

<pallas_src>
import functools
import math

import jax
import jax.numpy as jnp
from jax import lax
from jax.experimental import pallas as pl
from jax.experimental.pallas import tpu as pltpu


# ----------------------------------------------------------------------------
# small in-kernel helpers (pure jnp, traced inside the Pallas body)
# ----------------------------------------------------------------------------
def _layer_norm(x, w, b, eps=1e-5):
    # One-pass stats: var = E[x^2] - E[x]^2 (saves a full elementwise pass per LN).
    mu = jnp.mean(x, axis=-1, keepdims=True)
    ms = jnp.mean(x * x, axis=-1, keepdims=True)
    return (x - mu) * lax.rsqrt(ms - mu * mu + eps) * w + b


def _softmax(s):
    s = s - jnp.max(s, axis=-1, keepdims=True)
    e = jnp.exp(s)
    return e * pl.reciprocal(jnp.sum(e, axis=-1, keepdims=True), approx=True)


def _gelu(x):
    # TODO(synk): PyTorch nn.GELU() uses the exact erf form; tanh approximation is
    # used here for guaranteed Mosaic lowering (max error ~1e-3 per activation).
    c = 0.7978845608028654  # sqrt(2/pi)
    return 0.5 * x * (1.0 + jnp.tanh(c * (x + 0.044715 * x * x * x)))


# ----------------------------------------------------------------------------
# fused kernel: patch-embed -> num_layers ViT blocks -> final LN/BN ->
#               attention-pooling classifier, grid = (num_layers,)
# ----------------------------------------------------------------------------
def _aim_kernel(p_ref, pw_ref, posb_ref,
                ln1w_ref, ln1b_ref, wqkv_ref, bqkv_ref, wproj_ref, bproj_ref,
                ln2w_ref, ln2b_ref, wfc1_ref, bfc1_ref, wfc2_ref, bfc2_ref,
                clssc_ref, clsbi_ref, clsq_ref, wk_ref, bk_ref, wv_ref, bv_ref,
                wlin_ref, blin_ref,
                o_ref, h_scr, *, num_heads, batch, seq):
    layer = pl.program_id(0)
    n_layers = pl.num_programs(0)

    # ---- layer-0 prologue: conv(kernel=P, stride=P) patch embedding as a matmul
    @pl.when(layer == 0)
    def _():
        p = p_ref[...].astype(jnp.bfloat16)                       # [B*N, C*P*P]
        h_scr[...] = (jnp.dot(p, pw_ref[...],
                              preferred_element_type=jnp.float32)
                      + posb_ref[...])                            # conv bias folded in

    x = h_scr[...]                                                # [B*N, D] f32 stream
    BN, D = x.shape
    H = num_heads
    hd = D // H

    # ---- pre-norm multi-head self-attention ----------------------------------
    # One fused [B*N, D] x [D, 3D] QKV matmul; 1/sqrt(hd) is folded into Q columns.
    h1 = _layer_norm(x, ln1w_ref[0], ln1b_ref[0]).astype(jnp.bfloat16)
    qkv = jnp.dot(h1, wqkv_ref[0], preferred_element_type=jnp.float32) + bqkv_ref[0]
    qkv = qkv.reshape(batch, seq, 3 * D)            # per-image (block-diag) attention

    ctx_heads = []
    for h in range(H):                              # static unroll; H is small
        q = qkv[:, :, 0 * D + h * hd:0 * D + (h + 1) * hd].astype(jnp.bfloat16)
        k = qkv[:, :, 1 * D + h * hd:1 * D + (h + 1) * hd].astype(jnp.bfloat16)
        v = qkv[:, :, 2 * D + h * hd:2 * D + (h + 1) * hd].astype(jnp.bfloat16)
        s = jnp.einsum('bqd,bkd->bqk', q, k, preferred_element_type=jnp.float32)
        pa = _softmax(s).astype(jnp.bfloat16)
        ctx_heads.append(jnp.einsum('bqk,bkd->bqd', pa, v,
                                    preferred_element_type=jnp.float32))
    # heads are lane-contiguous -> single [B*N, D] x [D, D] out-projection
    ctx = jnp.concatenate(ctx_heads, axis=-1).reshape(BN, D).astype(jnp.bfloat16)
    attn = (jnp.dot(ctx, wproj_ref[0], preferred_element_type=jnp.float32)
            + bproj_ref[0])
    x = x + attn                                    # dropout = identity (eval mode)

    # ---- MLP ------------------------------------------------------------------
    # TODO(synk): at production AIM sizes (D>=1536, Dm=4D) stream wfc1/wfc2 in
    # 512-1024-column chunks via an extra grid axis so double-buffered weight
    # blocks stay within v7x's 64 MiB VMEM.
    h2 = _layer_norm(x, ln2w_ref[0], ln2b_ref[0]).astype(jnp.bfloat16)
    h2 = jnp.dot(h2, wfc1_ref[0], preferred_element_type=jnp.float32) + bfc1_ref[0]
    h2 = _gelu(h2).astype(jnp.bfloat16)
    h2 = jnp.dot(h2, wfc2_ref[0], preferred_element_type=jnp.float32) + bfc2_ref[0]
    x = x + h2                                      # dropout = identity (eval mode)

    h_scr[...] = x

    # ---- last-layer epilogue: encoder LN + BN + attention pooling + linear ----
    @pl.when(layer == n_layers - 1)
    def _():
        # encoder.norm_layer (eps=1e-5) with its affine and the eval-mode
        # BatchNorm1d(affine=False, eps=1e-6) folded into one scale/bias (host-side).
        xn = _layer_norm(x, clssc_ref[...], clsbi_ref[...]).astype(jnp.bfloat16)
        kk = jnp.dot(xn, wk_ref[...], preferred_element_type=jnp.float32) + bk_ref[...]
        vv = jnp.dot(xn, wv_ref[...], preferred_element_type=jnp.float32) + bv_ref[...]
        k3 = kk.reshape(batch, seq, D)
        v3 = vv.reshape(batch, seq, D)
        pooled = []
        for h in range(H):
            qh = clsq_ref[:, h * hd:(h + 1) * hd].astype(jnp.bfloat16)    # [1, hd]
            qb = jnp.broadcast_to(qh[None], (batch, 1, hd))               # tiny
            kh = k3[:, :, h * hd:(h + 1) * hd].astype(jnp.bfloat16)
            vh = v3[:, :, h * hd:(h + 1) * hd].astype(jnp.bfloat16)
            s = jnp.einsum('bqd,bkd->bqk', qb, kh,
                           preferred_element_type=jnp.float32)            # [B, 1, N]
            pa = _softmax(s).astype(jnp.bfloat16)
            pooled.append(jnp.einsum('bqk,bkd->bqd', pa, vh,
                                     preferred_element_type=jnp.float32))  # [B, 1, hd]
        xcls = jnp.concatenate(pooled, axis=-1)      # [B, 1, D]; mean over 1 query = id
        logits = (jnp.einsum('bqd,dc->bqc', xcls.astype(jnp.bfloat16), wlin_ref[...],
                             preferred_element_type=jnp.float32)
                  + blin_ref[...])                   # [B, 1, num_classes]
        o_ref[...] = logits                          # single dense lane-aligned store


def aim_call(patches, pos_bias, params, *, num_heads, batch, seq):
    BN, Cpp = patches.shape
    D = pos_bias.shape[-1]
    L = params["wqkv"].shape[0]
    Dm = params["wfc1"].shape[-1]
    C = params["cls_wlin"].shape[-1]

    def const_spec(a):               # whole array, resident in VMEM across all layers
        nd = a.ndim
        return pl.BlockSpec(a.shape, lambda l: (0,) * nd)

    def layer_spec(a):               # [L, ...] stacks: one layer slice per grid step
        nd = a.ndim
        return pl.BlockSpec((1,) + a.shape[1:], lambda l: (l,) + (0,) * (nd - 1))

    layer_names = ("ln1_w", "ln1_b", "wqkv", "bqkv", "wproj", "bproj",
                   "ln2_w", "ln2_b", "wfc1", "bfc1", "wfc2", "bfc2")
    cls_names = ("cls_scale", "cls_bias", "cls_q", "cls_wk", "cls_bk",
                 "cls_wv", "cls_bv", "cls_wlin", "cls_blin")

    args = ((patches, params["patch_w"], pos_bias)
            + tuple(params[n] for n in layer_names)
            + tuple(params[n] for n in cls_names))
    in_specs = ([const_spec(patches), const_spec(params["patch_w"]),
                 const_spec(pos_bias)]
                + [layer_spec(params[n]) for n in layer_names]
                + [const_spec(params[n]) for n in cls_names])

    # advisory cost estimate so XLA schedules around the long fused custom call
    flops = (L * (2 * BN * D * (4 * D + 2 * Dm) + 4 * batch * seq * seq * D)
             + 2 * BN * Cpp * D + 4 * BN * D * D
             + 4 * batch * seq * D + 2 * batch * D * C)
    trans = L * (num_heads * batch * seq * seq + BN * Dm) + num_heads * batch * seq
    bytes_acc = sum(int(a.size) * a.dtype.itemsize for a in args) + batch * C * 4

    out = pl.pallas_call(
        functools.partial(_aim_kernel, num_heads=num_heads, batch=batch, seq=seq),
        out_shape=jax.ShapeDtypeStruct((batch, 1, C), jnp.float32),
        grid=(L,),
        in_specs=in_specs,
        out_specs=pl.BlockSpec((batch, 1, C), lambda l: (0, 0, 0)),
        scratch_shapes=[pltpu.VMEM((BN, D), jnp.float32)],   # resident residual stream
        compiler_params=pltpu.CompilerParams(
            # Single sequential layer axis: weights are streamed once per layer and
            # double-buffered by the BlockSpecs while the activation stays in VMEM.
            # TODO(synk): on v7x megacore, split the B*N token axis across the two
            # TensorCores instead of duplicating the per-layer weight stream.
            dimension_semantics=("arbitrary",),
            vmem_limit_bytes=64 * 1024 * 1024),
        cost_estimate=pl.CostEstimate(flops=int(flops), transcendentals=int(trans),
                                      bytes_accessed=int(bytes_acc)),
    )(*args)
    return out.reshape(batch, C)


# ----------------------------------------------------------------------------
# sine/cosine positional embedding (matches AIM_Encoder.get_posembed)
# ----------------------------------------------------------------------------
def get_posembed(embed_dim, grid_size, temperature=10000.0):
    scale = 2.0 * math.pi
    num_pos_feats = embed_dim // 2
    y_embed, x_embed = jnp.meshgrid(
        jnp.arange(grid_size, dtype=jnp.float32),
        jnp.arange(grid_size, dtype=jnp.float32),
        indexing="ij",
    )
    y_embed = y_embed / (grid_size + 1e-6) * scale
    x_embed = x_embed / (grid_size + 1e-6) * scale
    dim_t = jnp.arange(num_pos_feats, dtype=jnp.float32)
    dim_t_ = jnp.floor(dim_t / 2) / num_pos_feats
    dim_t = temperature ** (2 * dim_t_)
    pos_x = x_embed[..., None] / dim_t
    pos_y = y_embed[..., None] / dim_t
    pos_x = jnp.stack((jnp.sin(pos_x[..., 0::2]), jnp.cos(pos_x[..., 1::2])),
                      axis=-1).reshape(grid_size, grid_size, -1)
    pos_y = jnp.stack((jnp.sin(pos_y[..., 0::2]), jnp.cos(pos_y[..., 1::2])),
                      axis=-1).reshape(grid_size, grid_size, -1)
    pos = jnp.concatenate((pos_y, pos_x), axis=-1).reshape(-1, embed_dim)
    return pos


# ----------------------------------------------------------------------------
# deterministic parameter init (nn.Linear: xavier_uniform weight, zero bias;
# nn.LayerNorm: weight=1, bias=0; conv patch-embed: PyTorch default uniform).
# Weights are stacked per layer, stored bf16, with the attention scale folded in.
# ----------------------------------------------------------------------------
def init_params(key, *, img_dim, patch_size, emb_dim, num_layers, num_heads,
                mlp_ratio, num_classes, num_patches):
    D = emb_dim
    H = num_heads
    hd = D // H
    Dm = int(D * mlp_ratio)
    Cpp = img_dim * patch_size * patch_size
    grid_size = int(round(math.sqrt(num_patches)))
    wdt = jnp.bfloat16
    keys = iter(jax.random.split(key, 4 * num_layers + 8))

    def xavier(k, fi, fo):
        lim = math.sqrt(6.0 / (fi + fo))
        return jax.random.uniform(k, (fi, fo), jnp.float32, -lim, lim)

    bound = 1.0 / math.sqrt(Cpp)
    patch_w = jax.random.uniform(next(keys), (Cpp, D), jnp.float32, -bound, bound)
    patch_b = jax.random.uniform(next(keys), (1, D), jnp.float32, -bound, bound)

    scale = 1.0 / math.sqrt(hd)
    wqkv_l, wproj_l, wfc1_l, wfc2_l = [], [], [], []
    for _ in range(num_layers):
        wqkv = xavier(next(keys), D, 3 * D)            # [Q | K | V] head-contiguous cols
        wqkv = wqkv.at[:, :D].multiply(scale)          # fold 1/sqrt(hd) into Q columns
        wqkv_l.append(wqkv)
        wproj_l.append(xavier(next(keys), D, D))
        wfc1_l.append(xavier(next(keys), D, Dm))
        wfc2_l.append(xavier(next(keys), Dm, D))

    cls_token = jax.random.normal(next(keys), (1, D), jnp.float32) * 0.02
    cls_wk = xavier(next(keys), D, D)
    cls_wv = xavier(next(keys), D, D)
    cls_wlin = xavier(next(keys), D, num_classes)

    # encoder.norm_layer (w=1, b=0) and BatchNorm1d(affine=False, eps=1e-6) eval-mode
    # running stats (mean=0, var=1) folded into a single per-feature scale / bias.
    # TODO(synk): plumb real BN running stats here when loading a trained checkpoint.
    ln_w = jnp.ones((1, D), jnp.float32)
    ln_b = jnp.zeros((1, D), jnp.float32)
    bn_mean = jnp.zeros((1, D), jnp.float32)
    bn_var = jnp.ones((1, D), jnp.float32)
    bn_rstd = lax.rsqrt(bn_var + 1e-6)

    return {
        # patch embedding + frozen sin/cos positional table
        "patch_w": patch_w.astype(wdt),
        "patch_b": patch_b,
        "pos_embed": get_posembed(D, grid_size),                      # [N, D]
        # transformer blocks (stacked along a leading layer axis)
        "ln1_w": jnp.ones((num_layers, 1, D), jnp.float32),
        "ln1_b": jnp.zeros((num_layers, 1, D), jnp.float32),
        "wqkv": jnp.stack(wqkv_l).astype(wdt),                        # [L, D, 3D]
        "bqkv": jnp.zeros((num_layers, 1, 3 * D), jnp.float32),
        "wproj": jnp.stack(wproj_l).astype(wdt),                      # [L, D, D]
        "bproj": jnp.zeros((num_layers, 1, D), jnp.float32),
        "ln2_w": jnp.ones((num_layers, 1, D), jnp.float32),
        "ln2_b": jnp.zeros((num_layers, 1, D), jnp.float32),
        "wfc1": jnp.stack(wfc1_l).astype(wdt),                        # [L, D, Dm]
        "bfc1": jnp.zeros((num_layers, 1, Dm), jnp.float32),
        "wfc2": jnp.stack(wfc2_l).astype(wdt),                        # [L, Dm, D]
        "bfc2": jnp.zeros((num_layers, 1, D), jnp.float32),
        # classifier epilogue (small, kept f32 except the matmul weights)
        "cls_scale": ln_w * bn_rstd,
        "cls_bias": (ln_b - bn_mean) * bn_rstd,
        "cls_q": cls_token * scale,                 # pre-scaled query, head-major cols
        "cls_wk": cls_wk.astype(wdt),
        "cls_bk": jnp.zeros((1, D), jnp.float32),
        "cls_wv": cls_wv.astype(wdt),
        "cls_bv": jnp.zeros((1, D), jnp.float32),
        "cls_wlin": cls_wlin.astype(wdt),
        "cls_blin": jnp.zeros((1, num_classes), jnp.float32),
    }


# ----------------------------------------------------------------------------
# full forward: AIMForImageClassification.forward (logits only)
# ----------------------------------------------------------------------------
def aim_forward(params, x, *, patch_size, num_heads):
    B, Cimg, Himg, Wimg = x.shape
    P = patch_size
    Hp, Wp = Himg // P, Wimg // P
    N = Hp * Wp
    # conv(kernel=P, stride=P) patch embedding == matmul over flattened (c, ph, pw)
    patches = (x.reshape(B, Cimg, Hp, P, Wp, P)
                 .transpose(0, 2, 4, 1, 3, 5)
                 .reshape(B * N, Cimg * P * P))
    # positional table tiled per image with the conv bias folded in (tiny host-side op)
    pos_bias = jnp.tile(params["pos_embed"], (B, 1)) + params["patch_b"]   # [B*N, D]
    return aim_call(patches, pos_bias, params, num_heads=num_heads, batch=B, seq=N)


# ----------------------------------------------------------------------------
if __name__ == "__main__":
    # small, hardware-friendly config consistent with the module:
    # D divisible by num_heads (head_dim = 128 lanes), num_patches = (img/patch)^2
    B = 2
    img_size, patch_size, img_dim = 16, 4, 3
    emb_dim, num_heads, num_layers = 256, 2, 2
    num_classes, mlp_ratio = 128, 4.0
    num_patches = (img_size // patch_size) ** 2   # 16

    key = jax.random.PRNGKey(0)
    kx, kp = jax.random.split(key)
    x = jax.random.normal(kx, (B, img_dim, img_size, img_size), dtype=jnp.float32)

    params = init_params(kp, img_dim=img_dim, patch_size=patch_size,
                         emb_dim=emb_dim, num_layers=num_layers,
                         num_heads=num_heads, mlp_ratio=mlp_ratio,
                         num_classes=num_classes, num_patches=num_patches)

    logits = aim_forward(params, x, patch_size=patch_size, num_heads=num_heads)
    logits = jax.block_until_ready(logits)
    assert logits.shape == (B, num_classes)
    assert bool(jnp.all(jnp.isfinite(logits)))
    print("KERNEL_OK")
</pallas_src>

<mosaic_0001>
module attributes {stable_mosaic.version = 11 : i64} {
  func.func @_aim_kernel(%arg0: i32, %arg1: memref<32x48xf32, #tpu.memory_space<vmem>>, %arg2: memref<48x256xbf16, #tpu.memory_space<vmem>>, %arg3: memref<32x256xf32, #tpu.memory_space<vmem>>, %arg4: memref<1x1x256xf32, #tpu.memory_space<vmem>>, %arg5: memref<1x1x256xf32, #tpu.memory_space<vmem>>, %arg6: memref<1x256x768xbf16, #tpu.memory_space<vmem>>, %arg7: memref<1x1x768xf32, #tpu.memory_space<vmem>>, %arg8: memref<1x256x256xbf16, #tpu.memory_space<vmem>>, %arg9: memref<1x1x256xf32, #tpu.memory_space<vmem>>, %arg10: memref<1x1x256xf32, #tpu.memory_space<vmem>>, %arg11: memref<1x1x256xf32, #tpu.memory_space<vmem>>, %arg12: memref<1x256x1024xbf16, #tpu.memory_space<vmem>>, %arg13: memref<1x1x1024xf32, #tpu.memory_space<vmem>>, %arg14: memref<1x1024x256xbf16, #tpu.memory_space<vmem>>, %arg15: memref<1x1x256xf32, #tpu.memory_space<vmem>>, %arg16: memref<1x256xf32, #tpu.memory_space<vmem>>, %arg17: memref<1x256xf32, #tpu.memory_space<vmem>>, %arg18: memref<1x256xf32, #tpu.memory_space<vmem>>, %arg19: memref<256x256xbf16, #tpu.memory_space<vmem>>, %arg20: memref<1x256xf32, #tpu.memory_space<vmem>>, %arg21: memref<256x256xbf16, #tpu.memory_space<vmem>>, %arg22: memref<1x256xf32, #tpu.memory_space<vmem>>, %arg23: memref<256x128xbf16, #tpu.memory_space<vmem>>, %arg24: memref<1x128xf32, #tpu.memory_space<vmem>>, %arg25: memref<2x1x128xf32, #tpu.memory_space<vmem>>, %arg26: memref<32x256xf32, #tpu.memory_space<vmem>>) attributes {dimension_semantics = [#tpu.dimension_semantics<arbitrary>], iteration_bounds = array<i64: 2>, scalar_prefetch = 0 : i64, scratch_operands = 1 : i64, tpu.core_type = #tpu.core_type<tc>, window_params = [{pipeline_mode = #tpu.pipeline_mode<synchronous>, transform_indices = @transform_0, window_bounds = array<i64: 32, 48>}, {pipeline_mode = #tpu.pipeline_mode<synchronous>, transform_indices = @transform_1, window_bounds = array<i64: 48, 256>}, {pipeline_mode = #tpu.pipeline_mode<synchronous>, transform_indices = @transform_2, window_bounds = array<i64: 32, 256>}, {transform_indices = @transform_3, window_bounds = array<i64: 1, 1, 256>}, {transform_indices = @transform_4, window_bounds = array<i64: 1, 1, 256>}, {transform_indices = @transform_5, window_bounds = array<i64: 1, 256, 768>}, {transform_indices = @transform_6, window_bounds = array<i64: 1, 1, 768>}, {transform_indices = @transform_7, window_bounds = array<i64: 1, 256, 256>}, {transform_indices = @transform_8, window_bounds = array<i64: 1, 1, 256>}, {transform_indices = @transform_9, window_bounds = array<i64: 1, 1, 256>}, {transform_indices = @transform_10, window_bounds = array<i64: 1, 1, 256>}, {transform_indices = @transform_11, window_bounds = array<i64: 1, 256, 1024>}, {transform_indices = @transform_12, window_bounds = array<i64: 1, 1, 1024>}, {transform_indices = @transform_13, window_bounds = array<i64: 1, 1024, 256>}, {transform_indices = @transform_14, window_bounds = array<i64: 1, 1, 256>}, {pipeline_mode = #tpu.pipeline_mode<synchronous>, transform_indices = @transform_15, window_bounds = array<i64: 1, 256>}, {pipeline_mode = #tpu.pipeline_mode<synchronous>, transform_indices = @transform_16, window_bounds = array<i64: 1, 256>}, {pipeline_mode = #tpu.pipeline_mode<synchronous>, transform_indices = @transform_17, window_bounds = array<i64: 1, 256>}, {pipeline_mode = #tpu.pipeline_mode<synchronous>, transform_indices = @transform_18, window_bounds = array<i64: 256, 256>}, {pipeline_mode = #tpu.pipeline_mode<synchronous>, transform_indices = @transform_19, window_bounds = array<i64: 1, 256>}, {pipeline_mode = #tpu.pipeline_mode<synchronous>, transform_indices = @transform_20, window_bounds = array<i64: 256, 256>}, {pipeline_mode = #tpu.pipeline_mode<synchronous>, transform_indices = @transform_21, window_bounds = array<i64: 1, 256>}, {pipeline_mode = #tpu.pipeline_mode<synchronous>, transform_indices = @transform_22, window_bounds = array<i64: 256, 128>}, {pipeline_mode = #tpu.pipeline_mode<synchronous>, transform_indices = @transform_23, window_bounds = array<i64: 1, 128>}, {pipeline_mode = #tpu.pipeline_mode<synchronous>, transform_indices = @transform_24, window_bounds = array<i64: 2, 1, 128>}]} {
    %c0_i32 = arith.constant 0 : i32
    %0 = arith.cmpi eq, %arg0, %c0_i32 : i32
    %1 = arith.extui %0 : i1 to i32
    %c0_i32_0 = arith.constant 0 : i32
    %2 = arith.cmpi ne, %1, %c0_i32_0 : i32
    scf.if %2 {
      %c0_66 = arith.constant 0 : index
      %c0_67 = arith.constant 0 : index
      %148 = vector.load %arg1[%c0_66, %c0_67] : memref<32x48xf32, #tpu.memory_space<vmem>>, vector<32x48xf32>
      %149 = arith.truncf %148 : vector<32x48xf32> to vector<32x48xbf16>
      %c0_68 = arith.constant 0 : index
      %c0_69 = arith.constant 0 : index
      %150 = vector.load %arg2[%c0_68, %c0_69] : memref<48x256xbf16, #tpu.memory_space<vmem>>, vector<48x256xbf16>
      %cst_70 = arith.constant dense<0.000000e+00> : vector<32x256xf32>
      %151 = tpu.matmul %149, %150, %cst_70 {dimension_numbers = #tpu.dot_dimension_numbers<[1], [0], [0], [1], [0, 0, 1, 1], [], []>} : vector<32x48xbf16>, vector<48x256xbf16>, vector<32x256xf32> -> vector<32x256xf32>
      %c0_71 = arith.constant 0 : index
      %c0_72 = arith.constant 0 : index
      %152 = vector.load %arg3[%c0_71, %c0_72] : memref<32x256xf32, #tpu.memory_space<vmem>>, vector<32x256xf32>
      %153 = arith.addf %151, %152 : vector<32x256xf32>
      %c0_73 = arith.constant 0 : index
      %c0_74 = arith.constant 0 : index
      %154 = vector.load %arg26[%c0_73, %c0_74] : memref<32x256xf32, #tpu.memory_space<vmem>>, vector<32x256xf32>
      tpu.vector_store %arg26[%c0_73, %c0_74], %153 {strides = array<i32>} : memref<32x256xf32, #tpu.memory_space<vmem>>, vector<32x256xf32>,
    } else {
    }
    %c0 = arith.constant 0 : index
    %c0_1 = arith.constant 0 : index
    %3 = vector.load %arg26[%c0, %c0_1] : memref<32x256xf32, #tpu.memory_space<vmem>>, vector<32x256xf32>
    %c0_2 = arith.constant 0 : index
    %c0_3 = arith.constant 0 : index
    %c0_4 = arith.constant 0 : index
    %4 = vector.load %arg4[%c0_2, %c0_3, %c0_4] : memref<1x1x256xf32, #tpu.memory_space<vmem>>, vector<1x1x256xf32>
    %5 = vector.shape_cast %4 : vector<1x1x256xf32> to vector<1x256xf32>
    %c0_5 = arith.constant 0 : index
    %c0_6 = arith.constant 0 : index
    %c0_7 = arith.constant 0 : index
    %6 = vector.load %arg5[%c0_5, %c0_6, %c0_7] : memref<1x1x256xf32, #tpu.memory_space<vmem>>, vector<1x1x256xf32>
    %7 = vector.shape_cast %6 : vector<1x1x256xf32> to vector<1x256xf32>
    %cst = arith.constant dense<0.000000e+00> : vector<32xf32>
    %8 = vector.multi_reduction <add>, %3, %cst [1] : vector<32x256xf32> to vector<32xf32>
    %9 = vector.shape_cast %8 : vector<32xf32> to vector<32x1xf32>
    %cst_8 = arith.constant 2.560000e+02 : f32
    %10 = vector.broadcast %cst_8 : f32 to vector<32x1xf32>
    %11 = arith.divf %9, %10 : vector<32x1xf32>
    %12 = arith.mulf %3, %3 : vector<32x256xf32>
    %cst_9 = arith.constant dense<0.000000e+00> : vector<32xf32>
    %13 = vector.multi_reduction <add>, %12, %cst_9 [1] : vector<32x256xf32> to vector<32xf32>
    %14 = vector.shape_cast %13 : vector<32xf32> to vector<32x1xf32>
    %cst_10 = arith.constant 2.560000e+02 : f32
    %15 = vector.broadcast %cst_10 : f32 to vector<32x1xf32>
    %16 = arith.divf %14, %15 : vector<32x1xf32>
    %17 = vector.broadcast %11 : vector<32x1xf32> to vector<32x256xf32>
    %18 = arith.subf %3, %17 : vector<32x256xf32>
    %19 = arith.mulf %11, %11 : vector<32x1xf32>
    %20 = arith.subf %16, %19 : vector<32x1xf32>
    %cst_11 = arith.constant 9.99999974E-6 : f32
    %21 = vector.broadcast %cst_11 : f32 to vector<32x1xf32>
    %22 = arith.addf %20, %21 : vector<32x1xf32>
    %23 = math.rsqrt %22 : vector<32x1xf32>
    %24 = vector.broadcast %23 : vector<32x1xf32> to vector<32x256xf32>
    %25 = arith.mulf %18, %24 : vector<32x256xf32>
    %26 = vector.broadcast %5 : vector<1x256xf32> to vector<32x256xf32>
    %27 = arith.mulf %25, %26 : vector<32x256xf32>
    %28 = vector.broadcast %7 : vector<1x256xf32> to vector<32x256xf32>
    %29 = arith.addf %27, %28 : vector<32x256xf32>
    %30 = arith.truncf %29 : vector<32x256xf32> to vector<32x256xbf16>
    %c0_12 = arith.constant 0 : index
    %c0_13 = arith.constant 0 : index
    %c0_14 = arith.constant 0 : index
    %31 = vector.load %arg6[%c0_12, %c0_13, %c0_14] : memref<1x256x768xbf16, #tpu.memory_space<vmem>>, vector<1x256x768xbf16>
    %32 = vector.shape_cast %31 : vector<1x256x768xbf16> to vector<256x768xbf16>
    %cst_15 = arith.constant dense<0.000000e+00> : vector<32x768xf32>
    %33 = tpu.matmul %30, %32, %cst_15 {dimension_numbers = #tpu.dot_dimension_numbers<[1], [0], [0], [1], [0, 0, 1, 1], [], []>} : vector<32x256xbf16>, vector<256x768xbf16>, vector<32x768xf32> -> vector<32x768xf32>
    %c0_16 = arith.constant 0 : index
    %c0_17 = arith.constant 0 : index
    %c0_18 = arith.constant 0 : index
    %34 = vector.load %arg7[%c0_16, %c0_17, %c0_18] : memref<1x1x768xf32, #tpu.memory_space<vmem>>, vector<1x1x768xf32>
    %35 = vector.shape_cast %34 : vector<1x1x768xf32> to vector<1x768xf32>
    %36 = vector.broadcast %35 : vector<1x768xf32> to vector<32x768xf32>
    %37 = arith.addf %33, %36 : vector<32x768xf32>
    %38 = vector.shape_cast %37 : vector<32x768xf32> to vector<2x16x768xf32>
    %39 = vector.extract_strided_slice %38 {offsets = [0, 0, 0], sizes = [2, 16, 128], strides = [1, 1, 1]} : vector<2x16x768xf32> to vector<2x16x128xf32>
    %40 = arith.truncf %39 : vector<2x16x128xf32> to vector<2x16x128xbf16>
    %41 = vector.extract_strided_slice %38 {offsets = [0, 0, 256], sizes = [2, 16, 128], strides = [1, 1, 1]} : vector<2x16x768xf32> to vector<2x16x128xf32>
    %42 = arith.truncf %41 : vector<2x16x128xf32> to vector<2x16x128xbf16>
    %43 = vector.extract_strided_slice %38 {offsets = [0, 0, 512], sizes = [2, 16, 128], strides = [1, 1, 1]} : vector<2x16x768xf32> to vector<2x16x128xf32>
    %44 = arith.truncf %43 : vector<2x16x128xf32> to vector<2x16x128xbf16>
    "tpu.trace_start"() <{level = 10 : i32, message = "bqd,bkd->bqk"}> : () -> ()
    %cst_19 = arith.constant dense<0.000000e+00> : vector<2x16x16xf32>
    %45 = tpu.matmul %40, %42, %cst_19 {dimension_numbers = #tpu.dot_dimension_numbers<[2], [2], [1], [1], [0, 0, 0, 1, 1, 1], [0], [0]>} : vector<2x16x128xbf16>, vector<2x16x128xbf16>, vector<2x16x16xf32> -> vector<2x16x16xf32>
    "tpu.trace_stop"() : () -> ()
    %cst_20 = arith.constant dense<0xFF800000> : vector<2x16xf32>
    %46 = vector.multi_reduction <maximumf>, %45, %cst_20 [2] : vector<2x16x16xf32> to vector<2x16xf32>
    %47 = vector.shape_cast %46 : vector<2x16xf32> to vector<2x16x1xf32>
    %48 = vector.broadcast %47 : vector<2x16x1xf32> to vector<2x16x16xf32>
    %49 = arith.subf %45, %48 : vector<2x16x16xf32>
    %50 = math.exp %49 : vector<2x16x16xf32>
    %cst_21 = arith.constant dense<0.000000e+00> : vector<2x16xf32>
    %51 = vector.multi_reduction <add>, %50, %cst_21 [2] : vector<2x16x16xf32> to vector<2x16xf32>
    %52 = vector.shape_cast %51 : vector<2x16xf32> to vector<2x16x1xf32>
    %53 = tpu.reciprocal %52 {approx = true} : vector<2x16x1xf32> -> vector<2x16x1xf32>
    %54 = vector.broadcast %53 : vector<2x16x1xf32> to vector<2x16x16xf32>
    %55 = arith.mulf %50, %54 : vector<2x16x16xf32>
    %56 = arith.truncf %55 : vector<2x16x16xf32> to vector<2x16x16xbf16>
    "tpu.trace_start"() <{level = 10 : i32, message = "bqk,bkd->bqd"}> : () -> ()
    %cst_22 = arith.constant dense<0.000000e+00> : vector<2x16x128xf32>
    %57 = tpu.matmul %56, %44, %cst_22 {dimension_numbers = #tpu.dot_dimension_numbers<[2], [1], [1], [2], [0, 0, 0, 1, 1, 2], [0], [0]>} : vector<2x16x16xbf16>, vector<2x16x128xbf16>, vector<2x16x128xf32> -> vector<2x16x128xf32>
    "tpu.trace_stop"() : () -> ()
    %58 = vector.extract_strided_slice %38 {offsets = [0, 0, 128], sizes = [2, 16, 128], strides = [1, 1, 1]} : vector<2x16x768xf32> to vector<2x16x128xf32>
    %59 = arith.truncf %58 : vector<2x16x128xf32> to vector<2x16x128xbf16>
    %60 = vector.extract_strided_slice %38 {offsets = [0, 0, 384], sizes = [2, 16, 128], strides = [1, 1, 1]} : vector<2x16x768xf32> to vector<2x16x128xf32>
    %61 = arith.truncf %60 : vector<2x16x128xf32> to vector<2x16x128xbf16>
    %62 = vector.extract_strided_slice %38 {offsets = [0, 0, 640], sizes = [2, 16, 128], strides = [1, 1, 1]} : vector<2x16x768xf32> to vector<2x16x128xf32>
    %63 = arith.truncf %62 : vector<2x16x128xf32> to vector<2x16x128xbf16>
    "tpu.trace_start"() <{level = 10 : i32, message = "bqd,bkd->bqk"}> : () -> ()
    %cst_23 = arith.constant dense<0.000000e+00> : vector<2x16x16xf32>
    %64 = tpu.matmul %59, %61, %cst_23 {dimension_numbers = #tpu.dot_dimension_numbers<[2], [2], [1], [1], [0, 0, 0, 1, 1, 1], [0], [0]>} : vector<2x16x128xbf16>, vector<2x16x128xbf16>, vector<2x16x16xf32> -> vector<2x16x16xf32>
    "tpu.trace_stop"() : () -> ()
    %cst_24 = arith.constant dense<0xFF800000> : vector<2x16xf32>
    %65 = vector.multi_reduction <maximumf>, %64, %cst_24 [2] : vector<2x16x16xf32> to vector<2x16xf32>
    %66 = vector.shape_cast %65 : vector<2x16xf32> to vector<2x16x1xf32>
    %67 = vector.broadcast %66 : vector<2x16x1xf32> to vector<2x16x16xf32>
    %68 = arith.subf %64, %67 : vector<2x16x16xf32>
    %69 = math.exp %68 : vector<2x16x16xf32>
    %cst_25 = arith.constant dense<0.000000e+00> : vector<2x16xf32>
    %70 = vector.multi_reduction <add>, %69, %cst_25 [2] : vector<2x16x16xf32> to vector<2x16xf32>
    %71 = vector.shape_cast %70 : vector<2x16xf32> to vector<2x16x1xf32>
    %72 = tpu.reciprocal %71 {approx = true} : vector<2x16x1xf32> -> vector<2x16x1xf32>
    %73 = vector.broadcast %72 : vector<2x16x1xf32> to vector<2x16x16xf32>
    %74 = arith.mulf %69, %73 : vector<2x16x16xf32>
    %75 = arith.truncf %74 : vector<2x16x16xf32> to vector<2x16x16xbf16>
    "tpu.trace_start"() <{level = 10 : i32, message = "bqk,bkd->bqd"}> : () -> ()
    %cst_26 = arith.constant dense<0.000000e+00> : vector<2x16x128xf32>
    %76 = tpu.matmul %75, %63, %cst_26 {dimension_numbers = #tpu.dot_dimension_numbers<[2], [1], [1], [2], [0, 0, 0, 1, 1, 2], [0], [0]>} : vector<2x16x16xbf16>, vector<2x16x128xbf16>, vector<2x16x128xf32> -> vector<2x16x128xf32>
    "tpu.trace_stop"() : () -> ()
    %77 = tpu.concatenate %57, %76 in 2 : vector<2x16x128xf32>, vector<2x16x128xf32> -> vector<2x16x256xf32>
    %78 = vector.shape_cast %77 : vector<2x16x256xf32> to vector<32x256xf32>
    %79 = arith.truncf %78 : vector<32x256xf32> to vector<32x256xbf16>
    %c0_27 = arith.constant 0 : index
    %c0_28 = arith.constant 0 : index
    %c0_29 = arith.constant 0 : index
    %80 = vector.load %arg8[%c0_27, %c0_28, %c0_29] : memref<1x256x256xbf16, #tpu.memory_space<vmem>>, vector<1x256x256xbf16>
    %81 = vector.shape_cast %80 : vector<1x256x256xbf16> to vector<256x256xbf16>
    %cst_30 = arith.constant dense<0.000000e+00> : vector<32x256xf32>
    %82 = tpu.matmul %79, %81, %cst_30 {dimension_numbers = #tpu.dot_dimension_numbers<[1], [0], [0], [1], [0, 0, 1, 1], [], []>} : vector<32x256xbf16>, vector<256x256xbf16>, vector<32x256xf32> -> vector<32x256xf32>
    %c0_31 = arith.constant 0 : index
    %c0_32 = arith.constant 0 : index
    %c0_33 = arith.constant 0 : index
    %83 = vector.load %arg9[%c0_31, %c0_32, %c0_33] : memref<1x1x256xf32, #tpu.memory_space<vmem>>, vector<1x1x256xf32>
    %84 = vector.shape_cast %83 : vector<1x1x256xf32> to vector<1x256xf32>
    %85 = vector.broadcast %84 : vector<1x256xf32> to vector<32x256xf32>
    %86 = arith.addf %82, %85 : vector<32x256xf32>
    %87 = arith.addf %3, %86 : vector<32x256xf32>
    %c0_34 = arith.constant 0 : index
    %c0_35 = arith.constant 0 : index
    %c0_36 = arith.constant 0 : index
    %88 = vector.load %arg10[%c0_34, %c0_35, %c0_36] : memref<1x1x256xf32, #tpu.memory_space<vmem>>, vector<1x1x256xf32>
    %89 = vector.shape_cast %88 : vector<1x1x256xf32> to vector<1x256xf32>
    %c0_37 = arith.constant 0 : index
    %c0_38 = arith.constant 0 : index
    %c0_39 = arith.constant 0 : index
    %90 = vector.load %arg11[%c0_37, %c0_38, %c0_39] : memref<1x1x256xf32, #tpu.memory_space<vmem>>, vector<1x1x256xf32>
    %91 = vector.shape_cast %90 : vector<1x1x256xf32> to vector<1x256xf32>
    %cst_40 = arith.constant dense<0.000000e+00> : vector<32xf32>
    %92 = vector.multi_reduction <add>, %87, %cst_40 [1] : vector<32x256xf32> to vector<32xf32>
    %93 = vector.shape_cast %92 : vector<32xf32> to vector<32x1xf32>
    %cst_41 = arith.constant 2.560000e+02 : f32
    %94 = vector.broadcast %cst_41 : f32 to vector<32x1xf32>
    %95 = arith.divf %93, %94 : vector<32x1xf32>
    %96 = arith.mulf %87, %87 : vector<32x256xf32>
    %cst_42 = arith.constant dense<0.000000e+00> : vector<32xf32>
    %97 = vector.multi_reduction <add>, %96, %cst_42 [1] : vector<32x256xf32> to vector<32xf32>
    %98 = vector.shape_cast %97 : vector<32xf32> to vector<32x1xf32>
    %cst_43 = arith.constant 2.560000e+02 : f32
    %99 = vector.broadcast %cst_43 : f32 to vector<32x1xf32>
    %100 = arith.divf %98, %99 : vector<32x1xf32>
    %101 = vector.broadcast %95 : vector<32x1xf32> to vector<32x256xf32>
    %102 = arith.subf %87, %101 : vector<32x256xf32>
    %103 = arith.mulf %95, %95 : vector<32x1xf32>
    %104 = arith.subf %100, %103 : vector<32x1xf32>
    %cst_44 = arith.constant 9.99999974E-6 : f32
    %105 = vector.broadcast %cst_44 : f32 to vector<32x1xf32>
    %106 = arith.addf %104, %105 : vector<32x1xf32>
    %107 = math.rsqrt %106 : vector<32x1xf32>
    %108 = vector.broadcast %107 : vector<32x1xf32> to vector<32x256xf32>
    %109 = arith.mulf %102, %108 : vector<32x256xf32>
    %110 = vector.broadcast %89 : vector<1x256xf32> to vector<32x256xf32>
    %111 = arith.mulf %109, %110 : vector<32x256xf32>
    %112 = vector.broadcast %91 : vector<1x256xf32> to vector<32x256xf32>
    %113 = arith.addf %111, %112 : vector<32x256xf32>
    %114 = arith.truncf %113 : vector<32x256xf32> to vector<32x256xbf16>
    %c0_45 = arith.constant 0 : index
    %c0_46 = arith.constant 0 : index
    %c0_47 = arith.constant 0 : index
    %115 = vector.load %arg12[%c0_45, %c0_46, %c0_47] : memref<1x256x1024xbf16, #tpu.memory_space<vmem>>, vector<1x256x1024xbf16>
    %116 = vector.shape_cast %115 : vector<1x256x1024xbf16> to vector<256x1024xbf16>
    %cst_48 = arith.constant dense<0.000000e+00> : vector<32x1024xf32>
    %117 = tpu.matmul %114, %116, %cst_48 {dimension_numbers = #tpu.dot_dimension_numbers<[1], [0], [0], [1], [0, 0, 1, 1], [], []>} : vector<32x256xbf16>, vector<256x1024xbf16>, vector<32x1024xf32> -> vector<32x1024xf32>
    %c0_49 = arith.constant 0 : index
    %c0_50 = arith.constant 0 : index
    %c0_51 = arith.constant 0 : index
    %118 = vector.load %arg13[%c0_49, %c0_50, %c0_51] : memref<1x1x1024xf32, #tpu.memory_space<vmem>>, vector<1x1x1024xf32>
    %119 = vector.shape_cast %118 : vector<1x1x1024xf32> to vector<1x1024xf32>
    %120 = vector.broadcast %119 : vector<1x1024xf32> to vector<32x1024xf32>
    %121 = arith.addf %117, %120 : vector<32x1024xf32>
    %cst_52 = arith.constant 5.000000e-01 : f32
    %122 = vector.broadcast %cst_52 : f32 to vector<32x1024xf32>
    %123 = arith.mulf %122, %121 : vector<32x1024xf32>
    %cst_53 = arith.constant 4.471500e-02 : f32
    %124 = vector.broadcast %cst_53 : f32 to vector<32x1024xf32>
    %125 = arith.mulf %124, %121 : vector<32x1024xf32>
    %126 = arith.mulf %125, %121 : vector<32x1024xf32>
    %127 = arith.mulf %126, %121 : vector<32x1024xf32>
    %128 = arith.addf %121, %127 : vector<32x1024xf32>
    %cst_54 = arith.constant 0.797884583 : f32
    %129 = vector.broadcast %cst_54 : f32 to vector<32x1024xf32>
    %130 = arith.mulf %129, %128 : vector<32x1024xf32>
    %131 = math.tanh %130 : vector<32x1024xf32>
    %cst_55 = arith.constant 1.000000e+00 : f32
    %132 = vector.broadcast %cst_55 : f32 to vector<32x1024xf32>
    %133 = arith.addf %132, %131 : vector<32x1024xf32>
    %134 = arith.mulf %123, %133 : vector<32x1024xf32>
    %135 = arith.truncf %134 : vector<32x1024xf32> to vector<32x1024xbf16>
    %c0_56 = arith.constant 0 : index
    %c0_57 = arith.constant 0 : index
    %c0_58 = arith.constant 0 : index
    %136 = vector.load %arg14[%c0_56, %c0_57, %c0_58] : memref<1x1024x256xbf16, #tpu.memory_space<vmem>>, vector<1x1024x256xbf16>
    %137 = vector.shape_cast %136 : vector<1x1024x256xbf16> to vector<1024x256xbf16>
    %cst_59 = arith.constant dense<0.000000e+00> : vector<32x256xf32>
    %138 = tpu.matmul %135, %137, %cst_59 {dimension_numbers = #tpu.dot_dimension_numbers<[1], [0], [0], [1], [0, 0, 1, 1], [], []>} : vector<32x1024xbf16>, vector<1024x256xbf16>, vector<32x256xf32> -> vector<32x256xf32>
    %c0_60 = arith.constant 0 : index
    %c0_61 = arith.constant 0 : index
    %c0_62 = arith.constant 0 : index
    %139 = vector.load %arg15[%c0_60, %c0_61, %c0_62] : memref<1x1x256xf32, #tpu.memory_space<vmem>>, vector<1x1x256xf32>
    %140 = vector.shape_cast %139 : vector<1x1x256xf32> to vector<1x256xf32>
    %141 = vector.broadcast %140 : vector<1x256xf32> to vector<32x256xf32>
    %142 = arith.addf %138, %141 : vector<32x256xf32>
    %143 = arith.addf %87, %142 : vector<32x256xf32>
    %c0_63 = arith.constant 0 : index
    %c0_64 = arith.constant 0 : index
    %144 = vector.load %arg26[%c0_63, %c0_64] : memref<32x256xf32, #tpu.memory_space<vmem>>, vector<32x256xf32>
    tpu.vector_store %arg26[%c0_63, %c0_64], %143 {strides = array<i32>} : memref<32x256xf32, #tpu.memory_space<vmem>>, vector<32x256xf32>,
    %c1_i32 = arith.constant 1 : i32
    %145 = arith.cmpi eq, %arg0, %c1_i32 : i32
    %146 = arith.extui %145 : i1 to i32
    %c0_i32_65 = arith.constant 0 : i32
    %147 = arith.cmpi ne, %146, %c0_i32_65 : i32
    scf.if %147 {
      %c0_66 = arith.constant 0 : index
      %c0_67 = arith.constant 0 : index
      %148 = vector.load %arg16[%c0_66, %c0_67] : memref<1x256xf32, #tpu.memory_space<vmem>>, vector<1x256xf32>
      %c0_68 = arith.constant 0 : index
      %c0_69 = arith.constant 0 : index
      %149 = vector.load %arg17[%c0_68, %c0_69] : memref<1x256xf32, #tpu.memory_space<vmem>>, vector<1x256xf32>
      %cst_70 = arith.constant dense<0.000000e+00> : vector<32xf32>
      %150 = vector.multi_reduction <add>, %143, %cst_70 [1] : vector<32x256xf32> to vector<32xf32>
      %151 = vector.shape_cast %150 : vector<32xf32> to vector<32x1xf32>
      %cst_71 = arith.constant 2.560000e+02 : f32
      %152 = vector.broadcast %cst_71 : f32 to vector<32x1xf32>
      %153 = arith.divf %151, %152 : vector<32x1xf32>
      %154 = arith.mulf %143, %143 : vector<32x256xf32>
      %cst_72 = arith.constant dense<0.000000e+00> : vector<32xf32>
      %155 = vector.multi_reduction <add>, %154, %cst_72 [1] : vector<32x256xf32> to vector<32xf32>
      %156 = vector.shape_cast %155 : vector<32xf32> to vector<32x1xf32>
      %cst_73 = arith.constant 2.560000e+02 : f32
      %157 = vector.broadcast %cst_73 : f32 to vector<32x1xf32>
      %158 = arith.divf %156, %157 : vector<32x1xf32>
      %159 = vector.broadcast %153 : vector<32x1xf32> to vector<32x256xf32>
      %160 = arith.subf %143, %159 : vector<32x256xf32>
      %161 = arith.mulf %153, %153 : vector<32x1xf32>
      %162 = arith.subf %158, %161 : vector<32x1xf32>
      %cst_74 = arith.constant 9.99999974E-6 : f32
      %163 = vector.broadcast %cst_74 : f32 to vector<32x1xf32>
      %164 = arith.addf %162, %163 : vector<32x1xf32>
      %165 = math.rsqrt %164 : vector<32x1xf32>
      %166 = vector.broadcast %165 : vector<32x1xf32> to vector<32x256xf32>
      %167 = arith.mulf %160, %166 : vector<32x256xf32>
      %168 = vector.broadcast %148 : vector<1x256xf32> to vector<32x256xf32>
      %169 = arith.mulf %167, %168 : vector<32x256xf32>
      %170 = vector.broadcast %149 : vector<1x256xf32> to vector<32x256xf32>
      %171 = arith.addf %169, %170 : vector<32x256xf32>
      %172 = arith.truncf %171 : vector<32x256xf32> to vector<32x256xbf16>
      %c0_75 = arith.constant 0 : index
      %c0_76 = arith.constant 0 : index
      %173 = vector.load %arg19[%c0_75, %c0_76] : memref<256x256xbf16, #tpu.memory_space<vmem>>, vector<256x256xbf16>
      %cst_77 = arith.constant dense<0.000000e+00> : vector<32x256xf32>
      %174 = tpu.matmul %172, %173, %cst_77 {dimension_numbers = #tpu.dot_dimension_numbers<[1], [0], [0], [1], [0, 0, 1, 1], [], []>} : vector<32x256xbf16>, vector<256x256xbf16>, vector<32x256xf32> -> vector<32x256xf32>
      %c0_78 = arith.constant 0 : index
      %c0_79 = arith.constant 0 : index
      %175 = vector.load %arg20[%c0_78, %c0_79] : memref<1x256xf32, #tpu.memory_space<vmem>>, vector<1x256xf32>
      %176 = vector.broadcast %175 : vector<1x256xf32> to vector<32x256xf32>
      %177 = arith.addf %174, %176 : vector<32x256xf32>
      %c0_80 = arith.constant 0 : index
      %c0_81 = arith.constant 0 : index
      %178 = vector.load %arg21[%c0_80, %c0_81] : memref<256x256xbf16, #tpu.memory_space<vmem>>, vector<256x256xbf16>
      %cst_82 = arith.constant dense<0.000000e+00> : vector<32x256xf32>
      %179 = tpu.matmul %172, %178, %cst_82 {dimension_numbers = #tpu.dot_dimension_numbers<[1], [0], [0], [1], [0, 0, 1, 1], [], []>} : vector<32x256xbf16>, vector<256x256xbf16>, vector<32x256xf32> -> vector<32x256xf32>
      %c0_83 = arith.constant 0 : index
      %c0_84 = arith.constant 0 : index
      %180 = vector.load %arg22[%c0_83, %c0_84] : memref<1x256xf32, #tpu.memory_space<vmem>>, vector<1x256xf32>
      %181 = vector.broadcast %180 : vector<1x256xf32> to vector<32x256xf32>
      %182 = arith.addf %179, %181 : vector<32x256xf32>
      %183 = vector.shape_cast %177 : vector<32x256xf32> to vector<2x16x256xf32>
      %184 = vector.shape_cast %182 : vector<32x256xf32> to vector<2x16x256xf32>
      %c0_85 = arith.constant 0 : index
      %c0_86 = arith.constant 0 : index
      %185 = vector.load %arg18[%c0_85, %c0_86] : memref<1x256xf32, #tpu.memory_space<vmem>>, vector<1x128xf32>
      %186 = arith.truncf %185 : vector<1x128xf32> to vector<1x128xbf16>
      %187 = vector.shape_cast %186 : vector<1x128xbf16> to vector<1x1x128xbf16>
      %188 = vector.shape_cast %187 : vector<1x1x128xbf16> to vector<1x1x128xbf16>
      %189 = vector.broadcast %188 : vector<1x1x128xbf16> to vector<2x1x128xbf16>
      %190 = vector.extract_strided_slice %183 {offsets = [0, 0, 0], sizes = [2, 16, 128], strides = [1, 1, 1]} : vector<2x16x256xf32> to vector<2x16x128xf32>
      %191 = arith.truncf %190 : vector<2x16x128xf32> to vector<2x16x128xbf16>
      %192 = vector.extract_strided_slice %184 {offsets = [0, 0, 0], sizes = [2, 16, 128], strides = [1, 1, 1]} : vector<2x16x256xf32> to vector<2x16x128xf32>
      %193 = arith.truncf %192 : vector<2x16x128xf32> to vector<2x16x128xbf16>
      "tpu.trace_start"() <{level = 10 : i32, message = "bqd,bkd->bqk"}> : () -> ()
      %cst_87 = arith.constant dense<0.000000e+00> : vector<2x1x16xf32>
      %194 = tpu.matmul %189, %191, %cst_87 {dimension_numbers = #tpu.dot_dimension_numbers<[2], [2], [1], [1], [0, 0, 0, 1, 1, 1], [0], [0]>} : vector<2x1x128xbf16>, vector<2x16x128xbf16>, vector<2x1x16xf32> -> vector<2x1x16xf32>
      "tpu.trace_stop"() : () -> ()
      %cst_88 = arith.constant dense<0xFF800000> : vector<2x1xf32>
      %195 = vector.multi_reduction <maximumf>, %194, %cst_88 [2] : vector<2x1x16xf32> to vector<2x1xf32>
      %196 = vector.shape_cast %195 : vector<2x1xf32> to vector<2x1x1xf32>
      %197 = vector.broadcast %196 : vector<2x1x1xf32> to vector<2x1x16xf32>
      %198 = arith.subf %194, %197 : vector<2x1x16xf32>
      %199 = math.exp %198 : vector<2x1x16xf32>
      %cst_89 = arith.constant dense<0.000000e+00> : vector<2x1xf32>
      %200 = vector.multi_reduction <add>, %199, %cst_89 [2] : vector<2x1x16xf32> to vector<2x1xf32>
      %201 = vector.shape_cast %200 : vector<2x1xf32> to vector<2x1x1xf32>
      %202 = tpu.reciprocal %201 {approx = true} : vector<2x1x1xf32> -> vector<2x1x1xf32>
      %203 = vector.broadcast %202 : vector<2x1x1xf32> to vector<2x1x16xf32>
      %204 = arith.mulf %199, %203 : vector<2x1x16xf32>
      %205 = arith.truncf %204 : vector<2x1x16xf32> to vector<2x1x16xbf16>
      "tpu.trace_start"() <{level = 10 : i32, message = "bqk,bkd->bqd"}> : () -> ()
      %cst_90 = arith.constant dense<0.000000e+00> : vector<2x1x128xf32>
      %206 = tpu.matmul %205, %193, %cst_90 {dimension_numbers = #tpu.dot_dimension_numbers<[2], [1], [1], [2], [0, 0, 0, 1, 1, 2], [0], [0]>} : vector<2x1x16xbf16>, vector<2x16x128xbf16>, vector<2x1x128xf32> -> vector<2x1x128xf32>
      "tpu.trace_stop"() : () -> ()
      %c0_91 = arith.constant 0 : index
      %c128 = arith.constant 128 : index
      %207 = vector.load %arg18[%c0_91, %c128] : memref<1x256xf32, #tpu.memory_space<vmem>>, vector<1x128xf32>
      %208 = arith.truncf %207 : vector<1x128xf32> to vector<1x128xbf16>
      %209 = vector.shape_cast %208 : vector<1x128xbf16> to vector<1x1x128xbf16>
      %210 = vector.shape_cast %209 : vector<1x1x128xbf16> to vector<1x1x128xbf16>
      %211 = vector.broadcast %210 : vector<1x1x128xbf16> to vector<2x1x128xbf16>
      %212 = vector.extract_strided_slice %183 {offsets = [0, 0, 128], sizes = [2, 16, 128], strides = [1, 1, 1]} : vector<2x16x256xf32> to vector<2x16x128xf32>
      %213 = arith.truncf %212 : vector<2x16x128xf32> to vector<2x16x128xbf16>
      %214 = vector.extract_strided_slice %184 {offsets = [0, 0, 128], sizes = [2, 16, 128], strides = [1, 1, 1]} : vector<2x16x256xf32> to vector<2x16x128xf32>
      %215 = arith.truncf %214 : vector<2x16x128xf32> to vector<2x16x128xbf16>
      "tpu.trace_start"() <{level = 10 : i32, message = "bqd,bkd->bqk"}> : () -> ()
      %cst_92 = arith.constant dense<0.000000e+00> : vector<2x1x16xf32>
      %216 = tpu.matmul %211, %213, %cst_92 {dimension_numbers = #tpu.dot_dimension_numbers<[2], [2], [1], [1], [0, 0, 0, 1, 1, 1], [0], [0]>} : vector<2x1x128xbf16>, vector<2x16x128xbf16>, vector<2x1x16xf32> -> vector<2x1x16xf32>
      "tpu.trace_stop"() : () -> ()
      %cst_93 = arith.constant dense<0xFF800000> : vector<2x1xf32>
      %217 = vector.multi_reduction <maximumf>, %216, %cst_93 [2] : vector<2x1x16xf32> to vector<2x1xf32>
      %218 = vector.shape_cast %217 : vector<2x1xf32> to vector<2x1x1xf32>
      %219 = vector.broadcast %218 : vector<2x1x1xf32> to vector<2x1x16xf32>
      %220 = arith.subf %216, %219 : vector<2x1x16xf32>
      %221 = math.exp %220 : vector<2x1x16xf32>
      %cst_94 = arith.constant dense<0.000000e+00> : vector<2x1xf32>
      %222 = vector.multi_reduction <add>, %221, %cst_94 [2] : vector<2x1x16xf32> to vector<2x1xf32>
      %223 = vector.shape_cast %222 : vector<2x1xf32> to vector<2x1x1xf32>
      %224 = tpu.reciprocal %223 {approx = true} : vector<2x1x1xf32> -> vector<2x1x1xf32>
      %225 = vector.broadcast %224 : vector<2x1x1xf32> to vector<2x1x16xf32>
      %226 = arith.mulf %221, %225 : vector<2x1x16xf32>
      %227 = arith.truncf %226 : vector<2x1x16xf32> to vector<2x1x16xbf16>
      "tpu.trace_start"() <{level = 10 : i32, message = "bqk,bkd->bqd"}> : () -> ()
      %cst_95 = arith.constant dense<0.000000e+00> : vector<2x1x128xf32>
      %228 = tpu.matmul %227, %215, %cst_95 {dimension_numbers = #tpu.dot_dimension_numbers<[2], [1], [1], [2], [0, 0, 0, 1, 1, 2], [0], [0]>} : vector<2x1x16xbf16>, vector<2x16x128xbf16>, vector<2x1x128xf32> -> vector<2x1x128xf32>
      "tpu.trace_stop"() : () -> ()
      %229 = tpu.concatenate %206, %228 in 2 : vector<2x1x128xf32>, vector<2x1x128xf32> -> vector<2x1x256xf32>
      %230 = arith.truncf %229 : vector<2x1x256xf32> to vector<2x1x256xbf16>
      %c0_96 = arith.constant 0 : index
      %c0_97 = arith.constant 0 : index
      %231 = vector.load %arg23[%c0_96, %c0_97] : memref<256x128xbf16, #tpu.memory_space<vmem>>, vector<256x128xbf16>
      "tpu.trace_start"() <{level = 10 : i32, message = "bqd,dc->bqc"}> : () -> ()
      %cst_98 = arith.constant dense<0.000000e+00> : vector<2x1x128xf32>
      %232 = tpu.matmul %230, %231, %cst_98 {dimension_numbers = #tpu.dot_dimension_numbers<[2], [0], [0, 1], [1], [0, 0, 0, 1, 1, 1], [], []>} : vector<2x1x256xbf16>, vector<256x128xbf16>, vector<2x1x128xf32> -> vector<2x1x128xf32>
      "tpu.trace_stop"() : () -> ()
      %c0_99 = arith.constant 0 : index
      %c0_100 = arith.constant 0 : index
      %233 = vector.load %arg24[%c0_99, %c0_100] : memref<1x128xf32, #tpu.memory_space<vmem>>, vector<1x128xf32>
      %234 = vector.shape_cast %233 : vector<1x128xf32> to vector<1x1x128xf32>
      %235 = vector.broadcast %234 : vector<1x1x128xf32> to vector<2x1x128xf32>
      %236 = arith.addf %232, %235 : vector<2x1x128xf32>
      %c0_101 = arith.constant 0 : index
      %c0_102 = arith.constant 0 : index
      %c0_103 = arith.constant 0 : index
      %237 = vector.load %arg25[%c0_101, %c0_102, %c0_103] : memref<2x1x128xf32, #tpu.memory_space<vmem>>, vector<2x1x128xf32>
      tpu.vector_store %arg25[%c0_101, %c0_102, %c0_103], %236 {strides = array<i32>} : memref<2x1x128xf32, #tpu.memory_space<vmem>>, vector<2x1x128xf32>,
    } else {
    }
    return
  }
  func.func @transform_0(%arg0: i32) -> (i32, i32) {
    %c0_i32 = arith.constant 0 : i32
    %c0_i32_0 = arith.constant 0 : i32
    %c0_i32_1 = arith.constant 0 : i32
    return %c0_i32, %c0_i32_0 : i32, i32
  }
  func.func @transform_1(%arg0: i32) -> (i32, i32) {
    %c0_i32 = arith.constant 0 : i32
    %c0_i32_0 = arith.constant 0 : i32
    %c0_i32_1 = arith.constant 0 : i32
    return %c0_i32, %c0_i32_0 : i32, i32
  }
  func.func @transform_2(%arg0: i32) -> (i32, i32) {
    %c0_i32 = arith.constant 0 : i32
    %c0_i32_0 = arith.constant 0 : i32
    %c0_i32_1 = arith.constant 0 : i32
    return %c0_i32, %c0_i32_0 : i32, i32
  }
  func.func @transform_3(%arg0: i32) -> (i32, i32, i32) {
    %c0_i32 = arith.constant 0 : i32
    %c0_i32_0 = arith.constant 0 : i32
    %c0_i32_1 = arith.constant 0 : i32
    return %arg0, %c0_i32, %c0_i32_0 : i32, i32, i32
  }
  func.func @transform_4(%arg0: i32) -> (i32, i32, i32) {
    %c0_i32 = arith.constant 0 : i32
    %c0_i32_0 = arith.constant 0 : i32
    %c0_i32_1 = arith.constant 0 : i32
    return %arg0, %c0_i32, %c0_i32_0 : i32, i32, i32
  }
  func.func @transform_5(%arg0: i32) -> (i32, i32, i32) {
    %c0_i32 = arith.constant 0 : i32
    %c0_i32_0 = arith.constant 0 : i32
    %c0_i32_1 = arith.constant 0 : i32
    return %arg0, %c0_i32, %c0_i32_0 : i32, i32, i32
  }
  func.func @transform_6(%arg0: i32) -> (i32, i32, i32) {
    %c0_i32 = arith.constant 0 : i32
    %c0_i32_0 = arith.constant 0 : i32
    %c0_i32_1 = arith.constant 0 : i32
    return %arg0, %c0_i32, %c0_i32_0 : i32, i32, i32
  }
  func.func @transform_7(%arg0: i32) -> (i32, i32, i32) {
    %c0_i32 = arith.constant 0 : i32
    %c0_i32_0 = arith.constant 0 : i32
    %c0_i32_1 = arith.constant 0 : i32
    return %arg0, %c0_i32, %c0_i32_0 : i32, i32, i32
  }
  func.func @transform_8(%arg0: i32) -> (i32, i32, i32) {
    %c0_i32 = arith.constant 0 : i32
    %c0_i32_0 = arith.constant 0 : i32
    %c0_i32_1 = arith.constant 0 : i32
    return %arg0, %c0_i32, %c0_i32_0 : i32, i32, i32
  }
  func.func @transform_9(%arg0: i32) -> (i32, i32, i32) {
    %c0_i32 = arith.constant 0 : i32
    %c0_i32_0 = arith.constant 0 : i32
    %c0_i32_1 = arith.constant 0 : i32
    return %arg0, %c0_i32, %c0_i32_0 : i32, i32, i32
  }
  func.func @transform_10(%arg0: i32) -> (i32, i32, i32) {
    %c0_i32 = arith.constant 0 : i32
    %c0_i32_0 = arith.constant 0 : i32
    %c0_i32_1 = arith.constant 0 : i32
    return %arg0, %c0_i32, %c0_i32_0 : i32, i32, i32
  }
  func.func @transform_11(%arg0: i32) -> (i32, i32, i32) {
    %c0_i32 = arith.constant 0 : i32
    %c0_i32_0 = arith.constant 0 : i32
    %c0_i32_1 = arith.constant 0 : i32
    return %arg0, %c0_i32, %c0_i32_0 : i32, i32, i32
  }
  func.func @transform_12(%arg0: i32) -> (i32, i32, i32) {
    %c0_i32 = arith.constant 0 : i32
    %c0_i32_0 = arith.constant 0 : i32
    %c0_i32_1 = arith.constant 0 : i32
    return %arg0, %c0_i32, %c0_i32_0 : i32, i32, i32
  }
  func.func @transform_13(%arg0: i32) -> (i32, i32, i32) {
    %c0_i32 = arith.constant 0 : i32
    %c0_i32_0 = arith.constant 0 : i32
    %c0_i32_1 = arith.constant 0 : i32
    return %arg0, %c0_i32, %c0_i32_0 : i32, i32, i32
  }
  func.func @transform_14(%arg0: i32) -> (i32, i32, i32) {
    %c0_i32 = arith.constant 0 : i32
    %c0_i32_0 = arith.constant 0 : i32
    %c0_i32_1 = arith.constant 0 : i32
    return %arg0, %c0_i32, %c0_i32_0 : i32, i32, i32
  }
  func.func @transform_15(%arg0: i32) -> (i32, i32) {
    %c0_i32 = arith.constant 0 : i32
    %c0_i32_0 = arith.constant 0 : i32
    %c0_i32_1 = arith.constant 0 : i32
    return %c0_i32, %c0_i32_0 : i32, i32
  }
  func.func @transform_16(%arg0: i32) -> (i32, i32) {
    %c0_i32 = arith.constant 0 : i32
    %c0_i32_0 = arith.constant 0 : i32
    %c0_i32_1 = arith.constant 0 : i32
    return %c0_i32, %c0_i32_0 : i32, i32
  }
  func.func @transform_17(%arg0: i32) -> (i32, i32) {
    %c0_i32 = arith.constant 0 : i32
    %c0_i32_0 = arith.constant 0 : i32
    %c0_i32_1 = arith.constant 0 : i32
    return %c0_i32, %c0_i32_0 : i32, i32
  }
  func.func @transform_18(%arg0: i32) -> (i32, i32) {
    %c0_i32 = arith.constant 0 : i32
    %c0_i32_0 = arith.constant 0 : i32
    %c0_i32_1 = arith.constant 0 : i32
    return %c0_i32, %c0_i32_0 : i32, i32
  }
  func.func @transform_19(%arg0: i32) -> (i32, i32) {
    %c0_i32 = arith.constant 0 : i32
    %c0_i32_0 = arith.constant 0 : i32
    %c0_i32_1 = arith.constant 0 : i32
    return %c0_i32, %c0_i32_0 : i32, i32
  }
  func.func @transform_20(%arg0: i32) -> (i32, i32) {
    %c0_i32 = arith.constant 0 : i32
    %c0_i32_0 = arith.constant 0 : i32
    %c0_i32_1 = arith.constant 0 : i32
    return %c0_i32, %c0_i32_0 : i32, i32
  }
  func.func @transform_21(%arg0: i32) -> (i32, i32) {
    %c0_i32 = arith.constant 0 : i32
    %c0_i32_0 = arith.constant 0 : i32
    %c0_i32_1 = arith.constant 0 : i32
    return %c0_i32, %c0_i32_0 : i32, i32
  }
  func.func @transform_22(%arg0: i32) -> (i32, i32) {
    %c0_i32 = arith.constant 0 : i32
    %c0_i32_0 = arith.constant 0 : i32
    %c0_i32_1 = arith.constant 0 : i32
    return %c0_i32, %c0_i32_0 : i32, i32
  }
  func.func @transform_23(%arg0: i32) -> (i32, i32) {
    %c0_i32 = arith.constant 0 : i32
    %c0_i32_0 = arith.constant 0 : i32
    %c0_i32_1 = arith.constant 0 : i32
    return %c0_i32, %c0_i32_0 : i32, i32
  }
  func.func @transform_24(%arg0: i32) -> (i32, i32, i32) {
    %c0_i32 = arith.constant 0 : i32
    %c0_i32_0 = arith.constant 0 : i32
    %c0_i32_1 = arith.constant 0 : i32
    %c0_i32_2 = arith.constant 0 : i32
    return %c0_i32, %c0_i32_0, %c0_i32_1 : i32, i32, i32
  }
}

</mosaic_0001>

<llo_original>
// kernel: tpu_custom_call.1
$region0: #{tpu_custom_call.1}
  #allocation0 [shape = 'u32[]', space=smem, size = 0x4, offset = 0x4, fixed_abs, tag = 'smem constant byte address 0x4 - core index']
  #allocation1 [shape = 'u32[144,128]{1,0:T(1,128)}', space=vmem, size = 0x12000, scoped, tag = 'internal scratch']
  #allocation2 [shape = 'f32[32,256]{1,0:T(8,128)}', space=vmem, size = 0x8000, scoped, tag = 'scratch operand']
  %s0 = inlined_call_operand.hbm [shape: f32[32,48], index: 0, kind: input, shape index: {}]
  %s1 = inlined_call_operand.hbm [shape: bf16[48,256], index: 1, kind: input, shape index: {}]
  %s2 = inlined_call_operand.hbm [shape: f32[32,256], index: 2, kind: input, shape index: {}]
  %s3 = inlined_call_operand.hbm [shape: f32[2,1,256], index: 3, kind: input, shape index: {}]
  %s4 = inlined_call_operand.hbm [shape: f32[2,1,256], index: 4, kind: input, shape index: {}]
  %s5 = inlined_call_operand.hbm [shape: bf16[2,256,768], index: 5, kind: input, shape index: {}]
  %s6 = inlined_call_operand.hbm [shape: f32[2,1,768], index: 6, kind: input, shape index: {}]
  %s7 = inlined_call_operand.hbm [shape: bf16[2,256,256], index: 7, kind: input, shape index: {}]
  %s8 = inlined_call_operand.hbm [shape: f32[2,1,256], index: 8, kind: input, shape index: {}]
  %s9 = inlined_call_operand.hbm [shape: f32[2,1,256], index: 9, kind: input, shape index: {}]
  %s10 = inlined_call_operand.hbm [shape: f32[2,1,256], index: 10, kind: input, shape index: {}]
  %s11 = inlined_call_operand.hbm [shape: bf16[2,256,1024], index: 11, kind: input, shape index: {}]
  %s12 = inlined_call_operand.hbm [shape: f32[2,1,1024], index: 12, kind: input, shape index: {}]
  %s13 = inlined_call_operand.hbm [shape: bf16[2,1024,256], index: 13, kind: input, shape index: {}]
  %s14 = inlined_call_operand.hbm [shape: f32[2,1,256], index: 14, kind: input, shape index: {}]
  %s15 = inlined_call_operand.hbm [shape: f32[1,256], index: 15, kind: input, shape index: {}]
  %s16 = inlined_call_operand.hbm [shape: f32[1,256], index: 16, kind: input, shape index: {}]
  %s17 = inlined_call_operand.hbm [shape: f32[1,256], index: 17, kind: input, shape index: {}]
  %s18 = inlined_call_operand.hbm [shape: bf16[256,256], index: 18, kind: input, shape index: {}]
  %s19 = inlined_call_operand.hbm [shape: f32[1,256], index: 19, kind: input, shape index: {}]
  %s20 = inlined_call_operand.hbm [shape: bf16[256,256], index: 20, kind: input, shape index: {}]
  %s21 = inlined_call_operand.hbm [shape: f32[1,256], index: 21, kind: input, shape index: {}]
  %s22 = inlined_call_operand.hbm [shape: bf16[256,128], index: 22, kind: input, shape index: {}]
  %s23 = inlined_call_operand.hbm [shape: f32[1,128], index: 23, kind: input, shape index: {}]
  %s24 = inlined_call_operand.hbm [shape: f32[2,1,128], index: 24, kind: output, shape index: {}]
  %s25 = sld [smem:[#allocation0]]
  $region233: #{tpu_custom_call.1} parent=0
    _
  %s27 = ssub.s32 1, %s25
  %s28 = scalar_select 0, %s27, %s25
  $region1: #{tpu_custom_call.1} parent=0
    #allocation3 [shape = 'u8[16384]{0}', space=vmem, size = 0x4000, scoped, tag = 'input window, operand 0, single buffered']
    #allocation4 [shape = 's32[2]{0}', space=sflag, size = 0x8, scoped, tag = 'scoped memory for tpu_custom_call.1']
    #allocation5 [shape = 's32[2]{0}', space=sflag, size = 0x8, scoped, tag = 'scoped memory for tpu_custom_call.1']
    #allocation6 [shape = 'u8[24576]{0}', space=vmem, size = 0x6000, scoped, tag = 'input window, operand 1, single buffered']
    #allocation7 [shape = 's32[1]{0}', space=sflag, size = 0x4, scoped, tag = 'scoped memory for tpu_custom_call.1']
    #allocation8 [shape = 'u8[32768]{0}', space=vmem, size = 0x8000, scoped, tag = 'input window, operand 2, single buffered']
    #allocation9 [shape = 'u8[2048]{0}', space=vmem, size = 0x800, scoped, tag = 'input window, operand 3']
    #allocation10 [shape = 's32[2]{0}', space=sflag, size = 0x8, scoped, tag = 'scoped memory for tpu_custom_call.1']
    #allocation11 [shape = 'u8[2048]{0}', space=vmem, size = 0x800, scoped, tag = 'input window, operand 4']
    #allocation12 [shape = 'u8[786432]{0}', space=vmem, size = 0xc0000, scoped, tag = 'input window, operand 5']
    #allocation13 [shape = 's32[2]{0}', space=sflag, size = 0x8, scoped, tag = 'scoped memory for tpu_custom_call.1']
    #allocation14 [shape = 'u8[6144]{0}', space=vmem, size = 0x1800, scoped, tag = 'input window, operand 6']
    #allocation15 [shape = 'u8[262144]{0}', space=vmem, size = 0x40000, scoped, tag = 'input window, operand 7']
    #allocation16 [shape = 's32[2]{0}', space=sflag, size = 0x8, scoped, tag = 'scoped memory for tpu_custom_call.1']
    #allocation17 [shape = 'u8[2048]{0}', space=vmem, size = 0x800, scoped, tag = 'input window, operand 8']
    #allocation18 [shape = 'u8[2048]{0}', space=vmem, size = 0x800, scoped, tag = 'input window, operand 9']
    #allocation19 [shape = 's32[2]{0}', space=sflag, size = 0x8, scoped, tag = 'scoped memory for tpu_custom_call.1']
    #allocation20 [shape = 'u8[2048]{0}', space=vmem, size = 0x800, scoped, tag = 'input window, operand 10']
    #allocation21 [shape = 'u8[1048576]{0}', space=vmem, size = 0x100000, scoped, tag = 'input window, operand 11']
    #allocation22 [shape = 's32[2]{0}', space=sflag, size = 0x8, scoped, tag = 'scoped memory for tpu_custom_call.1']
    #allocation23 [shape = 'u8[8192]{0}', space=vmem, size = 0x2000, scoped, tag = 'input window, operand 12']
    #allocation24 [shape = 'u8[1048576]{0}', space=vmem, size = 0x100000, scoped, tag = 'input window, operand 13']
    #allocation25 [shape = 's32[2]{0}', space=sflag, size = 0x8, scoped, tag = 'scoped memory for tpu_custom_call.1']
    #allocation26 [shape = 'u8[2048]{0}', space=vmem, size = 0x800, scoped, tag = 'input window, operand 14']
    #allocation27 [shape = 'u8[1024]{0}', space=vmem, size = 0x400, scoped, tag = 'input window, operand 15, single buffered']
    #allocation28 [shape = 's32[1]{0}', space=sflag, size = 0x4, scoped, tag = 'scoped memory for tpu_custom_call.1']
    #allocation29 [shape = 'u8[1024]{0}', space=vmem, size = 0x400, scoped, tag = 'input window, operand 16, single buffered']
    #allocation30 [shape = 'u8[1024]{0}', space=vmem, size = 0x400, scoped, tag = 'input window, operand 17, single buffered']
    #allocation31 [shape = 's32[1]{0}', space=sflag, size = 0x4, scoped, tag = 'scoped memory for tpu_custom_call.1']
    #allocation32 [shape = 'u8[131072]{0}', space=vmem, size = 0x20000, scoped, tag = 'input window, operand 18, single buffered']
    #allocation33 [shape = 'u8[1024]{0}', space=vmem, size = 0x400, scoped, tag = 'input window, operand 19, single buffered']
    #allocation34 [shape = 's32[1]{0}', space=sflag, size = 0x4, scoped, tag = 'scoped memory for tpu_custom_call.1']
    #allocation35 [shape = 'u8[131072]{0}', space=vmem, size = 0x20000, scoped, tag = 'input window, operand 20, single buffered']
    #allocation36 [shape = 'u8[1024]{0}', space=vmem, size = 0x400, scoped, tag = 'input window, operand 21, single buffered']
    #allocation37 [shape = 's32[1]{0}', space=sflag, size = 0x4, scoped, tag = 'scoped memory for tpu_custom_call.1']
    #allocation38 [shape = 'u8[65536]{0}', space=vmem, size = 0x10000, scoped, tag = 'input window, operand 22, single buffered']
    #allocation39 [shape = 'u8[512]{0}', space=vmem, size = 0x400, scoped, tag = 'input window, operand 23, single buffered']
    #allocation40 [shape = 's32[1]{0}', space=sflag, size = 0x4, scoped, tag = 'scoped memory for tpu_custom_call.1']
    #allocation41 [shape = 'u8[1024]{0}', space=vmem, size = 0x400, scoped, tag = 'output window, operand 0, single buffered']
    %29 = vsyncpa [#allocation4], 0
    %30 = vsyncpa [#allocation7], 0
    %31 = vsyncpa [#allocation10], 0
    %s32 = scalar_lea.sflag [#allocation10], 1
    %33 = vsyncpa %s32, 0
    %34 = vsyncpa [#allocation13], 0
    %s35 = scalar_lea.sflag [#allocation13], 1
    %36 = vsyncpa %s35, 0
    %37 = vsyncpa [#allocation16], 0
    %s38 = scalar_lea.sflag [#allocation16], 1
    %39 = vsyncpa %s38, 0
    %40 = vsyncpa [#allocation19], 0
    %s41 = scalar_lea.sflag [#allocation19], 1
    %42 = vsyncpa %s41, 0
    %43 = vsyncpa [#allocation22], 0
    %s44 = scalar_lea.sflag [#allocation22], 1
    %45 = vsyncpa %s44, 0
    %46 = vsyncpa [#allocation25], 0
    %s47 = scalar_lea.sflag [#allocation25], 1
    %48 = vsyncpa %s47, 0
    %49 = vsyncpa [#allocation28], 0
    %50 = vsyncpa [#allocation31], 0
    %51 = vsyncpa [#allocation34], 0
    %52 = vsyncpa [#allocation37], 0
    %53 = vsyncpa [#allocation40], 0
    %54 = vsyncpa [#allocation5], 0
    loop: start=0, step=1, limit=4
    $region2: #{tpu_custom_call.1} parent=1 // loop_pre_header
      _
    $region3: #{tpu_custom_call.1} parent=1 // loop_header
      %s56 = sphi 0, %s60
      %p57 = scmp.ge.s32.totalorder %s56, 4
      %s64 = sphi 0, %s64
      %s66 = sphi 0, %s64
      %s67 = sphi 0, %s66
      %s81 = sphi 0, %s67
      %s85 = sphi 0, %s85
      %s87 = sphi 0, %s85
      %s88 = sphi 0, %s87
      %s102 = sphi 0, %s88
      %s106 = sphi 0, %s106
      %s108 = sphi 0, %s106
      %s109 = sphi 0, %s108
      %s123 = sphi 0, %s109
      %s129 = sphi 0, %s131
      %s132 = sphi 0, %s129
      %s133 = sphi 0, %s132
      %s149 = sphi 0, %s133
      %s155 = sphi 0, %s157
      %s158 = sphi 0, %s155
      %s159 = sphi 0, %s158
      %s175 = sphi 0, %s159
      %s181 = sphi 0, %s183
      %s184 = sphi 0, %s181
      %s185 = sphi 0, %s184
      %s201 = sphi 0, %s185
      %s207 = sphi 0, %s209
      %s210 = sphi 0, %s207
      %s211 = sphi 0, %s210
      %s227 = sphi 0, %s211
      %s233 = sphi 0, %s235
      %s236 = sphi 0, %s233
      %s237 = sphi 0, %s236
      %s253 = sphi 0, %s237
      %s259 = sphi 0, %s261
      %s262 = sphi 0, %s259
      %s263 = sphi 0, %s262
      %s279 = sphi 0, %s263
      %s285 = sphi 0, %s287
      %s288 = sphi 0, %s285
      %s289 = sphi 0, %s288
      %s305 = sphi 0, %s289
      %s311 = sphi 0, %s313
      %s314 = sphi 0, %s311
      %s315 = sphi 0, %s314
      %s331 = sphi 0, %s315
      %s337 = sphi 0, %s339
      %s340 = sphi 0, %s337
      %s341 = sphi 0, %s340
      %s357 = sphi 0, %s341
      %s363 = sphi 0, %s365
      %s366 = sphi 0, %s363
      %s367 = sphi 0, %s366
      %s383 = sphi 0, %s367
      %s389 = sphi 0, %s391
      %s392 = sphi 0, %s389
      %s393 = sphi 0, %s392
      %s409 = sphi 0, %s393
      %s415 = sphi 0, %s417
      %s418 = sphi 0, %s415
      %s419 = sphi 0, %s418
      %s435 = sphi 0, %s419
      %s439 = sphi 0, %s439
      %s441 = sphi 0, %s439
      %s442 = sphi 0, %s441
      %s456 = sphi 0, %s442
      %s460 = sphi 0, %s460
      %s462 = sphi 0, %s460
      %s463 = sphi 0, %s462
      %s477 = sphi 0, %s463
      %s481 = sphi 0, %s481
      %s483 = sphi 0, %s481
      %s484 = sphi 0, %s483
      %s498 = sphi 0, %s484
      %s502 = sphi 0, %s502
      %s504 = sphi 0, %s502
      %s505 = sphi 0, %s504
      %s519 = sphi 0, %s505
      %s523 = sphi 0, %s523
      %s525 = sphi 0, %s523
      %s526 = sphi 0, %s525
      %s540 = sphi 0, %s526
      %s544 = sphi 0, %s544
      %s546 = sphi 0, %s544
      %s547 = sphi 0, %s546
      %s561 = sphi 0, %s547
      %s565 = sphi 0, %s565
      %s567 = sphi 0, %s565
      %s568 = sphi 0, %s567
      %s582 = sphi 0, %s568
      %s586 = sphi 0, %s586
      %s588 = sphi 0, %s586
      %s589 = sphi 0, %s588
      %s603 = sphi 0, %s589
      %s607 = sphi 0, %s607
      %s609 = sphi 0, %s607
      %s610 = sphi 0, %s609
      %s624 = sphi 0, %s610
      %s628 = sphi 0, %s628
      %s630 = sphi 0, %s628
      %s631 = sphi 0, %s630
      %s645 = sphi 0, %s631
    $region4: #{tpu_custom_call.1} parent=1 // loop_header_branch
      %59 = sbr.rel (%p57) target = $region8
    $region5: #{tpu_custom_call.1} parent=1 // loop_body
      %s61 = ssub.s32 %s56, 1
      %s62 = ssub.s32 %s56, 2
      %s63 = sadd.s32 %s56, 1
      %s65 = sadd.s32 %s64, 1
      %p68 = scmp.eq.s32.totalorder %s56, 1
      %p69 = scmp.ne.s32.totalorder %s64, %s66
      %p70 = scmp.eq.s32.totalorder %s56, 0
      %p71 = por %p69, %p70
      %p72 = scmp.ne.s32.totalorder %s64, %s66
      %p73 = scmp.eq.s32.totalorder %s61, 1
      %p74 = por %p72, %p73
      %p75 = scmp.ne.s32.totalorder %s66, %s67
      %p76 = scmp.eq.s32.totalorder %s61, 0
      %p77 = por %p75, %p76
      %p78 = scmp.ne.s32.totalorder %s66, %s67
      %p79 = scmp.eq.s32.totalorder %s62, 1
      %p80 = por %p78, %p79
      %p82 = scmp.ne.s32.totalorder %s67, %s81
      %p83 = scmp.eq.s32.totalorder %s62, 0
      %p84 = por %p82, %p83
      %s86 = sadd.s32 %s85, 1
      %p89 = scmp.eq.s32.totalorder %s56, 1
      %p90 = scmp.ne.s32.totalorder %s85, %s87
      %p91 = scmp.eq.s32.totalorder %s56, 0
      %p92 = por %p90, %p91
      %p93 = scmp.ne.s32.totalorder %s85, %s87
      %p94 = scmp.eq.s32.totalorder %s61, 1
      %p95 = por %p93, %p94
      %p96 = scmp.ne.s32.totalorder %s87, %s88
      %p97 = scmp.eq.s32.totalorder %s61, 0
      %p98 = por %p96, %p97
      %p99 = scmp.ne.s32.totalorder %s87, %s88
      %p100 = scmp.eq.s32.totalorder %s62, 1
      %p101 = por %p99, %p100
      %p103 = scmp.ne.s32.totalorder %s88, %s102
      %p104 = scmp.eq.s32.totalorder %s62, 0
      %p105 = por %p103, %p104
      %s107 = sadd.s32 %s106, 1
      %p110 = scmp.eq.s32.totalorder %s56, 1
      %p111 = scmp.ne.s32.totalorder %s106, %s108
      %p112 = scmp.eq.s32.totalorder %s56, 0
      %p113 = por %p111, %p112
      %p114 = scmp.ne.s32.totalorder %s106, %s108
      %p115 = scmp.eq.s32.totalorder %s61, 1
      %p116 = por %p114, %p115
      %p117 = scmp.ne.s32.totalorder %s108, %s109
      %p118 = scmp.eq.s32.totalorder %s61, 0
      %p119 = por %p117, %p118
      %p120 = scmp.ne.s32.totalorder %s108, %s109
      %p121 = scmp.eq.s32.totalorder %s62, 1
      %p122 = por %p120, %p121
      %p124 = scmp.ne.s32.totalorder %s109, %s123
      %p125 = scmp.eq.s32.totalorder %s62, 0
      %p126 = por %p124, %p125
      %s127 = ssub.s32 %s56, %s63
      %p128 = scmp.eq.s32.totalorder %s127, 0
      %s130 = sadd.s32 %s129, 1
      %s131 = scalar_select %p128, %s129, %s130
      %p134 = pneg %p128
      %p135 = scmp.eq.s32.totalorder %s56, 1
      %p136 = por %p134, %p135
      %p137 = scmp.ne.s32.totalorder %s129, %s132
      %p138 = scmp.eq.s32.totalorder %s56, 0
      %p139 = por %p137, %p138
      %p140 = scmp.ne.s32.totalorder %s129, %s132
      %p141 = scmp.eq.s32.totalorder %s61, 1
      %p142 = por %p140, %p141
      %p143 = scmp.ne.s32.totalorder %s132, %s133
      %p144 = scmp.eq.s32.totalorder %s61, 0
      %p145 = por %p143, %p144
      %p146 = scmp.ne.s32.totalorder %s132, %s133
      %p147 = scmp.eq.s32.totalorder %s62, 1
      %p148 = por %p146, %p147
      %p150 = scmp.ne.s32.totalorder %s133, %s149
      %p151 = scmp.eq.s32.totalorder %s62, 0
      %p152 = por %p150, %p151
      %s153 = ssub.s32 %s56, %s63
      %p154 = scmp.eq.s32.totalorder %s153, 0
      %s156 = sadd.s32 %s155, 1
      %s157 = scalar_select %p154, %s155, %s156
      %p160 = pneg %p154
      %p161 = scmp.eq.s32.totalorder %s56, 1
      %p162 = por %p160, %p161
      %p163 = scmp.ne.s32.totalorder %s155, %s158
      %p164 = scmp.eq.s32.totalorder %s56, 0
      %p165 = por %p163, %p164
      %p166 = scmp.ne.s32.totalorder %s155, %s158
      %p167 = scmp.eq.s32.totalorder %s61, 1
      %p168 = por %p166, %p167
      %p169 = scmp.ne.s32.totalorder %s158, %s159
      %p170 = scmp.eq.s32.totalorder %s61, 0
      %p171 = por %p169, %p170
      %p172 = scmp.ne.s32.totalorder %s158, %s159
      %p173 = scmp.eq.s32.totalorder %s62, 1
      %p174 = por %p172, %p173
      %p176 = scmp.ne.s32.totalorder %s159, %s175
      %p177 = scmp.eq.s32.totalorder %s62, 0
      %p178 = por %p176, %p177
      %s179 = ssub.s32 %s56, %s63
      %p180 = scmp.eq.s32.totalorder %s179, 0
      %s182 = sadd.s32 %s181, 1
      %s183 = scalar_select %p180, %s181, %s182
      %p186 = pneg %p180
      %p187 = scmp.eq.s32.totalorder %s56, 1
      %p188 = por %p186, %p187
      %p189 = scmp.ne.s32.totalorder %s181, %s184
      %p190 = scmp.eq.s32.totalorder %s56, 0
      %p191 = por %p189, %p190
      %p192 = scmp.ne.s32.totalorder %s181, %s184
      %p193 = scmp.eq.s32.totalorder %s61, 1
      %p194 = por %p192, %p193
      %p195 = scmp.ne.s32.totalorder %s184, %s185
      %p196 = scmp.eq.s32.totalorder %s61, 0
      %p197 = por %p195, %p196
      %p198 = scmp.ne.s32.totalorder %s184, %s185
      %p199 = scmp.eq.s32.totalorder %s62, 1
      %p200 = por %p198, %p199
      %p202 = scmp.ne.s32.totalorder %s185, %s201
      %p203 = scmp.eq.s32.totalorder %s62, 0
      %p204 = por %p202, %p203
      %s205 = ssub.s32 %s56, %s63
      %p206 = scmp.eq.s32.totalorder %s205, 0
      %s208 = sadd.s32 %s207, 1
      %s209 = scalar_select %p206, %s207, %s208
      %p212 = pneg %p206
      %p213 = scmp.eq.s32.totalorder %s56, 1
      %p214 = por %p212, %p213
      %p215 = scmp.ne.s32.totalorder %s207, %s210
      %p216 = scmp.eq.s32.totalorder %s56, 0
      %p217 = por %p215, %p216
      %p218 = scmp.ne.s32.totalorder %s207, %s210
      %p219 = scmp.eq.s32.totalorder %s61, 1
      %p220 = por %p218, %p219
      %p221 = scmp.ne.s32.totalorder %s210, %s211
      %p222 = scmp.eq.s32.totalorder %s61, 0
      %p223 = por %p221, %p222
      %p224 = scmp.ne.s32.totalorder %s210, %s211
      %p225 = scmp.eq.s32.totalorder %s62, 1
      %p226 = por %p224, %p225
      %p228 = scmp.ne.s32.totalorder %s211, %s227
      %p229 = scmp.eq.s32.totalorder %s62, 0
      %p230 = por %p228, %p229
      %s231 = ssub.s32 %s56, %s63
      %p232 = scmp.eq.s32.totalorder %s231, 0
      %s234 = sadd.s32 %s233, 1
      %s235 = scalar_select %p232, %s233, %s234
      %p238 = pneg %p232
      %p239 = scmp.eq.s32.totalorder %s56, 1
      %p240 = por %p238, %p239
      %p241 = scmp.ne.s32.totalorder %s233, %s236
      %p242 = scmp.eq.s32.totalorder %s56, 0
      %p243 = por %p241, %p242
      %p244 = scmp.ne.s32.totalorder %s233, %s236
      %p245 = scmp.eq.s32.totalorder %s61, 1
      %p246 = por %p244, %p245
      %p247 = scmp.ne.s32.totalorder %s236, %s237
      %p248 = scmp.eq.s32.totalorder %s61, 0
      %p249 = por %p247, %p248
      %p250 = scmp.ne.s32.totalorder %s236, %s237
      %p251 = scmp.eq.s32.totalorder %s62, 1
      %p252 = por %p250, %p251
      %p254 = scmp.ne.s32.totalorder %s237, %s253
      %p255 = scmp.eq.s32.totalorder %s62, 0
      %p256 = por %p254, %p255
      %s257 = ssub.s32 %s56, %s63
      %p258 = scmp.eq.s32.totalorder %s257, 0
      %s260 = sadd.s32 %s259, 1
      %s261 = scalar_select %p258, %s259, %s260
      %p264 = pneg %p258
      %p265 = scmp.eq.s32.totalorder %s56, 1
      %p266 = por %p264, %p265
      %p267 = scmp.ne.s32.totalorder %s259, %s262
      %p268 = scmp.eq.s32.totalorder %s56, 0
      %p269 = por %p267, %p268
      %p270 = scmp.ne.s32.totalorder %s259, %s262
      %p271 = scmp.eq.s32.totalorder %s61, 1
      %p272 = por %p270, %p271
      %p273 = scmp.ne.s32.totalorder %s262, %s263
      %p274 = scmp.eq.s32.totalorder %s61, 0
      %p275 = por %p273, %p274
      %p276 = scmp.ne.s32.totalorder %s262, %s263
      %p277 = scmp.eq.s32.totalorder %s62, 1
      %p278 = por %p276, %p277
      %p280 = scmp.ne.s32.totalorder %s263, %s279
      %p281 = scmp.eq.s32.totalorder %s62, 0
      %p282 = por %p280, %p281
      %s283 = ssub.s32 %s56, %s63
      %p284 = scmp.eq.s32.totalorder %s283, 0
      %s286 = sadd.s32 %s285, 1
      %s287 = scalar_select %p284, %s285, %s286
      %p290 = pneg %p284
      %p291 = scmp.eq.s32.totalorder %s56, 1
      %p292 = por %p290, %p291
      %p293 = scmp.ne.s32.totalorder %s285, %s288
      %p294 = scmp.eq.s32.totalorder %s56, 0
      %p295 = por %p293, %p294
      %p296 = scmp.ne.s32.totalorder %s285, %s288
      %p297 = scmp.eq.s32.totalorder %s61, 1
      %p298 = por %p296, %p297
      %p299 = scmp.ne.s32.totalorder %s288, %s289
      %p300 = scmp.eq.s32.totalorder %s61, 0
      %p301 = por %p299, %p300
      %p302 = scmp.ne.s32.totalorder %s288, %s289
      %p303 = scmp.eq.s32.totalorder %s62, 1
      %p304 = por %p302, %p303
      %p306 = scmp.ne.s32.totalorder %s289, %s305
      %p307 = scmp.eq.s32.totalorder %s62, 0
      %p308 = por %p306, %p307
      %s309 = ssub.s32 %s56, %s63
      %p310 = scmp.eq.s32.totalorder %s309, 0
      %s312 = sadd.s32 %s311, 1
      %s313 = scalar_select %p310, %s311, %s312
      %p316 = pneg %p310
      %p317 = scmp.eq.s32.totalorder %s56, 1
      %p318 = por %p316, %p317
      %p319 = scmp.ne.s32.totalorder %s311, %s314
      %p320 = scmp.eq.s32.totalorder %s56, 0
      %p321 = por %p319, %p320
      %p322 = scmp.ne.s32.totalorder %s311, %s314
      %p323 = scmp.eq.s32.totalorder %s61, 1
      %p324 = por %p322, %p323
      %p325 = scmp.ne.s32.totalorder %s314, %s315
      %p326 = scmp.eq.s32.totalorder %s61, 0
      %p327 = por %p325, %p326
      %p328 = scmp.ne.s32.totalorder %s314, %s315
      %p329 = scmp.eq.s32.totalorder %s62, 1
      %p330 = por %p328, %p329
      %p332 = scmp.ne.s32.totalorder %s315, %s331
      %p333 = scmp.eq.s32.totalorder %s62, 0
      %p334 = por %p332, %p333
      %s335 = ssub.s32 %s56, %s63
      %p336 = scmp.eq.s32.totalorder %s335, 0
      %s338 = sadd.s32 %s337, 1
      %s339 = scalar_select %p336, %s337, %s338
      %p342 = pneg %p336
      %p343 = scmp.eq.s32.totalorder %s56, 1
      %p344 = por %p342, %p343
      %p345 = scmp.ne.s32.totalorder %s337, %s340
      %p346 = scmp.eq.s32.totalorder %s56, 0
      %p347 = por %p345, %p346
      %p348 = scmp.ne.s32.totalorder %s337, %s340
      %p349 = scmp.eq.s32.totalorder %s61, 1
      %p350 = por %p348, %p349
      %p351 = scmp.ne.s32.totalorder %s340, %s341
      %p352 = scmp.eq.s32.totalorder %s61, 0
      %p353 = por %p351, %p352
      %p354 = scmp.ne.s32.totalorder %s340, %s341
      %p355 = scmp.eq.s32.totalorder %s62, 1
      %p356 = por %p354, %p355
      %p358 = scmp.ne.s32.totalorder %s341, %s357
      %p359 = scmp.eq.s32.totalorder %s62, 0
      %p360 = por %p358, %p359
      %s361 = ssub.s32 %s56, %s63
      %p362 = scmp.eq.s32.totalorder %s361, 0
      %s364 = sadd.s32 %s363, 1
      %s365 = scalar_select %p362, %s363, %s364
      %p368 = pneg %p362
      %p369 = scmp.eq.s32.totalorder %s56, 1
      %p370 = por %p368, %p369
      %p371 = scmp.ne.s32.totalorder %s363, %s366
      %p372 = scmp.eq.s32.totalorder %s56, 0
      %p373 = por %p371, %p372
      %p374 = scmp.ne.s32.totalorder %s363, %s366
      %p375 = scmp.eq.s32.totalorder %s61, 1
      %p376 = por %p374, %p375
      %p377 = scmp.ne.s32.totalorder %s366, %s367
      %p378 = scmp.eq.s32.totalorder %s61, 0
      %p379 = por %p377, %p378
      %p380 = scmp.ne.s32.totalorder %s366, %s367
      %p381 = scmp.eq.s32.totalorder %s62, 1
      %p382 = por %p380, %p381
      %p384 = scmp.ne.s32.totalorder %s367, %s383
      %p385 = scmp.eq.s32.totalorder %s62, 0
      %p386 = por %p384, %p385
      %s387 = ssub.s32 %s56, %s63
      %p388 = scmp.eq.s32.totalorder %s387, 0
      %s390 = sadd.s32 %s389, 1
      %s391 = scalar_select %p388, %s389, %s390
      %p394 = pneg %p388
      %p395 = scmp.eq.s32.totalorder %s56, 1
      %p396 = por %p394, %p395
      %p397 = scmp.ne.s32.totalorder %s389, %s392
      %p398 = scmp.eq.s32.totalorder %s56, 0
      %p399 = por %p397, %p398
      %p400 = scmp.ne.s32.totalorder %s389, %s392
      %p401 = scmp.eq.s32.totalorder %s61, 1
      %p402 = por %p400, %p401
      %p403 = scmp.ne.s32.totalorder %s392, %s393
      %p404 = scmp.eq.s32.totalorder %s61, 0
      %p405 = por %p403, %p404
      %p406 = scmp.ne.s32.totalorder %s392, %s393
      %p407 = scmp.eq.s32.totalorder %s62, 1
      %p408 = por %p406, %p407
      %p410 = scmp.ne.s32.totalorder %s393, %s409
      %p411 = scmp.eq.s32.totalorder %s62, 0
      %p412 = por %p410, %p411
      %s413 = ssub.s32 %s56, %s63
      %p414 = scmp.eq.s32.totalorder %s413, 0
      %s416 = sadd.s32 %s415, 1
      %s417 = scalar_select %p414, %s415, %s416
      %p420 = pneg %p414
      %p421 = scmp.eq.s32.totalorder %s56, 1
      %p422 = por %p420, %p421
      %p423 = scmp.ne.s32.totalorder %s415, %s418
      %p424 = scmp.eq.s32.totalorder %s56, 0
      %p425 = por %p423, %p424
      %p426 = scmp.ne.s32.totalorder %s415, %s418
      %p427 = scmp.eq.s32.totalorder %s61, 1
      %p428 = por %p426, %p427
      %p429 = scmp.ne.s32.totalorder %s418, %s419
      %p430 = scmp.eq.s32.totalorder %s61, 0
      %p431 = por %p429, %p430
      %p432 = scmp.ne.s32.totalorder %s418, %s419
      %p433 = scmp.eq.s32.totalorder %s62, 1
      %p434 = por %p432, %p433
      %p436 = scmp.ne.s32.totalorder %s419, %s435
      %p437 = scmp.eq.s32.totalorder %s62, 0
      %p438 = por %p436, %p437
      %s440 = sadd.s32 %s439, 1
      %p443 = scmp.eq.s32.totalorder %s56, 1
      %p444 = scmp.ne.s32.totalorder %s439, %s441
      %p445 = scmp.eq.s32.totalorder %s56, 0
      %p446 = por %p444, %p445
      %p447 = scmp.ne.s32.totalorder %s439, %s441
      %p448 = scmp.eq.s32.totalorder %s61, 1
      %p449 = por %p447, %p448
      %p450 = scmp.ne.s32.totalorder %s441, %s442
      %p451 = scmp.eq.s32.totalorder %s61, 0
      %p452 = por %p450, %p451
      %p453 = scmp.ne.s32.totalorder %s441, %s442
      %p454 = scmp.eq.s32.totalorder %s62, 1
      %p455 = por %p453, %p454
      %p457 = scmp.ne.s32.totalorder %s442, %s456
      %p458 = scmp.eq.s32.totalorder %s62, 0
      %p459 = por %p457, %p458
      %s461 = sadd.s32 %s460, 1
      %p464 = scmp.eq.s32.totalorder %s56, 1
      %p465 = scmp.ne.s32.totalorder %s460, %s462
      %p466 = scmp.eq.s32.totalorder %s56, 0
      %p467 = por %p465, %p466
      %p468 = scmp.ne.s32.totalorder %s460, %s462
      %p469 = scmp.eq.s32.totalorder %s61, 1
      %p470 = por %p468, %p469
      %p471 = scmp.ne.s32.totalorder %s462, %s463
      %p472 = scmp.eq.s32.totalorder %s61, 0
      %p473 = por %p471, %p472
      %p474 = scmp.ne.s32.totalorder %s462, %s463
      %p475 = scmp.eq.s32.totalorder %s62, 1
      %p476 = por %p474, %p475
      %p478 = scmp.ne.s32.totalorder %s463, %s477
      %p479 = scmp.eq.s32.totalorder %s62, 0
      %p480 = por %p478, %p479
      %s482 = sadd.s32 %s481, 1
      %p485 = scmp.eq.s32.totalorder %s56, 1
      %p486 = scmp.ne.s32.totalorder %s481, %s483
      %p487 = scmp.eq.s32.totalorder %s56, 0
      %p488 = por %p486, %p487
      %p489 = scmp.ne.s32.totalorder %s481, %s483
      %p490 = scmp.eq.s32.totalorder %s61, 1
      %p491 = por %p489, %p490
      %p492 = scmp.ne.s32.totalorder %s483, %s484
      %p493 = scmp.eq.s32.totalorder %s61, 0
      %p494 = por %p492, %p493
      %p495 = scmp.ne.s32.totalorder %s483, %s484
      %p496 = scmp.eq.s32.totalorder %s62, 1
      %p497 = por %p495, %p496
      %p499 = scmp.ne.s32.totalorder %s484, %s498
      %p500 = scmp.eq.s32.totalorder %s62, 0
      %p501 = por %p499, %p500
      %s503 = sadd.s32 %s502, 1
      %p506 = scmp.eq.s32.totalorder %s56, 1
      %p507 = scmp.ne.s32.totalorder %s502, %s504
      %p508 = scmp.eq.s32.totalorder %s56, 0
      %p509 = por %p507, %p508
      %p510 = scmp.ne.s32.totalorder %s502, %s504
      %p511 = scmp.eq.s32.totalorder %s61, 1
      %p512 = por %p510, %p511
      %p513 = scmp.ne.s32.totalorder %s504, %s505
      %p514 = scmp.eq.s32.totalorder %s61, 0
      %p515 = por %p513, %p514
      %p516 = scmp.ne.s32.totalorder %s504, %s505
      %p517 = scmp.eq.s32.totalorder %s62, 1
      %p518 = por %p516, %p517
      %p520 = scmp.ne.s32.totalorder %s505, %s519
      %p521 = scmp.eq.s32.totalorder %s62, 0
      %p522 = por %p520, %p521
      %s524 = sadd.s32 %s523, 1
      %p527 = scmp.eq.s32.totalorder %s56, 1
      %p528 = scmp.ne.s32.totalorder %s523, %s525
      %p529 = scmp.eq.s32.totalorder %s56, 0
      %p530 = por %p528, %p529
      %p531 = scmp.ne.s32.totalorder %s523, %s525
      %p532 = scmp.eq.s32.totalorder %s61, 1
      %p533 = por %p531, %p532
      %p534 = scmp.ne.s32.totalorder %s525, %s526
      %p535 = scmp.eq.s32.totalorder %s61, 0
      %p536 = por %p534, %p535
      %p537 = scmp.ne.s32.totalorder %s525, %s526
      %p538 = scmp.eq.s32.totalorder %s62, 1
      %p539 = por %p537, %p538
      %p541 = scmp.ne.s32.totalorder %s526, %s540
      %p542 = scmp.eq.s32.totalorder %s62, 0
      %p543 = por %p541, %p542
      %s545 = sadd.s32 %s544, 1
      %p548 = scmp.eq.s32.totalorder %s56, 1
      %p549 = scmp.ne.s32.totalorder %s544, %s546
      %p550 = scmp.eq.s32.totalorder %s56, 0
      %p551 = por %p549, %p550
      %p552 = scmp.ne.s32.totalorder %s544, %s546
      %p553 = scmp.eq.s32.totalorder %s61, 1
      %p554 = por %p552, %p553
      %p555 = scmp.ne.s32.totalorder %s546, %s547
      %p556 = scmp.eq.s32.totalorder %s61, 0
      %p557 = por %p555, %p556
      %p558 = scmp.ne.s32.totalorder %s546, %s547
      %p559 = scmp.eq.s32.totalorder %s62, 1
      %p560 = por %p558, %p559
      %p562 = scmp.ne.s32.totalorder %s547, %s561
      %p563 = scmp.eq.s32.totalorder %s62, 0
      %p564 = por %p562, %p563
      %s566 = sadd.s32 %s565, 1
      %p569 = scmp.eq.s32.totalorder %s56, 1
      %p570 = scmp.ne.s32.totalorder %s565, %s567
      %p571 = scmp.eq.s32.totalorder %s56, 0
      %p572 = por %p570, %p571
      %p573 = scmp.ne.s32.totalorder %s565, %s567
      %p574 = scmp.eq.s32.totalorder %s61, 1
      %p575 = por %p573, %p574
      %p576 = scmp.ne.s32.totalorder %s567, %s568
      %p577 = scmp.eq.s32.totalorder %s61, 0
      %p578 = por %p576, %p577
      %p579 = scmp.ne.s32.totalorder %s567, %s568
      %p580 = scmp.eq.s32.totalorder %s62, 1
      %p581 = por %p579, %p580
      %p583 = scmp.ne.s32.totalorder %s568, %s582
      %p584 = scmp.eq.s32.totalorder %s62, 0
      %p585 = por %p583, %p584
      %s587 = sadd.s32 %s586, 1
      %p590 = scmp.eq.s32.totalorder %s56, 1
      %p591 = scmp.ne.s32.totalorder %s586, %s588
      %p592 = scmp.eq.s32.totalorder %s56, 0
      %p593 = por %p591, %p592
      %p594 = scmp.ne.s32.totalorder %s586, %s588
      %p595 = scmp.eq.s32.totalorder %s61, 1
      %p596 = por %p594, %p595
      %p597 = scmp.ne.s32.totalorder %s588, %s589
      %p598 = scmp.eq.s32.totalorder %s61, 0
      %p599 = por %p597, %p598
      %p600 = scmp.ne.s32.totalorder %s588, %s589
      %p601 = scmp.eq.s32.totalorder %s62, 1
      %p602 = por %p600, %p601
      %p604 = scmp.ne.s32.totalorder %s589, %s603
      %p605 = scmp.eq.s32.totalorder %s62, 0
      %p606 = por %p604, %p605
      %s608 = sadd.s32 %s607, 1
      %p611 = scmp.eq.s32.totalorder %s56, 1
      %p612 = scmp.ne.s32.totalorder %s607, %s609
      %p613 = scmp.eq.s32.totalorder %s56, 0
      %p614 = por %p612, %p613
      %p615 = scmp.ne.s32.totalorder %s607, %s609
      %p616 = scmp.eq.s32.totalorder %s61, 1
      %p617 = por %p615, %p616
      %p618 = scmp.ne.s32.totalorder %s609, %s610
      %p619 = scmp.eq.s32.totalorder %s61, 0
      %p620 = por %p618, %p619
      %p621 = scmp.ne.s32.totalorder %s609, %s610
      %p622 = scmp.eq.s32.totalorder %s62, 1
      %p623 = por %p621, %p622
      %p625 = scmp.ne.s32.totalorder %s610, %s624
      %p626 = scmp.eq.s32.totalorder %s62, 0
      %p627 = por %p625, %p626
      %s629 = sadd.s32 %s628, 1
      %p632 = scmp.eq.s32.totalorder %s56, 1
      %p633 = scmp.ne.s32.totalorder %s628, %s630
      %p634 = scmp.eq.s32.totalorder %s56, 0
      %p635 = por %p633, %p634
      %p636 = scmp.ne.s32.totalorder %s628, %s630
      %p637 = scmp.eq.s32.totalorder %s61, 1
      %p638 = por %p636, %p637
      %p639 = scmp.ne.s32.totalorder %s630, %s631
      %p640 = scmp.eq.s32.totalorder %s61, 0
      %p641 = por %p639, %p640
      %p642 = scmp.ne.s32.totalorder %s630, %s631
      %p643 = scmp.eq.s32.totalorder %s62, 1
      %p644 = por %p642, %p643
      %p646 = scmp.ne.s32.totalorder %s631, %s645
      %p647 = scmp.eq.s32.totalorder %s62, 0
      %p648 = por %p646, %p647
      %p649 = scmp.le.s32.totalorder 1, %s56
      %p650 = scmp.lt.s32.totalorder %s56, 3
      %p651 = pnand %p649, %p650
      %p652 = pneg %p651
      // Predicated region
      $region9: #{tpu_custom_call.1} parent=5 // pred_check
        _
      $region10: #{tpu_custom_call.1} parent=5 // pred_check_branch
        %654 = sbr.rel (%p651) target = $region12
      $region11: #{tpu_custom_call.1} parent=5 // pred_region
        %s655 = ssub.s32 %s56, 1
        // Predicated region
        $region13: #{tpu_custom_call.1} parent=11 // pred_check
          %p656 = pneg %p77
        $region14: #{tpu_custom_call.1} parent=11 // pred_check_branch
          %658 = sbr.rel (%p656) target = $region16
        $region15: #{tpu_custom_call.1} parent=11 // pred_region
          %s660 = ssub.s32 512, 512
          %661 = vsyncadd [#allocation4], %s660
          %s662 = sshll.u32 [#allocation3], 4
          %s663 = int_to_ptr.vmem [resolvable:$true] %s662
          %668 = dma.hbm_to_vmem [thread:$0]  %s0, 512, %s663, [#allocation4], 128, 128, 8
        $region16: #{tpu_custom_call.1} parent=11 // pred_fallthru
          _
        // Predicated region
        $region17: #{tpu_custom_call.1} parent=11 // pred_check
          %p669 = pneg %p98
        $region18: #{tpu_custom_call.1} parent=11 // pred_check_branch
          %671 = sbr.rel (%p669) target = $region20
        $region19: #{tpu_custom_call.1} parent=11 // pred_region
          %s673 = ssub.s32 768, 768
          %674 = vsyncadd [#allocation7], %s673
          %s675 = sshll.u32 [#allocation6], 4
          %s676 = int_to_ptr.vmem [resolvable:$true] %s675
          %681 = dma.hbm_to_vmem [thread:$0]  %s1, 768, %s676, [#allocation7], 128, 128, 8
        $region20: #{tpu_custom_call.1} parent=11 // pred_fallthru
          _
        // Predicated region
        $region21: #{tpu_custom_call.1} parent=11 // pred_check
          %p682 = pneg %p119
        $region22: #{tpu_custom_call.1} parent=11 // pred_check_branch
          %684 = sbr.rel (%p682) target = $region24
        $region23: #{tpu_custom_call.1} parent=11 // pred_region
          %s686 = ssub.s32 1024, 1024
          %687 = vsyncadd [#allocation7], %s686
          %s688 = sshll.u32 [#allocation8], 4
          %s689 = int_to_ptr.vmem [resolvable:$true] %s688
          %694 = dma.hbm_to_vmem [thread:$0]  %s2, 1024, %s689, [#allocation7], 256, 256, 16
        $region24: #{tpu_custom_call.1} parent=11 // pred_fallthru
          _
        // Predicated region
        $region25: #{tpu_custom_call.1} parent=11 // pred_check
          %p695 = pneg %p452
        $region26: #{tpu_custom_call.1} parent=11 // pred_check_branch
          %697 = sbr.rel (%p695) target = $region28
        $region27: #{tpu_custom_call.1} parent=11 // pred_region
          %s699 = ssub.s32 32, 32
          %700 = vsyncadd [#allocation28], %s699
          %s702 = sshll.u32 [#allocation27], 4
          %s703 = int_to_ptr.vmem [resolvable:$true] %s702
          %705 = dma.hbm_to_vmem [thread:$0]  %s15, 32, %s703, [#allocation28]
        $region28: #{tpu_custom_call.1} parent=11 // pred_fallthru
          _
        // Predicated region
        $region29: #{tpu_custom_call.1} parent=11 // pred_check
          %p706 = pneg %p473
        $region30: #{tpu_custom_call.1} parent=11 // pred_check_branch
          %708 = sbr.rel (%p706) target = $region32
        $region31: #{tpu_custom_call.1} parent=11 // pred_region
          %s710 = ssub.s32 32, 32
          %711 = vsyncadd [#allocation28], %s710
          %s713 = sshll.u32 [#allocation29], 4
          %s714 = int_to_ptr.vmem [resolvable:$true] %s713
          %716 = dma.hbm_to_vmem [thread:$0]  %s16, 32, %s714, [#allocation28]
        $region32: #{tpu_custom_call.1} parent=11 // pred_fallthru
          _
        // Predicated region
        $region33: #{tpu_custom_call.1} parent=11 // pred_check
          %p717 = pneg %p494
        $region34: #{tpu_custom_call.1} parent=11 // pred_check_branch
          %719 = sbr.rel (%p717) target = $region36
        $region35: #{tpu_custom_call.1} parent=11 // pred_region
          %s721 = ssub.s32 32, 32
          %722 = vsyncadd [#allocation31], %s721
          %s724 = sshll.u32 [#allocation30], 4
          %s725 = int_to_ptr.vmem [resolvable:$true] %s724
          %727 = dma.hbm_to_vmem [thread:$0]  %s17, 32, %s725, [#allocation31]
        $region36: #{tpu_custom_call.1} parent=11 // pred_fallthru
          _
        // Predicated region
        $region37: #{tpu_custom_call.1} parent=11 // pred_check
          %p728 = pneg %p515
        $region38: #{tpu_custom_call.1} parent=11 // pred_check_branch
          %730 = sbr.rel (%p728) target = $region40
        $region39: #{tpu_custom_call.1} parent=11 // pred_region
          %s732 = ssub.s32 4096, 4096
          %733 = vsyncadd [#allocation31], %s732
          %s734 = sshll.u32 [#allocation32], 4
          %s735 = int_to_ptr.vmem [resolvable:$true] %s734
          %740 = dma.hbm_to_vmem [thread:$0]  %s18, 4096, %s735, [#allocation31], 128, 128, 8
        $region40: #{tpu_custom_call.1} parent=11 // pred_fallthru
          _
        // Predicated region
        $region41: #{tpu_custom_call.1} parent=11 // pred_check
          %p741 = pneg %p536
        $region42: #{tpu_custom_call.1} parent=11 // pred_check_branch
          %743 = sbr.rel (%p741) target = $region44
        $region43: #{tpu_custom_call.1} parent=11 // pred_region
          %s745 = ssub.s32 32, 32
          %746 = vsyncadd [#allocation34], %s745
          %s748 = sshll.u32 [#allocation33], 4
          %s749 = int_to_ptr.vmem [resolvable:$true] %s748
          %751 = dma.hbm_to_vmem [thread:$0]  %s19, 32, %s749, [#allocation34]
        $region44: #{tpu_custom_call.1} parent=11 // pred_fallthru
          _
        // Predicated region
        $region45: #{tpu_custom_call.1} parent=11 // pred_check
          %p752 = pneg %p557
        $region46: #{tpu_custom_call.1} parent=11 // pred_check_branch
          %754 = sbr.rel (%p752) target = $region48
        $region47: #{tpu_custom_call.1} parent=11 // pred_region
          %s756 = ssub.s32 4096, 4096
          %757 = vsyncadd [#allocation34], %s756
          %s758 = sshll.u32 [#allocation35], 4
          %s759 = int_to_ptr.vmem [resolvable:$true] %s758
          %764 = dma.hbm_to_vmem [thread:$0]  %s20, 4096, %s759, [#allocation34], 128, 128, 8
        $region48: #{tpu_custom_call.1} parent=11 // pred_fallthru
          _
        // Predicated region
        $region49: #{tpu_custom_call.1} parent=11 // pred_check
          %p765 = pneg %p578
        $region50: #{tpu_custom_call.1} parent=11 // pred_check_branch
          %767 = sbr.rel (%p765) target = $region52
        $region51: #{tpu_custom_call.1} parent=11 // pred_region
          %s769 = ssub.s32 32, 32
          %770 = vsyncadd [#allocation37], %s769
          %s772 = sshll.u32 [#allocation36], 4
          %s773 = int_to_ptr.vmem [resolvable:$true] %s772
          %775 = dma.hbm_to_vmem [thread:$0]  %s21, 32, %s773, [#allocation37]
        $region52: #{tpu_custom_call.1} parent=11 // pred_fallthru
          _
        // Predicated region
        $region53: #{tpu_custom_call.1} parent=11 // pred_check
          %p776 = pneg %p599
        $region54: #{tpu_custom_call.1} parent=11 // pred_check_branch
          %778 = sbr.rel (%p776) target = $region56
        $region55: #{tpu_custom_call.1} parent=11 // pred_region
          %s780 = ssub.s32 2048, 2048
          %781 = vsyncadd [#allocation37], %s780
          %s782 = sshll.u32 [#allocation38], 4
          %s783 = int_to_ptr.vmem [resolvable:$true] %s782
          %788 = dma.hbm_to_vmem [thread:$0]  %s22, 2048, %s783, [#allocation37], 64, 64, 4
        $region56: #{tpu_custom_call.1} parent=11 // pred_fallthru
          _
        // Predicated region
        $region57: #{tpu_custom_call.1} parent=11 // pred_check
          %p789 = pneg %p620
        $region58: #{tpu_custom_call.1} parent=11 // pred_check_branch
          %791 = sbr.rel (%p789) target = $region60
        $region59: #{tpu_custom_call.1} parent=11 // pred_region
          %s793 = ssub.s32 16, 16
          %794 = vsyncadd [#allocation40], %s793
          %s796 = sshll.u32 [#allocation39], 4
          %s797 = int_to_ptr.vmem [resolvable:$true] %s796
          %799 = dma.hbm_to_vmem [thread:$0]  %s23, 16, %s797, [#allocation40]
        $region60: #{tpu_custom_call.1} parent=11 // pred_fallthru
          _
      $region12: #{tpu_custom_call.1} parent=5 // pred_fallthru
        _
      %p800 = scmp.lt.s32.totalorder %s56, 2
      // Predicated region
      $region61: #{tpu_custom_call.1} parent=5 // pred_check
        %p801 = pneg %p800
      $region62: #{tpu_custom_call.1} parent=5 // pred_check_branch
        %803 = sbr.rel (%p801) target = $region64
      $region63: #{tpu_custom_call.1} parent=5 // pred_region
        // Predicated region
        $region65: #{tpu_custom_call.1} parent=63 // pred_check
          %p804 = pneg %p139
        $region66: #{tpu_custom_call.1} parent=63 // pred_check_branch
          %806 = sbr.rel (%p804) target = $region68
        $region67: #{tpu_custom_call.1} parent=63 // pred_region
          %s807 = sand.u32 %s56, 1
          %s808 = scalar_lea.sflag [#allocation10], %s807
          %s809 = sand.u32 %s129, 1
          %s810 = smul.addr %s809, 2
          %s811 = scalar_lea.vmem [#allocation9], %s810
          %s813 = ssub.s32 32, 32
          %814 = vsyncadd %s808, %s813
          %s815 = smul.addr %s56, 2
          %s816 = smul.addr %s815, 16
          %s817 = scalar_lea.hbm %s3, %s816
          %s819 = sshll.u32 %s811, 4
          %s820 = int_to_ptr.vmem [resolvable:$true] %s819
          %822 = dma.hbm_to_vmem [thread:$0]  %s817, 32, %s820, %s808
        $region68: #{tpu_custom_call.1} parent=63 // pred_fallthru
          _
        // Predicated region
        $region69: #{tpu_custom_call.1} parent=63 // pred_check
          %p823 = pneg %p165
        $region70: #{tpu_custom_call.1} parent=63 // pred_check_branch
          %825 = sbr.rel (%p823) target = $region72
        $region71: #{tpu_custom_call.1} parent=63 // pred_region
          %s826 = sand.u32 %s56, 1
          %s827 = scalar_lea.sflag [#allocation10], %s826
          %s828 = sand.u32 %s155, 1
          %s829 = smul.addr %s828, 2
          %s830 = scalar_lea.vmem [#allocation11], %s829
          %s832 = ssub.s32 32, 32
          %833 = vsyncadd %s827, %s832
          %s834 = smul.addr %s56, 2
          %s835 = smul.addr %s834, 16
          %s836 = scalar_lea.hbm %s4, %s835
          %s838 = sshll.u32 %s830, 4
          %s839 = int_to_ptr.vmem [resolvable:$true] %s838
          %841 = dma.hbm_to_vmem [thread:$0]  %s836, 32, %s839, %s827
        $region72: #{tpu_custom_call.1} parent=63 // pred_fallthru
          _
        // Predicated region
        $region73: #{tpu_custom_call.1} parent=63 // pred_check
          %p842 = pneg %p191
        $region74: #{tpu_custom_call.1} parent=63 // pred_check_branch
          %844 = sbr.rel (%p842) target = $region76
        $region75: #{tpu_custom_call.1} parent=63 // pred_region
          %s845 = sand.u32 %s56, 1
          %s846 = scalar_lea.sflag [#allocation13], %s845
          %s847 = sand.u32 %s181, 1
          %s848 = smul.addr %s847, 768
          %s849 = scalar_lea.vmem [#allocation12], %s848
          %s851 = ssub.s32 12288, 12288
          %852 = vsyncadd %s846, %s851
          %s853 = smul.addr %s56, 192
          %s854 = smul.addr %s853, 64
          %s855 = scalar_lea.hbm %s5, %s854
          %s856 = sshll.u32 %s849, 4
          %s857 = int_to_ptr.vmem [resolvable:$true] %s856
          %862 = dma.hbm_to_vmem [thread:$0]  %s855, 12288, %s857, %s846, 384, 384, 24
        $region76: #{tpu_custom_call.1} parent=63 // pred_fallthru
          _
        // Predicated region
        $region77: #{tpu_custom_call.1} parent=63 // pred_check
          %p863 = pneg %p217
        $region78: #{tpu_custom_call.1} parent=63 // pred_check_branch
          %865 = sbr.rel (%p863) target = $region80
        $region79: #{tpu_custom_call.1} parent=63 // pred_region
          %s866 = sand.u32 %s56, 1
          %s867 = scalar_lea.sflag [#allocation13], %s866
          %s868 = sand.u32 %s207, 1
          %s869 = smul.addr %s868, 6
          %s870 = scalar_lea.vmem [#allocation14], %s869
          %s872 = ssub.s32 96, 96
          %873 = vsyncadd %s867, %s872
          %s874 = smul.addr %s56, 6
          %s875 = smul.addr %s874, 16
          %s876 = scalar_lea.hbm %s6, %s875
          %s878 = sshll.u32 %s870, 4
          %s879 = int_to_ptr.vmem [resolvable:$true] %s878
          %881 = dma.hbm_to_vmem [thread:$0]  %s876, 96, %s879, %s867
        $region80: #{tpu_custom_call.1} parent=63 // pred_fallthru
          _
        // Predicated region
        $region81: #{tpu_custom_call.1} parent=63 // pred_check
          %p882 = pneg %p243
        $region82: #{tpu_custom_call.1} parent=63 // pred_check_branch
          %884 = sbr.rel (%p882) target = $region84
        $region83: #{tpu_custom_call.1} parent=63 // pred_region
          %s885 = sand.u32 %s56, 1
          %s886 = scalar_lea.sflag [#allocation16], %s885
          %s887 = sand.u32 %s233, 1
          %s888 = smul.addr %s887, 256
          %s889 = scalar_lea.vmem [#allocation15], %s888
          %s891 = ssub.s32 4096, 4096
          %892 = vsyncadd %s886, %s891
          %s893 = smul.addr %s56, 64
          %s894 = smul.addr %s893, 64
          %s895 = scalar_lea.hbm %s7, %s894
          %s896 = sshll.u32 %s889, 4
          %s897 = int_to_ptr.vmem [resolvable:$true] %s896
          %902 = dma.hbm_to_vmem [thread:$0]  %s895, 4096, %s897, %s886, 128, 128, 8
        $region84: #{tpu_custom_call.1} parent=63 // pred_fallthru
          _
        // Predicated region
        $region85: #{tpu_custom_call.1} parent=63 // pred_check
          %p903 = pneg %p269
        $region86: #{tpu_custom_call.1} parent=63 // pred_check_branch
          %905 = sbr.rel (%p903) target = $region88
        $region87: #{tpu_custom_call.1} parent=63 // pred_region
          %s906 = sand.u32 %s56, 1
          %s907 = scalar_lea.sflag [#allocation16], %s906
          %s908 = sand.u32 %s259, 1
          %s909 = smul.addr %s908, 2
          %s910 = scalar_lea.vmem [#allocation17], %s909
          %s912 = ssub.s32 32, 32
          %913 = vsyncadd %s907, %s912
          %s914 = smul.addr %s56, 2
          %s915 = smul.addr %s914, 16
          %s916 = scalar_lea.hbm %s8, %s915
          %s918 = sshll.u32 %s910, 4
          %s919 = int_to_ptr.vmem [resolvable:$true] %s918
          %921 = dma.hbm_to_vmem [thread:$0]  %s916, 32, %s919, %s907
        $region88: #{tpu_custom_call.1} parent=63 // pred_fallthru
          _
        // Predicated region
        $region89: #{tpu_custom_call.1} parent=63 // pred_check
          %p922 = pneg %p295
        $region90: #{tpu_custom_call.1} parent=63 // pred_check_branch
          %924 = sbr.rel (%p922) target = $region92
        $region91: #{tpu_custom_call.1} parent=63 // pred_region
          %s925 = sand.u32 %s56, 1
          %s926 = scalar_lea.sflag [#allocation19], %s925
          %s927 = sand.u32 %s285, 1
          %s928 = smul.addr %s927, 2
          %s929 = scalar_lea.vmem [#allocation18], %s928
          %s931 = ssub.s32 32, 32
          %932 = vsyncadd %s926, %s931
          %s933 = smul.addr %s56, 2
          %s934 = smul.addr %s933, 16
          %s935 = scalar_lea.hbm %s9, %s934
          %s937 = sshll.u32 %s929, 4
          %s938 = int_to_ptr.vmem [resolvable:$true] %s937
          %940 = dma.hbm_to_vmem [thread:$0]  %s935, 32, %s938, %s926
        $region92: #{tpu_custom_call.1} parent=63 // pred_fallthru
          _
        // Predicated region
        $region93: #{tpu_custom_call.1} parent=63 // pred_check
          %p941 = pneg %p321
        $region94: #{tpu_custom_call.1} parent=63 // pred_check_branch
          %943 = sbr.rel (%p941) target = $region96
        $region95: #{tpu_custom_call.1} parent=63 // pred_region
          %s944 = sand.u32 %s56, 1
          %s945 = scalar_lea.sflag [#allocation19], %s944
          %s946 = sand.u32 %s311, 1
          %s947 = smul.addr %s946, 2
          %s948 = scalar_lea.vmem [#allocation20], %s947
          %s950 = ssub.s32 32, 32
          %951 = vsyncadd %s945, %s950
          %s952 = smul.addr %s56, 2
          %s953 = smul.addr %s952, 16
          %s954 = scalar_lea.hbm %s10, %s953
          %s956 = sshll.u32 %s948, 4
          %s957 = int_to_ptr.vmem [resolvable:$true] %s956
          %959 = dma.hbm_to_vmem [thread:$0]  %s954, 32, %s957, %s945
        $region96: #{tpu_custom_call.1} parent=63 // pred_fallthru
          _
        // Predicated region
        $region97: #{tpu_custom_call.1} parent=63 // pred_check
          %p960 = pneg %p347
        $region98: #{tpu_custom_call.1} parent=63 // pred_check_branch
          %962 = sbr.rel (%p960) target = $region100
        $region99: #{tpu_custom_call.1} parent=63 // pred_region
          %s963 = sand.u32 %s56, 1
          %s964 = scalar_lea.sflag [#allocation22], %s963
          %s965 = sand.u32 %s337, 1
          %s966 = smul.addr %s965, 1024
          %s967 = scalar_lea.vmem [#allocation21], %s966
          %s969 = ssub.s32 16384, 16384
          %970 = vsyncadd %s964, %s969
          %s971 = smul.addr %s56, 256
          %s972 = smul.addr %s971, 64
          %s973 = scalar_lea.hbm %s11, %s972
          %s974 = sshll.u32 %s967, 4
          %s975 = int_to_ptr.vmem [resolvable:$true] %s974
          %980 = dma.hbm_to_vmem [thread:$0]  %s973, 16384, %s975, %s964, 512, 512, 32
        $region100: #{tpu_custom_call.1} parent=63 // pred_fallthru
          _
        // Predicated region
        $region101: #{tpu_custom_call.1} parent=63 // pred_check
          %p981 = pneg %p373
        $region102: #{tpu_custom_call.1} parent=63 // pred_check_branch
          %983 = sbr.rel (%p981) target = $region104
        $region103: #{tpu_custom_call.1} parent=63 // pred_region
          %s984 = sand.u32 %s56, 1
          %s985 = scalar_lea.sflag [#allocation22], %s984
          %s986 = sand.u32 %s363, 1
          %s987 = smul.addr %s986, 8
          %s988 = scalar_lea.vmem [#allocation23], %s987
          %s990 = ssub.s32 128, 128
          %991 = vsyncadd %s985, %s990
          %s992 = smul.addr %s56, 8
          %s993 = smul.addr %s992, 16
          %s994 = scalar_lea.hbm %s12, %s993
          %s996 = sshll.u32 %s988, 4
          %s997 = int_to_ptr.vmem [resolvable:$true] %s996
          %999 = dma.hbm_to_vmem [thread:$0]  %s994, 128, %s997, %s985
        $region104: #{tpu_custom_call.1} parent=63 // pred_fallthru
          _
        // Predicated region
        $region105: #{tpu_custom_call.1} parent=63 // pred_check
          %p1000 = pneg %p399
        $region106: #{tpu_custom_call.1} parent=63 // pred_check_branch
          %1002 = sbr.rel (%p1000) target = $region108
        $region107: #{tpu_custom_call.1} parent=63 // pred_region
          %s1003 = sand.u32 %s56, 1
          %s1004 = scalar_lea.sflag [#allocation25], %s1003
          %s1005 = sand.u32 %s389, 1
          %s1006 = smul.addr %s1005, 1024
          %s1007 = scalar_lea.vmem [#allocation24], %s1006
          %s1009 = ssub.s32 16384, 16384
          %1010 = vsyncadd %s1004, %s1009
          %s1011 = smul.addr %s56, 256
          %s1012 = smul.addr %s1011, 64
          %s1013 = scalar_lea.hbm %s13, %s1012
          %s1014 = sshll.u32 %s1007, 4
          %s1015 = int_to_ptr.vmem [resolvable:$true] %s1014
          %1020 = dma.hbm_to_vmem [thread:$0]  %s1013, 16384, %s1015, %s1004, 128, 128, 8
        $region108: #{tpu_custom_call.1} parent=63 // pred_fallthru
          _
        // Predicated region
        $region109: #{tpu_custom_call.1} parent=63 // pred_check
          %p1021 = pneg %p425
        $region110: #{tpu_custom_call.1} parent=63 // pred_check_branch
          %1023 = sbr.rel (%p1021) target = $region112
        $region111: #{tpu_custom_call.1} parent=63 // pred_region
          %s1024 = sand.u32 %s56, 1
          %s1025 = scalar_lea.sflag [#allocation25], %s1024
          %s1026 = sand.u32 %s415, 1
          %s1027 = smul.addr %s1026, 2
          %s1028 = scalar_lea.vmem [#allocation26], %s1027
          %s1030 = ssub.s32 32, 32
          %1031 = vsyncadd %s1025, %s1030
          %s1032 = smul.addr %s56, 2
          %s1033 = smul.addr %s1032, 16
          %s1034 = scalar_lea.hbm %s14, %s1033
          %s1036 = sshll.u32 %s1028, 4
          %s1037 = int_to_ptr.vmem [resolvable:$true] %s1036
          %1039 = dma.hbm_to_vmem [thread:$0]  %s1034, 32, %s1037, %s1025
        $region112: #{tpu_custom_call.1} parent=63 // pred_fallthru
          _
      $region64: #{tpu_custom_call.1} parent=5 // pred_fallthru
        _
      %p1040 = scmp.le.s32.totalorder 1, %s56
      %p1041 = scmp.lt.s32.totalorder %s56, 3
      %p1042 = pnand %p1040, %p1041
      %p1043 = pneg %p1042
      // Predicated region
      $region113: #{tpu_custom_call.1} parent=5 // pred_check
        _
      $region114: #{tpu_custom_call.1} parent=5 // pred_check_branch
        %1045 = sbr.rel (%p1042) target = $region116
      $region115: #{tpu_custom_call.1} parent=5 // pred_region
        %s1046 = ssub.s32 %s56, 1
        // Predicated region
        $region117: #{tpu_custom_call.1} parent=115 // pred_check
          %p1047 = pneg %p77
        $region118: #{tpu_custom_call.1} parent=115 // pred_check_branch
          %1049 = sbr.rel (%p1047) target = $region120
        $region119: #{tpu_custom_call.1} parent=115 // pred_region
          %1050 = dma.done [#allocation4], 512
        $region120: #{tpu_custom_call.1} parent=115 // pred_fallthru
          _
        // Predicated region
        $region121: #{tpu_custom_call.1} parent=115 // pred_check
          %p1051 = pneg %p98
        $region122: #{tpu_custom_call.1} parent=115 // pred_check_branch
          %1053 = sbr.rel (%p1051) target = $region124
        $region123: #{tpu_custom_call.1} parent=115 // pred_region
          %1054 = dma.done [#allocation7], 768
        $region124: #{tpu_custom_call.1} parent=115 // pred_fallthru
          _
        // Predicated region
        $region125: #{tpu_custom_call.1} parent=115 // pred_check
          %p1055 = pneg %p119
        $region126: #{tpu_custom_call.1} parent=115 // pred_check_branch
          %1057 = sbr.rel (%p1055) target = $region128
        $region127: #{tpu_custom_call.1} parent=115 // pred_region
          %1058 = dma.done [#allocation7], 1024
        $region128: #{tpu_custom_call.1} parent=115 // pred_fallthru
          _
        %s1059 = sand.u32 %s61, 1
        %s1060 = scalar_lea.sflag [#allocation10], %s1059
        %s1061 = sand.u32 %s132, 1
        %s1062 = smul.addr %s1061, 2
        %s1063 = scalar_lea.vmem [#allocation9], %s1062
        // Predicated region
        $region129: #{tpu_custom_call.1} parent=115 // pred_check
          %p1064 = pneg %p145
        $region130: #{tpu_custom_call.1} parent=115 // pred_check_branch
          %1066 = sbr.rel (%p1064) target = $region132
        $region131: #{tpu_custom_call.1} parent=115 // pred_region
          %1067 = dma.done %s1060, 32
        $region132: #{tpu_custom_call.1} parent=115 // pred_fallthru
          _
        %s1068 = sand.u32 %s61, 1
        %s1069 = scalar_lea.sflag [#allocation10], %s1068
        %s1070 = sand.u32 %s158, 1
        %s1071 = smul.addr %s1070, 2
        %s1072 = scalar_lea.vmem [#allocation11], %s1071
        // Predicated region
        $region133: #{tpu_custom_call.1} parent=115 // pred_check
          %p1073 = pneg %p171
        $region134: #{tpu_custom_call.1} parent=115 // pred_check_branch
          %1075 = sbr.rel (%p1073) target = $region136
        $region135: #{tpu_custom_call.1} parent=115 // pred_region
          %1076 = dma.done %s1069, 32
        $region136: #{tpu_custom_call.1} parent=115 // pred_fallthru
          _
        %s1077 = sand.u32 %s61, 1
        %s1078 = scalar_lea.sflag [#allocation13], %s1077
        %s1079 = sand.u32 %s184, 1
        %s1080 = smul.addr %s1079, 768
        %s1081 = scalar_lea.vmem [#allocation12], %s1080
        // Predicated region
        $region137: #{tpu_custom_call.1} parent=115 // pred_check
          %p1082 = pneg %p197
        $region138: #{tpu_custom_call.1} parent=115 // pred_check_branch
          %1084 = sbr.rel (%p1082) target = $region140
        $region139: #{tpu_custom_call.1} parent=115 // pred_region
          %1085 = dma.done %s1078, 12288
        $region140: #{tpu_custom_call.1} parent=115 // pred_fallthru
          _
        %s1086 = sand.u32 %s61, 1
        %s1087 = scalar_lea.sflag [#allocation13], %s1086
        %s1088 = sand.u32 %s210, 1
        %s1089 = smul.addr %s1088, 6
        %s1090 = scalar_lea.vmem [#allocation14], %s1089
        // Predicated region
        $region141: #{tpu_custom_call.1} parent=115 // pred_check
          %p1091 = pneg %p223
        $region142: #{tpu_custom_call.1} parent=115 // pred_check_branch
          %1093 = sbr.rel (%p1091) target = $region144
        $region143: #{tpu_custom_call.1} parent=115 // pred_region
          %1094 = dma.done %s1087, 96
        $region144: #{tpu_custom_call.1} parent=115 // pred_fallthru
          _
        %s1095 = sand.u32 %s61, 1
        %s1096 = scalar_lea.sflag [#allocation16], %s1095
        %s1097 = sand.u32 %s236, 1
        %s1098 = smul.addr %s1097, 256
        %s1099 = scalar_lea.vmem [#allocation15], %s1098
        // Predicated region
        $region145: #{tpu_custom_call.1} parent=115 // pred_check
          %p1100 = pneg %p249
        $region146: #{tpu_custom_call.1} parent=115 // pred_check_branch
          %1102 = sbr.rel (%p1100) target = $region148
        $region147: #{tpu_custom_call.1} parent=115 // pred_region
          %1103 = dma.done %s1096, 4096
        $region148: #{tpu_custom_call.1} parent=115 // pred_fallthru
          _
        %s1104 = sand.u32 %s61, 1
        %s1105 = scalar_lea.sflag [#allocation16], %s1104
        %s1106 = sand.u32 %s262, 1
        %s1107 = smul.addr %s1106, 2
        %s1108 = scalar_lea.vmem [#allocation17], %s1107
        // Predicated region
        $region149: #{tpu_custom_call.1} parent=115 // pred_check
          %p1109 = pneg %p275
        $region150: #{tpu_custom_call.1} parent=115 // pred_check_branch
          %1111 = sbr.rel (%p1109) target = $region152
        $region151: #{tpu_custom_call.1} parent=115 // pred_region
          %1112 = dma.done %s1105, 32
        $region152: #{tpu_custom_call.1} parent=115 // pred_fallthru
          _
        %s1113 = sand.u32 %s61, 1
        %s1114 = scalar_lea.sflag [#allocation19], %s1113
        %s1115 = sand.u32 %s288, 1
        %s1116 = smul.addr %s1115, 2
        %s1117 = scalar_lea.vmem [#allocation18], %s1116
        // Predicated region
        $region153: #{tpu_custom_call.1} parent=115 // pred_check
          %p1118 = pneg %p301
        $region154: #{tpu_custom_call.1} parent=115 // pred_check_branch
          %1120 = sbr.rel (%p1118) target = $region156
        $region155: #{tpu_custom_call.1} parent=115 // pred_region
          %1121 = dma.done %s1114, 32
        $region156: #{tpu_custom_call.1} parent=115 // pred_fallthru
          _
        %s1122 = sand.u32 %s61, 1
        %s1123 = scalar_lea.sflag [#allocation19], %s1122
        %s1124 = sand.u32 %s314, 1
        %s1125 = smul.addr %s1124, 2
        %s1126 = scalar_lea.vmem [#allocation20], %s1125
        // Predicated region
        $region157: #{tpu_custom_call.1} parent=115 // pred_check
          %p1127 = pneg %p327
        $region158: #{tpu_custom_call.1} parent=115 // pred_check_branch
          %1129 = sbr.rel (%p1127) target = $region160
        $region159: #{tpu_custom_call.1} parent=115 // pred_region
          %1130 = dma.done %s1123, 32
        $region160: #{tpu_custom_call.1} parent=115 // pred_fallthru
          _
        %s1131 = sand.u32 %s61, 1
        %s1132 = scalar_lea.sflag [#allocation22], %s1131
        %s1133 = sand.u32 %s340, 1
        %s1134 = smul.addr %s1133, 1024
        %s1135 = scalar_lea.vmem [#allocation21], %s1134
        // Predicated region
        $region161: #{tpu_custom_call.1} parent=115 // pred_check
          %p1136 = pneg %p353
        $region162: #{tpu_custom_call.1} parent=115 // pred_check_branch
          %1138 = sbr.rel (%p1136) target = $region164
        $region163: #{tpu_custom_call.1} parent=115 // pred_region
          %1139 = dma.done %s1132, 16384
        $region164: #{tpu_custom_call.1} parent=115 // pred_fallthru
          _
        %s1140 = sand.u32 %s61, 1
        %s1141 = scalar_lea.sflag [#allocation22], %s1140
        %s1142 = sand.u32 %s366, 1
        %s1143 = smul.addr %s1142, 8
        %s1144 = scalar_lea.vmem [#allocation23], %s1143
        // Predicated region
        $region165: #{tpu_custom_call.1} parent=115 // pred_check
          %p1145 = pneg %p379
        $region166: #{tpu_custom_call.1} parent=115 // pred_check_branch
          %1147 = sbr.rel (%p1145) target = $region168
        $region167: #{tpu_custom_call.1} parent=115 // pred_region
          %1148 = dma.done %s1141, 128
        $region168: #{tpu_custom_call.1} parent=115 // pred_fallthru
          _
        %s1149 = sand.u32 %s61, 1
        %s1150 = scalar_lea.sflag [#allocation25], %s1149
        %s1151 = sand.u32 %s392, 1
        %s1152 = smul.addr %s1151, 1024
        %s1153 = scalar_lea.vmem [#allocation24], %s1152
        // Predicated region
        $region169: #{tpu_custom_call.1} parent=115 // pred_check
          %p1154 = pneg %p405
        $region170: #{tpu_custom_call.1} parent=115 // pred_check_branch
          %1156 = sbr.rel (%p1154) target = $region172
        $region171: #{tpu_custom_call.1} parent=115 // pred_region
          %1157 = dma.done %s1150, 16384
        $region172: #{tpu_custom_call.1} parent=115 // pred_fallthru
          _
        %s1158 = sand.u32 %s61, 1
        %s1159 = scalar_lea.sflag [#allocation25], %s1158
        %s1160 = sand.u32 %s418, 1
        %s1161 = smul.addr %s1160, 2
        %s1162 = scalar_lea.vmem [#allocation26], %s1161
        // Predicated region
        $region173: #{tpu_custom_call.1} parent=115 // pred_check
          %p1163 = pneg %p431
        $region174: #{tpu_custom_call.1} parent=115 // pred_check_branch
          %1165 = sbr.rel (%p1163) target = $region176
        $region175: #{tpu_custom_call.1} parent=115 // pred_region
          %1166 = dma.done %s1159, 32
        $region176: #{tpu_custom_call.1} parent=115 // pred_fallthru
          _
        // Predicated region
        $region177: #{tpu_custom_call.1} parent=115 // pred_check
          %p1167 = pneg %p452
        $region178: #{tpu_custom_call.1} parent=115 // pred_check_branch
          %1169 = sbr.rel (%p1167) target = $region180
        $region179: #{tpu_custom_call.1} parent=115 // pred_region
          %1170 = dma.done [#allocation28], 32
        $region180: #{tpu_custom_call.1} parent=115 // pred_fallthru
          _
        // Predicated region
        $region181: #{tpu_custom_call.1} parent=115 // pred_check
          %p1171 = pneg %p473
        $region182: #{tpu_custom_call.1} parent=115 // pred_check_branch
          %1173 = sbr.rel (%p1171) target = $region184
        $region183: #{tpu_custom_call.1} parent=115 // pred_region
          %1174 = dma.done [#allocation28], 32
        $region184: #{tpu_custom_call.1} parent=115 // pred_fallthru
          _
        // Predicated region
        $region185: #{tpu_custom_call.1} parent=115 // pred_check
          %p1175 = pneg %p494
        $region186: #{tpu_custom_call.1} parent=115 // pred_check_branch
          %1177 = sbr.rel (%p1175) target = $region188
        $region187: #{tpu_custom_call.1} parent=115 // pred_region
          %1178 = dma.done [#allocation31], 32
        $region188: #{tpu_custom_call.1} parent=115 // pred_fallthru
          _
        // Predicated region
        $region189: #{tpu_custom_call.1} parent=115 // pred_check
          %p1179 = pneg %p515
        $region190: #{tpu_custom_call.1} parent=115 // pred_check_branch
          %1181 = sbr.rel (%p1179) target = $region192
        $region191: #{tpu_custom_call.1} parent=115 // pred_region
          %1182 = dma.done [#allocation31], 4096
        $region192: #{tpu_custom_call.1} parent=115 // pred_fallthru
          _
        // Predicated region
        $region193: #{tpu_custom_call.1} parent=115 // pred_check
          %p1183 = pneg %p536
        $region194: #{tpu_custom_call.1} parent=115 // pred_check_branch
          %1185 = sbr.rel (%p1183) target = $region196
        $region195: #{tpu_custom_call.1} parent=115 // pred_region
          %1186 = dma.done [#allocation34], 32
        $region196: #{tpu_custom_call.1} parent=115 // pred_fallthru
          _
        // Predicated region
        $region197: #{tpu_custom_call.1} parent=115 // pred_check
          %p1187 = pneg %p557
        $region198: #{tpu_custom_call.1} parent=115 // pred_check_branch
          %1189 = sbr.rel (%p1187) target = $region200
        $region199: #{tpu_custom_call.1} parent=115 // pred_region
          %1190 = dma.done [#allocation34], 4096
        $region200: #{tpu_custom_call.1} parent=115 // pred_fallthru
          _
        // Predicated region
        $region201: #{tpu_custom_call.1} parent=115 // pred_check
          %p1191 = pneg %p578
        $region202: #{tpu_custom_call.1} parent=115 // pred_check_branch
          %1193 = sbr.rel (%p1191) target = $region204
        $region203: #{tpu_custom_call.1} parent=115 // pred_region
          %1194 = dma.done [#allocation37], 32
        $region204: #{tpu_custom_call.1} parent=115 // pred_fallthru
          _
        // Predicated region
        $region205: #{tpu_custom_call.1} parent=115 // pred_check
          %p1195 = pneg %p599
        $region206: #{tpu_custom_call.1} parent=115 // pred_check_branch
          %1197 = sbr.rel (%p1195) target = $region208
        $region207: #{tpu_custom_call.1} parent=115 // pred_region
          %1198 = dma.done [#allocation37], 2048
        $region208: #{tpu_custom_call.1} parent=115 // pred_fallthru
          _
        // Predicated region
        $region209: #{tpu_custom_call.1} parent=115 // pred_check
          %p1199 = pneg %p620
        $region210: #{tpu_custom_call.1} parent=115 // pred_check_branch
          %1201 = sbr.rel (%p1199) target = $region212
        $region211: #{tpu_custom_call.1} parent=115 // pred_region
          %1202 = dma.done [#allocation40], 16
        $region212: #{tpu_custom_call.1} parent=115 // pred_fallthru
          _
        %p1203 = pneg %p77
        %p1204 = pneg %p74
        %p1205 = pneg %p98
        %p1206 = pneg %p95
        %p1207 = pneg %p119
        %p1208 = pneg %p116
        %s1209 = sand.u32 %s61, 1
        %s1210 = scalar_lea.sflag [#allocation10], %s1209
        %s1211 = sand.u32 %s132, 1
        %s1212 = smul.addr %s1211, 2
        %s1213 = scalar_lea.vmem [#allocation9], %s1212
        %p1214 = pneg %p145
        %p1215 = pneg %p142
        %s1216 = sand.u32 %s61, 1
        %s1217 = scalar_lea.sflag [#allocation10], %s1216
        %s1218 = sand.u32 %s158, 1
        %s1219 = smul.addr %s1218, 2
        %s1220 = scalar_lea.vmem [#allocation11], %s1219
        %p1221 = pneg %p171
        %p1222 = pneg %p168
        %s1223 = sand.u32 %s61, 1
        %s1224 = scalar_lea.sflag [#allocation13], %s1223
        %s1225 = sand.u32 %s184, 1
        %s1226 = smul.addr %s1225, 768
        %s1227 = scalar_lea.vmem [#allocation12], %s1226
        %p1228 = pneg %p197
        %p1229 = pneg %p194
        %s1230 = sand.u32 %s61, 1
        %s1231 = scalar_lea.sflag [#allocation13], %s1230
        %s1232 = sand.u32 %s210, 1
        %s1233 = smul.addr %s1232, 6
        %s1234 = scalar_lea.vmem [#allocation14], %s1233
        %p1235 = pneg %p223
        %p1236 = pneg %p220
        %s1237 = sand.u32 %s61, 1
        %s1238 = scalar_lea.sflag [#allocation16], %s1237
        %s1239 = sand.u32 %s236, 1
        %s1240 = smul.addr %s1239, 256
        %s1241 = scalar_lea.vmem [#allocation15], %s1240
        %p1242 = pneg %p249
        %p1243 = pneg %p246
        %s1244 = sand.u32 %s61, 1
        %s1245 = scalar_lea.sflag [#allocation16], %s1244
        %s1246 = sand.u32 %s262, 1
        %s1247 = smul.addr %s1246, 2
        %s1248 = scalar_lea.vmem [#allocation17], %s1247
        %p1249 = pneg %p275
        %p1250 = pneg %p272
        %s1251 = sand.u32 %s61, 1
        %s1252 = scalar_lea.sflag [#allocation19], %s1251
        %s1253 = sand.u32 %s288, 1
        %s1254 = smul.addr %s1253, 2
        %s1255 = scalar_lea.vmem [#allocation18], %s1254
        %p1256 = pneg %p301
        %p1257 = pneg %p298
        %s1258 = sand.u32 %s61, 1
        %s1259 = scalar_lea.sflag [#allocation19], %s1258
        %s1260 = sand.u32 %s314, 1
        %s1261 = smul.addr %s1260, 2
        %s1262 = scalar_lea.vmem [#allocation20], %s1261
        %p1263 = pneg %p327
        %p1264 = pneg %p324
        %s1265 = sand.u32 %s61, 1
        %s1266 = scalar_lea.sflag [#allocation22], %s1265
        %s1267 = sand.u32 %s340, 1
        %s1268 = smul.addr %s1267, 1024
        %s1269 = scalar_lea.vmem [#allocation21], %s1268
        %p1270 = pneg %p353
        %p1271 = pneg %p350
        %s1272 = sand.u32 %s61, 1
        %s1273 = scalar_lea.sflag [#allocation22], %s1272
        %s1274 = sand.u32 %s366, 1
        %s1275 = smul.addr %s1274, 8
        %s1276 = scalar_lea.vmem [#allocation23], %s1275
        %p1277 = pneg %p379
        %p1278 = pneg %p376
        %s1279 = sand.u32 %s61, 1
        %s1280 = scalar_lea.sflag [#allocation25], %s1279
        %s1281 = sand.u32 %s392, 1
        %s1282 = smul.addr %s1281, 1024
        %s1283 = scalar_lea.vmem [#allocation24], %s1282
        %p1284 = pneg %p405
        %p1285 = pneg %p402
        %s1286 = sand.u32 %s61, 1
        %s1287 = scalar_lea.sflag [#allocation25], %s1286
        %s1288 = sand.u32 %s418, 1
        %s1289 = smul.addr %s1288, 2
        %s1290 = scalar_lea.vmem [#allocation26], %s1289
        %p1291 = pneg %p431
        %p1292 = pneg %p428
        %p1293 = pneg %p452
        %p1294 = pneg %p449
        %p1295 = pneg %p473
        %p1296 = pneg %p470
        %p1297 = pneg %p494
        %p1298 = pneg %p491
        %p1299 = pneg %p515
        %p1300 = pneg %p512
        %p1301 = pneg %p536
        %p1302 = pneg %p533
        %p1303 = pneg %p557
        %p1304 = pneg %p554
        %p1305 = pneg %p578
        %p1306 = pneg %p575
        %p1307 = pneg %p599
        %p1308 = pneg %p596
        %p1309 = pneg %p620
        %p1310 = pneg %p617
        %p1311 = pneg %p641
        %p1312 = pneg %p638
        %p1314 = scmp.eq.s32.totalorder %s61, 0
        // Predicated region
        $region213: #{tpu_custom_call.1} parent=115 // pred_check
          %p1315 = pneg %p1314
        $region214: #{tpu_custom_call.1} parent=115 // pred_check_branch
          %1317 = sbr.rel (%p1315) target = $region216
        $region215: #{tpu_custom_call.1} parent=115 // pred_region
          %v1318 = vld [vmem:[#allocation3] sm:$0xff]
          %v1319 = vld [vmem:[#allocation3 + $0x8] sm:$0xff]
          %v1320 = vld [vmem:[#allocation3 + $0x10] sm:$0xff]
          %v1321 = vld [vmem:[#allocation3 + $0x18] sm:$0xff]
          %v1322 = vpack.c.bf16 %v1319, %v1318
          %v1323 = vpack.c.bf16 %v1321, %v1320
          %v1324 = vld [vmem:[#allocation6] sm:$0xff]
          %v1325 = vld [vmem:[#allocation6 + $0x8] sm:$0xff]
          %v1326 = vld [vmem:[#allocation6 + $0x10] sm:$0xff]
          %v1327 = vld [vmem:[#allocation6 + $0x18] sm:$0xff]
          %v1328 = vld [vmem:[#allocation6 + $0x20] sm:$0xff]
          %v1329 = vld [vmem:[#allocation6 + $0x28] sm:$0xff]
          %v1330 = vld [vmem:[#allocation8] sm:$0xff]
          %v1331 = vld [vmem:[#allocation8 + $0x8] sm:$0xff]
          %v1332 = vld [vmem:[#allocation8 + $0x10] sm:$0xff]
          %v1333 = vld [vmem:[#allocation8 + $0x18] sm:$0xff]
          %v1334 = vld [vmem:[#allocation8 + $0x20] sm:$0xff]
          %v1335 = vld [vmem:[#allocation8 + $0x28] sm:$0xff]
          %v1336 = vld [vmem:[#allocation8 + $0x30] sm:$0xff]
          %v1337 = vld [vmem:[#allocation8 + $0x38] sm:$0xff]
          %v1344 = vunpack.c.l.b16 %v1324
          %v1345 = vunpack.c.h.b16 %v1324
          %v1346 = vunpack.c.l.b16 %v1325
          %v1347 = vunpack.c.h.b16 %v1325
          %v1348 = vunpack.c.l.b16 %v1326
          %v1349 = vunpack.c.h.b16 %v1326
          %v1350 = vunpack.c.l.b16 %v1327
          %v1351 = vunpack.c.h.b16 %v1327
          %v1352 = vunpack.c.l.b16 %v1328
          %v1353 = vunpack.c.h.b16 %v1328
          %v1354 = vunpack.c.l.b16 %v1329
          %v1355 = vunpack.c.h.b16 %v1329
          %v1356 = vpack.c.b16 %v1346, %v1344
          %v1357 = vpack.c.b16 %v1347, %v1345
          %v1358 = vpack.c.b16 %v1350, %v1348
          %v1359 = vpack.c.b16 %v1351, %v1349
          %v1360 = vpack.c.b16 %v1354, %v1352
          %v1361 = vpack.c.b16 %v1355, %v1353
          %vm1368 = vcmask 392192
          %v1370 = vsel %vm1368, %v1322, 0
          %v1373 = vsel %vm1368, %v1323, 0
          %1375 = vmatprep.subr.bf16.mxu0 %v1357
          %1376 = vmatpush1.bf16.msra.mxu0 %v1356
          %1377 = vmatprep.subr.bf16.mxu0 %v1359
          %1378 = vmatpush1.bf16.msra.mxu0 %v1358
          %1379 = vmatprep.subr.bf16.mxu0 %v1361
          %1380 = vmatpush1.bf16.msra.mxu0 %v1360
          %1381 = vmatprep.subr.bf16.mxu0 0
          %1382 = vmatpush1.bf16.msra.mxu0 0
          %1383 = vmatprep.subr.bf16.mxu0 0
          %1384 = vmatpush1.bf16.msra.mxu0 0
          %1385 = vmatprep.subr.bf16.mxu0 0
          %1386 = vmatpush1.bf16.msra.mxu0 0
          %1387 = vmatprep.subr.bf16.mxu0 0
          %1388 = vmatpush1.bf16.msra.mxu0 0
          %1389 = vmatprep.subr.bf16.mxu0 0
          %1390 = vmatpush1.bf16.msra.mxu0 0
          %1391 = vmatprep.subr.bf16.mxu0 0
          %1392 = vmatpush1.bf16.msra.mxu0 0
          %1393 = vmatprep.subr.bf16.mxu0 0
          %1394 = vmatpush1.bf16.msra.mxu0 0
          %1395 = vmatprep.subr.bf16.mxu0 0
          %1396 = vmatpush1.bf16.msra.mxu0 0
          %1397 = vmatprep.subr.bf16.mxu0 0
          %1398 = vmatpush1.bf16.msra.mxu0 0
          %1399 = vmatprep.subr.bf16.mxu0 0
          %1400 = vmatpush1.bf16.msra.mxu0 0
          %1401 = vmatprep.subr.bf16.mxu0 0
          %1402 = vmatpush1.bf16.msra.mxu0 0
          %1403 = vmatprep.subr.bf16.mxu0 0
          %1404 = vmatpush1.bf16.msra.mxu0 0
          %1405 = vmatprep.subr.bf16.mxu0 0
          %1406 = vmatpush1.bf16.msra.mxu0 0
          %1407 = vmatprep.mubr.bf16.mxu0 0
          %1408 = vmatmul.mubr.bf16.gmra.mrb[0].mxu0 %v1370
          %v1409 = vpop.f32.mrb[0].mxu0
          %v1410 = vadd.f32 %v1330, %v1409
          %v1411 = vpop.f32.mrb[0].mxu0
          %v1412 = vadd.f32 %v1331, %v1411
          %v1413 = vpop.f32.mrb[0].mxu0
          %v1414 = vadd.f32 %v1332, %v1413
          %v1415 = vpop.f32.mrb[0].mxu0
          %v1416 = vadd.f32 %v1333, %v1415
          %1417 = vmatprep.mubr.bf16.mxu0 0
          %1418 = vmatmul.mubr.bf16.gmra.mrb[0].mxu0 %v1373
          %v1419 = vpop.f32.mrb[0].mxu0
          %v1420 = vadd.f32 %v1334, %v1419
          %v1421 = vpop.f32.mrb[0].mxu0
          %v1422 = vadd.f32 %v1335, %v1421
          %v1423 = vpop.f32.mrb[0].mxu0
          %v1424 = vadd.f32 %v1336, %v1423
          %v1425 = vpop.f32.mrb[0].mxu0
          %v1426 = vadd.f32 %v1337, %v1425
          %1427 = vdwg.mxu0
          %1428 = vst [vmem:[#allocation2] sm:$0xff] %v1410
          %1429 = vst [vmem:[#allocation2 + $0x8] sm:$0xff] %v1412
          %1430 = vst [vmem:[#allocation2 + $0x10] sm:$0xff] %v1414
          %1431 = vst [vmem:[#allocation2 + $0x18] sm:$0xff] %v1416
          %1432 = vst [vmem:[#allocation2 + $0x20] sm:$0xff] %v1420
          %1433 = vst [vmem:[#allocation2 + $0x28] sm:$0xff] %v1422
          %1434 = vst [vmem:[#allocation2 + $0x30] sm:$0xff] %v1424
          %1435 = vst [vmem:[#allocation2 + $0x38] sm:$0xff] %v1426
        $region216: #{tpu_custom_call.1} parent=115 // pred_fallthru
          _
        %v1436 = vld [vmem:[#allocation2] sm:$0xff]
        %v1437 = vld [vmem:[#allocation2 + $0x8] sm:$0xff]
        %v1438 = vld [vmem:[#allocation2 + $0x10] sm:$0xff]
        %v1439 = vld [vmem:[#allocation2 + $0x18] sm:$0xff]
        %v1440 = vld [vmem:[#allocation2 + $0x20] sm:$0xff]
        %v1441 = vld [vmem:[#allocation2 + $0x28] sm:$0xff]
        %v1442 = vld [vmem:[#allocation2 + $0x30] sm:$0xff]
        %v1443 = vld [vmem:[#allocation2 + $0x38] sm:$0xff]
        %v1444 = vld [vmem:[%s1063] sm:$0x3]
        %v1445 = vld [vmem:[%s1072] sm:$0x3]
        %v1446 = vadd.f32 %v1436, %v1437
        %1447 = vadd.xlane.f32.xlu0 %v1446
        %v1448 = vpop.xlane.xlu0 %1447
        %v1449 = vadd.f32 %v1438, %v1439
        %1450 = vadd.xlane.f32.xlu0 %v1449
        %v1451 = vpop.xlane.xlu0 %1450
        %v1452 = vadd.f32 %v1440, %v1441
        %1453 = vadd.xlane.f32.xlu0 %v1452
        %v1454 = vpop.xlane.xlu0 %1453
        %v1455 = vadd.f32 %v1442, %v1443
        %1456 = vadd.xlane.f32.xlu0 %v1455
        %v1457 = vpop.xlane.xlu0 %1456
        %v1458 = vrcp.pop 256.0
        %v1459 = vmul.f32 %v1448, %v1458
        %v1460 = vmul.f32 %v1451, %v1458
        %v1461 = vmul.f32 %v1454, %v1458
        %v1462 = vmul.f32 %v1457, %v1458
        %v1463 = vmul.f32 %v1436, %v1436
        %v1464 = vmul.f32 %v1437, %v1437
        %v1465 = vmul.f32 %v1438, %v1438
        %v1466 = vmul.f32 %v1439, %v1439
        %v1467 = vmul.f32 %v1440, %v1440
        %v1468 = vmul.f32 %v1441, %v1441
        %v1469 = vmul.f32 %v1442, %v1442
        %v1470 = vmul.f32 %v1443, %v1443
        %v1471 = vadd.f32 %v1463, %v1464
        %1472 = vadd.xlane.f32.xlu0 %v1471
        %v1473 = vpop.xlane.xlu0 %1472
        %v1474 = vadd.f32 %v1465, %v1466
        %1475 = vadd.xlane.f32.xlu0 %v1474
        %v1476 = vpop.xlane.xlu0 %1475
        %v1477 = vadd.f32 %v1467, %v1468
        %1478 = vadd.xlane.f32.xlu0 %v1477
        %v1479 = vpop.xlane.xlu0 %1478
        %v1480 = vadd.f32 %v1469, %v1470
        %1481 = vadd.xlane.f32.xlu0 %v1480
        %v1482 = vpop.xlane.xlu0 %1481
        %v1483 = vmul.f32 %v1473, %v1458
        %v1484 = vmul.f32 %v1476, %v1458
        %v1485 = vmul.f32 %v1479, %v1458
        %v1486 = vmul.f32 %v1482, %v1458
        %v1487 = vsub.f32 %v1436, %v1459
        %v1488 = vsub.f32 %v1437, %v1459
        %v1489 = vsub.f32 %v1438, %v1460
        %v1490 = vsub.f32 %v1439, %v1460
        %v1491 = vsub.f32 %v1440, %v1461
        %v1492 = vsub.f32 %v1441, %v1461
        %v1493 = vsub.f32 %v1442, %v1462
        %v1494 = vsub.f32 %v1443, %v1462
        %v1495 = vmul.f32 %v1459, %v1459
        %v1496 = vmul.f32 %v1460, %v1460
        %v1497 = vmul.f32 %v1461, %v1461
        %v1498 = vmul.f32 %v1462, %v1462
        %v1499 = vsub.f32 %v1483, %v1495
        %v1500 = vsub.f32 %v1484, %v1496
        %v1501 = vsub.f32 %v1485, %v1497
        %v1502 = vsub.f32 %v1486, %v1498
        %v1503 = vadd.f32 %v1499, 1e-05
        %v1504 = vadd.f32 %v1500, 1e-05
        %v1505 = vadd.f32 %v1501, 1e-05
        %v1506 = vadd.f32 %v1502, 1e-05
        %v1507 = vrsqrt.pop %v1503
        %v1508 = vrsqrt.pop %v1504
        %v1509 = vrsqrt.pop %v1505
        %v1510 = vrsqrt.pop %v1506
        %v1511 = vmul.f32 %v1487, %v1507
        %v1512 = vmul.f32 %v1488, %v1507
        %v1513 = vmul.f32 %v1489, %v1508
        %v1514 = vmul.f32 %v1490, %v1508
        %v1515 = vmul.f32 %v1491, %v1509
        %v1516 = vmul.f32 %v1492, %v1509
        %v1517 = vmul.f32 %v1493, %v1510
        %v1518 = vmul.f32 %v1494, %v1510
        %v1520 = vlaneseq
        %v1521 = vshrl.u32 %v1520, 7
        %v1522 = vsub.s32 0, %v1521
        %v1523 = vrot.slane %v1444, %v1522
        %v1524 = vlaneseq
        %v1525 = vshrl.u32 %v1524, 7
        %v1526 = vsub.s32 1, %v1525
        %v1527 = vrot.slane %v1444, %v1526
        %v1530 = vmul.f32 %v1511, %v1523
        %v1531 = vmul.f32 %v1512, %v1527
        %v1532 = vmul.f32 %v1513, %v1523
        %v1533 = vmul.f32 %v1514, %v1527
        %v1534 = vmul.f32 %v1515, %v1523
        %v1535 = vmul.f32 %v1516, %v1527
        %v1536 = vmul.f32 %v1517, %v1523
        %v1537 = vmul.f32 %v1518, %v1527
        %v1539 = vlaneseq
        %v1540 = vshrl.u32 %v1539, 7
        %v1541 = vsub.s32 0, %v1540
        %v1542 = vrot.slane %v1445, %v1541
        %v1543 = vlaneseq
        %v1544 = vshrl.u32 %v1543, 7
        %v1545 = vsub.s32 1, %v1544
        %v1546 = vrot.slane %v1445, %v1545
        %v1549 = vadd.f32 %v1530, %v1542
        %v1550 = vadd.f32 %v1531, %v1546
        %v1551 = vadd.f32 %v1532, %v1542
        %v1552 = vadd.f32 %v1533, %v1546
        %v1553 = vadd.f32 %v1534, %v1542
        %v1554 = vadd.f32 %v1535, %v1546
        %v1555 = vadd.f32 %v1536, %v1542
        %v1556 = vadd.f32 %v1537, %v1546
        %v1557 = vpack.c.bf16 %v1551, %v1549
        %v1558 = vpack.c.bf16 %v1552, %v1550
        %v1559 = vpack.c.bf16 %v1555, %v1553
        %v1560 = vpack.c.bf16 %v1556, %v1554
        %v1561 = vld [vmem:[%s1081] sm:$0xff]
        %v1562 = vld [vmem:[%s1081 + $0x8] sm:$0xff]
        %v1563 = vld [vmem:[%s1081 + $0x10] sm:$0xff]
        %v1564 = vld [vmem:[%s1081 + $0x18] sm:$0xff]
        %v1565 = vld [vmem:[%s1081 + $0x20] sm:$0xff]
        %v1566 = vld [vmem:[%s1081 + $0x28] sm:$0xff]
        %v1567 = vld [vmem:[%s1081 + $0x30] sm:$0xff]
        %v1568 = vld [vmem:[%s1081 + $0x38] sm:$0xff]
        %v1569 = vld [vmem:[%s1081 + $0x40] sm:$0xff]
        %v1570 = vld [vmem:[%s1081 + $0x48] sm:$0xff]
        %v1571 = vld [vmem:[%s1081 + $0x50] sm:$0xff]
        %v1572 = vld [vmem:[%s1081 + $0x58] sm:$0xff]
        %v1573 = vld [vmem:[%s1081 + $0x60] sm:$0xff]
        %v1574 = vld [vmem:[%s1081 + $0x68] sm:$0xff]
        %v1575 = vld [vmem:[%s1081 + $0x70] sm:$0xff]
        %v1576 = vld [vmem:[%s1081 + $0x78] sm:$0xff]
        %v1577 = vld [vmem:[%s1081 + $0x80] sm:$0xff]
        %v1578 = vld [vmem:[%s1081 + $0x88] sm:$0xff]
        %v1579 = vld [vmem:[%s1081 + $0x90] sm:$0xff]
        %v1580 = vld [vmem:[%s1081 + $0x98] sm:$0xff]
        %v1581 = vld [vmem:[%s1081 + $0xa0] sm:$0xff]
        %v1582 = vld [vmem:[%s1081 + $0xa8] sm:$0xff]
        %v1583 = vld [vmem:[%s1081 + $0xb0] sm:$0xff]
        %v1584 = vld [vmem:[%s1081 + $0xb8] sm:$0xff]
        %v1585 = vld [vmem:[%s1081 + $0xc0] sm:$0xff]
        %v1586 = vld [vmem:[%s1081 + $0xc8] sm:$0xff]
        %v1587 = vld [vmem:[%s1081 + $0xd0] sm:$0xff]
        %v1588 = vld [vmem:[%s1081 + $0xd8] sm:$0xff]
        %v1589 = vld [vmem:[%s1081 + $0xe0] sm:$0xff]
        %v1590 = vld [vmem:[%s1081 + $0xe8] sm:$0xff]
        %v1591 = vld [vmem:[%s1081 + $0xf0] sm:$0xff]
        %v1592 = vld [vmem:[%s1081 + $0xf8] sm:$0xff]
        %v1593 = vld [vmem:[%s1081 + $0x100] sm:$0xff]
        %v1594 = vld [vmem:[%s1081 + $0x108] sm:$0xff]
        %v1595 = vld [vmem:[%s1081 + $0x110] sm:$0xff]
        %v1596 = vld [vmem:[%s1081 + $0x118] sm:$0xff]
        %v1597 = vld [vmem:[%s1081 + $0x120] sm:$0xff]
        %v1598 = vld [vmem:[%s1081 + $0x128] sm:$0xff]
        %v1599 = vld [vmem:[%s1081 + $0x130] sm:$0xff]
        %v1600 = vld [vmem:[%s1081 + $0x138] sm:$0xff]
        %v1601 = vld [vmem:[%s1081 + $0x140] sm:$0xff]
        %v1602 = vld [vmem:[%s1081 + $0x148] sm:$0xff]
        %v1603 = vld [vmem:[%s1081 + $0x150] sm:$0xff]
        %v1604 = vld [vmem:[%s1081 + $0x158] sm:$0xff]
        %v1605 = vld [vmem:[%s1081 + $0x160] sm:$0xff]
        %v1606 = vld [vmem:[%s1081 + $0x168] sm:$0xff]
        %v1607 = vld [vmem:[%s1081 + $0x170] sm:$0xff]
        %v1608 = vld [vmem:[%s1081 + $0x178] sm:$0xff]
        %v1609 = vld [vmem:[%s1081 + $0x180] sm:$0xff]
        %v1610 = vld [vmem:[%s1081 + $0x188] sm:$0xff]
        %v1611 = vld [vmem:[%s1081 + $0x190] sm:$0xff]
        %v1612 = vld [vmem:[%s1081 + $0x198] sm:$0xff]
        %v1613 = vld [vmem:[%s1081 + $0x1a0] sm:$0xff]
        %v1614 = vld [vmem:[%s1081 + $0x1a8] sm:$0xff]
        %v1615 = vld [vmem:[%s1081 + $0x1b0] sm:$0xff]
        %v1616 = vld [vmem:[%s1081 + $0x1b8] sm:$0xff]
        %v1617 = vld [vmem:[%s1081 + $0x1c0] sm:$0xff]
        %v1618 = vld [vmem:[%s1081 + $0x1c8] sm:$0xff]
        %v1619 = vld [vmem:[%s1081 + $0x1d0] sm:$0xff]
        %v1620 = vld [vmem:[%s1081 + $0x1d8] sm:$0xff]
        %v1621 = vld [vmem:[%s1081 + $0x1e0] sm:$0xff]
        %v1622 = vld [vmem:[%s1081 + $0x1e8] sm:$0xff]
        %v1623 = vld [vmem:[%s1081 + $0x1f0] sm:$0xff]
        %v1624 = vld [vmem:[%s1081 + $0x1f8] sm:$0xff]
        %v1625 = vld [vmem:[%s1081 + $0x200] sm:$0xff]
        %v1626 = vld [vmem:[%s1081 + $0x208] sm:$0xff]
        %v1627 = vld [vmem:[%s1081 + $0x210] sm:$0xff]
        %v1628 = vld [vmem:[%s1081 + $0x218] sm:$0xff]
        %v1629 = vld [vmem:[%s1081 + $0x220] sm:$0xff]
        %v1630 = vld [vmem:[%s1081 + $0x228] sm:$0xff]
        %v1631 = vld [vmem:[%s1081 + $0x230] sm:$0xff]
        %v1632 = vld [vmem:[%s1081 + $0x238] sm:$0xff]
        %v1633 = vld [vmem:[%s1081 + $0x240] sm:$0xff]
        %v1634 = vld [vmem:[%s1081 + $0x248] sm:$0xff]
        %v1635 = vld [vmem:[%s1081 + $0x250] sm:$0xff]
        %v1636 = vld [vmem:[%s1081 + $0x258] sm:$0xff]
        %v1637 = vld [vmem:[%s1081 + $0x260] sm:$0xff]
        %v1638 = vld [vmem:[%s1081 + $0x268] sm:$0xff]
        %v1639 = vld [vmem:[%s1081 + $0x270] sm:$0xff]
        %v1640 = vld [vmem:[%s1081 + $0x278] sm:$0xff]
        %v1641 = vld [vmem:[%s1081 + $0x280] sm:$0xff]
        %v1642 = vld [vmem:[%s1081 + $0x288] sm:$0xff]
        %v1643 = vld [vmem:[%s1081 + $0x290] sm:$0xff]
        %v1644 = vld [vmem:[%s1081 + $0x298] sm:$0xff]
        %v1645 = vld [vmem:[%s1081 + $0x2a0] sm:$0xff]
        %v1646 = vld [vmem:[%s1081 + $0x2a8] sm:$0xff]
        %v1647 = vld [vmem:[%s1081 + $0x2b0] sm:$0xff]
        %v1648 = vld [vmem:[%s1081 + $0x2b8] sm:$0xff]
        %v1649 = vld [vmem:[%s1081 + $0x2c0] sm:$0xff]
        %v1650 = vld [vmem:[%s1081 + $0x2c8] sm:$0xff]
        %v1651 = vld [vmem:[%s1081 + $0x2d0] sm:$0xff]
        %v1652 = vld [vmem:[%s1081 + $0x2d8] sm:$0xff]
        %v1653 = vld [vmem:[%s1081 + $0x2e0] sm:$0xff]
        %v1654 = vld [vmem:[%s1081 + $0x2e8] sm:$0xff]
        %v1655 = vld [vmem:[%s1081 + $0x2f0] sm:$0xff]
        %v1656 = vld [vmem:[%s1081 + $0x2f8] sm:$0xff]
        %v1657 = vld [vmem:[%s1090] sm:$0x3f]
        %v1659 = vlaneseq
        %v1660 = vshrl.u32 %v1659, 7
        %v1661 = vsub.s32 0, %v1660
        %v1662 = vrot.slane %v1657, %v1661
        %v1663 = vlaneseq
        %v1664 = vshrl.u32 %v1663, 7
        %v1665 = vsub.s32 1, %v1664
        %v1666 = vrot.slane %v1657, %v1665
        %v1667 = vlaneseq
        %v1668 = vshrl.u32 %v1667, 7
        %v1669 = vsub.s32 2, %v1668
        %v1670 = vrot.slane %v1657, %v1669
        %v1671 = vlaneseq
        %v1672 = vshrl.u32 %v1671, 7
        %v1673 = vsub.s32 3, %v1672
        %v1674 = vrot.slane %v1657, %v1673
        %v1675 = vlaneseq
        %v1676 = vshrl.u32 %v1675, 7
        %v1677 = vsub.s32 4, %v1676
        %v1678 = vrot.slane %v1657, %v1677
        %v1679 = vlaneseq
        %v1680 = vshrl.u32 %v1679, 7
        %v1681 = vsub.s32 5, %v1680
        %v1682 = vrot.slane %v1657, %v1681
        %v1785 = vunpack.c.l.b16 %v1561
        %v1786 = vunpack.c.h.b16 %v1561
        %v1787 = vunpack.c.l.b16 %v1562
        %v1788 = vunpack.c.h.b16 %v1562
        %v1789 = vunpack.c.l.b16 %v1563
        %v1790 = vunpack.c.h.b16 %v1563
        %v1791 = vunpack.c.l.b16 %v1564
        %v1792 = vunpack.c.h.b16 %v1564
        %v1793 = vunpack.c.l.b16 %v1565
        %v1794 = vunpack.c.h.b16 %v1565
        %v1795 = vunpack.c.l.b16 %v1566
        %v1796 = vunpack.c.h.b16 %v1566
        %v1797 = vunpack.c.l.b16 %v1567
        %v1798 = vunpack.c.h.b16 %v1567
        %v1799 = vunpack.c.l.b16 %v1568
        %v1800 = vunpack.c.h.b16 %v1568
        %v1801 = vunpack.c.l.b16 %v1569
        %v1802 = vunpack.c.h.b16 %v1569
        %v1803 = vunpack.c.l.b16 %v1570
        %v1804 = vunpack.c.h.b16 %v1570
        %v1805 = vunpack.c.l.b16 %v1571
        %v1806 = vunpack.c.h.b16 %v1571
        %v1807 = vunpack.c.l.b16 %v1572
        %v1808 = vunpack.c.h.b16 %v1572
        %v1809 = vunpack.c.l.b16 %v1573
        %v1810 = vunpack.c.h.b16 %v1573
        %v1811 = vunpack.c.l.b16 %v1574
        %v1812 = vunpack.c.h.b16 %v1574
        %v1813 = vunpack.c.l.b16 %v1575
        %v1814 = vunpack.c.h.b16 %v1575
        %v1815 = vunpack.c.l.b16 %v1576
        %v1816 = vunpack.c.h.b16 %v1576
        %v1817 = vunpack.c.l.b16 %v1577
        %v1818 = vunpack.c.h.b16 %v1577
        %v1819 = vunpack.c.l.b16 %v1578
        %v1820 = vunpack.c.h.b16 %v1578
        %v1821 = vunpack.c.l.b16 %v1579
        %v1822 = vunpack.c.h.b16 %v1579
        %v1823 = vunpack.c.l.b16 %v1580
        %v1824 = vunpack.c.h.b16 %v1580
        %v1825 = vunpack.c.l.b16 %v1581
        %v1826 = vunpack.c.h.b16 %v1581
        %v1827 = vunpack.c.l.b16 %v1582
        %v1828 = vunpack.c.h.b16 %v1582
        %v1829 = vunpack.c.l.b16 %v1583
        %v1830 = vunpack.c.h.b16 %v1583
        %v1831 = vunpack.c.l.b16 %v1584
        %v1832 = vunpack.c.h.b16 %v1584
        %v1833 = vunpack.c.l.b16 %v1585
        %v1834 = vunpack.c.h.b16 %v1585
        %v1835 = vunpack.c.l.b16 %v1586
        %v1836 = vunpack.c.h.b16 %v1586
        %v1837 = vunpack.c.l.b16 %v1587
        %v1838 = vunpack.c.h.b16 %v1587
        %v1839 = vunpack.c.l.b16 %v1588
        %v1840 = vunpack.c.h.b16 %v1588
        %v1841 = vunpack.c.l.b16 %v1589
        %v1842 = vunpack.c.h.b16 %v1589
        %v1843 = vunpack.c.l.b16 %v1590
        %v1844 = vunpack.c.h.b16 %v1590
        %v1845 = vunpack.c.l.b16 %v1591
        %v1846 = vunpack.c.h.b16 %v1591
        %v1847 = vunpack.c.l.b16 %v1592
        %v1848 = vunpack.c.h.b16 %v1592
        %v1849 = vunpack.c.l.b16 %v1593
        %v1850 = vunpack.c.h.b16 %v1593
        %v1851 = vunpack.c.l.b16 %v1594
        %v1852 = vunpack.c.h.b16 %v1594
        %v1853 = vunpack.c.l.b16 %v1595
        %v1854 = vunpack.c.h.b16 %v1595
        %v1855 = vunpack.c.l.b16 %v1596
        %v1856 = vunpack.c.h.b16 %v1596
        %v1857 = vunpack.c.l.b16 %v1597
        %v1858 = vunpack.c.h.b16 %v1597
        %v1859 = vunpack.c.l.b16 %v1598
        %v1860 = vunpack.c.h.b16 %v1598
        %v1861 = vunpack.c.l.b16 %v1599
        %v1862 = vunpack.c.h.b16 %v1599
        %v1863 = vunpack.c.l.b16 %v1600
        %v1864 = vunpack.c.h.b16 %v1600
        %v1865 = vunpack.c.l.b16 %v1601
        %v1866 = vunpack.c.h.b16 %v1601
        %v1867 = vunpack.c.l.b16 %v1602
        %v1868 = vunpack.c.h.b16 %v1602
        %v1869 = vunpack.c.l.b16 %v1603
        %v1870 = vunpack.c.h.b16 %v1603
        %v1871 = vunpack.c.l.b16 %v1604
        %v1872 = vunpack.c.h.b16 %v1604
        %v1873 = vunpack.c.l.b16 %v1605
        %v1874 = vunpack.c.h.b16 %v1605
        %v1875 = vunpack.c.l.b16 %v1606
        %v1876 = vunpack.c.h.b16 %v1606
        %v1877 = vunpack.c.l.b16 %v1607
        %v1878 = vunpack.c.h.b16 %v1607
        %v1879 = vunpack.c.l.b16 %v1608
        %v1880 = vunpack.c.h.b16 %v1608
        %v1881 = vunpack.c.l.b16 %v1609
        %v1882 = vunpack.c.h.b16 %v1609
        %v1883 = vunpack.c.l.b16 %v1610
        %v1884 = vunpack.c.h.b16 %v1610
        %v1885 = vunpack.c.l.b16 %v1611
        %v1886 = vunpack.c.h.b16 %v1611
        %v1887 = vunpack.c.l.b16 %v1612
        %v1888 = vunpack.c.h.b16 %v1612
        %v1889 = vunpack.c.l.b16 %v1613
        %v1890 = vunpack.c.h.b16 %v1613
        %v1891 = vunpack.c.l.b16 %v1614
        %v1892 = vunpack.c.h.b16 %v1614
        %v1893 = vunpack.c.l.b16 %v1615
        %v1894 = vunpack.c.h.b16 %v1615
        %v1895 = vunpack.c.l.b16 %v1616
        %v1896 = vunpack.c.h.b16 %v1616
        %v1897 = vunpack.c.l.b16 %v1617
        %v1898 = vunpack.c.h.b16 %v1617
        %v1899 = vunpack.c.l.b16 %v1618
        %v1900 = vunpack.c.h.b16 %v1618
        %v1901 = vunpack.c.l.b16 %v1619
        %v1902 = vunpack.c.h.b16 %v1619
        %v1903 = vunpack.c.l.b16 %v1620
        %v1904 = vunpack.c.h.b16 %v1620
        %v1905 = vunpack.c.l.b16 %v1621
        %v1906 = vunpack.c.h.b16 %v1621
        %v1907 = vunpack.c.l.b16 %v1622
        %v1908 = vunpack.c.h.b16 %v1622
        %v1909 = vunpack.c.l.b16 %v1623
        %v1910 = vunpack.c.h.b16 %v1623
        %v1911 = vunpack.c.l.b16 %v1624
        %v1912 = vunpack.c.h.b16 %v1624
        %v1913 = vunpack.c.l.b16 %v1625
        %v1914 = vunpack.c.h.b16 %v1625
        %v1915 = vunpack.c.l.b16 %v1626
        %v1916 = vunpack.c.h.b16 %v1626
        %v1917 = vunpack.c.l.b16 %v1627
        %v1918 = vunpack.c.h.b16 %v1627
        %v1919 = vunpack.c.l.b16 %v1628
        %v1920 = vunpack.c.h.b16 %v1628
        %v1921 = vunpack.c.l.b16 %v1629
        %v1922 = vunpack.c.h.b16 %v1629
        %v1923 = vunpack.c.l.b16 %v1630
        %v1924 = vunpack.c.h.b16 %v1630
        %v1925 = vunpack.c.l.b16 %v1631
        %v1926 = vunpack.c.h.b16 %v1631
        %v1927 = vunpack.c.l.b16 %v1632
        %v1928 = vunpack.c.h.b16 %v1632
        %v1929 = vunpack.c.l.b16 %v1633
        %v1930 = vunpack.c.h.b16 %v1633
        %v1931 = vunpack.c.l.b16 %v1634
        %v1932 = vunpack.c.h.b16 %v1634
        %v1933 = vunpack.c.l.b16 %v1635
        %v1934 = vunpack.c.h.b16 %v1635
        %v1935 = vunpack.c.l.b16 %v1636
        %v1936 = vunpack.c.h.b16 %v1636
        %v1937 = vunpack.c.l.b16 %v1637
        %v1938 = vunpack.c.h.b16 %v1637
        %v1939 = vunpack.c.l.b16 %v1638
        %v1940 = vunpack.c.h.b16 %v1638
        %v1941 = vunpack.c.l.b16 %v1639
        %v1942 = vunpack.c.h.b16 %v1639
        %v1943 = vunpack.c.l.b16 %v1640
        %v1944 = vunpack.c.h.b16 %v1640
        %v1945 = vunpack.c.l.b16 %v1641
        %v1946 = vunpack.c.h.b16 %v1641
        %v1947 = vunpack.c.l.b16 %v1642
        %v1948 = vunpack.c.h.b16 %v1642
        %v1949 = vunpack.c.l.b16 %v1643
        %v1950 = vunpack.c.h.b16 %v1643
        %v1951 = vunpack.c.l.b16 %v1644
        %v1952 = vunpack.c.h.b16 %v1644
        %v1953 = vunpack.c.l.b16 %v1645
        %v1954 = vunpack.c.h.b16 %v1645
        %v1955 = vunpack.c.l.b16 %v1646
        %v1956 = vunpack.c.h.b16 %v1646
        %v1957 = vunpack.c.l.b16 %v1647
        %v1958 = vunpack.c.h.b16 %v1647
        %v1959 = vunpack.c.l.b16 %v1648
        %v1960 = vunpack.c.h.b16 %v1648
        %v1961 = vunpack.c.l.b16 %v1649
        %v1962 = vunpack.c.h.b16 %v1649
        %v1963 = vunpack.c.l.b16 %v1650
        %v1964 = vunpack.c.h.b16 %v1650
        %v1965 = vunpack.c.l.b16 %v1651
        %v1966 = vunpack.c.h.b16 %v1651
        %v1967 = vunpack.c.l.b16 %v1652
        %v1968 = vunpack.c.h.b16 %v1652
        %v1969 = vunpack.c.l.b16 %v1653
        %v1970 = vunpack.c.h.b16 %v1653
        %v1971 = vunpack.c.l.b16 %v1654
        %v1972 = vunpack.c.h.b16 %v1654
        %v1973 = vunpack.c.l.b16 %v1655
        %v1974 = vunpack.c.h.b16 %v1655
        %v1975 = vunpack.c.l.b16 %v1656
        %v1976 = vunpack.c.h.b16 %v1656
        %v1977 = vpack.c.b16 %v1791, %v1785
        %v1978 = vpack.c.b16 %v1792, %v1786
        %v1979 = vpack.c.b16 %v1793, %v1787
        %v1980 = vpack.c.b16 %v1794, %v1788
        %v1981 = vpack.c.b16 %v1795, %v1789
        %v1982 = vpack.c.b16 %v1796, %v1790
        %v1983 = vpack.c.b16 %v1803, %v1797
        %v1984 = vpack.c.b16 %v1804, %v1798
        %v1985 = vpack.c.b16 %v1805, %v1799
        %v1986 = vpack.c.b16 %v1806, %v1800
        %v1987 = vpack.c.b16 %v1807, %v1801
        %v1988 = vpack.c.b16 %v1808, %v1802
        %v1989 = vpack.c.b16 %v1815, %v1809
        %v1990 = vpack.c.b16 %v1816, %v1810
        %v1991 = vpack.c.b16 %v1817, %v1811
        %v1992 = vpack.c.b16 %v1818, %v1812
        %v1993 = vpack.c.b16 %v1819, %v1813
        %v1994 = vpack.c.b16 %v1820, %v1814
        %v1995 = vpack.c.b16 %v1827, %v1821
        %v1996 = vpack.c.b16 %v1828, %v1822
        %v1997 = vpack.c.b16 %v1829, %v1823
        %v1998 = vpack.c.b16 %v1830, %v1824
        %v1999 = vpack.c.b16 %v1831, %v1825
        %v2000 = vpack.c.b16 %v1832, %v1826
        %v2001 = vpack.c.b16 %v1839, %v1833
        %v2002 = vpack.c.b16 %v1840, %v1834
        %v2003 = vpack.c.b16 %v1841, %v1835
        %v2004 = vpack.c.b16 %v1842, %v1836
        %v2005 = vpack.c.b16 %v1843, %v1837
        %v2006 = vpack.c.b16 %v1844, %v1838
        %v2007 = vpack.c.b16 %v1851, %v1845
        %v2008 = vpack.c.b16 %v1852, %v1846
        %v2009 = vpack.c.b16 %v1853, %v1847
        %v2010 = vpack.c.b16 %v1854, %v1848
        %v2011 = vpack.c.b16 %v1855, %v1849
        %v2012 = vpack.c.b16 %v1856, %v1850
        %v2013 = vpack.c.b16 %v1863, %v1857
        %v2014 = vpack.c.b16 %v1864, %v1858
        %v2015 = vpack.c.b16 %v1865, %v1859
        %v2016 = vpack.c.b16 %v1866, %v1860
        %v2017 = vpack.c.b16 %v1867, %v1861
        %v2018 = vpack.c.b16 %v1868, %v1862
        %v2019 = vpack.c.b16 %v1875, %v1869
        %v2020 = vpack.c.b16 %v1876, %v1870
        %v2021 = vpack.c.b16 %v1877, %v1871
        %v2022 = vpack.c.b16 %v1878, %v1872
        %v2023 = vpack.c.b16 %v1879, %v1873
        %v2024 = vpack.c.b16 %v1880, %v1874
        %v2025 = vpack.c.b16 %v1887, %v1881
        %v2026 = vpack.c.b16 %v1888, %v1882
        %v2027 = vpack.c.b16 %v1889, %v1883
        %v2028 = vpack.c.b16 %v1890, %v1884
        %v2029 = vpack.c.b16 %v1891, %v1885
        %v2030 = vpack.c.b16 %v1892, %v1886
        %v2031 = vpack.c.b16 %v1899, %v1893
        %v2032 = vpack.c.b16 %v1900, %v1894
        %v2033 = vpack.c.b16 %v1901, %v1895
        %v2034 = vpack.c.b16 %v1902, %v1896
        %v2035 = vpack.c.b16 %v1903, %v1897
        %v2036 = vpack.c.b16 %v1904, %v1898
        %v2037 = vpack.c.b16 %v1911, %v1905
        %v2038 = vpack.c.b16 %v1912, %v1906
        %v2039 = vpack.c.b16 %v1913, %v1907
        %v2040 = vpack.c.b16 %v1914, %v1908
        %v2041 = vpack.c.b16 %v1915, %v1909
        %v2042 = vpack.c.b16 %v1916, %v1910
        %v2043 = vpack.c.b16 %v1923, %v1917
        %v2044 = vpack.c.b16 %v1924, %v1918
        %v2045 = vpack.c.b16 %v1925, %v1919
        %v2046 = vpack.c.b16 %v1926, %v1920
        %v2047 = vpack.c.b16 %v1927, %v1921
        %v2048 = vpack.c.b16 %v1928, %v1922
        %v2049 = vpack.c.b16 %v1935, %v1929
        %v2050 = vpack.c.b16 %v1936, %v1930
        %v2051 = vpack.c.b16 %v1937, %v1931
        %v2052 = vpack.c.b16 %v1938, %v1932
        %v2053 = vpack.c.b16 %v1939, %v1933
        %v2054 = vpack.c.b16 %v1940, %v1934
        %v2055 = vpack.c.b16 %v1947, %v1941
        %v2056 = vpack.c.b16 %v1948, %v1942
        %v2057 = vpack.c.b16 %v1949, %v1943
        %v2058 = vpack.c.b16 %v1950, %v1944
        %v2059 = vpack.c.b16 %v1951, %v1945
        %v2060 = vpack.c.b16 %v1952, %v1946
        %v2061 = vpack.c.b16 %v1959, %v1953
        %v2062 = vpack.c.b16 %v1960, %v1954
        %v2063 = vpack.c.b16 %v1961, %v1955
        %v2064 = vpack.c.b16 %v1962, %v1956
        %v2065 = vpack.c.b16 %v1963, %v1957
        %v2066 = vpack.c.b16 %v1964, %v1958
        %v2067 = vpack.c.b16 %v1971, %v1965
        %v2068 = vpack.c.b16 %v1972, %v1966
        %v2069 = vpack.c.b16 %v1973, %v1967
        %v2070 = vpack.c.b16 %v1974, %v1968
        %v2071 = vpack.c.b16 %v1975, %v1969
        %v2072 = vpack.c.b16 %v1976, %v1970
        %2169 = vmatprep.subr.bf16.mxu0 %v1978
        %2170 = vmatpush1.bf16.msra.mxu0 %v1977
        %2171 = vmatprep.subr.bf16.mxu0 %v1984
        %2172 = vmatpush1.bf16.msra.mxu0 %v1983
        %2173 = vmatprep.subr.bf16.mxu0 %v1990
        %2174 = vmatpush1.bf16.msra.mxu0 %v1989
        %2175 = vmatprep.subr.bf16.mxu0 %v1996
        %2176 = vmatpush1.bf16.msra.mxu0 %v1995
        %2177 = vmatprep.subr.bf16.mxu0 %v2002
        %2178 = vmatpush1.bf16.msra.mxu0 %v2001
        %2179 = vmatprep.subr.bf16.mxu0 %v2008
        %2180 = vmatpush1.bf16.msra.mxu0 %v2007
        %2181 = vmatprep.subr.bf16.mxu0 %v2014
        %2182 = vmatpush1.bf16.msra.mxu0 %v2013
        %2183 = vmatprep.subr.bf16.mxu0 %v2020
        %2184 = vmatpush1.bf16.msra.mxu0 %v2019
        %2185 = vmatprep.subr.bf16.mxu0 %v2026
        %2186 = vmatpush1.bf16.msra.mxu0 %v2025
        %2187 = vmatprep.subr.bf16.mxu0 %v2032
        %2188 = vmatpush1.bf16.msra.mxu0 %v2031
        %2189 = vmatprep.subr.bf16.mxu0 %v2038
        %2190 = vmatpush1.bf16.msra.mxu0 %v2037
        %2191 = vmatprep.subr.bf16.mxu0 %v2044
        %2192 = vmatpush1.bf16.msra.mxu0 %v2043
        %2193 = vmatprep.subr.bf16.mxu0 %v2050
        %2194 = vmatpush1.bf16.msra.mxu0 %v2049
        %2195 = vmatprep.subr.bf16.mxu0 %v2056
        %2196 = vmatpush1.bf16.msra.mxu0 %v2055
        %2197 = vmatprep.subr.bf16.mxu0 %v2062
        %2198 = vmatpush1.bf16.msra.mxu0 %v2061
        %2199 = vmatprep.subr.bf16.mxu0 %v2068
        %2200 = vmatpush1.bf16.msra.mxu0 %v2067
        %2201 = vmatprep.mubr.bf16.mxu0 %v1558
        %2202 = vmatmul.mubr.bf16.gmra.mrb[0].mxu0 %v1557
        %v2203 = vpop.f32.mrb[0].mxu0
        %v2204 = vadd.f32 %v1662, %v2203
        %v2205 = vpop.f32.mrb[0].mxu0
        %v2206 = vadd.f32 %v1666, %v2205
        %v2207 = vpop.f32.mrb[0].mxu0
        %v2208 = vadd.f32 %v1662, %v2207
        %v2209 = vpop.f32.mrb[0].mxu0
        %v2210 = vadd.f32 %v1666, %v2209
        %2211 = vmatprep.mubr.bf16.mxu0 %v1560
        %2212 = vmatmul.mubr.bf16.gmra.mrb[0].mxu0 %v1559
        %v2213 = vpop.f32.mrb[0].mxu0
        %v2214 = vadd.f32 %v1662, %v2213
        %v2215 = vpop.f32.mrb[0].mxu0
        %v2216 = vadd.f32 %v1666, %v2215
        %v2217 = vpop.f32.mrb[0].mxu0
        %v2218 = vadd.f32 %v1662, %v2217
        %v2219 = vpop.f32.mrb[0].mxu0
        %v2220 = vadd.f32 %v1666, %v2219
        %2221 = vdwg.mxu0
        %2222 = vmatprep.subr.bf16.mxu0 %v1980
        %2223 = vmatpush1.bf16.msra.mxu0 %v1979
        %2224 = vmatprep.subr.bf16.mxu0 %v1986
        %2225 = vmatpush1.bf16.msra.mxu0 %v1985
        %2226 = vmatprep.subr.bf16.mxu0 %v1992
        %2227 = vmatpush1.bf16.msra.mxu0 %v1991
        %2228 = vmatprep.subr.bf16.mxu0 %v1998
        %2229 = vmatpush1.bf16.msra.mxu0 %v1997
        %2230 = vmatprep.subr.bf16.mxu0 %v2004
        %2231 = vmatpush1.bf16.msra.mxu0 %v2003
        %2232 = vmatprep.subr.bf16.mxu0 %v2010
        %2233 = vmatpush1.bf16.msra.mxu0 %v2009
        %2234 = vmatprep.subr.bf16.mxu0 %v2016
        %2235 = vmatpush1.bf16.msra.mxu0 %v2015
        %2236 = vmatprep.subr.bf16.mxu0 %v2022
        %2237 = vmatpush1.bf16.msra.mxu0 %v2021
        %2238 = vmatprep.subr.bf16.mxu0 %v2028
        %2239 = vmatpush1.bf16.msra.mxu0 %v2027
        %2240 = vmatprep.subr.bf16.mxu0 %v2034
        %2241 = vmatpush1.bf16.msra.mxu0 %v2033
        %2242 = vmatprep.subr.bf16.mxu0 %v2040
        %2243 = vmatpush1.bf16.msra.mxu0 %v2039
        %2244 = vmatprep.subr.bf16.mxu0 %v2046
        %2245 = vmatpush1.bf16.msra.mxu0 %v2045
        %2246 = vmatprep.subr.bf16.mxu0 %v2052
        %2247 = vmatpush1.bf16.msra.mxu0 %v2051
        %2248 = vmatprep.subr.bf16.mxu0 %v2058
        %2249 = vmatpush1.bf16.msra.mxu0 %v2057
        %2250 = vmatprep.subr.bf16.mxu0 %v2064
        %2251 = vmatpush1.bf16.msra.mxu0 %v2063
        %2252 = vmatprep.subr.bf16.mxu0 %v2070
        %2253 = vmatpush1.bf16.msra.mxu0 %v2069
        %2254 = vmatprep.mubr.bf16.mxu0 %v1558
        %2255 = vmatmul.mubr.bf16.gmra.mrb[0].mxu0 %v1557
        %v2256 = vpop.f32.mrb[0].mxu0
        %v2257 = vadd.f32 %v1670, %v2256
        %v2258 = vpop.f32.mrb[0].mxu0
        %v2259 = vadd.f32 %v1674, %v2258
        %v2260 = vpop.f32.mrb[0].mxu0
        %v2261 = vadd.f32 %v1670, %v2260
        %v2262 = vpop.f32.mrb[0].mxu0
        %v2263 = vadd.f32 %v1674, %v2262
        %2264 = vmatprep.mubr.bf16.mxu0 %v1560
        %2265 = vmatmul.mubr.bf16.gmra.mrb[0].mxu0 %v1559
        %v2266 = vpop.f32.mrb[0].mxu0
        %v2267 = vadd.f32 %v1670, %v2266
        %v2268 = vpop.f32.mrb[0].mxu0
        %v2269 = vadd.f32 %v1674, %v2268
        %v2270 = vpop.f32.mrb[0].mxu0
        %v2271 = vadd.f32 %v1670, %v2270
        %v2272 = vpop.f32.mrb[0].mxu0
        %v2273 = vadd.f32 %v1674, %v2272
        %2274 = vdwg.mxu0
        %2275 = vmatprep.subr.bf16.mxu0 %v1982
        %2276 = vmatpush1.bf16.msra.mxu0 %v1981
        %2277 = vmatprep.subr.bf16.mxu0 %v1988
        %2278 = vmatpush1.bf16.msra.mxu0 %v1987
        %2279 = vmatprep.subr.bf16.mxu0 %v1994
        %2280 = vmatpush1.bf16.msra.mxu0 %v1993
        %2281 = vmatprep.subr.bf16.mxu0 %v2000
        %2282 = vmatpush1.bf16.msra.mxu0 %v1999
        %2283 = vmatprep.subr.bf16.mxu0 %v2006
        %2284 = vmatpush1.bf16.msra.mxu0 %v2005
        %2285 = vmatprep.subr.bf16.mxu0 %v2012
        %2286 = vmatpush1.bf16.msra.mxu0 %v2011
        %2287 = vmatprep.subr.bf16.mxu0 %v2018
        %2288 = vmatpush1.bf16.msra.mxu0 %v2017
        %2289 = vmatprep.subr.bf16.mxu0 %v2024
        %2290 = vmatpush1.bf16.msra.mxu0 %v2023
        %2291 = vmatprep.subr.bf16.mxu0 %v2030
        %2292 = vmatpush1.bf16.msra.mxu0 %v2029
        %2293 = vmatprep.subr.bf16.mxu0 %v2036
        %2294 = vmatpush1.bf16.msra.mxu0 %v2035
        %2295 = vmatprep.subr.bf16.mxu0 %v2042
        %2296 = vmatpush1.bf16.msra.mxu0 %v2041
        %2297 = vmatprep.subr.bf16.mxu0 %v2048
        %2298 = vmatpush1.bf16.msra.mxu0 %v2047
        %2299 = vmatprep.subr.bf16.mxu0 %v2054
        %2300 = vmatpush1.bf16.msra.mxu0 %v2053
        %2301 = vmatprep.subr.bf16.mxu0 %v2060
        %2302 = vmatpush1.bf16.msra.mxu0 %v2059
        %2303 = vmatprep.subr.bf16.mxu0 %v2066
        %2304 = vmatpush1.bf16.msra.mxu0 %v2065
        %2305 = vmatprep.subr.bf16.mxu0 %v2072
        %2306 = vmatpush1.bf16.msra.mxu0 %v2071
        %2307 = vmatprep.mubr.bf16.mxu0 %v1558
        %2308 = vmatmul.mubr.bf16.gmra.mrb[0].mxu0 %v1557
        %v2309 = vpop.f32.mrb[0].mxu0
        %v2310 = vadd.f32 %v1678, %v2309
        %v2311 = vpop.f32.mrb[0].mxu0
        %v2312 = vadd.f32 %v1682, %v2311
        %v2313 = vpop.f32.mrb[0].mxu0
        %v2314 = vadd.f32 %v1678, %v2313
        %v2315 = vpop.f32.mrb[0].mxu0
        %v2316 = vadd.f32 %v1682, %v2315
        %2317 = vmatprep.mubr.bf16.mxu0 %v1560
        %2318 = vmatmul.mubr.bf16.gmra.mrb[0].mxu0 %v1559
        %v2319 = vpop.f32.mrb[0].mxu0
        %v2320 = vadd.f32 %v1678, %v2319
        %v2321 = vpop.f32.mrb[0].mxu0
        %v2322 = vadd.f32 %v1682, %v2321
        %v2323 = vpop.f32.mrb[0].mxu0
        %v2324 = vadd.f32 %v1678, %v2323
        %v2325 = vpop.f32.mrb[0].mxu0
        %v2326 = vadd.f32 %v1682, %v2325
        %2327 = vdwg.mxu0
        %v2328 = vpack.c.bf16 %v2208, %v2204
        %v2329 = vpack.c.bf16 %v2218, %v2214
        %v2330 = vpack.c.bf16 %v2261, %v2257
        %v2331 = vpack.c.bf16 %v2271, %v2267
        %v2332 = vpack.c.bf16 %v2314, %v2310
        %v2333 = vpack.c.bf16 %v2324, %v2320
        %2334 = vmatprep.subr.bf16.mxu0 0
        %2335 = vmatpush1.bf16.xpose.msra.mxu0 %v2330
        %2336 = vmatprep.subr.bf16.mxu0 0
        %2337 = vmatpush1.bf16.xpose.msra.mxu0 0
        %2338 = vmatprep.subr.bf16.mxu0 0
        %2339 = vmatpush1.bf16.xpose.msra.mxu0 0
        %2340 = vmatprep.subr.bf16.mxu0 0
        %2341 = vmatpush1.bf16.xpose.msra.mxu0 0
        %2342 = vmatprep.subr.bf16.mxu0 0
        %2343 = vmatpush1.bf16.xpose.msra.mxu0 0
        %2344 = vmatprep.subr.bf16.mxu0 0
        %2345 = vmatpush1.bf16.xpose.msra.mxu0 0
        %2346 = vmatprep.subr.bf16.mxu0 0
        %2347 = vmatpush1.bf16.xpose.msra.mxu0 0
        %2348 = vmatprep.subr.bf16.mxu0 0
        %2349 = vmatpush1.bf16.xpose.msra.mxu0 0
        %2350 = vmatprep.subr.bf16.mxu0 0
        %2351 = vmatpush1.bf16.xpose.msra.mxu0 0
        %2352 = vmatprep.subr.bf16.mxu0 0
        %2353 = vmatpush1.bf16.xpose.msra.mxu0 0
        %2354 = vmatprep.subr.bf16.mxu0 0
        %2355 = vmatpush1.bf16.xpose.msra.mxu0 0
        %2356 = vmatprep.subr.bf16.mxu0 0
        %2357 = vmatpush1.bf16.xpose.msra.mxu0 0
        %2358 = vmatprep.subr.bf16.mxu0 0
        %2359 = vmatpush1.bf16.xpose.msra.mxu0 0
        %2360 = vmatprep.subr.bf16.mxu0 0
        %2361 = vmatpush1.bf16.xpose.msra.mxu0 0
        %2362 = vmatprep.subr.bf16.mxu0 0
        %2363 = vmatpush1.bf16.xpose.msra.mxu0 0
        %2364 = vmatprep.subr.bf16.mxu0 0
        %2365 = vmatpush1.bf16.xpose.msra.mxu0 0
        %2366 = vmatprep.mubr.bf16.mxu0 0
        %2367 = vmatmul.mubr.bf16.gmra.mrb[0].mxu0 %v2328
        %v2368 = vpop.f32.mrb[0].mxu0
        %v2369 = vadd.f32 0.0, %v2368
        %v2370 = vpop.f32.mrb[0].mxu0
        %v2371 = vpop.f32.mrb[0].mxu0
        %v2372 = vadd.f32 0.0, %v2371
        %v2373 = vpop.f32.mrb[0].mxu0
        %2374 = vdwg.mxu0
        %2375 = vmatprep.subr.bf16.mxu0 0
        %2376 = vmatpush1.bf16.xpose.msra.mxu0 %v2331
        %2377 = vmatprep.subr.bf16.mxu0 0
        %2378 = vmatpush1.bf16.xpose.msra.mxu0 0
        %2379 = vmatprep.subr.bf16.mxu0 0
        %2380 = vmatpush1.bf16.xpose.msra.mxu0 0
        %2381 = vmatprep.subr.bf16.mxu0 0
        %2382 = vmatpush1.bf16.xpose.msra.mxu0 0
        %2383 = vmatprep.subr.bf16.mxu0 0
        %2384 = vmatpush1.bf16.xpose.msra.mxu0 0
        %2385 = vmatprep.subr.bf16.mxu0 0
        %2386 = vmatpush1.bf16.xpose.msra.mxu0 0
        %2387 = vmatprep.subr.bf16.mxu0 0
        %2388 = vmatpush1.bf16.xpose.msra.mxu0 0
        %2389 = vmatprep.subr.bf16.mxu0 0
        %2390 = vmatpush1.bf16.xpose.msra.mxu0 0
        %2391 = vmatprep.subr.bf16.mxu0 0
        %2392 = vmatpush1.bf16.xpose.msra.mxu0 0
        %2393 = vmatprep.subr.bf16.mxu0 0
        %2394 = vmatpush1.bf16.xpose.msra.mxu0 0
        %2395 = vmatprep.subr.bf16.mxu0 0
        %2396 = vmatpush1.bf16.xpose.msra.mxu0 0
        %2397 = vmatprep.subr.bf16.mxu0 0
        %2398 = vmatpush1.bf16.xpose.msra.mxu0 0
        %2399 = vmatprep.subr.bf16.mxu0 0
        %2400 = vmatpush1.bf16.xpose.msra.mxu0 0
        %2401 = vmatprep.subr.bf16.mxu0 0
        %2402 = vmatpush1.bf16.xpose.msra.mxu0 0
        %2403 = vmatprep.subr.bf16.mxu0 0
        %2404 = vmatpush1.bf16.xpose.msra.mxu0 0
        %2405 = vmatprep.subr.bf16.mxu0 0
        %2406 = vmatpush1.bf16.xpose.msra.mxu0 0
        %2407 = vmatprep.mubr.bf16.mxu0 0
        %2408 = vmatmul.mubr.bf16.gmra.mrb[0].mxu0 %v2329
        %v2409 = vpop.f32.mrb[0].mxu0
        %v2410 = vadd.f32 0.0, %v2409
        %v2411 = vpop.f32.mrb[0].mxu0
        %v2412 = vpop.f32.mrb[0].mxu0
        %v2413 = vadd.f32 0.0, %v2412
        %v2414 = vpop.f32.mrb[0].mxu0
        %2415 = vdwg.mxu0
        %vm2416 = vcmask 130048
        %v2417 = vsel %vm2416, %v2369, -inf
        %2418 = vmax.xlane.f32.xlu0 %v2417
        %v2419 = vpop.xlane.xlu0 %2418
        %v2420 = vsel %vm2416, %v2372, -inf
        %2421 = vmax.xlane.f32.xlu0 %v2420
        %v2422 = vpop.xlane.xlu0 %2421
        %v2423 = vsel %vm2416, %v2410, -inf
        %2424 = vmax.xlane.f32.xlu0 %v2423
        %v2425 = vpop.xlane.xlu0 %2424
        %v2426 = vsel %vm2416, %v2413, -inf
        %2427 = vmax.xlane.f32.xlu0 %v2426
        %v2428 = vpop.xlane.xlu0 %2427
        %v2429 = vsub.f32 %v2369, %v2419
        %v2430 = vsub.f32 %v2372, %v2422
        %v2431 = vsub.f32 %v2410, %v2425
        %v2432 = vsub.f32 %v2413, %v2428
        %v2433 = vmul.f32 %v2429, 1.442695
        %v2434 = vpow.pop %v2433
        %v2435 = vmul.f32 %v2430, 1.442695
        %v2436 = vpow.pop %v2435
        %v2437 = vmul.f32 %v2431, 1.442695
        %v2438 = vpow.pop %v2437
        %v2439 = vmul.f32 %v2432, 1.442695
        %v2440 = vpow.pop %v2439
        %v2441 = vsel %vm2416, %v2434, 0.0
        %2442 = vadd.xlane.f32.xlu0 %v2441
        %v2443 = vpop.xlane.xlu0 %2442
        %v2444 = vsel %vm2416, %v2436, 0.0
        %2445 = vadd.xlane.f32.xlu0 %v2444
        %v2446 = vpop.xlane.xlu0 %2445
        %v2447 = vsel %vm2416, %v2438, 0.0
        %2448 = vadd.xlane.f32.xlu0 %v2447
        %v2449 = vpop.xlane.xlu0 %2448
        %v2450 = vsel %vm2416, %v2440, 0.0
        %2451 = vadd.xlane.f32.xlu0 %v2450
        %v2452 = vpop.xlane.xlu0 %2451
        %v2453 = vrcp.pop %v2443
        %v2454 = vrcp.pop %v2446
        %v2455 = vrcp.pop %v2449
        %v2456 = vrcp.pop %v2452
        %v2457 = vmul.f32 %v2434, %v2453
        %v2458 = vmul.f32 %v2436, %v2454
        %v2459 = vmul.f32 %v2438, %v2455
        %v2460 = vmul.f32 %v2440, %v2456
        %v2461 = vpack.c.bf16 %v2458, %v2457
        %v2462 = vpack.c.bf16 %v2460, %v2459
        %v2464 = vsel %vm2416, %v2461, 0
        %2466 = vmatprep.subr.bf16.mxu0 0
        %2467 = vmatpush1.bf16.msra.mxu0 %v2332
        %2468 = vmatprep.subr.bf16.mxu0 0
        %2469 = vmatpush1.bf16.msra.mxu0 0
        %2470 = vmatprep.subr.bf16.mxu0 0
        %2471 = vmatpush1.bf16.msra.mxu0 0
        %2472 = vmatprep.subr.bf16.mxu0 0
        %2473 = vmatpush1.bf16.msra.mxu0 0
        %2474 = vmatprep.subr.bf16.mxu0 0
        %2475 = vmatpush1.bf16.msra.mxu0 0
        %2476 = vmatprep.subr.bf16.mxu0 0
        %2477 = vmatpush1.bf16.msra.mxu0 0
        %2478 = vmatprep.subr.bf16.mxu0 0
        %2479 = vmatpush1.bf16.msra.mxu0 0
        %2480 = vmatprep.subr.bf16.mxu0 0
        %2481 = vmatpush1.bf16.msra.mxu0 0
        %2482 = vmatprep.subr.bf16.mxu0 0
        %2483 = vmatpush1.bf16.msra.mxu0 0
        %2484 = vmatprep.subr.bf16.mxu0 0
        %2485 = vmatpush1.bf16.msra.mxu0 0
        %2486 = vmatprep.subr.bf16.mxu0 0
        %2487 = vmatpush1.bf16.msra.mxu0 0
        %2488 = vmatprep.subr.bf16.mxu0 0
        %2489 = vmatpush1.bf16.msra.mxu0 0
        %2490 = vmatprep.subr.bf16.mxu0 0
        %2491 = vmatpush1.bf16.msra.mxu0 0
        %2492 = vmatprep.subr.bf16.mxu0 0
        %2493 = vmatpush1.bf16.msra.mxu0 0
        %2494 = vmatprep.subr.bf16.mxu0 0
        %2495 = vmatpush1.bf16.msra.mxu0 0
        %2496 = vmatprep.subr.bf16.mxu0 0
        %2497 = vmatpush1.bf16.msra.mxu0 0
        %2498 = vmatprep.mubr.bf16.mxu0 0
        %2499 = vmatmul.mubr.bf16.gmra.mrb[0].mxu0 %v2464
        %v2500 = vpop.f32.mrb[0].mxu0
        %v2501 = vadd.f32 0.0, %v2500
        %v2502 = vpop.f32.mrb[0].mxu0
        %v2503 = vpop.f32.mrb[0].mxu0
        %v2504 = vadd.f32 0.0, %v2503
        %v2505 = vpop.f32.mrb[0].mxu0
        %2506 = vdwg.mxu0
        %v2508 = vsel %vm2416, %v2462, 0
        %2510 = vmatprep.subr.bf16.mxu0 0
        %2511 = vmatpush1.bf16.msra.mxu0 %v2333
        %2512 = vmatprep.subr.bf16.mxu0 0
        %2513 = vmatpush1.bf16.msra.mxu0 0
        %2514 = vmatprep.subr.bf16.mxu0 0
        %2515 = vmatpush1.bf16.msra.mxu0 0
        %2516 = vmatprep.subr.bf16.mxu0 0
        %2517 = vmatpush1.bf16.msra.mxu0 0
        %2518 = vmatprep.subr.bf16.mxu0 0
        %2519 = vmatpush1.bf16.msra.mxu0 0
        %2520 = vmatprep.subr.bf16.mxu0 0
        %2521 = vmatpush1.bf16.msra.mxu0 0
        %2522 = vmatprep.subr.bf16.mxu0 0
        %2523 = vmatpush1.bf16.msra.mxu0 0
        %2524 = vmatprep.subr.bf16.mxu0 0
        %2525 = vmatpush1.bf16.msra.mxu0 0
        %2526 = vmatprep.subr.bf16.mxu0 0
        %2527 = vmatpush1.bf16.msra.mxu0 0
        %2528 = vmatprep.subr.bf16.mxu0 0
        %2529 = vmatpush1.bf16.msra.mxu0 0
        %2530 = vmatprep.subr.bf16.mxu0 0
        %2531 = vmatpush1.bf16.msra.mxu0 0
        %2532 = vmatprep.subr.bf16.mxu0 0
        %2533 = vmatpush1.bf16.msra.mxu0 0
        %2534 = vmatprep.subr.bf16.mxu0 0
        %2535 = vmatpush1.bf16.msra.mxu0 0
        %2536 = vmatprep.subr.bf16.mxu0 0
        %2537 = vmatpush1.bf16.msra.mxu0 0
        %2538 = vmatprep.subr.bf16.mxu0 0
        %2539 = vmatpush1.bf16.msra.mxu0 0
        %2540 = vmatprep.subr.bf16.mxu0 0
        %2541 = vmatpush1.bf16.msra.mxu0 0
        %2542 = vmatprep.mubr.bf16.mxu0 0
        %2543 = vmatmul.mubr.bf16.gmra.mrb[0].mxu0 %v2508
        %v2544 = vpop.f32.mrb[0].mxu0
        %v2545 = vadd.f32 0.0, %v2544
        %v2546 = vpop.f32.mrb[0].mxu0
        %v2547 = vpop.f32.mrb[0].mxu0
        %v2548 = vadd.f32 0.0, %v2547
        %v2549 = vpop.f32.mrb[0].mxu0
        %2550 = vdwg.mxu0
        %v2551 = vpack.c.bf16 %v2210, %v2206
        %v2552 = vpack.c.bf16 %v2220, %v2216
        %v2553 = vpack.c.bf16 %v2263, %v2259
        %v2554 = vpack.c.bf16 %v2273, %v2269
        %v2555 = vpack.c.bf16 %v2316, %v2312
        %v2556 = vpack.c.bf16 %v2326, %v2322
        %2557 = vmatprep.subr.bf16.mxu0 0
        %2558 = vmatpush1.bf16.xpose.msra.mxu0 %v2553
        %2559 = vmatprep.subr.bf16.mxu0 0
        %2560 = vmatpush1.bf16.xpose.msra.mxu0 0
        %2561 = vmatprep.subr.bf16.mxu0 0
        %2562 = vmatpush1.bf16.xpose.msra.mxu0 0
        %2563 = vmatprep.subr.bf16.mxu0 0
        %2564 = vmatpush1.bf16.xpose.msra.mxu0 0
        %2565 = vmatprep.subr.bf16.mxu0 0
        %2566 = vmatpush1.bf16.xpose.msra.mxu0 0
        %2567 = vmatprep.subr.bf16.mxu0 0
        %2568 = vmatpush1.bf16.xpose.msra.mxu0 0
        %2569 = vmatprep.subr.bf16.mxu0 0
        %2570 = vmatpush1.bf16.xpose.msra.mxu0 0
        %2571 = vmatprep.subr.bf16.mxu0 0
        %2572 = vmatpush1.bf16.xpose.msra.mxu0 0
        %2573 = vmatprep.subr.bf16.mxu0 0
        %2574 = vmatpush1.bf16.xpose.msra.mxu0 0
        %2575 = vmatprep.subr.bf16.mxu0 0
        %2576 = vmatpush1.bf16.xpose.msra.mxu0 0
        %2577 = vmatprep.subr.bf16.mxu0 0
        %2578 = vmatpush1.bf16.xpose.msra.mxu0 0
        %2579 = vmatprep.subr.bf16.mxu0 0
        %2580 = vmatpush1.bf16.xpose.msra.mxu0 0
        %2581 = vmatprep.subr.bf16.mxu0 0
        %2582 = vmatpush1.bf16.xpose.msra.mxu0 0
        %2583 = vmatprep.subr.bf16.mxu0 0
        %2584 = vmatpush1.bf16.xpose.msra.mxu0 0
        %2585 = vmatprep.subr.bf16.mxu0 0
        %2586 = vmatpush1.bf16.xpose.msra.mxu0 0
        %2587 = vmatprep.subr.bf16.mxu0 0
        %2588 = vmatpush1.bf16.xpose.msra.mxu0 0
        %2589 = vmatprep.mubr.bf16.mxu0 0
        %2590 = vmatmul.mubr.bf16.gmra.mrb[0].mxu0 %v2551
        %v2591 = vpop.f32.mrb[0].mxu0
        %v2592 = vadd.f32 0.0, %v2591
        %v2593 = vpop.f32.mrb[0].mxu0
        %v2594 = vpop.f32.mrb[0].mxu0
        %v2595 = vadd.f32 0.0, %v2594
        %v2596 = vpop.f32.mrb[0].mxu0
        %2597 = vdwg.mxu0
        %2598 = vmatprep.subr.bf16.mxu0 0
        %2599 = vmatpush1.bf16.xpose.msra.mxu0 %v2554
        %2600 = vmatprep.subr.bf16.mxu0 0
        %2601 = vmatpush1.bf16.xpose.msra.mxu0 0
        %2602 = vmatprep.subr.bf16.mxu0 0
        %2603 = vmatpush1.bf16.xpose.msra.mxu0 0
        %2604 = vmatprep.subr.bf16.mxu0 0
        %2605 = vmatpush1.bf16.xpose.msra.mxu0 0
        %2606 = vmatprep.subr.bf16.mxu0 0
        %2607 = vmatpush1.bf16.xpose.msra.mxu0 0
        %2608 = vmatprep.subr.bf16.mxu0 0
        %2609 = vmatpush1.bf16.xpose.msra.mxu0 0
        %2610 = vmatprep.subr.bf16.mxu0 0
        %2611 = vmatpush1.bf16.xpose.msra.mxu0 0
        %2612 = vmatprep.subr.bf16.mxu0 0
        %2613 = vmatpush1.bf16.xpose.msra.mxu0 0
        %2614 = vmatprep.subr.bf16.mxu0 0
        %2615 = vmatpush1.bf16.xpose.msra.mxu0 0
        %2616 = vmatprep.subr.bf16.mxu0 0
        %2617 = vmatpush1.bf16.xpose.msra.mxu0 0
        %2618 = vmatprep.subr.bf16.mxu0 0
        %2619 = vmatpush1.bf16.xpose.msra.mxu0 0
        %2620 = vmatprep.subr.bf16.mxu0 0
        %2621 = vmatpush1.bf16.xpose.msra.mxu0 0
        %2622 = vmatprep.subr.bf16.mxu0 0
        %2623 = vmatpush1.bf16.xpose.msra.mxu0 0
        %2624 = vmatprep.subr.bf16.mxu0 0
        %2625 = vmatpush1.bf16.xpose.msra.mxu0 0
        %2626 = vmatprep.subr.bf16.mxu0 0
        %2627 = vmatpush1.bf16.xpose.msra.mxu0 0
        %2628 = vmatprep.subr.bf16.mxu0 0
        %2629 = vmatpush1.bf16.xpose.msra.mxu0 0
        %2630 = vmatprep.mubr.bf16.mxu0 0
        %2631 = vmatmul.mubr.bf16.gmra.mrb[0].mxu0 %v2552
        %v2632 = vpop.f32.mrb[0].mxu0
        %v2633 = vadd.f32 0.0, %v2632
        %v2634 = vpop.f32.mrb[0].mxu0
        %v2635 = vpop.f32.mrb[0].mxu0
        %v2636 = vadd.f32 0.0, %v2635
        %v2637 = vpop.f32.mrb[0].mxu0
        %2638 = vdwg.mxu0
        %v2639 = vsel %vm2416, %v2592, -inf
        %2640 = vmax.xlane.f32.xlu0 %v2639
        %v2641 = vpop.xlane.xlu0 %2640
        %v2642 = vsel %vm2416, %v2595, -inf
        %2643 = vmax.xlane.f32.xlu0 %v2642
        %v2644 = vpop.xlane.xlu0 %2643
        %v2645 = vsel %vm2416, %v2633, -inf
        %2646 = vmax.xlane.f32.xlu0 %v2645
        %v2647 = vpop.xlane.xlu0 %2646
        %v2648 = vsel %vm2416, %v2636, -inf
        %2649 = vmax.xlane.f32.xlu0 %v2648
        %v2650 = vpop.xlane.xlu0 %2649
        %v2651 = vsub.f32 %v2592, %v2641
        %v2652 = vsub.f32 %v2595, %v2644
        %v2653 = vsub.f32 %v2633, %v2647
        %v2654 = vsub.f32 %v2636, %v2650
        %v2655 = vmul.f32 %v2651, 1.442695
        %v2656 = vpow.pop %v2655
        %v2657 = vmul.f32 %v2652, 1.442695
        %v2658 = vpow.pop %v2657
        %v2659 = vmul.f32 %v2653, 1.442695
        %v2660 = vpow.pop %v2659
        %v2661 = vmul.f32 %v2654, 1.442695
        %v2662 = vpow.pop %v2661
        %v2663 = vsel %vm2416, %v2656, 0.0
        %2664 = vadd.xlane.f32.xlu0 %v2663
        %v2665 = vpop.xlane.xlu0 %2664
        %v2666 = vsel %vm2416, %v2658, 0.0
        %2667 = vadd.xlane.f32.xlu0 %v2666
        %v2668 = vpop.xlane.xlu0 %2667
        %v2669 = vsel %vm2416, %v2660, 0.0
        %2670 = vadd.xlane.f32.xlu0 %v2669
        %v2671 = vpop.xlane.xlu0 %2670
        %v2672 = vsel %vm2416, %v2662, 0.0
        %2673 = vadd.xlane.f32.xlu0 %v2672
        %v2674 = vpop.xlane.xlu0 %2673
        %v2675 = vrcp.pop %v2665
        %v2676 = vrcp.pop %v2668
        %v2677 = vrcp.pop %v2671
        %v2678 = vrcp.pop %v2674
        %v2679 = vmul.f32 %v2656, %v2675
        %v2680 = vmul.f32 %v2658, %v2676
        %v2681 = vmul.f32 %v2660, %v2677
        %v2682 = vmul.f32 %v2662, %v2678
        %v2683 = vpack.c.bf16 %v2680, %v2679
        %v2684 = vpack.c.bf16 %v2682, %v2681
        %v2686 = vsel %vm2416, %v2683, 0
        %2688 = vmatprep.subr.bf16.mxu0 0
        %2689 = vmatpush1.bf16.msra.mxu0 %v2555
        %2690 = vmatprep.subr.bf16.mxu0 0
        %2691 = vmatpush1.bf16.msra.mxu0 0
        %2692 = vmatprep.subr.bf16.mxu0 0
        %2693 = vmatpush1.bf16.msra.mxu0 0
        %2694 = vmatprep.subr.bf16.mxu0 0
        %2695 = vmatpush1.bf16.msra.mxu0 0
        %2696 = vmatprep.subr.bf16.mxu0 0
        %2697 = vmatpush1.bf16.msra.mxu0 0
        %2698 = vmatprep.subr.bf16.mxu0 0
        %2699 = vmatpush1.bf16.msra.mxu0 0
        %2700 = vmatprep.subr.bf16.mxu0 0
        %2701 = vmatpush1.bf16.msra.mxu0 0
        %2702 = vmatprep.subr.bf16.mxu0 0
        %2703 = vmatpush1.bf16.msra.mxu0 0
        %2704 = vmatprep.subr.bf16.mxu0 0
        %2705 = vmatpush1.bf16.msra.mxu0 0
        %2706 = vmatprep.subr.bf16.mxu0 0
        %2707 = vmatpush1.bf16.msra.mxu0 0
        %2708 = vmatprep.subr.bf16.mxu0 0
        %2709 = vmatpush1.bf16.msra.mxu0 0
        %2710 = vmatprep.subr.bf16.mxu0 0
        %2711 = vmatpush1.bf16.msra.mxu0 0
        %2712 = vmatprep.subr.bf16.mxu0 0
        %2713 = vmatpush1.bf16.msra.mxu0 0
        %2714 = vmatprep.subr.bf16.mxu0 0
        %2715 = vmatpush1.bf16.msra.mxu0 0
        %2716 = vmatprep.subr.bf16.mxu0 0
        %2717 = vmatpush1.bf16.msra.mxu0 0
        %2718 = vmatprep.subr.bf16.mxu0 0
        %2719 = vmatpush1.bf16.msra.mxu0 0
        %2720 = vmatprep.mubr.bf16.mxu0 0
        %2721 = vmatmul.mubr.bf16.gmra.mrb[0].mxu0 %v2686
        %v2722 = vpop.f32.mrb[0].mxu0
        %v2723 = vadd.f32 0.0, %v2722
        %v2724 = vpop.f32.mrb[0].mxu0
        %v2725 = vpop.f32.mrb[0].mxu0
        %v2726 = vadd.f32 0.0, %v2725
        %v2727 = vpop.f32.mrb[0].mxu0
        %2728 = vdwg.mxu0
        %v2730 = vsel %vm2416, %v2684, 0
        %2732 = vmatprep.subr.bf16.mxu0 0
        %2733 = vmatpush1.bf16.msra.mxu0 %v2556
        %2734 = vmatprep.subr.bf16.mxu0 0
        %2735 = vmatpush1.bf16.msra.mxu0 0
        %2736 = vmatprep.subr.bf16.mxu0 0
        %2737 = vmatpush1.bf16.msra.mxu0 0
        %2738 = vmatprep.subr.bf16.mxu0 0
        %2739 = vmatpush1.bf16.msra.mxu0 0
        %2740 = vmatprep.subr.bf16.mxu0 0
        %2741 = vmatpush1.bf16.msra.mxu0 0
        %2742 = vmatprep.subr.bf16.mxu0 0
        %2743 = vmatpush1.bf16.msra.mxu0 0
        %2744 = vmatprep.subr.bf16.mxu0 0
        %2745 = vmatpush1.bf16.msra.mxu0 0
        %2746 = vmatprep.subr.bf16.mxu0 0
        %2747 = vmatpush1.bf16.msra.mxu0 0
        %2748 = vmatprep.subr.bf16.mxu0 0
        %2749 = vmatpush1.bf16.msra.mxu0 0
        %2750 = vmatprep.subr.bf16.mxu0 0
        %2751 = vmatpush1.bf16.msra.mxu0 0
        %2752 = vmatprep.subr.bf16.mxu0 0
        %2753 = vmatpush1.bf16.msra.mxu0 0
        %2754 = vmatprep.subr.bf16.mxu0 0
        %2755 = vmatpush1.bf16.msra.mxu0 0
        %2756 = vmatprep.subr.bf16.mxu0 0
        %2757 = vmatpush1.bf16.msra.mxu0 0
        %2758 = vmatprep.subr.bf16.mxu0 0
        %2759 = vmatpush1.bf16.msra.mxu0 0
        %2760 = vmatprep.subr.bf16.mxu0 0
        %2761 = vmatpush1.bf16.msra.mxu0 0
        %2762 = vmatprep.subr.bf16.mxu0 0
        %2763 = vmatpush1.bf16.msra.mxu0 0
        %2764 = vmatprep.mubr.bf16.mxu0 0
        %2765 = vmatmul.mubr.bf16.gmra.mrb[0].mxu0 %v2730
        %v2766 = vpop.f32.mrb[0].mxu0
        %v2767 = vadd.f32 0.0, %v2766
        %v2768 = vpop.f32.mrb[0].mxu0
        %v2769 = vpop.f32.mrb[0].mxu0
        %v2770 = vadd.f32 0.0, %v2769
        %v2771 = vpop.f32.mrb[0].mxu0
        %2772 = vdwg.mxu0
        %v2773 = vpack.c.bf16 %v2504, %v2501
        %v2774 = vpack.c.bf16 %v2726, %v2723
        %v2775 = vpack.c.bf16 %v2548, %v2545
        %v2776 = vpack.c.bf16 %v2770, %v2767
        %v2777 = vld [vmem:[%s1099] sm:$0xff]
        %v2778 = vld [vmem:[%s1099 + $0x8] sm:$0xff]
        %v2779 = vld [vmem:[%s1099 + $0x10] sm:$0xff]
        %v2780 = vld [vmem:[%s1099 + $0x18] sm:$0xff]
        %v2781 = vld [vmem:[%s1099 + $0x20] sm:$0xff]
        %v2782 = vld [vmem:[%s1099 + $0x28] sm:$0xff]
        %v2783 = vld [vmem:[%s1099 + $0x30] sm:$0xff]
        %v2784 = vld [vmem:[%s1099 + $0x38] sm:$0xff]
        %v2785 = vld [vmem:[%s1099 + $0x40] sm:$0xff]
        %v2786 = vld [vmem:[%s1099 + $0x48] sm:$0xff]
        %v2787 = vld [vmem:[%s1099 + $0x50] sm:$0xff]
        %v2788 = vld [vmem:[%s1099 + $0x58] sm:$0xff]
        %v2789 = vld [vmem:[%s1099 + $0x60] sm:$0xff]
        %v2790 = vld [vmem:[%s1099 + $0x68] sm:$0xff]
        %v2791 = vld [vmem:[%s1099 + $0x70] sm:$0xff]
        %v2792 = vld [vmem:[%s1099 + $0x78] sm:$0xff]
        %v2793 = vld [vmem:[%s1099 + $0x80] sm:$0xff]
        %v2794 = vld [vmem:[%s1099 + $0x88] sm:$0xff]
        %v2795 = vld [vmem:[%s1099 + $0x90] sm:$0xff]
        %v2796 = vld [vmem:[%s1099 + $0x98] sm:$0xff]
        %v2797 = vld [vmem:[%s1099 + $0xa0] sm:$0xff]
        %v2798 = vld [vmem:[%s1099 + $0xa8] sm:$0xff]
        %v2799 = vld [vmem:[%s1099 + $0xb0] sm:$0xff]
        %v2800 = vld [vmem:[%s1099 + $0xb8] sm:$0xff]
        %v2801 = vld [vmem:[%s1099 + $0xc0] sm:$0xff]
        %v2802 = vld [vmem:[%s1099 + $0xc8] sm:$0xff]
        %v2803 = vld [vmem:[%s1099 + $0xd0] sm:$0xff]
        %v2804 = vld [vmem:[%s1099 + $0xd8] sm:$0xff]
        %v2805 = vld [vmem:[%s1099 + $0xe0] sm:$0xff]
        %v2806 = vld [vmem:[%s1099 + $0xe8] sm:$0xff]
        %v2807 = vld [vmem:[%s1099 + $0xf0] sm:$0xff]
        %v2808 = vld [vmem:[%s1099 + $0xf8] sm:$0xff]
        %v2809 = vld [vmem:[%s1108] sm:$0x3]
        %v2811 = vlaneseq
        %v2812 = vshrl.u32 %v2811, 7
        %v2813 = vsub.s32 0, %v2812
        %v2814 = vrot.slane %v2809, %v2813
        %v2815 = vlaneseq
        %v2816 = vshrl.u32 %v2815, 7
        %v2817 = vsub.s32 1, %v2816
        %v2818 = vrot.slane %v2809, %v2817
        %v2853 = vunpack.c.l.b16 %v2777
        %v2854 = vunpack.c.h.b16 %v2777
        %v2855 = vunpack.c.l.b16 %v2778
        %v2856 = vunpack.c.h.b16 %v2778
        %v2857 = vunpack.c.l.b16 %v2779
        %v2858 = vunpack.c.h.b16 %v2779
        %v2859 = vunpack.c.l.b16 %v2780
        %v2860 = vunpack.c.h.b16 %v2780
        %v2861 = vunpack.c.l.b16 %v2781
        %v2862 = vunpack.c.h.b16 %v2781
        %v2863 = vunpack.c.l.b16 %v2782
        %v2864 = vunpack.c.h.b16 %v2782
        %v2865 = vunpack.c.l.b16 %v2783
        %v2866 = vunpack.c.h.b16 %v2783
        %v2867 = vunpack.c.l.b16 %v2784
        %v2868 = vunpack.c.h.b16 %v2784
        %v2869 = vunpack.c.l.b16 %v2785
        %v2870 = vunpack.c.h.b16 %v2785
        %v2871 = vunpack.c.l.b16 %v2786
        %v2872 = vunpack.c.h.b16 %v2786
        %v2873 = vunpack.c.l.b16 %v2787
        %v2874 = vunpack.c.h.b16 %v2787
        %v2875 = vunpack.c.l.b16 %v2788
        %v2876 = vunpack.c.h.b16 %v2788
        %v2877 = vunpack.c.l.b16 %v2789
        %v2878 = vunpack.c.h.b16 %v2789
        %v2879 = vunpack.c.l.b16 %v2790
        %v2880 = vunpack.c.h.b16 %v2790
        %v2881 = vunpack.c.l.b16 %v2791
        %v2882 = vunpack.c.h.b16 %v2791
        %v2883 = vunpack.c.l.b16 %v2792
        %v2884 = vunpack.c.h.b16 %v2792
        %v2885 = vunpack.c.l.b16 %v2793
        %v2886 = vunpack.c.h.b16 %v2793
        %v2887 = vunpack.c.l.b16 %v2794
        %v2888 = vunpack.c.h.b16 %v2794
        %v2889 = vunpack.c.l.b16 %v2795
        %v2890 = vunpack.c.h.b16 %v2795
        %v2891 = vunpack.c.l.b16 %v2796
        %v2892 = vunpack.c.h.b16 %v2796
        %v2893 = vunpack.c.l.b16 %v2797
        %v2894 = vunpack.c.h.b16 %v2797
        %v2895 = vunpack.c.l.b16 %v2798
        %v2896 = vunpack.c.h.b16 %v2798
        %v2897 = vunpack.c.l.b16 %v2799
        %v2898 = vunpack.c.h.b16 %v2799
        %v2899 = vunpack.c.l.b16 %v2800
        %v2900 = vunpack.c.h.b16 %v2800
        %v2901 = vunpack.c.l.b16 %v2801
        %v2902 = vunpack.c.h.b16 %v2801
        %v2903 = vunpack.c.l.b16 %v2802
        %v2904 = vunpack.c.h.b16 %v2802
        %v2905 = vunpack.c.l.b16 %v2803
        %v2906 = vunpack.c.h.b16 %v2803
        %v2907 = vunpack.c.l.b16 %v2804
        %v2908 = vunpack.c.h.b16 %v2804
        %v2909 = vunpack.c.l.b16 %v2805
        %v2910 = vunpack.c.h.b16 %v2805
        %v2911 = vunpack.c.l.b16 %v2806
        %v2912 = vunpack.c.h.b16 %v2806
        %v2913 = vunpack.c.l.b16 %v2807
        %v2914 = vunpack.c.h.b16 %v2807
        %v2915 = vunpack.c.l.b16 %v2808
        %v2916 = vunpack.c.h.b16 %v2808
        %v2917 = vpack.c.b16 %v2855, %v2853
        %v2918 = vpack.c.b16 %v2856, %v2854
        %v2919 = vpack.c.b16 %v2859, %v2857
        %v2920 = vpack.c.b16 %v2860, %v2858
        %v2921 = vpack.c.b16 %v2863, %v2861
        %v2922 = vpack.c.b16 %v2864, %v2862
        %v2923 = vpack.c.b16 %v2867, %v2865
        %v2924 = vpack.c.b16 %v2868, %v2866
        %v2925 = vpack.c.b16 %v2871, %v2869
        %v2926 = vpack.c.b16 %v2872, %v2870
        %v2927 = vpack.c.b16 %v2875, %v2873
        %v2928 = vpack.c.b16 %v2876, %v2874
        %v2929 = vpack.c.b16 %v2879, %v2877
        %v2930 = vpack.c.b16 %v2880, %v2878
        %v2931 = vpack.c.b16 %v2883, %v2881
        %v2932 = vpack.c.b16 %v2884, %v2882
        %v2933 = vpack.c.b16 %v2887, %v2885
        %v2934 = vpack.c.b16 %v2888, %v2886
        %v2935 = vpack.c.b16 %v2891, %v2889
        %v2936 = vpack.c.b16 %v2892, %v2890
        %v2937 = vpack.c.b16 %v2895, %v2893
        %v2938 = vpack.c.b16 %v2896, %v2894
        %v2939 = vpack.c.b16 %v2899, %v2897
        %v2940 = vpack.c.b16 %v2900, %v2898
        %v2941 = vpack.c.b16 %v2903, %v2901
        %v2942 = vpack.c.b16 %v2904, %v2902
        %v2943 = vpack.c.b16 %v2907, %v2905
        %v2944 = vpack.c.b16 %v2908, %v2906
        %v2945 = vpack.c.b16 %v2911, %v2909
        %v2946 = vpack.c.b16 %v2912, %v2910
        %v2947 = vpack.c.b16 %v2915, %v2913
        %v2948 = vpack.c.b16 %v2916, %v2914
        %2981 = vmatprep.subr.bf16.mxu0 %v2918
        %2982 = vmatpush1.bf16.msra.mxu0 %v2917
        %2983 = vmatprep.subr.bf16.mxu0 %v2920
        %2984 = vmatpush1.bf16.msra.mxu0 %v2919
        %2985 = vmatprep.subr.bf16.mxu0 %v2922
        %2986 = vmatpush1.bf16.msra.mxu0 %v2921
        %2987 = vmatprep.subr.bf16.mxu0 %v2924
        %2988 = vmatpush1.bf16.msra.mxu0 %v2923
        %2989 = vmatprep.subr.bf16.mxu0 %v2926
        %2990 = vmatpush1.bf16.msra.mxu0 %v2925
        %2991 = vmatprep.subr.bf16.mxu0 %v2928
        %2992 = vmatpush1.bf16.msra.mxu0 %v2927
        %2993 = vmatprep.subr.bf16.mxu0 %v2930
        %2994 = vmatpush1.bf16.msra.mxu0 %v2929
        %2995 = vmatprep.subr.bf16.mxu0 %v2932
        %2996 = vmatpush1.bf16.msra.mxu0 %v2931
        %2997 = vmatprep.subr.bf16.mxu0 %v2934
        %2998 = vmatpush1.bf16.msra.mxu0 %v2933
        %2999 = vmatprep.subr.bf16.mxu0 %v2936
        %3000 = vmatpush1.bf16.msra.mxu0 %v2935
        %3001 = vmatprep.subr.bf16.mxu0 %v2938
        %3002 = vmatpush1.bf16.msra.mxu0 %v2937
        %3003 = vmatprep.subr.bf16.mxu0 %v2940
        %3004 = vmatpush1.bf16.msra.mxu0 %v2939
        %3005 = vmatprep.subr.bf16.mxu0 %v2942
        %3006 = vmatpush1.bf16.msra.mxu0 %v2941
        %3007 = vmatprep.subr.bf16.mxu0 %v2944
        %3008 = vmatpush1.bf16.msra.mxu0 %v2943
        %3009 = vmatprep.subr.bf16.mxu0 %v2946
        %3010 = vmatpush1.bf16.msra.mxu0 %v2945
        %3011 = vmatprep.subr.bf16.mxu0 %v2948
        %3012 = vmatpush1.bf16.msra.mxu0 %v2947
        %3013 = vmatprep.mubr.bf16.mxu0 %v2774
        %3014 = vmatmul.mubr.bf16.gmra.mrb[0].mxu0 %v2773
        %v3015 = vpop.f32.mrb[0].mxu0
        %v3016 = vadd.f32 %v2814, %v3015
        %v3017 = vpop.f32.mrb[0].mxu0
        %v3018 = vadd.f32 %v2818, %v3017
        %v3019 = vpop.f32.mrb[0].mxu0
        %v3020 = vadd.f32 %v2814, %v3019
        %v3021 = vpop.f32.mrb[0].mxu0
        %v3022 = vadd.f32 %v2818, %v3021
        %3023 = vmatprep.mubr.bf16.mxu0 %v2776
        %3024 = vmatmul.mubr.bf16.gmra.mrb[0].mxu0 %v2775
        %v3025 = vpop.f32.mrb[0].mxu0
        %v3026 = vadd.f32 %v2814, %v3025
        %v3027 = vpop.f32.mrb[0].mxu0
        %v3028 = vadd.f32 %v2818, %v3027
        %v3029 = vpop.f32.mrb[0].mxu0
        %v3030 = vadd.f32 %v2814, %v3029
        %v3031 = vpop.f32.mrb[0].mxu0
        %v3032 = vadd.f32 %v2818, %v3031
        %3033 = vdwg.mxu0
        %v3034 = vadd.f32 %v1436, %v3016
        %v3035 = vadd.f32 %v1437, %v3018
        %v3036 = vadd.f32 %v1438, %v3020
        %v3037 = vadd.f32 %v1439, %v3022
        %v3038 = vadd.f32 %v1440, %v3026
        %v3039 = vadd.f32 %v1441, %v3028
        %v3040 = vadd.f32 %v1442, %v3030
        %v3041 = vadd.f32 %v1443, %v3032
        %v3042 = vld [vmem:[%s1117] sm:$0x3]
        %v3043 = vld [vmem:[%s1126] sm:$0x3]
        %v3044 = vadd.f32 %v3034, %v3035
        %3045 = vadd.xlane.f32.xlu0 %v3044
        %v3046 = vpop.xlane.xlu0 %3045
        %v3047 = vadd.f32 %v3036, %v3037
        %3048 = vadd.xlane.f32.xlu0 %v3047
        %v3049 = vpop.xlane.xlu0 %3048
        %v3050 = vadd.f32 %v3038, %v3039
        %3051 = vadd.xlane.f32.xlu0 %v3050
        %v3052 = vpop.xlane.xlu0 %3051
        %v3053 = vadd.f32 %v3040, %v3041
        %3054 = vadd.xlane.f32.xlu0 %v3053
        %v3055 = vpop.xlane.xlu0 %3054
        %v3056 = vmul.f32 %v3046, %v1458
        %v3057 = vmul.f32 %v3049, %v1458
        %v3058 = vmul.f32 %v3052, %v1458
        %v3059 = vmul.f32 %v3055, %v1458
        %v3060 = vmul.f32 %v3034, %v3034
        %v3061 = vmul.f32 %v3035, %v3035
        %v3062 = vmul.f32 %v3036, %v3036
        %v3063 = vmul.f32 %v3037, %v3037
        %v3064 = vmul.f32 %v3038, %v3038
        %v3065 = vmul.f32 %v3039, %v3039
        %v3066 = vmul.f32 %v3040, %v3040
        %v3067 = vmul.f32 %v3041, %v3041
        %v3068 = vadd.f32 %v3060, %v3061
        %3069 = vadd.xlane.f32.xlu0 %v3068
        %v3070 = vpop.xlane.xlu0 %3069
        %v3071 = vadd.f32 %v3062, %v3063
        %3072 = vadd.xlane.f32.xlu0 %v3071
        %v3073 = vpop.xlane.xlu0 %3072
        %v3074 = vadd.f32 %v3064, %v3065
        %3075 = vadd.xlane.f32.xlu0 %v3074
        %v3076 = vpop.xlane.xlu0 %3075
        %v3077 = vadd.f32 %v3066, %v3067
        %3078 = vadd.xlane.f32.xlu0 %v3077
        %v3079 = vpop.xlane.xlu0 %3078
        %v3080 = vmul.f32 %v3070, %v1458
        %v3081 = vmul.f32 %v3073, %v1458
        %v3082 = vmul.f32 %v3076, %v1458
        %v3083 = vmul.f32 %v3079, %v1458
        %v3084 = vsub.f32 %v3034, %v3056
        %v3085 = vsub.f32 %v3035, %v3056
        %v3086 = vsub.f32 %v3036, %v3057
        %v3087 = vsub.f32 %v3037, %v3057
        %v3088 = vsub.f32 %v3038, %v3058
        %v3089 = vsub.f32 %v3039, %v3058
        %v3090 = vsub.f32 %v3040, %v3059
        %v3091 = vsub.f32 %v3041, %v3059
        %v3092 = vmul.f32 %v3056, %v3056
        %v3093 = vmul.f32 %v3057, %v3057
        %v3094 = vmul.f32 %v3058, %v3058
        %v3095 = vmul.f32 %v3059, %v3059
        %v3096 = vsub.f32 %v3080, %v3092
        %v3097 = vsub.f32 %v3081, %v3093
        %v3098 = vsub.f32 %v3082, %v3094
        %v3099 = vsub.f32 %v3083, %v3095
        %v3100 = vadd.f32 %v3096, 1e-05
        %v3101 = vadd.f32 %v3097, 1e-05
        %v3102 = vadd.f32 %v3098, 1e-05
        %v3103 = vadd.f32 %v3099, 1e-05
        %v3104 = vrsqrt.pop %v3100
        %v3105 = vrsqrt.pop %v3101
        %v3106 = vrsqrt.pop %v3102
        %v3107 = vrsqrt.pop %v3103
        %v3108 = vmul.f32 %v3084, %v3104
        %v3109 = vmul.f32 %v3085, %v3104
        %v3110 = vmul.f32 %v3086, %v3105
        %v3111 = vmul.f32 %v3087, %v3105
        %v3112 = vmul.f32 %v3088, %v3106
        %v3113 = vmul.f32 %v3089, %v3106
        %v3114 = vmul.f32 %v3090, %v3107
        %v3115 = vmul.f32 %v3091, %v3107
        %v3117 = vlaneseq
        %v3118 = vshrl.u32 %v3117, 7
        %v3119 = vsub.s32 0, %v3118
        %v3120 = vrot.slane %v3042, %v3119
        %v3121 = vlaneseq
        %v3122 = vshrl.u32 %v3121, 7
        %v3123 = vsub.s32 1, %v3122
        %v3124 = vrot.slane %v3042, %v3123
        %v3127 = vmul.f32 %v3108, %v3120
        %v3128 = vmul.f32 %v3109, %v3124
        %v3129 = vmul.f32 %v3110, %v3120
        %v3130 = vmul.f32 %v3111, %v3124
        %v3131 = vmul.f32 %v3112, %v3120
        %v3132 = vmul.f32 %v3113, %v3124
        %v3133 = vmul.f32 %v3114, %v3120
        %v3134 = vmul.f32 %v3115, %v3124
        %v3136 = vlaneseq
        %v3137 = vshrl.u32 %v3136, 7
        %v3138 = vsub.s32 0, %v3137
        %v3139 = vrot.slane %v3043, %v3138
        %v3140 = vlaneseq
        %v3141 = vshrl.u32 %v3140, 7
        %v3142 = vsub.s32 1, %v3141
        %v3143 = vrot.slane %v3043, %v3142
        %v3146 = vadd.f32 %v3127, %v3139
        %v3147 = vadd.f32 %v3128, %v3143
        %v3148 = vadd.f32 %v3129, %v3139
        %v3149 = vadd.f32 %v3130, %v3143
        %v3150 = vadd.f32 %v3131, %v3139
        %v3151 = vadd.f32 %v3132, %v3143
        %v3152 = vadd.f32 %v3133, %v3139
        %v3153 = vadd.f32 %v3134, %v3143
        %v3154 = vpack.c.bf16 %v3148, %v3146
        %v3155 = vpack.c.bf16 %v3149, %v3147
        %v3156 = vpack.c.bf16 %v3152, %v3150
        %v3157 = vpack.c.bf16 %v3153, %v3151
        %v3158 = vld [vmem:[%s1135] sm:$0xff]
        %v3159 = vld [vmem:[%s1135 + $0x8] sm:$0xff]
        %v3160 = vld [vmem:[%s1135 + $0x10] sm:$0xff]
        %v3161 = vld [vmem:[%s1135 + $0x18] sm:$0xff]
        %v3162 = vld [vmem:[%s1135 + $0x20] sm:$0xff]
        %v3163 = vld [vmem:[%s1135 + $0x28] sm:$0xff]
        %v3164 = vld [vmem:[%s1135 + $0x30] sm:$0xff]
        %v3165 = vld [vmem:[%s1135 + $0x38] sm:$0xff]
        %v3166 = vld [vmem:[%s1135 + $0x40] sm:$0xff]
        %v3167 = vld [vmem:[%s1135 + $0x48] sm:$0xff]
        %v3168 = vld [vmem:[%s1135 + $0x50] sm:$0xff]
        %v3169 = vld [vmem:[%s1135 + $0x58] sm:$0xff]
        %v3170 = vld [vmem:[%s1135 + $0x60] sm:$0xff]
        %v3171 = vld [vmem:[%s1135 + $0x68] sm:$0xff]
        %v3172 = vld [vmem:[%s1135 + $0x70] sm:$0xff]
        %v3173 = vld [vmem:[%s1135 + $0x78] sm:$0xff]
        %v3174 = vld [vmem:[%s1135 + $0x80] sm:$0xff]
        %v3175 = vld [vmem:[%s1135 + $0x88] sm:$0xff]
        %v3176 = vld [vmem:[%s1135 + $0x90] sm:$0xff]
        %v3177 = vld [vmem:[%s1135 + $0x98] sm:$0xff]
        %v3178 = vld [vmem:[%s1135 + $0xa0] sm:$0xff]
        %v3179 = vld [vmem:[%s1135 + $0xa8] sm:$0xff]
        %v3180 = vld [vmem:[%s1135 + $0xb0] sm:$0xff]
        %v3181 = vld [vmem:[%s1135 + $0xb8] sm:$0xff]
        %v3182 = vld [vmem:[%s1135 + $0xc0] sm:$0xff]
        %v3183 = vld [vmem:[%s1135 + $0xc8] sm:$0xff]
        %v3184 = vld [vmem:[%s1135 + $0xd0] sm:$0xff]
        %v3185 = vld [vmem:[%s1135 + $0xd8] sm:$0xff]
        %v3186 = vld [vmem:[%s1135 + $0xe0] sm:$0xff]
        %v3187 = vld [vmem:[%s1135 + $0xe8] sm:$0xff]
        %v3188 = vld [vmem:[%s1135 + $0xf0] sm:$0xff]
        %v3189 = vld [vmem:[%s1135 + $0xf8] sm:$0xff]
        %v3190 = vld [vmem:[%s1135 + $0x100] sm:$0xff]
        %v3191 = vld [vmem:[%s1135 + $0x108] sm:$0xff]
        %v3192 = vld [vmem:[%s1135 + $0x110] sm:$0xff]
        %v3193 = vld [vmem:[%s1135 + $0x118] sm:$0xff]
        %v3194 = vld [vmem:[%s1135 + $0x120] sm:$0xff]
        %v3195 = vld [vmem:[%s1135 + $0x128] sm:$0xff]
        %v3196 = vld [vmem:[%s1135 + $0x130] sm:$0xff]
        %v3197 = vld [vmem:[%s1135 + $0x138] sm:$0xff]
        %v3198 = vld [vmem:[%s1135 + $0x140] sm:$0xff]
        %v3199 = vld [vmem:[%s1135 + $0x148] sm:$0xff]
        %v3200 = vld [vmem:[%s1135 + $0x150] sm:$0xff]
        %v3201 = vld [vmem:[%s1135 + $0x158] sm:$0xff]
        %v3202 = vld [vmem:[%s1135 + $0x160] sm:$0xff]
        %v3203 = vld [vmem:[%s1135 + $0x168] sm:$0xff]
        %v3204 = vld [vmem:[%s1135 + $0x170] sm:$0xff]
        %v3205 = vld [vmem:[%s1135 + $0x178] sm:$0xff]
        %v3206 = vld [vmem:[%s1135 + $0x180] sm:$0xff]
        %v3207 = vld [vmem:[%s1135 + $0x188] sm:$0xff]
        %v3208 = vld [vmem:[%s1135 + $0x190] sm:$0xff]
        %v3209 = vld [vmem:[%s1135 + $0x198] sm:$0xff]
        %v3210 = vld [vmem:[%s1135 + $0x1a0] sm:$0xff]
        %v3211 = vld [vmem:[%s1135 + $0x1a8] sm:$0xff]
        %v3212 = vld [vmem:[%s1135 + $0x1b0] sm:$0xff]
        %v3213 = vld [vmem:[%s1135 + $0x1b8] sm:$0xff]
        %v3214 = vld [vmem:[%s1135 + $0x1c0] sm:$0xff]
        %v3215 = vld [vmem:[%s1135 + $0x1c8] sm:$0xff]
        %v3216 = vld [vmem:[%s1135 + $0x1d0] sm:$0xff]
        %v3217 = vld [vmem:[%s1135 + $0x1d8] sm:$0xff]
        %v3218 = vld [vmem:[%s1135 + $0x1e0] sm:$0xff]
        %v3219 = vld [vmem:[%s1135 + $0x1e8] sm:$0xff]
        %v3220 = vld [vmem:[%s1135 + $0x1f0] sm:$0xff]
        %v3221 = vld [vmem:[%s1135 + $0x1f8] sm:$0xff]
        %v3222 = vld [vmem:[%s1135 + $0x200] sm:$0xff]
        %v3223 = vld [vmem:[%s1135 + $0x208] sm:$0xff]
        %v3224 = vld [vmem:[%s1135 + $0x210] sm:$0xff]
        %v3225 = vld [vmem:[%s1135 + $0x218] sm:$0xff]
        %v3226 = vld [vmem:[%s1135 + $0x220] sm:$0xff]
        %v3227 = vld [vmem:[%s1135 + $0x228] sm:$0xff]
        %v3228 = vld [vmem:[%s1135 + $0x230] sm:$0xff]
        %v3229 = vld [vmem:[%s1135 + $0x238] sm:$0xff]
        %v3230 = vld [vmem:[%s1135 + $0x240] sm:$0xff]
        %v3231 = vld [vmem:[%s1135 + $0x248] sm:$0xff]
        %v3232 = vld [vmem:[%s1135 + $0x250] sm:$0xff]
        %v3233 = vld [vmem:[%s1135 + $0x258] sm:$0xff]
        %v3234 = vld [vmem:[%s1135 + $0x260] sm:$0xff]
        %v3235 = vld [vmem:[%s1135 + $0x268] sm:$0xff]
        %v3236 = vld [vmem:[%s1135 + $0x270] sm:$0xff]
        %v3237 = vld [vmem:[%s1135 + $0x278] sm:$0xff]
        %v3238 = vld [vmem:[%s1135 + $0x280] sm:$0xff]
        %v3239 = vld [vmem:[%s1135 + $0x288] sm:$0xff]
        %v3240 = vld [vmem:[%s1135 + $0x290] sm:$0xff]
        %v3241 = vld [vmem:[%s1135 + $0x298] sm:$0xff]
        %v3242 = vld [vmem:[%s1135 + $0x2a0] sm:$0xff]
        %v3243 = vld [vmem:[%s1135 + $0x2a8] sm:$0xff]
        %v3244 = vld [vmem:[%s1135 + $0x2b0] sm:$0xff]
        %v3245 = vld [vmem:[%s1135 + $0x2b8] sm:$0xff]
        %v3246 = vld [vmem:[%s1135 + $0x2c0] sm:$0xff]
        %v3247 = vld [vmem:[%s1135 + $0x2c8] sm:$0xff]
        %v3248 = vld [vmem:[%s1135 + $0x2d0] sm:$0xff]
        %v3249 = vld [vmem:[%s1135 + $0x2d8] sm:$0xff]
        %v3250 = vld [vmem:[%s1135 + $0x2e0] sm:$0xff]
        %v3251 = vld [vmem:[%s1135 + $0x2e8] sm:$0xff]
        %v3252 = vld [vmem:[%s1135 + $0x2f0] sm:$0xff]
        %v3253 = vld [vmem:[%s1135 + $0x2f8] sm:$0xff]
        %v3254 = vld [vmem:[%s1135 + $0x300] sm:$0xff]
        %v3255 = vld [vmem:[%s1135 + $0x308] sm:$0xff]
        %v3256 = vld [vmem:[%s1135 + $0x310] sm:$0xff]
        %v3257 = vld [vmem:[%s1135 + $0x318] sm:$0xff]
        %v3258 = vld [vmem:[%s1135 + $0x320] sm:$0xff]
        %v3259 = vld [vmem:[%s1135 + $0x328] sm:$0xff]
        %v3260 = vld [vmem:[%s1135 + $0x330] sm:$0xff]
        %v3261 = vld [vmem:[%s1135 + $0x338] sm:$0xff]
        %v3262 = vld [vmem:[%s1135 + $0x340] sm:$0xff]
        %v3263 = vld [vmem:[%s1135 + $0x348] sm:$0xff]
        %v3264 = vld [vmem:[%s1135 + $0x350] sm:$0xff]
        %v3265 = vld [vmem:[%s1135 + $0x358] sm:$0xff]
        %v3266 = vld [vmem:[%s1135 + $0x360] sm:$0xff]
        %v3267 = vld [vmem:[%s1135 + $0x368] sm:$0xff]
        %v3268 = vld [vmem:[%s1135 + $0x370] sm:$0xff]
        %v3269 = vld [vmem:[%s1135 + $0x378] sm:$0xff]
        %v3270 = vld [vmem:[%s1135 + $0x380] sm:$0xff]
        %v3271 = vld [vmem:[%s1135 + $0x388] sm:$0xff]
        %v3272 = vld [vmem:[%s1135 + $0x390] sm:$0xff]
        %v3273 = vld [vmem:[%s1135 + $0x398] sm:$0xff]
        %v3274 = vld [vmem:[%s1135 + $0x3a0] sm:$0xff]
        %v3275 = vld [vmem:[%s1135 + $0x3a8] sm:$0xff]
        %v3276 = vld [vmem:[%s1135 + $0x3b0] sm:$0xff]
        %v3277 = vld [vmem:[%s1135 + $0x3b8] sm:$0xff]
        %v3278 = vld [vmem:[%s1135 + $0x3c0] sm:$0xff]
        %v3279 = vld [vmem:[%s1135 + $0x3c8] sm:$0xff]
        %v3280 = vld [vmem:[%s1135 + $0x3d0] sm:$0xff]
        %v3281 = vld [vmem:[%s1135 + $0x3d8] sm:$0xff]
        %v3282 = vld [vmem:[%s1135 + $0x3e0] sm:$0xff]
        %v3283 = vld [vmem:[%s1135 + $0x3e8] sm:$0xff]
        %v3284 = vld [vmem:[%s1135 + $0x3f0] sm:$0xff]
        %v3285 = vld [vmem:[%s1135 + $0x3f8] sm:$0xff]
        %v3286 = vld [vmem:[%s1144] sm:$0xff]
        %v3288 = vlaneseq
        %v3289 = vshrl.u32 %v3288, 7
        %v3290 = vsub.s32 0, %v3289
        %v3291 = vrot.slane %v3286, %v3290
        %v3292 = vlaneseq
        %v3293 = vshrl.u32 %v3292, 7
        %v3294 = vsub.s32 1, %v3293
        %v3295 = vrot.slane %v3286, %v3294
        %v3296 = vlaneseq
        %v3297 = vshrl.u32 %v3296, 7
        %v3298 = vsub.s32 2, %v3297
        %v3299 = vrot.slane %v3286, %v3298
        %v3300 = vlaneseq
        %v3301 = vshrl.u32 %v3300, 7
        %v3302 = vsub.s32 3, %v3301
        %v3303 = vrot.slane %v3286, %v3302
        %v3304 = vlaneseq
        %v3305 = vshrl.u32 %v3304, 7
        %v3306 = vsub.s32 4, %v3305
        %v3307 = vrot.slane %v3286, %v3306
        %v3308 = vlaneseq
        %v3309 = vshrl.u32 %v3308, 7
        %v3310 = vsub.s32 5, %v3309
        %v3311 = vrot.slane %v3286, %v3310
        %v3312 = vlaneseq
        %v3313 = vshrl.u32 %v3312, 7
        %v3314 = vsub.s32 6, %v3313
        %v3315 = vrot.slane %v3286, %v3314
        %v3316 = vlaneseq
        %v3317 = vshrl.u32 %v3316, 7
        %v3318 = vsub.s32 7, %v3317
        %v3319 = vrot.slane %v3286, %v3318
        %v3456 = vunpack.c.l.b16 %v3158
        %v3457 = vunpack.c.h.b16 %v3158
        %v3458 = vunpack.c.l.b16 %v3159
        %v3459 = vunpack.c.h.b16 %v3159
        %v3460 = vunpack.c.l.b16 %v3160
        %v3461 = vunpack.c.h.b16 %v3160
        %v3462 = vunpack.c.l.b16 %v3161
        %v3463 = vunpack.c.h.b16 %v3161
        %v3464 = vunpack.c.l.b16 %v3162
        %v3465 = vunpack.c.h.b16 %v3162
        %v3466 = vunpack.c.l.b16 %v3163
        %v3467 = vunpack.c.h.b16 %v3163
        %v3468 = vunpack.c.l.b16 %v3164
        %v3469 = vunpack.c.h.b16 %v3164
        %v3470 = vunpack.c.l.b16 %v3165
        %v3471 = vunpack.c.h.b16 %v3165
        %v3472 = vunpack.c.l.b16 %v3166
        %v3473 = vunpack.c.h.b16 %v3166
        %v3474 = vunpack.c.l.b16 %v3167
        %v3475 = vunpack.c.h.b16 %v3167
        %v3476 = vunpack.c.l.b16 %v3168
        %v3477 = vunpack.c.h.b16 %v3168
        %v3478 = vunpack.c.l.b16 %v3169
        %v3479 = vunpack.c.h.b16 %v3169
        %v3480 = vunpack.c.l.b16 %v3170
        %v3481 = vunpack.c.h.b16 %v3170
        %v3482 = vunpack.c.l.b16 %v3171
        %v3483 = vunpack.c.h.b16 %v3171
        %v3484 = vunpack.c.l.b16 %v3172
        %v3485 = vunpack.c.h.b16 %v3172
        %v3486 = vunpack.c.l.b16 %v3173
        %v3487 = vunpack.c.h.b16 %v3173
        %v3488 = vunpack.c.l.b16 %v3174
        %v3489 = vunpack.c.h.b16 %v3174
        %v3490 = vunpack.c.l.b16 %v3175
        %v3491 = vunpack.c.h.b16 %v3175
        %v3492 = vunpack.c.l.b16 %v3176
        %v3493 = vunpack.c.h.b16 %v3176
        %v3494 = vunpack.c.l.b16 %v3177
        %v3495 = vunpack.c.h.b16 %v3177
        %v3496 = vunpack.c.l.b16 %v3178
        %v3497 = vunpack.c.h.b16 %v3178
        %v3498 = vunpack.c.l.b16 %v3179
        %v3499 = vunpack.c.h.b16 %v3179
        %v3500 = vunpack.c.l.b16 %v3180
        %v3501 = vunpack.c.h.b16 %v3180
        %v3502 = vunpack.c.l.b16 %v3181
        %v3503 = vunpack.c.h.b16 %v3181
        %v3504 = vunpack.c.l.b16 %v3182
        %v3505 = vunpack.c.h.b16 %v3182
        %v3506 = vunpack.c.l.b16 %v3183
        %v3507 = vunpack.c.h.b16 %v3183
        %v3508 = vunpack.c.l.b16 %v3184
        %v3509 = vunpack.c.h.b16 %v3184
        %v3510 = vunpack.c.l.b16 %v3185
        %v3511 = vunpack.c.h.b16 %v3185
        %v3512 = vunpack.c.l.b16 %v3186
        %v3513 = vunpack.c.h.b16 %v3186
        %v3514 = vunpack.c.l.b16 %v3187
        %v3515 = vunpack.c.h.b16 %v3187
        %v3516 = vunpack.c.l.b16 %v3188
        %v3517 = vunpack.c.h.b16 %v3188
        %v3518 = vunpack.c.l.b16 %v3189
        %v3519 = vunpack.c.h.b16 %v3189
        %v3520 = vunpack.c.l.b16 %v3190
        %v3521 = vunpack.c.h.b16 %v3190
        %v3522 = vunpack.c.l.b16 %v3191
        %v3523 = vunpack.c.h.b16 %v3191
        %v3524 = vunpack.c.l.b16 %v3192
        %v3525 = vunpack.c.h.b16 %v3192
        %v3526 = vunpack.c.l.b16 %v3193
        %v3527 = vunpack.c.h.b16 %v3193
        %v3528 = vunpack.c.l.b16 %v3194
        %v3529 = vunpack.c.h.b16 %v3194
        %v3530 = vunpack.c.l.b16 %v3195
        %v3531 = vunpack.c.h.b16 %v3195
        %v3532 = vunpack.c.l.b16 %v3196
        %v3533 = vunpack.c.h.b16 %v3196
        %v3534 = vunpack.c.l.b16 %v3197
        %v3535 = vunpack.c.h.b16 %v3197
        %v3536 = vunpack.c.l.b16 %v3198
        %v3537 = vunpack.c.h.b16 %v3198
        %v3538 = vunpack.c.l.b16 %v3199
        %v3539 = vunpack.c.h.b16 %v3199
        %v3540 = vunpack.c.l.b16 %v3200
        %v3541 = vunpack.c.h.b16 %v3200
        %v3542 = vunpack.c.l.b16 %v3201
        %v3543 = vunpack.c.h.b16 %v3201
        %v3544 = vunpack.c.l.b16 %v3202
        %v3545 = vunpack.c.h.b16 %v3202
        %v3546 = vunpack.c.l.b16 %v3203
        %v3547 = vunpack.c.h.b16 %v3203
        %v3548 = vunpack.c.l.b16 %v3204
        %v3549 = vunpack.c.h.b16 %v3204
        %v3550 = vunpack.c.l.b16 %v3205
        %v3551 = vunpack.c.h.b16 %v3205
        %v3552 = vunpack.c.l.b16 %v3206
        %v3553 = vunpack.c.h.b16 %v3206
        %v3554 = vunpack.c.l.b16 %v3207
        %v3555 = vunpack.c.h.b16 %v3207
        %v3556 = vunpack.c.l.b16 %v3208
        %v3557 = vunpack.c.h.b16 %v3208
        %v3558 = vunpack.c.l.b16 %v3209
        %v3559 = vunpack.c.h.b16 %v3209
        %v3560 = vunpack.c.l.b16 %v3210
        %v3561 = vunpack.c.h.b16 %v3210
        %v3562 = vunpack.c.l.b16 %v3211
        %v3563 = vunpack.c.h.b16 %v3211
        %v3564 = vunpack.c.l.b16 %v3212
        %v3565 = vunpack.c.h.b16 %v3212
        %v3566 = vunpack.c.l.b16 %v3213
        %v3567 = vunpack.c.h.b16 %v3213
        %v3568 = vunpack.c.l.b16 %v3214
        %v3569 = vunpack.c.h.b16 %v3214
        %v3570 = vunpack.c.l.b16 %v3215
        %v3571 = vunpack.c.h.b16 %v3215
        %v3572 = vunpack.c.l.b16 %v3216
        %v3573 = vunpack.c.h.b16 %v3216
        %v3574 = vunpack.c.l.b16 %v3217
        %v3575 = vunpack.c.h.b16 %v3217
        %v3576 = vunpack.c.l.b16 %v3218
        %v3577 = vunpack.c.h.b16 %v3218
        %v3578 = vunpack.c.l.b16 %v3219
        %v3579 = vunpack.c.h.b16 %v3219
        %v3580 = vunpack.c.l.b16 %v3220
        %v3581 = vunpack.c.h.b16 %v3220
        %v3582 = vunpack.c.l.b16 %v3221
        %v3583 = vunpack.c.h.b16 %v3221
        %v3584 = vunpack.c.l.b16 %v3222
        %v3585 = vunpack.c.h.b16 %v3222
        %v3586 = vunpack.c.l.b16 %v3223
        %v3587 = vunpack.c.h.b16 %v3223
        %v3588 = vunpack.c.l.b16 %v3224
        %v3589 = vunpack.c.h.b16 %v3224
        %v3590 = vunpack.c.l.b16 %v3225
        %v3591 = vunpack.c.h.b16 %v3225
        %v3592 = vunpack.c.l.b16 %v3226
        %v3593 = vunpack.c.h.b16 %v3226
        %v3594 = vunpack.c.l.b16 %v3227
        %v3595 = vunpack.c.h.b16 %v3227
        %v3596 = vunpack.c.l.b16 %v3228
        %v3597 = vunpack.c.h.b16 %v3228
        %v3598 = vunpack.c.l.b16 %v3229
        %v3599 = vunpack.c.h.b16 %v3229
        %v3600 = vunpack.c.l.b16 %v3230
        %v3601 = vunpack.c.h.b16 %v3230
        %v3602 = vunpack.c.l.b16 %v3231
        %v3603 = vunpack.c.h.b16 %v3231
        %v3604 = vunpack.c.l.b16 %v3232
        %v3605 = vunpack.c.h.b16 %v3232
        %v3606 = vunpack.c.l.b16 %v3233
        %v3607 = vunpack.c.h.b16 %v3233
        %v3608 = vunpack.c.l.b16 %v3234
        %v3609 = vunpack.c.h.b16 %v3234
        %v3610 = vunpack.c.l.b16 %v3235
        %v3611 = vunpack.c.h.b16 %v3235
        %v3612 = vunpack.c.l.b16 %v3236
        %v3613 = vunpack.c.h.b16 %v3236
        %v3614 = vunpack.c.l.b16 %v3237
        %v3615 = vunpack.c.h.b16 %v3237
        %v3616 = vunpack.c.l.b16 %v3238
        %v3617 = vunpack.c.h.b16 %v3238
        %v3618 = vunpack.c.l.b16 %v3239
        %v3619 = vunpack.c.h.b16 %v3239
        %v3620 = vunpack.c.l.b16 %v3240
        %v3621 = vunpack.c.h.b16 %v3240
        %v3622 = vunpack.c.l.b16 %v3241
        %v3623 = vunpack.c.h.b16 %v3241
        %v3624 = vunpack.c.l.b16 %v3242
        %v3625 = vunpack.c.h.b16 %v3242
        %v3626 = vunpack.c.l.b16 %v3243
        %v3627 = vunpack.c.h.b16 %v3243
        %v3628 = vunpack.c.l.b16 %v3244
        %v3629 = vunpack.c.h.b16 %v3244
        %v3630 = vunpack.c.l.b16 %v3245
        %v3631 = vunpack.c.h.b16 %v3245
        %v3632 = vunpack.c.l.b16 %v3246
        %v3633 = vunpack.c.h.b16 %v3246
        %v3634 = vunpack.c.l.b16 %v3247
        %v3635 = vunpack.c.h.b16 %v3247
        %v3636 = vunpack.c.l.b16 %v3248
        %v3637 = vunpack.c.h.b16 %v3248
        %v3638 = vunpack.c.l.b16 %v3249
        %v3639 = vunpack.c.h.b16 %v3249
        %v3640 = vunpack.c.l.b16 %v3250
        %v3641 = vunpack.c.h.b16 %v3250
        %v3642 = vunpack.c.l.b16 %v3251
        %v3643 = vunpack.c.h.b16 %v3251
        %v3644 = vunpack.c.l.b16 %v3252
        %v3645 = vunpack.c.h.b16 %v3252
        %v3646 = vunpack.c.l.b16 %v3253
        %v3647 = vunpack.c.h.b16 %v3253
        %v3648 = vunpack.c.l.b16 %v3254
        %v3649 = vunpack.c.h.b16 %v3254
        %v3650 = vunpack.c.l.b16 %v3255
        %v3651 = vunpack.c.h.b16 %v3255
        %v3652 = vunpack.c.l.b16 %v3256
        %v3653 = vunpack.c.h.b16 %v3256
        %v3654 = vunpack.c.l.b16 %v3257
        %v3655 = vunpack.c.h.b16 %v3257
        %v3656 = vunpack.c.l.b16 %v3258
        %v3657 = vunpack.c.h.b16 %v3258
        %v3658 = vunpack.c.l.b16 %v3259
        %v3659 = vunpack.c.h.b16 %v3259
        %v3660 = vunpack.c.l.b16 %v3260
        %v3661 = vunpack.c.h.b16 %v3260
        %v3662 = vunpack.c.l.b16 %v3261
        %v3663 = vunpack.c.h.b16 %v3261
        %v3664 = vunpack.c.l.b16 %v3262
        %v3665 = vunpack.c.h.b16 %v3262
        %v3666 = vunpack.c.l.b16 %v3263
        %v3667 = vunpack.c.h.b16 %v3263
        %v3668 = vunpack.c.l.b16 %v3264
        %v3669 = vunpack.c.h.b16 %v3264
        %v3670 = vunpack.c.l.b16 %v3265
        %v3671 = vunpack.c.h.b16 %v3265
        %v3672 = vunpack.c.l.b16 %v3266
        %v3673 = vunpack.c.h.b16 %v3266
        %v3674 = vunpack.c.l.b16 %v3267
        %v3675 = vunpack.c.h.b16 %v3267
        %v3676 = vunpack.c.l.b16 %v3268
        %v3677 = vunpack.c.h.b16 %v3268
        %v3678 = vunpack.c.l.b16 %v3269
        %v3679 = vunpack.c.h.b16 %v3269
        %v3680 = vunpack.c.l.b16 %v3270
        %v3681 = vunpack.c.h.b16 %v3270
        %v3682 = vunpack.c.l.b16 %v3271
        %v3683 = vunpack.c.h.b16 %v3271
        %v3684 = vunpack.c.l.b16 %v3272
        %v3685 = vunpack.c.h.b16 %v3272
        %v3686 = vunpack.c.l.b16 %v3273
        %v3687 = vunpack.c.h.b16 %v3273
        %v3688 = vunpack.c.l.b16 %v3274
        %v3689 = vunpack.c.h.b16 %v3274
        %v3690 = vunpack.c.l.b16 %v3275
        %v3691 = vunpack.c.h.b16 %v3275
        %v3692 = vunpack.c.l.b16 %v3276
        %v3693 = vunpack.c.h.b16 %v3276
        %v3694 = vunpack.c.l.b16 %v3277
        %v3695 = vunpack.c.h.b16 %v3277
        %v3696 = vunpack.c.l.b16 %v3278
        %v3697 = vunpack.c.h.b16 %v3278
        %v3698 = vunpack.c.l.b16 %v3279
        %v3699 = vunpack.c.h.b16 %v3279
        %v3700 = vunpack.c.l.b16 %v3280
        %v3701 = vunpack.c.h.b16 %v3280
        %v3702 = vunpack.c.l.b16 %v3281
        %v3703 = vunpack.c.h.b16 %v3281
        %v3704 = vunpack.c.l.b16 %v3282
        %v3705 = vunpack.c.h.b16 %v3282
        %v3706 = vunpack.c.l.b16 %v3283
        %v3707 = vunpack.c.h.b16 %v3283
        %v3708 = vunpack.c.l.b16 %v3284
        %v3709 = vunpack.c.h.b16 %v3284
        %v3710 = vunpack.c.l.b16 %v3285
        %v3711 = vunpack.c.h.b16 %v3285
        %v3712 = vpack.c.b16 %v3464, %v3456
        %v3713 = vpack.c.b16 %v3465, %v3457
        %v3714 = vpack.c.b16 %v3466, %v3458
        %v3715 = vpack.c.b16 %v3467, %v3459
        %v3716 = vpack.c.b16 %v3468, %v3460
        %v3717 = vpack.c.b16 %v3469, %v3461
        %v3718 = vpack.c.b16 %v3470, %v3462
        %v3719 = vpack.c.b16 %v3471, %v3463
        %v3720 = vpack.c.b16 %v3480, %v3472
        %v3721 = vpack.c.b16 %v3481, %v3473
        %v3722 = vpack.c.b16 %v3482, %v3474
        %v3723 = vpack.c.b16 %v3483, %v3475
        %v3724 = vpack.c.b16 %v3484, %v3476
        %v3725 = vpack.c.b16 %v3485, %v3477
        %v3726 = vpack.c.b16 %v3486, %v3478
        %v3727 = vpack.c.b16 %v3487, %v3479
        %v3728 = vpack.c.b16 %v3496, %v3488
        %v3729 = vpack.c.b16 %v3497, %v3489
        %v3730 = vpack.c.b16 %v3498, %v3490
        %v3731 = vpack.c.b16 %v3499, %v3491
        %v3732 = vpack.c.b16 %v3500, %v3492
        %v3733 = vpack.c.b16 %v3501, %v3493
        %v3734 = vpack.c.b16 %v3502, %v3494
        %v3735 = vpack.c.b16 %v3503, %v3495
        %v3736 = vpack.c.b16 %v3512, %v3504
        %v3737 = vpack.c.b16 %v3513, %v3505
        %v3738 = vpack.c.b16 %v3514, %v3506
        %v3739 = vpack.c.b16 %v3515, %v3507
        %v3740 = vpack.c.b16 %v3516, %v3508
        %v3741 = vpack.c.b16 %v3517, %v3509
        %v3742 = vpack.c.b16 %v3518, %v3510
        %v3743 = vpack.c.b16 %v3519, %v3511
        %v3744 = vpack.c.b16 %v3528, %v3520
        %v3745 = vpack.c.b16 %v3529, %v3521
        %v3746 = vpack.c.b16 %v3530, %v3522
        %v3747 = vpack.c.b16 %v3531, %v3523
        %v3748 = vpack.c.b16 %v3532, %v3524
        %v3749 = vpack.c.b16 %v3533, %v3525
        %v3750 = vpack.c.b16 %v3534, %v3526
        %v3751 = vpack.c.b16 %v3535, %v3527
        %v3752 = vpack.c.b16 %v3544, %v3536
        %v3753 = vpack.c.b16 %v3545, %v3537
        %v3754 = vpack.c.b16 %v3546, %v3538
        %v3755 = vpack.c.b16 %v3547, %v3539
        %v3756 = vpack.c.b16 %v3548, %v3540
        %v3757 = vpack.c.b16 %v3549, %v3541
        %v3758 = vpack.c.b16 %v3550, %v3542
        %v3759 = vpack.c.b16 %v3551, %v3543
        %v3760 = vpack.c.b16 %v3560, %v3552
        %v3761 = vpack.c.b16 %v3561, %v3553
        %v3762 = vpack.c.b16 %v3562, %v3554
        %v3763 = vpack.c.b16 %v3563, %v3555
        %v3764 = vpack.c.b16 %v3564, %v3556
        %v3765 = vpack.c.b16 %v3565, %v3557
        %v3766 = vpack.c.b16 %v3566, %v3558
        %v3767 = vpack.c.b16 %v3567, %v3559
        %v3768 = vpack.c.b16 %v3576, %v3568
        %v3769 = vpack.c.b16 %v3577, %v3569
        %v3770 = vpack.c.b16 %v3578, %v3570
        %v3771 = vpack.c.b16 %v3579, %v3571
        %v3772 = vpack.c.b16 %v3580, %v3572
        %v3773 = vpack.c.b16 %v3581, %v3573
        %v3774 = vpack.c.b16 %v3582, %v3574
        %v3775 = vpack.c.b16 %v3583, %v3575
        %v3776 = vpack.c.b16 %v3592, %v3584
        %v3777 = vpack.c.b16 %v3593, %v3585
        %v3778 = vpack.c.b16 %v3594, %v3586
        %v3779 = vpack.c.b16 %v3595, %v3587
        %v3780 = vpack.c.b16 %v3596, %v3588
        %v3781 = vpack.c.b16 %v3597, %v3589
        %v3782 = vpack.c.b16 %v3598, %v3590
        %v3783 = vpack.c.b16 %v3599, %v3591
        %v3784 = vpack.c.b16 %v3608, %v3600
        %v3785 = vpack.c.b16 %v3609, %v3601
        %v3786 = vpack.c.b16 %v3610, %v3602
        %v3787 = vpack.c.b16 %v3611, %v3603
        %v3788 = vpack.c.b16 %v3612, %v3604
        %v3789 = vpack.c.b16 %v3613, %v3605
        %v3790 = vpack.c.b16 %v3614, %v3606
        %v3791 = vpack.c.b16 %v3615, %v3607
        %v3792 = vpack.c.b16 %v3624, %v3616
        %v3793 = vpack.c.b16 %v3625, %v3617
        %v3794 = vpack.c.b16 %v3626, %v3618
        %v3795 = vpack.c.b16 %v3627, %v3619
        %v3796 = vpack.c.b16 %v3628, %v3620
        %v3797 = vpack.c.b16 %v3629, %v3621
        %v3798 = vpack.c.b16 %v3630, %v3622
        %v3799 = vpack.c.b16 %v3631, %v3623
        %v3800 = vpack.c.b16 %v3640, %v3632
        %v3801 = vpack.c.b16 %v3641, %v3633
        %v3802 = vpack.c.b16 %v3642, %v3634
        %v3803 = vpack.c.b16 %v3643, %v3635
        %v3804 = vpack.c.b16 %v3644, %v3636
        %v3805 = vpack.c.b16 %v3645, %v3637
        %v3806 = vpack.c.b16 %v3646, %v3638
        %v3807 = vpack.c.b16 %v3647, %v3639
        %v3808 = vpack.c.b16 %v3656, %v3648
        %v3809 = vpack.c.b16 %v3657, %v3649
        %v3810 = vpack.c.b16 %v3658, %v3650
        %v3811 = vpack.c.b16 %v3659, %v3651
        %v3812 = vpack.c.b16 %v3660, %v3652
        %v3813 = vpack.c.b16 %v3661, %v3653
        %v3814 = vpack.c.b16 %v3662, %v3654
        %v3815 = vpack.c.b16 %v3663, %v3655
        %v3816 = vpack.c.b16 %v3672, %v3664
        %v3817 = vpack.c.b16 %v3673, %v3665
        %v3818 = vpack.c.b16 %v3674, %v3666
        %v3819 = vpack.c.b16 %v3675, %v3667
        %v3820 = vpack.c.b16 %v3676, %v3668
        %v3821 = vpack.c.b16 %v3677, %v3669
        %v3822 = vpack.c.b16 %v3678, %v3670
        %v3823 = vpack.c.b16 %v3679, %v3671
        %v3824 = vpack.c.b16 %v3688, %v3680
        %v3825 = vpack.c.b16 %v3689, %v3681
        %v3826 = vpack.c.b16 %v3690, %v3682
        %v3827 = vpack.c.b16 %v3691, %v3683
        %v3828 = vpack.c.b16 %v3692, %v3684
        %v3829 = vpack.c.b16 %v3693, %v3685
        %v3830 = vpack.c.b16 %v3694, %v3686
        %v3831 = vpack.c.b16 %v3695, %v3687
        %v3832 = vpack.c.b16 %v3704, %v3696
        %v3833 = vpack.c.b16 %v3705, %v3697
        %v3834 = vpack.c.b16 %v3706, %v3698
        %v3835 = vpack.c.b16 %v3707, %v3699
        %v3836 = vpack.c.b16 %v3708, %v3700
        %v3837 = vpack.c.b16 %v3709, %v3701
        %v3838 = vpack.c.b16 %v3710, %v3702
        %v3839 = vpack.c.b16 %v3711, %v3703
        %3968 = vmatprep.subr.bf16.mxu0 %v3713
        %3969 = vmatpush1.bf16.msra.mxu0 %v3712
        %3970 = vmatprep.subr.bf16.mxu0 %v3721
        %3971 = vmatpush1.bf16.msra.mxu0 %v3720
        %3972 = vmatprep.subr.bf16.mxu0 %v3729
        %3973 = vmatpush1.bf16.msra.mxu0 %v3728
        %3974 = vmatprep.subr.bf16.mxu0 %v3737
        %3975 = vmatpush1.bf16.msra.mxu0 %v3736
        %3976 = vmatprep.subr.bf16.mxu0 %v3745
        %3977 = vmatpush1.bf16.msra.mxu0 %v3744
        %3978 = vmatprep.subr.bf16.mxu0 %v3753
        %3979 = vmatpush1.bf16.msra.mxu0 %v3752
        %3980 = vmatprep.subr.bf16.mxu0 %v3761
        %3981 = vmatpush1.bf16.msra.mxu0 %v3760
        %3982 = vmatprep.subr.bf16.mxu0 %v3769
        %3983 = vmatpush1.bf16.msra.mxu0 %v3768
        %3984 = vmatprep.subr.bf16.mxu0 %v3777
        %3985 = vmatpush1.bf16.msra.mxu0 %v3776
        %3986 = vmatprep.subr.bf16.mxu0 %v3785
        %3987 = vmatpush1.bf16.msra.mxu0 %v3784
        %3988 = vmatprep.subr.bf16.mxu0 %v3793
        %3989 = vmatpush1.bf16.msra.mxu0 %v3792
        %3990 = vmatprep.subr.bf16.mxu0 %v3801
        %3991 = vmatpush1.bf16.msra.mxu0 %v3800
        %3992 = vmatprep.subr.bf16.mxu0 %v3809
        %3993 = vmatpush1.bf16.msra.mxu0 %v3808
        %3994 = vmatprep.subr.bf16.mxu0 %v3817
        %3995 = vmatpush1.bf16.msra.mxu0 %v3816
        %3996 = vmatprep.subr.bf16.mxu0 %v3825
        %3997 = vmatpush1.bf16.msra.mxu0 %v3824
        %3998 = vmatprep.subr.bf16.mxu0 %v3833
        %3999 = vmatpush1.bf16.msra.mxu0 %v3832
        %4000 = vmatprep.mubr.bf16.mxu0 %v3155
        %4001 = vmatmul.mubr.bf16.gmra.mrb[0].mxu0 %v3154
        %v4002 = vpop.f32.mrb[0].mxu0
        %v4003 = vadd.f32 %v3291, %v4002
        %v4004 = vpop.f32.mrb[0].mxu0
        %v4005 = vadd.f32 %v3295, %v4004
        %v4006 = vpop.f32.mrb[0].mxu0
        %v4007 = vadd.f32 %v3291, %v4006
        %v4008 = vpop.f32.mrb[0].mxu0
        %v4009 = vadd.f32 %v3295, %v4008
        %4010 = vmatprep.mubr.bf16.mxu0 %v3157
        %4011 = vmatmul.mubr.bf16.gmra.mrb[0].mxu0 %v3156
        %v4012 = vpop.f32.mrb[0].mxu0
        %v4013 = vadd.f32 %v3291, %v4012
        %v4014 = vpop.f32.mrb[0].mxu0
        %v4015 = vadd.f32 %v3295, %v4014
        %v4016 = vpop.f32.mrb[0].mxu0
        %v4017 = vadd.f32 %v3291, %v4016
        %v4018 = vpop.f32.mrb[0].mxu0
        %v4019 = vadd.f32 %v3295, %v4018
        %4020 = vdwg.mxu0
        %4021 = vmatprep.subr.bf16.mxu0 %v3715
        %4022 = vmatpush1.bf16.msra.mxu0 %v3714
        %4023 = vmatprep.subr.bf16.mxu0 %v3723
        %4024 = vmatpush1.bf16.msra.mxu0 %v3722
        %4025 = vmatprep.subr.bf16.mxu0 %v3731
        %4026 = vmatpush1.bf16.msra.mxu0 %v3730
        %4027 = vmatprep.subr.bf16.mxu0 %v3739
        %4028 = vmatpush1.bf16.msra.mxu0 %v3738
        %4029 = vmatprep.subr.bf16.mxu0 %v3747
        %4030 = vmatpush1.bf16.msra.mxu0 %v3746
        %4031 = vmatprep.subr.bf16.mxu0 %v3755
        %4032 = vmatpush1.bf16.msra.mxu0 %v3754
        %4033 = vmatprep.subr.bf16.mxu0 %v3763
        %4034 = vmatpush1.bf16.msra.mxu0 %v3762
        %4035 = vmatprep.subr.bf16.mxu0 %v3771
        %4036 = vmatpush1.bf16.msra.mxu0 %v3770
        %4037 = vmatprep.subr.bf16.mxu0 %v3779
        %4038 = vmatpush1.bf16.msra.mxu0 %v3778
        %4039 = vmatprep.subr.bf16.mxu0 %v3787
        %4040 = vmatpush1.bf16.msra.mxu0 %v3786
        %4041 = vmatprep.subr.bf16.mxu0 %v3795
        %4042 = vmatpush1.bf16.msra.mxu0 %v3794
        %4043 = vmatprep.subr.bf16.mxu0 %v3803
        %4044 = vmatpush1.bf16.msra.mxu0 %v3802
        %4045 = vmatprep.subr.bf16.mxu0 %v3811
        %4046 = vmatpush1.bf16.msra.mxu0 %v3810
        %4047 = vmatprep.subr.bf16.mxu0 %v3819
        %4048 = vmatpush1.bf16.msra.mxu0 %v3818
        %4049 = vmatprep.subr.bf16.mxu0 %v3827
        %4050 = vmatpush1.bf16.msra.mxu0 %v3826
        %4051 = vmatprep.subr.bf16.mxu0 %v3835
        %4052 = vmatpush1.bf16.msra.mxu0 %v3834
        %4053 = vmatprep.mubr.bf16.mxu0 %v3155
        %4054 = vmatmul.mubr.bf16.gmra.mrb[0].mxu0 %v3154
        %v4055 = vpop.f32.mrb[0].mxu0
        %v4056 = vadd.f32 %v3299, %v4055
        %v4057 = vpop.f32.mrb[0].mxu0
        %v4058 = vadd.f32 %v3303, %v4057
        %v4059 = vpop.f32.mrb[0].mxu0
        %v4060 = vadd.f32 %v3299, %v4059
        %v4061 = vpop.f32.mrb[0].mxu0
        %v4062 = vadd.f32 %v3303, %v4061
        %4063 = vmatprep.mubr.bf16.mxu0 %v3157
        %4064 = vmatmul.mubr.bf16.gmra.mrb[0].mxu0 %v3156
        %v4065 = vpop.f32.mrb[0].mxu0
        %v4066 = vadd.f32 %v3299, %v4065
        %v4067 = vpop.f32.mrb[0].mxu0
        %v4068 = vadd.f32 %v3303, %v4067
        %v4069 = vpop.f32.mrb[0].mxu0
        %v4070 = vadd.f32 %v3299, %v4069
        %v4071 = vpop.f32.mrb[0].mxu0
        %v4072 = vadd.f32 %v3303, %v4071
        %4073 = vdwg.mxu0
        %4074 = vmatprep.subr.bf16.mxu0 %v3717
        %4075 = vmatpush1.bf16.msra.mxu0 %v3716
        %4076 = vmatprep.subr.bf16.mxu0 %v3725
        %4077 = vmatpush1.bf16.msra.mxu0 %v3724
        %4078 = vmatprep.subr.bf16.mxu0 %v3733
        %4079 = vmatpush1.bf16.msra.mxu0 %v3732
        %4080 = vmatprep.subr.bf16.mxu0 %v3741
        %4081 = vmatpush1.bf16.msra.mxu0 %v3740
        %4082 = vmatprep.subr.bf16.mxu0 %v3749
        %4083 = vmatpush1.bf16.msra.mxu0 %v3748
        %4084 = vmatprep.subr.bf16.mxu0 %v3757
        %4085 = vmatpush1.bf16.msra.mxu0 %v3756
        %4086 = vmatprep.subr.bf16.mxu0 %v3765
        %4087 = vmatpush1.bf16.msra.mxu0 %v3764
        %4088 = vmatprep.subr.bf16.mxu0 %v3773
        %4089 = vmatpush1.bf16.msra.mxu0 %v3772
        %4090 = vmatprep.subr.bf16.mxu0 %v3781
        %4091 = vmatpush1.bf16.msra.mxu0 %v3780
        %4092 = vmatprep.subr.bf16.mxu0 %v3789
        %4093 = vmatpush1.bf16.msra.mxu0 %v3788
        %4094 = vmatprep.subr.bf16.mxu0 %v3797
        %4095 = vmatpush1.bf16.msra.mxu0 %v3796
        %4096 = vmatprep.subr.bf16.mxu0 %v3805
        %4097 = vmatpush1.bf16.msra.mxu0 %v3804
        %4098 = vmatprep.subr.bf16.mxu0 %v3813
        %4099 = vmatpush1.bf16.msra.mxu0 %v3812
        %4100 = vmatprep.subr.bf16.mxu0 %v3821
        %4101 = vmatpush1.bf16.msra.mxu0 %v3820
        %4102 = vmatprep.subr.bf16.mxu0 %v3829
        %4103 = vmatpush1.bf16.msra.mxu0 %v3828
        %4104 = vmatprep.subr.bf16.mxu0 %v3837
        %4105 = vmatpush1.bf16.msra.mxu0 %v3836
        %4106 = vmatprep.mubr.bf16.mxu0 %v3155
        %4107 = vmatmul.mubr.bf16.gmra.mrb[0].mxu0 %v3154
        %v4108 = vpop.f32.mrb[0].mxu0
        %v4109 = vadd.f32 %v3307, %v4108
        %v4110 = vpop.f32.mrb[0].mxu0
        %v4111 = vadd.f32 %v3311, %v4110
        %v4112 = vpop.f32.mrb[0].mxu0
        %v4113 = vadd.f32 %v3307, %v4112
        %v4114 = vpop.f32.mrb[0].mxu0
        %v4115 = vadd.f32 %v3311, %v4114
        %4116 = vmatprep.mubr.bf16.mxu0 %v3157
        %4117 = vmatmul.mubr.bf16.gmra.mrb[0].mxu0 %v3156
        %v4118 = vpop.f32.mrb[0].mxu0
        %v4119 = vadd.f32 %v3307, %v4118
        %v4120 = vpop.f32.mrb[0].mxu0
        %v4121 = vadd.f32 %v3311, %v4120
        %v4122 = vpop.f32.mrb[0].mxu0
        %v4123 = vadd.f32 %v3307, %v4122
        %v4124 = vpop.f32.mrb[0].mxu0
        %v4125 = vadd.f32 %v3311, %v4124
        %4126 = vdwg.mxu0
        %4127 = vmatprep.subr.bf16.mxu0 %v3719
        %4128 = vmatpush1.bf16.msra.mxu0 %v3718
        %4129 = vmatprep.subr.bf16.mxu0 %v3727
        %4130 = vmatpush1.bf16.msra.mxu0 %v3726
        %4131 = vmatprep.subr.bf16.mxu0 %v3735
        %4132 = vmatpush1.bf16.msra.mxu0 %v3734
        %4133 = vmatprep.subr.bf16.mxu0 %v3743
        %4134 = vmatpush1.bf16.msra.mxu0 %v3742
        %4135 = vmatprep.subr.bf16.mxu0 %v3751
        %4136 = vmatpush1.bf16.msra.mxu0 %v3750
        %4137 = vmatprep.subr.bf16.mxu0 %v3759
        %4138 = vmatpush1.bf16.msra.mxu0 %v3758
        %4139 = vmatprep.subr.bf16.mxu0 %v3767
        %4140 = vmatpush1.bf16.msra.mxu0 %v3766
        %4141 = vmatprep.subr.bf16.mxu0 %v3775
        %4142 = vmatpush1.bf16.msra.mxu0 %v3774
        %4143 = vmatprep.subr.bf16.mxu0 %v3783
        %4144 = vmatpush1.bf16.msra.mxu0 %v3782
        %4145 = vmatprep.subr.bf16.mxu0 %v3791
        %4146 = vmatpush1.bf16.msra.mxu0 %v3790
        %4147 = vmatprep.subr.bf16.mxu0 %v3799
        %4148 = vmatpush1.bf16.msra.mxu0 %v3798
        %4149 = vmatprep.subr.bf16.mxu0 %v3807
        %4150 = vmatpush1.bf16.msra.mxu0 %v3806
        %4151 = vmatprep.subr.bf16.mxu0 %v3815
        %4152 = vmatpush1.bf16.msra.mxu0 %v3814
        %4153 = vmatprep.subr.bf16.mxu0 %v3823
        %4154 = vmatpush1.bf16.msra.mxu0 %v3822
        %4155 = vmatprep.subr.bf16.mxu0 %v3831
        %4156 = vmatpush1.bf16.msra.mxu0 %v3830
        %4157 = vmatprep.subr.bf16.mxu0 %v3839
        %4158 = vmatpush1.bf16.msra.mxu0 %v3838
        %4159 = vmatprep.mubr.bf16.mxu0 %v3155
        %4160 = vmatmul.mubr.bf16.gmra.mrb[0].mxu0 %v3154
        %v4161 = vpop.f32.mrb[0].mxu0
        %v4162 = vadd.f32 %v3315, %v4161
        %v4163 = vpop.f32.mrb[0].mxu0
        %v4164 = vadd.f32 %v3319, %v4163
        %v4165 = vpop.f32.mrb[0].mxu0
        %v4166 = vadd.f32 %v3315, %v4165
        %v4167 = vpop.f32.mrb[0].mxu0
        %v4168 = vadd.f32 %v3319, %v4167
        %4169 = vmatprep.mubr.bf16.mxu0 %v3157
        %4170 = vmatmul.mubr.bf16.gmra.mrb[0].mxu0 %v3156
        %v4171 = vpop.f32.mrb[0].mxu0
        %v4172 = vadd.f32 %v3315, %v4171
        %v4173 = vpop.f32.mrb[0].mxu0
        %v4174 = vadd.f32 %v3319, %v4173
        %v4175 = vpop.f32.mrb[0].mxu0
        %v4176 = vadd.f32 %v3315, %v4175
        %v4177 = vpop.f32.mrb[0].mxu0
        %v4178 = vadd.f32 %v3319, %v4177
        %4179 = vdwg.mxu0
        %v4180 = vmul.f32 %v4003, 0.5
        %v4181 = vmul.f32 %v4005, 0.5
        %v4182 = vmul.f32 %v4056, 0.5
        %v4183 = vmul.f32 %v4058, 0.5
        %v4184 = vmul.f32 %v4109, 0.5
        %v4185 = vmul.f32 %v4111, 0.5
        %v4186 = vmul.f32 %v4162, 0.5
        %v4187 = vmul.f32 %v4164, 0.5
        %v4188 = vmul.f32 %v4007, 0.5
        %v4189 = vmul.f32 %v4009, 0.5
        %v4190 = vmul.f32 %v4060, 0.5
        %v4191 = vmul.f32 %v4062, 0.5
        %v4192 = vmul.f32 %v4113, 0.5
        %v4193 = vmul.f32 %v4115, 0.5
        %v4194 = vmul.f32 %v4166, 0.5
        %v4195 = vmul.f32 %v4168, 0.5
        %v4196 = vmul.f32 %v4013, 0.5
        %v4197 = vmul.f32 %v4015, 0.5
        %v4198 = vmul.f32 %v4066, 0.5
        %v4199 = vmul.f32 %v4068, 0.5
        %v4200 = vmul.f32 %v4119, 0.5
        %v4201 = vmul.f32 %v4121, 0.5
        %v4202 = vmul.f32 %v4172, 0.5
        %v4203 = vmul.f32 %v4174, 0.5
        %v4204 = vmul.f32 %v4017, 0.5
        %v4205 = vmul.f32 %v4019, 0.5
        %v4206 = vmul.f32 %v4070, 0.5
        %v4207 = vmul.f32 %v4072, 0.5
        %v4208 = vmul.f32 %v4123, 0.5
        %v4209 = vmul.f32 %v4125, 0.5
        %v4210 = vmul.f32 %v4176, 0.5
        %v4211 = vmul.f32 %v4178, 0.5
        %v4212 = vmul.f32 %v4003, 0.044715
        %v4213 = vmul.f32 %v4005, 0.044715
        %v4214 = vmul.f32 %v4056, 0.044715
        %v4215 = vmul.f32 %v4058, 0.044715
        %v4216 = vmul.f32 %v4109, 0.044715
        %v4217 = vmul.f32 %v4111, 0.044715
        %v4218 = vmul.f32 %v4162, 0.044715
        %v4219 = vmul.f32 %v4164, 0.044715
        %v4220 = vmul.f32 %v4007, 0.044715
        %v4221 = vmul.f32 %v4009, 0.044715
        %v4222 = vmul.f32 %v4060, 0.044715
        %v4223 = vmul.f32 %v4062, 0.044715
        %v4224 = vmul.f32 %v4113, 0.044715
        %v4225 = vmul.f32 %v4115, 0.044715
        %v4226 = vmul.f32 %v4166, 0.044715
        %v4227 = vmul.f32 %v4168, 0.044715
        %v4228 = vmul.f32 %v4013, 0.044715
        %v4229 = vmul.f32 %v4015, 0.044715
        %v4230 = vmul.f32 %v4066, 0.044715
        %v4231 = vmul.f32 %v4068, 0.044715
        %v4232 = vmul.f32 %v4119, 0.044715
        %v4233 = vmul.f32 %v4121, 0.044715
        %v4234 = vmul.f32 %v4172, 0.044715
        %v4235 = vmul.f32 %v4174, 0.044715
        %v4236 = vmul.f32 %v4017, 0.044715
        %v4237 = vmul.f32 %v4019, 0.044715
        %v4238 = vmul.f32 %v4070, 0.044715
        %v4239 = vmul.f32 %v4072, 0.044715
        %v4240 = vmul.f32 %v4123, 0.044715
        %v4241 = vmul.f32 %v4125, 0.044715
        %v4242 = vmul.f32 %v4176, 0.044715
        %v4243 = vmul.f32 %v4178, 0.044715
        %v4244 = vmul.f32 %v4212, %v4003
        %v4245 = vmul.f32 %v4213, %v4005
        %v4246 = vmul.f32 %v4214, %v4056
        %v4247 = vmul.f32 %v4215, %v4058
        %v4248 = vmul.f32 %v4216, %v4109
        %v4249 = vmul.f32 %v4217, %v4111
        %v4250 = vmul.f32 %v4218, %v4162
        %v4251 = vmul.f32 %v4219, %v4164
        %v4252 = vmul.f32 %v4220, %v4007
        %v4253 = vmul.f32 %v4221, %v4009
        %v4254 = vmul.f32 %v4222, %v4060
        %v4255 = vmul.f32 %v4223, %v4062
        %v4256 = vmul.f32 %v4224, %v4113
        %v4257 = vmul.f32 %v4225, %v4115
        %v4258 = vmul.f32 %v4226, %v4166
        %v4259 = vmul.f32 %v4227, %v4168
        %v4260 = vmul.f32 %v4228, %v4013
        %v4261 = vmul.f32 %v4229, %v4015
        %v4262 = vmul.f32 %v4230, %v4066
        %v4263 = vmul.f32 %v4231, %v4068
        %v4264 = vmul.f32 %v4232, %v4119
        %v4265 = vmul.f32 %v4233, %v4121
        %v4266 = vmul.f32 %v4234, %v4172
        %v4267 = vmul.f32 %v4235, %v4174
        %v4268 = vmul.f32 %v4236, %v4017
        %v4269 = vmul.f32 %v4237, %v4019
        %v4270 = vmul.f32 %v4238, %v4070
        %v4271 = vmul.f32 %v4239, %v4072
        %v4272 = vmul.f32 %v4240, %v4123
        %v4273 = vmul.f32 %v4241, %v4125
        %v4274 = vmul.f32 %v4242, %v4176
        %v4275 = vmul.f32 %v4243, %v4178
        %v4276 = vmul.f32 %v4244, %v4003
        %v4277 = vmul.f32 %v4245, %v4005
        %v4278 = vmul.f32 %v4246, %v4056
        %v4279 = vmul.f32 %v4247, %v4058
        %v4280 = vmul.f32 %v4248, %v4109
        %v4281 = vmul.f32 %v4249, %v4111
        %v4282 = vmul.f32 %v4250, %v4162
        %v4283 = vmul.f32 %v4251, %v4164
        %v4284 = vmul.f32 %v4252, %v4007
        %v4285 = vmul.f32 %v4253, %v4009
        %v4286 = vmul.f32 %v4254, %v4060
        %v4287 = vmul.f32 %v4255, %v4062
        %v4288 = vmul.f32 %v4256, %v4113
        %v4289 = vmul.f32 %v4257, %v4115
        %v4290 = vmul.f32 %v4258, %v4166
        %v4291 = vmul.f32 %v4259, %v4168
        %v4292 = vmul.f32 %v4260, %v4013
        %v4293 = vmul.f32 %v4261, %v4015
        %v4294 = vmul.f32 %v4262, %v4066
        %v4295 = vmul.f32 %v4263, %v4068
        %v4296 = vmul.f32 %v4264, %v4119
        %v4297 = vmul.f32 %v4265, %v4121
        %v4298 = vmul.f32 %v4266, %v4172
        %v4299 = vmul.f32 %v4267, %v4174
        %v4300 = vmul.f32 %v4268, %v4017
        %v4301 = vmul.f32 %v4269, %v4019
        %v4302 = vmul.f32 %v4270, %v4070
        %v4303 = vmul.f32 %v4271, %v4072
        %v4304 = vmul.f32 %v4272, %v4123
        %v4305 = vmul.f32 %v4273, %v4125
        %v4306 = vmul.f32 %v4274, %v4176
        %v4307 = vmul.f32 %v4275, %v4178
        %v4308 = vadd.f32 %v4003, %v4276
        %v4309 = vadd.f32 %v4005, %v4277
        %v4310 = vadd.f32 %v4056, %v4278
        %v4311 = vadd.f32 %v4058, %v4279
        %v4312 = vadd.f32 %v4109, %v4280
        %v4313 = vadd.f32 %v4111, %v4281
        %v4314 = vadd.f32 %v4162, %v4282
        %v4315 = vadd.f32 %v4164, %v4283
        %v4316 = vadd.f32 %v4007, %v4284
        %v4317 = vadd.f32 %v4009, %v4285
        %v4318 = vadd.f32 %v4060, %v4286
        %v4319 = vadd.f32 %v4062, %v4287
        %v4320 = vadd.f32 %v4113, %v4288
        %v4321 = vadd.f32 %v4115, %v4289
        %v4322 = vadd.f32 %v4166, %v4290
        %v4323 = vadd.f32 %v4168, %v4291
        %v4324 = vadd.f32 %v4013, %v4292
        %v4325 = vadd.f32 %v4015, %v4293
        %v4326 = vadd.f32 %v4066, %v4294
        %v4327 = vadd.f32 %v4068, %v4295
        %v4328 = vadd.f32 %v4119, %v4296
        %v4329 = vadd.f32 %v4121, %v4297
        %v4330 = vadd.f32 %v4172, %v4298
        %v4331 = vadd.f32 %v4174, %v4299
        %v4332 = vadd.f32 %v4017, %v4300
        %v4333 = vadd.f32 %v4019, %v4301
        %v4334 = vadd.f32 %v4070, %v4302
        %v4335 = vadd.f32 %v4072, %v4303
        %v4336 = vadd.f32 %v4123, %v4304
        %v4337 = vadd.f32 %v4125, %v4305
        %v4338 = vadd.f32 %v4176, %v4306
        %v4339 = vadd.f32 %v4178, %v4307
        %v4340 = vmul.f32 %v4308, 0.7978846
        %v4341 = vmul.f32 %v4309, 0.7978846
        %v4342 = vmul.f32 %v4310, 0.7978846
        %v4343 = vmul.f32 %v4311, 0.7978846
        %v4344 = vmul.f32 %v4312, 0.7978846
        %v4345 = vmul.f32 %v4313, 0.7978846
        %v4346 = vmul.f32 %v4314, 0.7978846
        %v4347 = vmul.f32 %v4315, 0.7978846
        %v4348 = vmul.f32 %v4316, 0.7978846
        %v4349 = vmul.f32 %v4317, 0.7978846
        %v4350 = vmul.f32 %v4318, 0.7978846
        %v4351 = vmul.f32 %v4319, 0.7978846
        %v4352 = vmul.f32 %v4320, 0.7978846
        %v4353 = vmul.f32 %v4321, 0.7978846
        %v4354 = vmul.f32 %v4322, 0.7978846
        %v4355 = vmul.f32 %v4323, 0.7978846
        %v4356 = vmul.f32 %v4324, 0.7978846
        %v4357 = vmul.f32 %v4325, 0.7978846
        %v4358 = vmul.f32 %v4326, 0.7978846
        %v4359 = vmul.f32 %v4327, 0.7978846
        %v4360 = vmul.f32 %v4328, 0.7978846
        %v4361 = vmul.f32 %v4329, 0.7978846
        %v4362 = vmul.f32 %v4330, 0.7978846
        %v4363 = vmul.f32 %v4331, 0.7978846
        %v4364 = vmul.f32 %v4332, 0.7978846
        %v4365 = vmul.f32 %v4333, 0.7978846
        %v4366 = vmul.f32 %v4334, 0.7978846
        %v4367 = vmul.f32 %v4335, 0.7978846
        %v4368 = vmul.f32 %v4336, 0.7978846
        %v4369 = vmul.f32 %v4337, 0.7978846
        %v4370 = vmul.f32 %v4338, 0.7978846
        %v4371 = vmul.f32 %v4339, 0.7978846
        %v4372 = vtanh.pop %v4340
        %v4373 = vtanh.pop %v4341
        %v4374 = vtanh.pop %v4342
        %v4375 = vtanh.pop %v4343
        %v4376 = vtanh.pop %v4344
        %v4377 = vtanh.pop %v4345
        %v4378 = vtanh.pop %v4346
        %v4379 = vtanh.pop %v4347
        %v4380 = vtanh.pop %v4348
        %v4381 = vtanh.pop %v4349
        %v4382 = vtanh.pop %v4350
        %v4383 = vtanh.pop %v4351
        %v4384 = vtanh.pop %v4352
        %v4385 = vtanh.pop %v4353
        %v4386 = vtanh.pop %v4354
        %v4387 = vtanh.pop %v4355
        %v4388 = vtanh.pop %v4356
        %v4389 = vtanh.pop %v4357
        %v4390 = vtanh.pop %v4358
        %v4391 = vtanh.pop %v4359
        %v4392 = vtanh.pop %v4360
        %v4393 = vtanh.pop %v4361
        %v4394 = vtanh.pop %v4362
        %v4395 = vtanh.pop %v4363
        %v4396 = vtanh.pop %v4364
        %v4397 = vtanh.pop %v4365
        %v4398 = vtanh.pop %v4366
        %v4399 = vtanh.pop %v4367
        %v4400 = vtanh.pop %v4368
        %v4401 = vtanh.pop %v4369
        %v4402 = vtanh.pop %v4370
        %v4403 = vtanh.pop %v4371
        %v4404 = vadd.f32 %v4372, 1.0
        %v4405 = vadd.f32 %v4373, 1.0
        %v4406 = vadd.f32 %v4374, 1.0
        %v4407 = vadd.f32 %v4375, 1.0
        %v4408 = vadd.f32 %v4376, 1.0
        %v4409 = vadd.f32 %v4377, 1.0
        %v4410 = vadd.f32 %v4378, 1.0
        %v4411 = vadd.f32 %v4379, 1.0
        %v4412 = vadd.f32 %v4380, 1.0
        %v4413 = vadd.f32 %v4381, 1.0
        %v4414 = vadd.f32 %v4382, 1.0
        %v4415 = vadd.f32 %v4383, 1.0
        %v4416 = vadd.f32 %v4384, 1.0
        %v4417 = vadd.f32 %v4385, 1.0
        %v4418 = vadd.f32 %v4386, 1.0
        %v4419 = vadd.f32 %v4387, 1.0
        %v4420 = vadd.f32 %v4388, 1.0
        %v4421 = vadd.f32 %v4389, 1.0
        %v4422 = vadd.f32 %v4390, 1.0
        %v4423 = vadd.f32 %v4391, 1.0
        %v4424 = vadd.f32 %v4392, 1.0
        %v4425 = vadd.f32 %v4393, 1.0
        %v4426 = vadd.f32 %v4394, 1.0
        %v4427 = vadd.f32 %v4395, 1.0
        %v4428 = vadd.f32 %v4396, 1.0
        %v4429 = vadd.f32 %v4397, 1.0
        %v4430 = vadd.f32 %v4398, 1.0
        %v4431 = vadd.f32 %v4399, 1.0
        %v4432 = vadd.f32 %v4400, 1.0
        %v4433 = vadd.f32 %v4401, 1.0
        %v4434 = vadd.f32 %v4402, 1.0
        %v4435 = vadd.f32 %v4403, 1.0
        %v4436 = vmul.f32 %v4180, %v4404
        %v4437 = vmul.f32 %v4181, %v4405
        %v4438 = vmul.f32 %v4182, %v4406
        %v4439 = vmul.f32 %v4183, %v4407
        %v4440 = vmul.f32 %v4184, %v4408
        %v4441 = vmul.f32 %v4185, %v4409
        %v4442 = vmul.f32 %v4186, %v4410
        %v4443 = vmul.f32 %v4187, %v4411
        %v4444 = vmul.f32 %v4188, %v4412
        %v4445 = vmul.f32 %v4189, %v4413
        %v4446 = vmul.f32 %v4190, %v4414
        %v4447 = vmul.f32 %v4191, %v4415
        %v4448 = vmul.f32 %v4192, %v4416
        %v4449 = vmul.f32 %v4193, %v4417
        %v4450 = vmul.f32 %v4194, %v4418
        %v4451 = vmul.f32 %v4195, %v4419
        %v4452 = vmul.f32 %v4196, %v4420
        %v4453 = vmul.f32 %v4197, %v4421
        %v4454 = vmul.f32 %v4198, %v4422
        %v4455 = vmul.f32 %v4199, %v4423
        %v4456 = vmul.f32 %v4200, %v4424
        %v4457 = vmul.f32 %v4201, %v4425
        %v4458 = vmul.f32 %v4202, %v4426
        %v4459 = vmul.f32 %v4203, %v4427
        %v4460 = vmul.f32 %v4204, %v4428
        %v4461 = vmul.f32 %v4205, %v4429
        %v4462 = vmul.f32 %v4206, %v4430
        %v4463 = vmul.f32 %v4207, %v4431
        %v4464 = vmul.f32 %v4208, %v4432
        %v4465 = vmul.f32 %v4209, %v4433
        %v4466 = vmul.f32 %v4210, %v4434
        %v4467 = vmul.f32 %v4211, %v4435
        %v4468 = vpack.c.bf16 %v4444, %v4436
        %v4469 = vpack.c.bf16 %v4445, %v4437
        %v4470 = vpack.c.bf16 %v4446, %v4438
        %v4471 = vpack.c.bf16 %v4447, %v4439
        %v4472 = vpack.c.bf16 %v4448, %v4440
        %v4473 = vpack.c.bf16 %v4449, %v4441
        %v4474 = vpack.c.bf16 %v4450, %v4442
        %v4475 = vpack.c.bf16 %v4451, %v4443
        %v4476 = vpack.c.bf16 %v4460, %v4452
        %v4477 = vpack.c.bf16 %v4461, %v4453
        %v4478 = vpack.c.bf16 %v4462, %v4454
        %v4479 = vpack.c.bf16 %v4463, %v4455
        %v4480 = vpack.c.bf16 %v4464, %v4456
        %v4481 = vpack.c.bf16 %v4465, %v4457
        %v4482 = vpack.c.bf16 %v4466, %v4458
        %v4483 = vpack.c.bf16 %v4467, %v4459
        %v4484 = vld [vmem:[%s1153] sm:$0xff]
        %v4485 = vld [vmem:[%s1153 + $0x8] sm:$0xff]
        %v4486 = vld [vmem:[%s1153 + $0x10] sm:$0xff]
        %v4487 = vld [vmem:[%s1153 + $0x18] sm:$0xff]
        %v4488 = vld [vmem:[%s1153 + $0x20] sm:$0xff]
        %v4489 = vld [vmem:[%s1153 + $0x28] sm:$0xff]
        %v4490 = vld [vmem:[%s1153 + $0x30] sm:$0xff]
        %v4491 = vld [vmem:[%s1153 + $0x38] sm:$0xff]
        %v4492 = vld [vmem:[%s1153 + $0x40] sm:$0xff]
        %v4493 = vld [vmem:[%s1153 + $0x48] sm:$0xff]
        %v4494 = vld [vmem:[%s1153 + $0x50] sm:$0xff]
        %v4495 = vld [vmem:[%s1153 + $0x58] sm:$0xff]
        %v4496 = vld [vmem:[%s1153 + $0x60] sm:$0xff]
        %v4497 = vld [vmem:[%s1153 + $0x68] sm:$0xff]
        %v4498 = vld [vmem:[%s1153 + $0x70] sm:$0xff]
        %v4499 = vld [vmem:[%s1153 + $0x78] sm:$0xff]
        %v4500 = vld [vmem:[%s1153 + $0x80] sm:$0xff]
        %v4501 = vld [vmem:[%s1153 + $0x88] sm:$0xff]
        %v4502 = vld [vmem:[%s1153 + $0x90] sm:$0xff]
        %v4503 = vld [vmem:[%s1153 + $0x98] sm:$0xff]
        %v4504 = vld [vmem:[%s1153 + $0xa0] sm:$0xff]
        %v4505 = vld [vmem:[%s1153 + $0xa8] sm:$0xff]
        %v4506 = vld [vmem:[%s1153 + $0xb0] sm:$0xff]
        %v4507 = vld [vmem:[%s1153 + $0xb8] sm:$0xff]
        %v4508 = vld [vmem:[%s1153 + $0xc0] sm:$0xff]
        %v4509 = vld [vmem:[%s1153 + $0xc8] sm:$0xff]
        %v4510 = vld [vmem:[%s1153 + $0xd0] sm:$0xff]
        %v4511 = vld [vmem:[%s1153 + $0xd8] sm:$0xff]
        %v4512 = vld [vmem:[%s1153 + $0xe0] sm:$0xff]
        %v4513 = vld [vmem:[%s1153 + $0xe8] sm:$0xff]
        %v4514 = vld [vmem:[%s1153 + $0xf0] sm:$0xff]
        %v4515 = vld [vmem:[%s1153 + $0xf8] sm:$0xff]
        %v4516 = vld [vmem:[%s1153 + $0x100] sm:$0xff]
        %v4517 = vld [vmem:[%s1153 + $0x108] sm:$0xff]
        %v4518 = vld [vmem:[%s1153 + $0x110] sm:$0xff]
        %v4519 = vld [vmem:[%s1153 + $0x118] sm:$0xff]
        %v4520 = vld [vmem:[%s1153 + $0x120] sm:$0xff]
        %v4521 = vld [vmem:[%s1153 + $0x128] sm:$0xff]
        %v4522 = vld [vmem:[%s1153 + $0x130] sm:$0xff]
        %v4523 = vld [vmem:[%s1153 + $0x138] sm:$0xff]
        %v4524 = vld [vmem:[%s1153 + $0x140] sm:$0xff]
        %v4525 = vld [vmem:[%s1153 + $0x148] sm:$0xff]
        %v4526 = vld [vmem:[%s1153 + $0x150] sm:$0xff]
        %v4527 = vld [vmem:[%s1153 + $0x158] sm:$0xff]
        %v4528 = vld [vmem:[%s1153 + $0x160] sm:$0xff]
        %v4529 = vld [vmem:[%s1153 + $0x168] sm:$0xff]
        %v4530 = vld [vmem:[%s1153 + $0x170] sm:$0xff]
        %v4531 = vld [vmem:[%s1153 + $0x178] sm:$0xff]
        %v4532 = vld [vmem:[%s1153 + $0x180] sm:$0xff]
        %v4533 = vld [vmem:[%s1153 + $0x188] sm:$0xff]
        %v4534 = vld [vmem:[%s1153 + $0x190] sm:$0xff]
        %v4535 = vld [vmem:[%s1153 + $0x198] sm:$0xff]
        %v4536 = vld [vmem:[%s1153 + $0x1a0] sm:$0xff]
        %v4537 = vld [vmem:[%s1153 + $0x1a8] sm:$0xff]
        %v4538 = vld [vmem:[%s1153 + $0x1b0] sm:$0xff]
        %v4539 = vld [vmem:[%s1153 + $0x1b8] sm:$0xff]
        %v4540 = vld [vmem:[%s1153 + $0x1c0] sm:$0xff]
        %v4541 = vld [vmem:[%s1153 + $0x1c8] sm:$0xff]
        %v4542 = vld [vmem:[%s1153 + $0x1d0] sm:$0xff]
        %v4543 = vld [vmem:[%s1153 + $0x1d8] sm:$0xff]
        %v4544 = vld [vmem:[%s1153 + $0x1e0] sm:$0xff]
        %v4545 = vld [vmem:[%s1153 + $0x1e8] sm:$0xff]
        %v4546 = vld [vmem:[%s1153 + $0x1f0] sm:$0xff]
        %v4547 = vld [vmem:[%s1153 + $0x1f8] sm:$0xff]
        %v4548 = vld [vmem:[%s1153 + $0x200] sm:$0xff]
        %v4549 = vld [vmem:[%s1153 + $0x208] sm:$0xff]
        %v4550 = vld [vmem:[%s1153 + $0x210] sm:$0xff]
        %v4551 = vld [vmem:[%s1153 + $0x218] sm:$0xff]
        %v4552 = vld [vmem:[%s1153 + $0x220] sm:$0xff]
        %v4553 = vld [vmem:[%s1153 + $0x228] sm:$0xff]
        %v4554 = vld [vmem:[%s1153 + $0x230] sm:$0xff]
        %v4555 = vld [vmem:[%s1153 + $0x238] sm:$0xff]
        %v4556 = vld [vmem:[%s1153 + $0x240] sm:$0xff]
        %v4557 = vld [vmem:[%s1153 + $0x248] sm:$0xff]
        %v4558 = vld [vmem:[%s1153 + $0x250] sm:$0xff]
        %v4559 = vld [vmem:[%s1153 + $0x258] sm:$0xff]
        %v4560 = vld [vmem:[%s1153 + $0x260] sm:$0xff]
        %v4561 = vld [vmem:[%s1153 + $0x268] sm:$0xff]
        %v4562 = vld [vmem:[%s1153 + $0x270] sm:$0xff]
        %v4563 = vld [vmem:[%s1153 + $0x278] sm:$0xff]
        %v4564 = vld [vmem:[%s1153 + $0x280] sm:$0xff]
        %v4565 = vld [vmem:[%s1153 + $0x288] sm:$0xff]
        %v4566 = vld [vmem:[%s1153 + $0x290] sm:$0xff]
        %v4567 = vld [vmem:[%s1153 + $0x298] sm:$0xff]
        %v4568 = vld [vmem:[%s1153 + $0x2a0] sm:$0xff]
        %v4569 = vld [vmem:[%s1153 + $0x2a8] sm:$0xff]
        %v4570 = vld [vmem:[%s1153 + $0x2b0] sm:$0xff]
        %v4571 = vld [vmem:[%s1153 + $0x2b8] sm:$0xff]
        %v4572 = vld [vmem:[%s1153 + $0x2c0] sm:$0xff]
        %v4573 = vld [vmem:[%s1153 + $0x2c8] sm:$0xff]
        %v4574 = vld [vmem:[%s1153 + $0x2d0] sm:$0xff]
        %v4575 = vld [vmem:[%s1153 + $0x2d8] sm:$0xff]
        %v4576 = vld [vmem:[%s1153 + $0x2e0] sm:$0xff]
        %v4577 = vld [vmem:[%s1153 + $0x2e8] sm:$0xff]
        %v4578 = vld [vmem:[%s1153 + $0x2f0] sm:$0xff]
        %v4579 = vld [vmem:[%s1153 + $0x2f8] sm:$0xff]
        %v4580 = vld [vmem:[%s1153 + $0x300] sm:$0xff]
        %v4581 = vld [vmem:[%s1153 + $0x308] sm:$0xff]
        %v4582 = vld [vmem:[%s1153 + $0x310] sm:$0xff]
        %v4583 = vld [vmem:[%s1153 + $0x318] sm:$0xff]
        %v4584 = vld [vmem:[%s1153 + $0x320] sm:$0xff]
        %v4585 = vld [vmem:[%s1153 + $0x328] sm:$0xff]
        %v4586 = vld [vmem:[%s1153 + $0x330] sm:$0xff]
        %v4587 = vld [vmem:[%s1153 + $0x338] sm:$0xff]
        %v4588 = vld [vmem:[%s1153 + $0x340] sm:$0xff]
        %v4589 = vld [vmem:[%s1153 + $0x348] sm:$0xff]
        %v4590 = vld [vmem:[%s1153 + $0x350] sm:$0xff]
        %v4591 = vld [vmem:[%s1153 + $0x358] sm:$0xff]
        %v4592 = vld [vmem:[%s1153 + $0x360] sm:$0xff]
        %v4593 = vld [vmem:[%s1153 + $0x368] sm:$0xff]
        %v4594 = vld [vmem:[%s1153 + $0x370] sm:$0xff]
        %v4595 = vld [vmem:[%s1153 + $0x378] sm:$0xff]
        %v4596 = vld [vmem:[%s1153 + $0x380] sm:$0xff]
        %v4597 = vld [vmem:[%s1153 + $0x388] sm:$0xff]
        %v4598 = vld [vmem:[%s1153 + $0x390] sm:$0xff]
        %v4599 = vld [vmem:[%s1153 + $0x398] sm:$0xff]
        %v4600 = vld [vmem:[%s1153 + $0x3a0] sm:$0xff]
        %v4601 = vld [vmem:[%s1153 + $0x3a8] sm:$0xff]
        %v4602 = vld [vmem:[%s1153 + $0x3b0] sm:$0xff]
        %v4603 = vld [vmem:[%s1153 + $0x3b8] sm:$0xff]
        %v4604 = vld [vmem:[%s1153 + $0x3c0] sm:$0xff]
        %v4605 = vld [vmem:[%s1153 + $0x3c8] sm:$0xff]
        %v4606 = vld [vmem:[%s1153 + $0x3d0] sm:$0xff]
        %v4607 = vld [vmem:[%s1153 + $0x3d8] sm:$0xff]
        %v4608 = vld [vmem:[%s1153 + $0x3e0] sm:$0xff]
        %v4609 = vld [vmem:[%s1153 + $0x3e8] sm:$0xff]
        %v4610 = vld [vmem:[%s1153 + $0x3f0] sm:$0xff]
        %v4611 = vld [vmem:[%s1153 + $0x3f8] sm:$0xff]
        %v4612 = vld [vmem:[%s1162] sm:$0x3]
        %v4614 = vlaneseq
        %v4615 = vshrl.u32 %v4614, 7
        %v4616 = vsub.s32 0, %v4615
        %v4617 = vrot.slane %v4612, %v4616
        %v4618 = vlaneseq
        %v4619 = vshrl.u32 %v4618, 7
        %v4620 = vsub.s32 1, %v4619
        %v4621 = vrot.slane %v4612, %v4620
        %v4752 = vunpack.c.l.b16 %v4484
        %v4753 = vunpack.c.h.b16 %v4484
        %v4754 = vunpack.c.l.b16 %v4485
        %v4755 = vunpack.c.h.b16 %v4485
        %v4756 = vunpack.c.l.b16 %v4486
        %v4757 = vunpack.c.h.b16 %v4486
        %v4758 = vunpack.c.l.b16 %v4487
        %v4759 = vunpack.c.h.b16 %v4487
        %v4760 = vunpack.c.l.b16 %v4488
        %v4761 = vunpack.c.h.b16 %v4488
        %v4762 = vunpack.c.l.b16 %v4489
        %v4763 = vunpack.c.h.b16 %v4489
        %v4764 = vunpack.c.l.b16 %v4490
        %v4765 = vunpack.c.h.b16 %v4490
        %v4766 = vunpack.c.l.b16 %v4491
        %v4767 = vunpack.c.h.b16 %v4491
        %v4768 = vunpack.c.l.b16 %v4492
        %v4769 = vunpack.c.h.b16 %v4492
        %v4770 = vunpack.c.l.b16 %v4493
        %v4771 = vunpack.c.h.b16 %v4493
        %v4772 = vunpack.c.l.b16 %v4494
        %v4773 = vunpack.c.h.b16 %v4494
        %v4774 = vunpack.c.l.b16 %v4495
        %v4775 = vunpack.c.h.b16 %v4495
        %v4776 = vunpack.c.l.b16 %v4496
        %v4777 = vunpack.c.h.b16 %v4496
        %v4778 = vunpack.c.l.b16 %v4497
        %v4779 = vunpack.c.h.b16 %v4497
        %v4780 = vunpack.c.l.b16 %v4498
        %v4781 = vunpack.c.h.b16 %v4498
        %v4782 = vunpack.c.l.b16 %v4499
        %v4783 = vunpack.c.h.b16 %v4499
        %v4784 = vunpack.c.l.b16 %v4500
        %v4785 = vunpack.c.h.b16 %v4500
        %v4786 = vunpack.c.l.b16 %v4501
        %v4787 = vunpack.c.h.b16 %v4501
        %v4788 = vunpack.c.l.b16 %v4502
        %v4789 = vunpack.c.h.b16 %v4502
        %v4790 = vunpack.c.l.b16 %v4503
        %v4791 = vunpack.c.h.b16 %v4503
        %v4792 = vunpack.c.l.b16 %v4504
        %v4793 = vunpack.c.h.b16 %v4504
        %v4794 = vunpack.c.l.b16 %v4505
        %v4795 = vunpack.c.h.b16 %v4505
        %v4796 = vunpack.c.l.b16 %v4506
        %v4797 = vunpack.c.h.b16 %v4506
        %v4798 = vunpack.c.l.b16 %v4507
        %v4799 = vunpack.c.h.b16 %v4507
        %v4800 = vunpack.c.l.b16 %v4508
        %v4801 = vunpack.c.h.b16 %v4508
        %v4802 = vunpack.c.l.b16 %v4509
        %v4803 = vunpack.c.h.b16 %v4509
        %v4804 = vunpack.c.l.b16 %v4510
        %v4805 = vunpack.c.h.b16 %v4510
        %v4806 = vunpack.c.l.b16 %v4511
        %v4807 = vunpack.c.h.b16 %v4511
        %v4808 = vunpack.c.l.b16 %v4512
        %v4809 = vunpack.c.h.b16 %v4512
        %v4810 = vunpack.c.l.b16 %v4513
        %v4811 = vunpack.c.h.b16 %v4513
        %v4812 = vunpack.c.l.b16 %v4514
        %v4813 = vunpack.c.h.b16 %v4514
        %v4814 = vunpack.c.l.b16 %v4515
        %v4815 = vunpack.c.h.b16 %v4515
        %v4816 = vunpack.c.l.b16 %v4516
        %v4817 = vunpack.c.h.b16 %v4516
        %v4818 = vunpack.c.l.b16 %v4517
        %v4819 = vunpack.c.h.b16 %v4517
        %v4820 = vunpack.c.l.b16 %v4518
        %v4821 = vunpack.c.h.b16 %v4518
        %v4822 = vunpack.c.l.b16 %v4519
        %v4823 = vunpack.c.h.b16 %v4519
        %v4824 = vunpack.c.l.b16 %v4520
        %v4825 = vunpack.c.h.b16 %v4520
        %v4826 = vunpack.c.l.b16 %v4521
        %v4827 = vunpack.c.h.b16 %v4521
        %v4828 = vunpack.c.l.b16 %v4522
        %v4829 = vunpack.c.h.b16 %v4522
        %v4830 = vunpack.c.l.b16 %v4523
        %v4831 = vunpack.c.h.b16 %v4523
        %v4832 = vunpack.c.l.b16 %v4524
        %v4833 = vunpack.c.h.b16 %v4524
        %v4834 = vunpack.c.l.b16 %v4525
        %v4835 = vunpack.c.h.b16 %v4525
        %v4836 = vunpack.c.l.b16 %v4526
        %v4837 = vunpack.c.h.b16 %v4526
        %v4838 = vunpack.c.l.b16 %v4527
        %v4839 = vunpack.c.h.b16 %v4527
        %v4840 = vunpack.c.l.b16 %v4528
        %v4841 = vunpack.c.h.b16 %v4528
        %v4842 = vunpack.c.l.b16 %v4529
        %v4843 = vunpack.c.h.b16 %v4529
        %v4844 = vunpack.c.l.b16 %v4530
        %v4845 = vunpack.c.h.b16 %v4530
        %v4846 = vunpack.c.l.b16 %v4531
        %v4847 = vunpack.c.h.b16 %v4531
        %v4848 = vunpack.c.l.b16 %v4532
        %v4849 = vunpack.c.h.b16 %v4532
        %v4850 = vunpack.c.l.b16 %v4533
        %v4851 = vunpack.c.h.b16 %v4533
        %v4852 = vunpack.c.l.b16 %v4534
        %v4853 = vunpack.c.h.b16 %v4534
        %v4854 = vunpack.c.l.b16 %v4535
        %v4855 = vunpack.c.h.b16 %v4535
        %v4856 = vunpack.c.l.b16 %v4536
        %v4857 = vunpack.c.h.b16 %v4536
        %v4858 = vunpack.c.l.b16 %v4537
        %v4859 = vunpack.c.h.b16 %v4537
        %v4860 = vunpack.c.l.b16 %v4538
        %v4861 = vunpack.c.h.b16 %v4538
        %v4862 = vunpack.c.l.b16 %v4539
        %v4863 = vunpack.c.h.b16 %v4539
        %v4864 = vunpack.c.l.b16 %v4540
        %v4865 = vunpack.c.h.b16 %v4540
        %v4866 = vunpack.c.l.b16 %v4541
        %v4867 = vunpack.c.h.b16 %v4541
        %v4868 = vunpack.c.l.b16 %v4542
        %v4869 = vunpack.c.h.b16 %v4542
        %v4870 = vunpack.c.l.b16 %v4543
        %v4871 = vunpack.c.h.b16 %v4543
        %v4872 = vunpack.c.l.b16 %v4544
        %v4873 = vunpack.c.h.b16 %v4544
        %v4874 = vunpack.c.l.b16 %v4545
        %v4875 = vunpack.c.h.b16 %v4545
        %v4876 = vunpack.c.l.b16 %v4546
        %v4877 = vunpack.c.h.b16 %v4546
        %v4878 = vunpack.c.l.b16 %v4547
        %v4879 = vunpack.c.h.b16 %v4547
        %v4880 = vunpack.c.l.b16 %v4548
        %v4881 = vunpack.c.h.b16 %v4548
        %v4882 = vunpack.c.l.b16 %v4549
        %v4883 = vunpack.c.h.b16 %v4549
        %v4884 = vunpack.c.l.b16 %v4550
        %v4885 = vunpack.c.h.b16 %v4550
        %v4886 = vunpack.c.l.b16 %v4551
        %v4887 = vunpack.c.h.b16 %v4551
        %v4888 = vunpack.c.l.b16 %v4552
        %v4889 = vunpack.c.h.b16 %v4552
        %v4890 = vunpack.c.l.b16 %v4553
        %v4891 = vunpack.c.h.b16 %v4553
        %v4892 = vunpack.c.l.b16 %v4554
        %v4893 = vunpack.c.h.b16 %v4554
        %v4894 = vunpack.c.l.b16 %v4555
        %v4895 = vunpack.c.h.b16 %v4555
        %v4896 = vunpack.c.l.b16 %v4556
        %v4897 = vunpack.c.h.b16 %v4556
        %v4898 = vunpack.c.l.b16 %v4557
        %v4899 = vunpack.c.h.b16 %v4557
        %v4900 = vunpack.c.l.b16 %v4558
        %v4901 = vunpack.c.h.b16 %v4558
        %v4902 = vunpack.c.l.b16 %v4559
        %v4903 = vunpack.c.h.b16 %v4559
        %v4904 = vunpack.c.l.b16 %v4560
        %v4905 = vunpack.c.h.b16 %v4560
        %v4906 = vunpack.c.l.b16 %v4561
        %v4907 = vunpack.c.h.b16 %v4561
        %v4908 = vunpack.c.l.b16 %v4562
        %v4909 = vunpack.c.h.b16 %v4562
        %v4910 = vunpack.c.l.b16 %v4563
        %v4911 = vunpack.c.h.b16 %v4563
        %v4912 = vunpack.c.l.b16 %v4564
        %v4913 = vunpack.c.h.b16 %v4564
        %v4914 = vunpack.c.l.b16 %v4565
        %v4915 = vunpack.c.h.b16 %v4565
        %v4916 = vunpack.c.l.b16 %v4566
        %v4917 = vunpack.c.h.b16 %v4566
        %v4918 = vunpack.c.l.b16 %v4567
        %v4919 = vunpack.c.h.b16 %v4567
        %v4920 = vunpack.c.l.b16 %v4568
        %v4921 = vunpack.c.h.b16 %v4568
        %v4922 = vunpack.c.l.b16 %v4569
        %v4923 = vunpack.c.h.b16 %v4569
        %v4924 = vunpack.c.l.b16 %v4570
        %v4925 = vunpack.c.h.b16 %v4570
        %v4926 = vunpack.c.l.b16 %v4571
        %v4927 = vunpack.c.h.b16 %v4571
        %v4928 = vunpack.c.l.b16 %v4572
        %v4929 = vunpack.c.h.b16 %v4572
        %v4930 = vunpack.c.l.b16 %v4573
        %v4931 = vunpack.c.h.b16 %v4573
        %v4932 = vunpack.c.l.b16 %v4574
        %v4933 = vunpack.c.h.b16 %v4574
        %v4934 = vunpack.c.l.b16 %v4575
        %v4935 = vunpack.c.h.b16 %v4575
        %v4936 = vunpack.c.l.b16 %v4576
        %v4937 = vunpack.c.h.b16 %v4576
        %v4938 = vunpack.c.l.b16 %v4577
        %v4939 = vunpack.c.h.b16 %v4577
        %v4940 = vunpack.c.l.b16 %v4578
        %v4941 = vunpack.c.h.b16 %v4578
        %v4942 = vunpack.c.l.b16 %v4579
        %v4943 = vunpack.c.h.b16 %v4579
        %v4944 = vunpack.c.l.b16 %v4580
        %v4945 = vunpack.c.h.b16 %v4580
        %v4946 = vunpack.c.l.b16 %v4581
        %v4947 = vunpack.c.h.b16 %v4581
        %v4948 = vunpack.c.l.b16 %v4582
        %v4949 = vunpack.c.h.b16 %v4582
        %v4950 = vunpack.c.l.b16 %v4583
        %v4951 = vunpack.c.h.b16 %v4583
        %v4952 = vunpack.c.l.b16 %v4584
        %v4953 = vunpack.c.h.b16 %v4584
        %v4954 = vunpack.c.l.b16 %v4585
        %v4955 = vunpack.c.h.b16 %v4585
        %v4956 = vunpack.c.l.b16 %v4586
        %v4957 = vunpack.c.h.b16 %v4586
        %v4958 = vunpack.c.l.b16 %v4587
        %v4959 = vunpack.c.h.b16 %v4587
        %v4960 = vunpack.c.l.b16 %v4588
        %v4961 = vunpack.c.h.b16 %v4588
        %v4962 = vunpack.c.l.b16 %v4589
        %v4963 = vunpack.c.h.b16 %v4589
        %v4964 = vunpack.c.l.b16 %v4590
        %v4965 = vunpack.c.h.b16 %v4590
        %v4966 = vunpack.c.l.b16 %v4591
        %v4967 = vunpack.c.h.b16 %v4591
        %v4968 = vunpack.c.l.b16 %v4592
        %v4969 = vunpack.c.h.b16 %v4592
        %v4970 = vunpack.c.l.b16 %v4593
        %v4971 = vunpack.c.h.b16 %v4593
        %v4972 = vunpack.c.l.b16 %v4594
        %v4973 = vunpack.c.h.b16 %v4594
        %v4974 = vunpack.c.l.b16 %v4595
        %v4975 = vunpack.c.h.b16 %v4595
        %v4976 = vunpack.c.l.b16 %v4596
        %v4977 = vunpack.c.h.b16 %v4596
        %v4978 = vunpack.c.l.b16 %v4597
        %v4979 = vunpack.c.h.b16 %v4597
        %v4980 = vunpack.c.l.b16 %v4598
        %v4981 = vunpack.c.h.b16 %v4598
        %v4982 = vunpack.c.l.b16 %v4599
        %v4983 = vunpack.c.h.b16 %v4599
        %v4984 = vunpack.c.l.b16 %v4600
        %v4985 = vunpack.c.h.b16 %v4600
        %v4986 = vunpack.c.l.b16 %v4601
        %v4987 = vunpack.c.h.b16 %v4601
        %v4988 = vunpack.c.l.b16 %v4602
        %v4989 = vunpack.c.h.b16 %v4602
        %v4990 = vunpack.c.l.b16 %v4603
        %v4991 = vunpack.c.h.b16 %v4603
        %v4992 = vunpack.c.l.b16 %v4604
        %v4993 = vunpack.c.h.b16 %v4604
        %v4994 = vunpack.c.l.b16 %v4605
        %v4995 = vunpack.c.h.b16 %v4605
        %v4996 = vunpack.c.l.b16 %v4606
        %v4997 = vunpack.c.h.b16 %v4606
        %v4998 = vunpack.c.l.b16 %v4607
        %v4999 = vunpack.c.h.b16 %v4607
        %v5000 = vunpack.c.l.b16 %v4608
        %v5001 = vunpack.c.h.b16 %v4608
        %v5002 = vunpack.c.l.b16 %v4609
        %v5003 = vunpack.c.h.b16 %v4609
        %v5004 = vunpack.c.l.b16 %v4610
        %v5005 = vunpack.c.h.b16 %v4610
        %v5006 = vunpack.c.l.b16 %v4611
        %v5007 = vunpack.c.h.b16 %v4611
        %v5008 = vpack.c.b16 %v4754, %v4752
        %v5009 = vpack.c.b16 %v4755, %v4753
        %v5010 = vpack.c.b16 %v4758, %v4756
        %v5011 = vpack.c.b16 %v4759, %v4757
        %v5012 = vpack.c.b16 %v4762, %v4760
        %v5013 = vpack.c.b16 %v4763, %v4761
        %v5014 = vpack.c.b16 %v4766, %v4764
        %v5015 = vpack.c.b16 %v4767, %v4765
        %v5016 = vpack.c.b16 %v4770, %v4768
        %v5017 = vpack.c.b16 %v4771, %v4769
        %v5018 = vpack.c.b16 %v4774, %v4772
        %v5019 = vpack.c.b16 %v4775, %v4773
        %v5020 = vpack.c.b16 %v4778, %v4776
        %v5021 = vpack.c.b16 %v4779, %v4777
        %v5022 = vpack.c.b16 %v4782, %v4780
        %v5023 = vpack.c.b16 %v4783, %v4781
        %v5024 = vpack.c.b16 %v4786, %v4784
        %v5025 = vpack.c.b16 %v4787, %v4785
        %v5026 = vpack.c.b16 %v4790, %v4788
        %v5027 = vpack.c.b16 %v4791, %v4789
        %v5028 = vpack.c.b16 %v4794, %v4792
        %v5029 = vpack.c.b16 %v4795, %v4793
        %v5030 = vpack.c.b16 %v4798, %v4796
        %v5031 = vpack.c.b16 %v4799, %v4797
        %v5032 = vpack.c.b16 %v4802, %v4800
        %v5033 = vpack.c.b16 %v4803, %v4801
        %v5034 = vpack.c.b16 %v4806, %v4804
        %v5035 = vpack.c.b16 %v4807, %v4805
        %v5036 = vpack.c.b16 %v4810, %v4808
        %v5037 = vpack.c.b16 %v4811, %v4809
        %v5038 = vpack.c.b16 %v4814, %v4812
        %v5039 = vpack.c.b16 %v4815, %v4813
        %v5040 = vpack.c.b16 %v4818, %v4816
        %v5041 = vpack.c.b16 %v4819, %v4817
        %v5042 = vpack.c.b16 %v4822, %v4820
        %v5043 = vpack.c.b16 %v4823, %v4821
        %v5044 = vpack.c.b16 %v4826, %v4824
        %v5045 = vpack.c.b16 %v4827, %v4825
        %v5046 = vpack.c.b16 %v4830, %v4828
        %v5047 = vpack.c.b16 %v4831, %v4829
        %v5048 = vpack.c.b16 %v4834, %v4832
        %v5049 = vpack.c.b16 %v4835, %v4833
        %v5050 = vpack.c.b16 %v4838, %v4836
        %v5051 = vpack.c.b16 %v4839, %v4837
        %v5052 = vpack.c.b16 %v4842, %v4840
        %v5053 = vpack.c.b16 %v4843, %v4841
        %v5054 = vpack.c.b16 %v4846, %v4844
        %v5055 = vpack.c.b16 %v4847, %v4845
        %v5056 = vpack.c.b16 %v4850, %v4848
        %v5057 = vpack.c.b16 %v4851, %v4849
        %v5058 = vpack.c.b16 %v4854, %v4852
        %v5059 = vpack.c.b16 %v4855, %v4853
        %v5060 = vpack.c.b16 %v4858, %v4856
        %v5061 = vpack.c.b16 %v4859, %v4857
        %v5062 = vpack.c.b16 %v4862, %v4860
        %v5063 = vpack.c.b16 %v4863, %v4861
        %v5064 = vpack.c.b16 %v4866, %v4864
        %v5065 = vpack.c.b16 %v4867, %v4865
        %v5066 = vpack.c.b16 %v4870, %v4868
        %v5067 = vpack.c.b16 %v4871, %v4869
        %v5068 = vpack.c.b16 %v4874, %v4872
        %v5069 = vpack.c.b16 %v4875, %v4873
        %v5070 = vpack.c.b16 %v4878, %v4876
        %v5071 = vpack.c.b16 %v4879, %v4877
        %v5072 = vpack.c.b16 %v4882, %v4880
        %v5073 = vpack.c.b16 %v4883, %v4881
        %v5074 = vpack.c.b16 %v4886, %v4884
        %v5075 = vpack.c.b16 %v4887, %v4885
        %v5076 = vpack.c.b16 %v4890, %v4888
        %v5077 = vpack.c.b16 %v4891, %v4889
        %v5078 = vpack.c.b16 %v4894, %v4892
        %v5079 = vpack.c.b16 %v4895, %v4893
        %v5080 = vpack.c.b16 %v4898, %v4896
        %v5081 = vpack.c.b16 %v4899, %v4897
        %v5082 = vpack.c.b16 %v4902, %v4900
        %v5083 = vpack.c.b16 %v4903, %v4901
        %v5084 = vpack.c.b16 %v4906, %v4904
        %v5085 = vpack.c.b16 %v4907, %v4905
        %v5086 = vpack.c.b16 %v4910, %v4908
        %v5087 = vpack.c.b16 %v4911, %v4909
        %v5088 = vpack.c.b16 %v4914, %v4912
        %v5089 = vpack.c.b16 %v4915, %v4913
        %v5090 = vpack.c.b16 %v4918, %v4916
        %v5091 = vpack.c.b16 %v4919, %v4917
        %v5092 = vpack.c.b16 %v4922, %v4920
        %v5093 = vpack.c.b16 %v4923, %v4921
        %v5094 = vpack.c.b16 %v4926, %v4924
        %v5095 = vpack.c.b16 %v4927, %v4925
        %v5096 = vpack.c.b16 %v4930, %v4928
        %v5097 = vpack.c.b16 %v4931, %v4929
        %v5098 = vpack.c.b16 %v4934, %v4932
        %v5099 = vpack.c.b16 %v4935, %v4933
        %v5100 = vpack.c.b16 %v4938, %v4936
        %v5101 = vpack.c.b16 %v4939, %v4937
        %v5102 = vpack.c.b16 %v4942, %v4940
        %v5103 = vpack.c.b16 %v4943, %v4941
        %v5104 = vpack.c.b16 %v4946, %v4944
        %v5105 = vpack.c.b16 %v4947, %v4945
        %v5106 = vpack.c.b16 %v4950, %v4948
        %v5107 = vpack.c.b16 %v4951, %v4949
        %v5108 = vpack.c.b16 %v4954, %v4952
        %v5109 = vpack.c.b16 %v4955, %v4953
        %v5110 = vpack.c.b16 %v4958, %v4956
        %v5111 = vpack.c.b16 %v4959, %v4957
        %v5112 = vpack.c.b16 %v4962, %v4960
        %v5113 = vpack.c.b16 %v4963, %v4961
        %v5114 = vpack.c.b16 %v4966, %v4964
        %v5115 = vpack.c.b16 %v4967, %v4965
        %v5116 = vpack.c.b16 %v4970, %v4968
        %v5117 = vpack.c.b16 %v4971, %v4969
        %v5118 = vpack.c.b16 %v4974, %v4972
        %v5119 = vpack.c.b16 %v4975, %v4973
        %v5120 = vpack.c.b16 %v4978, %v4976
        %v5121 = vpack.c.b16 %v4979, %v4977
        %v5122 = vpack.c.b16 %v4982, %v4980
        %v5123 = vpack.c.b16 %v4983, %v4981
        %v5124 = vpack.c.b16 %v4986, %v4984
        %v5125 = vpack.c.b16 %v4987, %v4985
        %v5126 = vpack.c.b16 %v4990, %v4988
        %v5127 = vpack.c.b16 %v4991, %v4989
        %v5128 = vpack.c.b16 %v4994, %v4992
        %v5129 = vpack.c.b16 %v4995, %v4993
        %v5130 = vpack.c.b16 %v4998, %v4996
        %v5131 = vpack.c.b16 %v4999, %v4997
        %v5132 = vpack.c.b16 %v5002, %v5000
        %v5133 = vpack.c.b16 %v5003, %v5001
        %v5134 = vpack.c.b16 %v5006, %v5004
        %v5135 = vpack.c.b16 %v5007, %v5005
        %5264 = vmatprep.subr.bf16.mxu0 %v5009
        %5265 = vmatpush1.bf16.msra.mxu0 %v5008
        %5266 = vmatprep.subr.bf16.mxu0 %v5011
        %5267 = vmatpush1.bf16.msra.mxu0 %v5010
        %5268 = vmatprep.subr.bf16.mxu0 %v5013
        %5269 = vmatpush1.bf16.msra.mxu0 %v5012
        %5270 = vmatprep.subr.bf16.mxu0 %v5015
        %5271 = vmatpush1.bf16.msra.mxu0 %v5014
        %5272 = vmatprep.subr.bf16.mxu0 %v5017
        %5273 = vmatpush1.bf16.msra.mxu0 %v5016
        %5274 = vmatprep.subr.bf16.mxu0 %v5019
        %5275 = vmatpush1.bf16.msra.mxu0 %v5018
        %5276 = vmatprep.subr.bf16.mxu0 %v5021
        %5277 = vmatpush1.bf16.msra.mxu0 %v5020
        %5278 = vmatprep.subr.bf16.mxu0 %v5023
        %5279 = vmatpush1.bf16.msra.mxu0 %v5022
        %5280 = vmatprep.subr.bf16.mxu0 %v5025
        %5281 = vmatpush1.bf16.msra.mxu0 %v5024
        %5282 = vmatprep.subr.bf16.mxu0 %v5027
        %5283 = vmatpush1.bf16.msra.mxu0 %v5026
        %5284 = vmatprep.subr.bf16.mxu0 %v5029
        %5285 = vmatpush1.bf16.msra.mxu0 %v5028
        %5286 = vmatprep.subr.bf16.mxu0 %v5031
        %5287 = vmatpush1.bf16.msra.mxu0 %v5030
        %5288 = vmatprep.subr.bf16.mxu0 %v5033
        %5289 = vmatpush1.bf16.msra.mxu0 %v5032
        %5290 = vmatprep.subr.bf16.mxu0 %v5035
        %5291 = vmatpush1.bf16.msra.mxu0 %v5034
        %5292 = vmatprep.subr.bf16.mxu0 %v5037
        %5293 = vmatpush1.bf16.msra.mxu0 %v5036
        %5294 = vmatprep.subr.bf16.mxu0 %v5039
        %5295 = vmatpush1.bf16.msra.mxu0 %v5038
        %5296 = vmatprep.mubr.bf16.mxu0 %v4469
        %5297 = vmatmul.mubr.bf16.gmra.mrb[0].mxu0 %v4468
        %v5298 = vpop.f32.mrb[0].mxu0
        %v5299 = vadd.f32 %v4617, %v5298
        %v5300 = vpop.f32.mrb[0].mxu0
        %v5301 = vadd.f32 %v4621, %v5300
        %v5302 = vpop.f32.mrb[0].mxu0
        %v5303 = vadd.f32 %v4617, %v5302
        %v5304 = vpop.f32.mrb[0].mxu0
        %v5305 = vadd.f32 %v4621, %v5304
        %5306 = vmatprep.mubr.bf16.mxu0 %v4477
        %5307 = vmatmul.mubr.bf16.gmra.mrb[0].mxu0 %v4476
        %v5308 = vpop.f32.mrb[0].mxu0
        %v5309 = vadd.f32 %v4617, %v5308
        %v5310 = vpop.f32.mrb[0].mxu0
        %v5311 = vadd.f32 %v4621, %v5310
        %v5312 = vpop.f32.mrb[0].mxu0
        %v5313 = vadd.f32 %v4617, %v5312
        %v5314 = vpop.f32.mrb[0].mxu0
        %v5315 = vadd.f32 %v4621, %v5314
        %5316 = vdwg.mxu0
        %5317 = vmatprep.subr.bf16.mxu0 %v5041
        %5318 = vmatpush1.bf16.msra.mxu0 %v5040
        %5319 = vmatprep.subr.bf16.mxu0 %v5043
        %5320 = vmatpush1.bf16.msra.mxu0 %v5042
        %5321 = vmatprep.subr.bf16.mxu0 %v5045
        %5322 = vmatpush1.bf16.msra.mxu0 %v5044
        %5323 = vmatprep.subr.bf16.mxu0 %v5047
        %5324 = vmatpush1.bf16.msra.mxu0 %v5046
        %5325 = vmatprep.subr.bf16.mxu0 %v5049
        %5326 = vmatpush1.bf16.msra.mxu0 %v5048
        %5327 = vmatprep.subr.bf16.mxu0 %v5051
        %5328 = vmatpush1.bf16.msra.mxu0 %v5050
        %5329 = vmatprep.subr.bf16.mxu0 %v5053
        %5330 = vmatpush1.bf16.msra.mxu0 %v5052
        %5331 = vmatprep.subr.bf16.mxu0 %v5055
        %5332 = vmatpush1.bf16.msra.mxu0 %v5054
        %5333 = vmatprep.subr.bf16.mxu0 %v5057
        %5334 = vmatpush1.bf16.msra.mxu0 %v5056
        %5335 = vmatprep.subr.bf16.mxu0 %v5059
        %5336 = vmatpush1.bf16.msra.mxu0 %v5058
        %5337 = vmatprep.subr.bf16.mxu0 %v5061
        %5338 = vmatpush1.bf16.msra.mxu0 %v5060
        %5339 = vmatprep.subr.bf16.mxu0 %v5063
        %5340 = vmatpush1.bf16.msra.mxu0 %v5062
        %5341 = vmatprep.subr.bf16.mxu0 %v5065
        %5342 = vmatpush1.bf16.msra.mxu0 %v5064
        %5343 = vmatprep.subr.bf16.mxu0 %v5067
        %5344 = vmatpush1.bf16.msra.mxu0 %v5066
        %5345 = vmatprep.subr.bf16.mxu0 %v5069
        %5346 = vmatpush1.bf16.msra.mxu0 %v5068
        %5347 = vmatprep.subr.bf16.mxu0 %v5071
        %5348 = vmatpush1.bf16.msra.mxu0 %v5070
        %5349 = vmatprep.mubr.bf16.mxu0 %v4471
        %5350 = vmatmul.mubr.bf16.gmra.mrb[0].mxu0 %v4470
        %v5351 = vpop.f32.mrb[0].mxu0
        %v5352 = vadd.f32 %v5299, %v5351
        %v5353 = vpop.f32.mrb[0].mxu0
        %v5354 = vadd.f32 %v5301, %v5353
        %v5355 = vpop.f32.mrb[0].mxu0
        %v5356 = vadd.f32 %v5303, %v5355
        %v5357 = vpop.f32.mrb[0].mxu0
        %v5358 = vadd.f32 %v5305, %v5357
        %5359 = vmatprep.mubr.bf16.mxu0 %v4479
        %5360 = vmatmul.mubr.bf16.gmra.mrb[0].mxu0 %v4478
        %v5361 = vpop.f32.mrb[0].mxu0
        %v5362 = vadd.f32 %v5309, %v5361
        %v5363 = vpop.f32.mrb[0].mxu0
        %v5364 = vadd.f32 %v5311, %v5363
        %v5365 = vpop.f32.mrb[0].mxu0
        %v5366 = vadd.f32 %v5313, %v5365
        %v5367 = vpop.f32.mrb[0].mxu0
        %v5368 = vadd.f32 %v5315, %v5367
        %5369 = vdwg.mxu0
        %5370 = vmatprep.subr.bf16.mxu0 %v5073
        %5371 = vmatpush1.bf16.msra.mxu0 %v5072
        %5372 = vmatprep.subr.bf16.mxu0 %v5075
        %5373 = vmatpush1.bf16.msra.mxu0 %v5074
        %5374 = vmatprep.subr.bf16.mxu0 %v5077
        %5375 = vmatpush1.bf16.msra.mxu0 %v5076
        %5376 = vmatprep.subr.bf16.mxu0 %v5079
        %5377 = vmatpush1.bf16.msra.mxu0 %v5078
        %5378 = vmatprep.subr.bf16.mxu0 %v5081
        %5379 = vmatpush1.bf16.msra.mxu0 %v5080
        %5380 = vmatprep.subr.bf16.mxu0 %v5083
        %5381 = vmatpush1.bf16.msra.mxu0 %v5082
        %5382 = vmatprep.subr.bf16.mxu0 %v5085
        %5383 = vmatpush1.bf16.msra.mxu0 %v5084
        %5384 = vmatprep.subr.bf16.mxu0 %v5087
        %5385 = vmatpush1.bf16.msra.mxu0 %v5086
        %5386 = vmatprep.subr.bf16.mxu0 %v5089
        %5387 = vmatpush1.bf16.msra.mxu0 %v5088
        %5388 = vmatprep.subr.bf16.mxu0 %v5091
        %5389 = vmatpush1.bf16.msra.mxu0 %v5090
        %5390 = vmatprep.subr.bf16.mxu0 %v5093
        %5391 = vmatpush1.bf16.msra.mxu0 %v5092
        %5392 = vmatprep.subr.bf16.mxu0 %v5095
        %5393 = vmatpush1.bf16.msra.mxu0 %v5094
        %5394 = vmatprep.subr.bf16.mxu0 %v5097
        %5395 = vmatpush1.bf16.msra.mxu0 %v5096
        %5396 = vmatprep.subr.bf16.mxu0 %v5099
        %5397 = vmatpush1.bf16.msra.mxu0 %v5098
        %5398 = vmatprep.subr.bf16.mxu0 %v5101
        %5399 = vmatpush1.bf16.msra.mxu0 %v5100
        %5400 = vmatprep.subr.bf16.mxu0 %v5103
        %5401 = vmatpush1.bf16.msra.mxu0 %v5102
        %5402 = vmatprep.mubr.bf16.mxu0 %v4473
        %5403 = vmatmul.mubr.bf16.gmra.mrb[0].mxu0 %v4472
        %v5404 = vpop.f32.mrb[0].mxu0
        %v5405 = vadd.f32 %v5352, %v5404
        %v5406 = vpop.f32.mrb[0].mxu0
        %v5407 = vadd.f32 %v5354, %v5406
        %v5408 = vpop.f32.mrb[0].mxu0
        %v5409 = vadd.f32 %v5356, %v5408
        %v5410 = vpop.f32.mrb[0].mxu0
        %v5411 = vadd.f32 %v5358, %v5410
        %5412 = vmatprep.mubr.bf16.mxu0 %v4481
        %5413 = vmatmul.mubr.bf16.gmra.mrb[0].mxu0 %v4480
        %v5414 = vpop.f32.mrb[0].mxu0
        %v5415 = vadd.f32 %v5362, %v5414
        %v5416 = vpop.f32.mrb[0].mxu0
        %v5417 = vadd.f32 %v5364, %v5416
        %v5418 = vpop.f32.mrb[0].mxu0
        %v5419 = vadd.f32 %v5366, %v5418
        %v5420 = vpop.f32.mrb[0].mxu0
        %v5421 = vadd.f32 %v5368, %v5420
        %5422 = vdwg.mxu0
        %5423 = vmatprep.subr.bf16.mxu0 %v5105
        %5424 = vmatpush1.bf16.msra.mxu0 %v5104
        %5425 = vmatprep.subr.bf16.mxu0 %v5107
        %5426 = vmatpush1.bf16.msra.mxu0 %v5106
        %5427 = vmatprep.subr.bf16.mxu0 %v5109
        %5428 = vmatpush1.bf16.msra.mxu0 %v5108
        %5429 = vmatprep.subr.bf16.mxu0 %v5111
        %5430 = vmatpush1.bf16.msra.mxu0 %v5110
        %5431 = vmatprep.subr.bf16.mxu0 %v5113
        %5432 = vmatpush1.bf16.msra.mxu0 %v5112
        %5433 = vmatprep.subr.bf16.mxu0 %v5115
        %5434 = vmatpush1.bf16.msra.mxu0 %v5114
        %5435 = vmatprep.subr.bf16.mxu0 %v5117
        %5436 = vmatpush1.bf16.msra.mxu0 %v5116
        %5437 = vmatprep.subr.bf16.mxu0 %v5119
        %5438 = vmatpush1.bf16.msra.mxu0 %v5118
        %5439 = vmatprep.subr.bf16.mxu0 %v5121
        %5440 = vmatpush1.bf16.msra.mxu0 %v5120
        %5441 = vmatprep.subr.bf16.mxu0 %v5123
        %5442 = vmatpush1.bf16.msra.mxu0 %v5122
        %5443 = vmatprep.subr.bf16.mxu0 %v5125
        %5444 = vmatpush1.bf16.msra.mxu0 %v5124
        %5445 = vmatprep.subr.bf16.mxu0 %v5127
        %5446 = vmatpush1.bf16.msra.mxu0 %v5126
        %5447 = vmatprep.subr.bf16.mxu0 %v5129
        %5448 = vmatpush1.bf16.msra.mxu0 %v5128
        %5449 = vmatprep.subr.bf16.mxu0 %v5131
        %5450 = vmatpush1.bf16.msra.mxu0 %v5130
        %5451 = vmatprep.subr.bf16.mxu0 %v5133
        %5452 = vmatpush1.bf16.msra.mxu0 %v5132
        %5453 = vmatprep.subr.bf16.mxu0 %v5135
        %5454 = vmatpush1.bf16.msra.mxu0 %v5134
        %5455 = vmatprep.mubr.bf16.mxu0 %v4475
        %5456 = vmatmul.mubr.bf16.gmra.mrb[0].mxu0 %v4474
        %v5457 = vpop.f32.mrb[0].mxu0
        %v5458 = vadd.f32 %v5405, %v5457
        %v5459 = vpop.f32.mrb[0].mxu0
        %v5460 = vadd.f32 %v5407, %v5459
        %v5461 = vpop.f32.mrb[0].mxu0
        %v5462 = vadd.f32 %v5409, %v5461
        %v5463 = vpop.f32.mrb[0].mxu0
        %v5464 = vadd.f32 %v5411, %v5463
        %5465 = vmatprep.mubr.bf16.mxu0 %v4483
        %5466 = vmatmul.mubr.bf16.gmra.mrb[0].mxu0 %v4482
        %v5467 = vpop.f32.mrb[0].mxu0
        %v5468 = vadd.f32 %v5415, %v5467
        %v5469 = vpop.f32.mrb[0].mxu0
        %v5470 = vadd.f32 %v5417, %v5469
        %v5471 = vpop.f32.mrb[0].mxu0
        %v5472 = vadd.f32 %v5419, %v5471
        %v5473 = vpop.f32.mrb[0].mxu0
        %v5474 = vadd.f32 %v5421, %v5473
        %5475 = vdwg.mxu0
        %v5476 = vadd.f32 %v3034, %v5458
        %v5477 = vadd.f32 %v3035, %v5460
        %v5478 = vadd.f32 %v3036, %v5462
        %v5479 = vadd.f32 %v3037, %v5464
        %v5480 = vadd.f32 %v3038, %v5468
        %v5481 = vadd.f32 %v3039, %v5470
        %v5482 = vadd.f32 %v3040, %v5472
        %v5483 = vadd.f32 %v3041, %v5474
        %5484 = vst [vmem:[#allocation2] sm:$0xff] %v5476
        %5485 = vst [vmem:[#allocation2 + $0x8] sm:$0xff] %v5477
        %5486 = vst [vmem:[#allocation2 + $0x10] sm:$0xff] %v5478
        %5487 = vst [vmem:[#allocation2 + $0x18] sm:$0xff] %v5479
        %5488 = vst [vmem:[#allocation2 + $0x20] sm:$0xff] %v5480
        %5489 = vst [vmem:[#allocation2 + $0x28] sm:$0xff] %v5481
        %5490 = vst [vmem:[#allocation2 + $0x30] sm:$0xff] %v5482
        %5491 = vst [vmem:[#allocation2 + $0x38] sm:$0xff] %v5483
        %p5492 = scmp.eq.s32.totalorder %s61, 1
        // Predicated region
        $region217: #{tpu_custom_call.1} parent=115 // pred_check
          %p5493 = pneg %p5492
        $region218: #{tpu_custom_call.1} parent=115 // pred_check_branch
          %5495 = sbr.rel (%p5493) target = $region220
        $region219: #{tpu_custom_call.1} parent=115 // pred_region
          %v5496 = vld [vmem:[#allocation27] sm:$0x3]
          %v5497 = vld [vmem:[#allocation29] sm:$0x3]
          %v5498 = vadd.f32 %v5476, %v5477
          %5499 = vadd.xlane.f32.xlu0 %v5498
          %v5500 = vpop.xlane.xlu0 %5499
          %v5501 = vadd.f32 %v5478, %v5479
          %5502 = vadd.xlane.f32.xlu0 %v5501
          %v5503 = vpop.xlane.xlu0 %5502
          %v5504 = vadd.f32 %v5480, %v5481
          %5505 = vadd.xlane.f32.xlu0 %v5504
          %v5506 = vpop.xlane.xlu0 %5505
          %v5507 = vadd.f32 %v5482, %v5483
          %5508 = vadd.xlane.f32.xlu0 %v5507
          %v5509 = vpop.xlane.xlu0 %5508
          %v5510 = vmul.f32 %v5500, %v1458
          %v5511 = vmul.f32 %v5503, %v1458
          %v5512 = vmul.f32 %v5506, %v1458
          %v5513 = vmul.f32 %v5509, %v1458
          %v5514 = vmul.f32 %v5476, %v5476
          %v5515 = vmul.f32 %v5477, %v5477
          %v5516 = vmul.f32 %v5478, %v5478
          %v5517 = vmul.f32 %v5479, %v5479
          %v5518 = vmul.f32 %v5480, %v5480
          %v5519 = vmul.f32 %v5481, %v5481
          %v5520 = vmul.f32 %v5482, %v5482
          %v5521 = vmul.f32 %v5483, %v5483
          %v5522 = vadd.f32 %v5514, %v5515
          %5523 = vadd.xlane.f32.xlu0 %v5522
          %v5524 = vpop.xlane.xlu0 %5523
          %v5525 = vadd.f32 %v5516, %v5517
          %5526 = vadd.xlane.f32.xlu0 %v5525
          %v5527 = vpop.xlane.xlu0 %5526
          %v5528 = vadd.f32 %v5518, %v5519
          %5529 = vadd.xlane.f32.xlu0 %v5528
          %v5530 = vpop.xlane.xlu0 %5529
          %v5531 = vadd.f32 %v5520, %v5521
          %5532 = vadd.xlane.f32.xlu0 %v5531
          %v5533 = vpop.xlane.xlu0 %5532
          %v5534 = vmul.f32 %v5524, %v1458
          %v5535 = vmul.f32 %v5527, %v1458
          %v5536 = vmul.f32 %v5530, %v1458
          %v5537 = vmul.f32 %v5533, %v1458
          %v5538 = vsub.f32 %v5476, %v5510
          %v5539 = vsub.f32 %v5477, %v5510
          %v5540 = vsub.f32 %v5478, %v5511
          %v5541 = vsub.f32 %v5479, %v5511
          %v5542 = vsub.f32 %v5480, %v5512
          %v5543 = vsub.f32 %v5481, %v5512
          %v5544 = vsub.f32 %v5482, %v5513
          %v5545 = vsub.f32 %v5483, %v5513
          %v5546 = vmul.f32 %v5510, %v5510
          %v5547 = vmul.f32 %v5511, %v5511
          %v5548 = vmul.f32 %v5512, %v5512
          %v5549 = vmul.f32 %v5513, %v5513
          %v5550 = vsub.f32 %v5534, %v5546
          %v5551 = vsub.f32 %v5535, %v5547
          %v5552 = vsub.f32 %v5536, %v5548
          %v5553 = vsub.f32 %v5537, %v5549
          %v5554 = vadd.f32 %v5550, 1e-05
          %v5555 = vadd.f32 %v5551, 1e-05
          %v5556 = vadd.f32 %v5552, 1e-05
          %v5557 = vadd.f32 %v5553, 1e-05
          %v5558 = vrsqrt.pop %v5554
          %v5559 = vrsqrt.pop %v5555
          %v5560 = vrsqrt.pop %v5556
          %v5561 = vrsqrt.pop %v5557
          %v5562 = vmul.f32 %v5538, %v5558
          %v5563 = vmul.f32 %v5539, %v5558
          %v5564 = vmul.f32 %v5540, %v5559
          %v5565 = vmul.f32 %v5541, %v5559
          %v5566 = vmul.f32 %v5542, %v5560
          %v5567 = vmul.f32 %v5543, %v5560
          %v5568 = vmul.f32 %v5544, %v5561
          %v5569 = vmul.f32 %v5545, %v5561
          %v5571 = vlaneseq
          %v5572 = vshrl.u32 %v5571, 7
          %v5573 = vsub.s32 0, %v5572
          %v5574 = vrot.slane %v5496, %v5573
          %v5575 = vlaneseq
          %v5576 = vshrl.u32 %v5575, 7
          %v5577 = vsub.s32 1, %v5576
          %v5578 = vrot.slane %v5496, %v5577
          %v5581 = vmul.f32 %v5562, %v5574
          %v5582 = vmul.f32 %v5563, %v5578
          %v5583 = vmul.f32 %v5564, %v5574
          %v5584 = vmul.f32 %v5565, %v5578
          %v5585 = vmul.f32 %v5566, %v5574
          %v5586 = vmul.f32 %v5567, %v5578
          %v5587 = vmul.f32 %v5568, %v5574
          %v5588 = vmul.f32 %v5569, %v5578
          %v5590 = vlaneseq
          %v5591 = vshrl.u32 %v5590, 7
          %v5592 = vsub.s32 0, %v5591
          %v5593 = vrot.slane %v5497, %v5592
          %v5594 = vlaneseq
          %v5595 = vshrl.u32 %v5594, 7
          %v5596 = vsub.s32 1, %v5595
          %v5597 = vrot.slane %v5497, %v5596
          %v5600 = vadd.f32 %v5581, %v5593
          %v5601 = vadd.f32 %v5582, %v5597
          %v5602 = vadd.f32 %v5583, %v5593
          %v5603 = vadd.f32 %v5584, %v5597
          %v5604 = vadd.f32 %v5585, %v5593
          %v5605 = vadd.f32 %v5586, %v5597
          %v5606 = vadd.f32 %v5587, %v5593
          %v5607 = vadd.f32 %v5588, %v5597
          %v5608 = vpack.c.bf16 %v5602, %v5600
          %v5609 = vpack.c.bf16 %v5603, %v5601
          %v5610 = vpack.c.bf16 %v5606, %v5604
          %v5611 = vpack.c.bf16 %v5607, %v5605
          %v5612 = vld [vmem:[#allocation32] sm:$0xff]
          %v5613 = vld [vmem:[#allocation32 + $0x8] sm:$0xff]
          %v5614 = vld [vmem:[#allocation32 + $0x10] sm:$0xff]
          %v5615 = vld [vmem:[#allocation32 + $0x18] sm:$0xff]
          %v5616 = vld [vmem:[#allocation32 + $0x20] sm:$0xff]
          %v5617 = vld [vmem:[#allocation32 + $0x28] sm:$0xff]
          %v5618 = vld [vmem:[#allocation32 + $0x30] sm:$0xff]
          %v5619 = vld [vmem:[#allocation32 + $0x38] sm:$0xff]
          %v5620 = vld [vmem:[#allocation32 + $0x40] sm:$0xff]
          %v5621 = vld [vmem:[#allocation32 + $0x48] sm:$0xff]
          %v5622 = vld [vmem:[#allocation32 + $0x50] sm:$0xff]
          %v5623 = vld [vmem:[#allocation32 + $0x58] sm:$0xff]
          %v5624 = vld [vmem:[#allocation32 + $0x60] sm:$0xff]
          %v5625 = vld [vmem:[#allocation32 + $0x68] sm:$0xff]
          %v5626 = vld [vmem:[#allocation32 + $0x70] sm:$0xff]
          %v5627 = vld [vmem:[#allocation32 + $0x78] sm:$0xff]
          %v5628 = vld [vmem:[#allocation32 + $0x80] sm:$0xff]
          %v5629 = vld [vmem:[#allocation32 + $0x88] sm:$0xff]
          %v5630 = vld [vmem:[#allocation32 + $0x90] sm:$0xff]
          %v5631 = vld [vmem:[#allocation32 + $0x98] sm:$0xff]
          %v5632 = vld [vmem:[#allocation32 + $0xa0] sm:$0xff]
          %v5633 = vld [vmem:[#allocation32 + $0xa8] sm:$0xff]
          %v5634 = vld [vmem:[#allocation32 + $0xb0] sm:$0xff]
          %v5635 = vld [vmem:[#allocation32 + $0xb8] sm:$0xff]
          %v5636 = vld [vmem:[#allocation32 + $0xc0] sm:$0xff]
          %v5637 = vld [vmem:[#allocation32 + $0xc8] sm:$0xff]
          %v5638 = vld [vmem:[#allocation32 + $0xd0] sm:$0xff]
          %v5639 = vld [vmem:[#allocation32 + $0xd8] sm:$0xff]
          %v5640 = vld [vmem:[#allocation32 + $0xe0] sm:$0xff]
          %v5641 = vld [vmem:[#allocation32 + $0xe8] sm:$0xff]
          %v5642 = vld [vmem:[#allocation32 + $0xf0] sm:$0xff]
          %v5643 = vld [vmem:[#allocation32 + $0xf8] sm:$0xff]
          %v5644 = vld [vmem:[#allocation33] sm:$0x3]
          %v5646 = vlaneseq
          %v5647 = vshrl.u32 %v5646, 7
          %v5648 = vsub.s32 0, %v5647
          %v5649 = vrot.slane %v5644, %v5648
          %v5650 = vlaneseq
          %v5651 = vshrl.u32 %v5650, 7
          %v5652 = vsub.s32 1, %v5651
          %v5653 = vrot.slane %v5644, %v5652
          %v5688 = vunpack.c.l.b16 %v5612
          %v5689 = vunpack.c.h.b16 %v5612
          %v5690 = vunpack.c.l.b16 %v5613
          %v5691 = vunpack.c.h.b16 %v5613
          %v5692 = vunpack.c.l.b16 %v5614
          %v5693 = vunpack.c.h.b16 %v5614
          %v5694 = vunpack.c.l.b16 %v5615
          %v5695 = vunpack.c.h.b16 %v5615
          %v5696 = vunpack.c.l.b16 %v5616
          %v5697 = vunpack.c.h.b16 %v5616
          %v5698 = vunpack.c.l.b16 %v5617
          %v5699 = vunpack.c.h.b16 %v5617
          %v5700 = vunpack.c.l.b16 %v5618
          %v5701 = vunpack.c.h.b16 %v5618
          %v5702 = vunpack.c.l.b16 %v5619
          %v5703 = vunpack.c.h.b16 %v5619
          %v5704 = vunpack.c.l.b16 %v5620
          %v5705 = vunpack.c.h.b16 %v5620
          %v5706 = vunpack.c.l.b16 %v5621
          %v5707 = vunpack.c.h.b16 %v5621
          %v5708 = vunpack.c.l.b16 %v5622
          %v5709 = vunpack.c.h.b16 %v5622
          %v5710 = vunpack.c.l.b16 %v5623
          %v5711 = vunpack.c.h.b16 %v5623
          %v5712 = vunpack.c.l.b16 %v5624
          %v5713 = vunpack.c.h.b16 %v5624
          %v5714 = vunpack.c.l.b16 %v5625
          %v5715 = vunpack.c.h.b16 %v5625
          %v5716 = vunpack.c.l.b16 %v5626
          %v5717 = vunpack.c.h.b16 %v5626
          %v5718 = vunpack.c.l.b16 %v5627
          %v5719 = vunpack.c.h.b16 %v5627
          %v5720 = vunpack.c.l.b16 %v5628
          %v5721 = vunpack.c.h.b16 %v5628
          %v5722 = vunpack.c.l.b16 %v5629
          %v5723 = vunpack.c.h.b16 %v5629
          %v5724 = vunpack.c.l.b16 %v5630
          %v5725 = vunpack.c.h.b16 %v5630
          %v5726 = vunpack.c.l.b16 %v5631
          %v5727 = vunpack.c.h.b16 %v5631
          %v5728 = vunpack.c.l.b16 %v5632
          %v5729 = vunpack.c.h.b16 %v5632
          %v5730 = vunpack.c.l.b16 %v5633
          %v5731 = vunpack.c.h.b16 %v5633
          %v5732 = vunpack.c.l.b16 %v5634
          %v5733 = vunpack.c.h.b16 %v5634
          %v5734 = vunpack.c.l.b16 %v5635
          %v5735 = vunpack.c.h.b16 %v5635
          %v5736 = vunpack.c.l.b16 %v5636
          %v5737 = vunpack.c.h.b16 %v5636
          %v5738 = vunpack.c.l.b16 %v5637
          %v5739 = vunpack.c.h.b16 %v5637
          %v5740 = vunpack.c.l.b16 %v5638
          %v5741 = vunpack.c.h.b16 %v5638
          %v5742 = vunpack.c.l.b16 %v5639
          %v5743 = vunpack.c.h.b16 %v5639
          %v5744 = vunpack.c.l.b16 %v5640
          %v5745 = vunpack.c.h.b16 %v5640
          %v5746 = vunpack.c.l.b16 %v5641
          %v5747 = vunpack.c.h.b16 %v5641
          %v5748 = vunpack.c.l.b16 %v5642
          %v5749 = vunpack.c.h.b16 %v5642
          %v5750 = vunpack.c.l.b16 %v5643
          %v5751 = vunpack.c.h.b16 %v5643
          %v5752 = vpack.c.b16 %v5690, %v5688
          %v5753 = vpack.c.b16 %v5691, %v5689
          %v5754 = vpack.c.b16 %v5694, %v5692
          %v5755 = vpack.c.b16 %v5695, %v5693
          %v5756 = vpack.c.b16 %v5698, %v5696
          %v5757 = vpack.c.b16 %v5699, %v5697
          %v5758 = vpack.c.b16 %v5702, %v5700
          %v5759 = vpack.c.b16 %v5703, %v5701
          %v5760 = vpack.c.b16 %v5706, %v5704
          %v5761 = vpack.c.b16 %v5707, %v5705
          %v5762 = vpack.c.b16 %v5710, %v5708
          %v5763 = vpack.c.b16 %v5711, %v5709
          %v5764 = vpack.c.b16 %v5714, %v5712
          %v5765 = vpack.c.b16 %v5715, %v5713
          %v5766 = vpack.c.b16 %v5718, %v5716
          %v5767 = vpack.c.b16 %v5719, %v5717
          %v5768 = vpack.c.b16 %v5722, %v5720
          %v5769 = vpack.c.b16 %v5723, %v5721
          %v5770 = vpack.c.b16 %v5726, %v5724
          %v5771 = vpack.c.b16 %v5727, %v5725
          %v5772 = vpack.c.b16 %v5730, %v5728
          %v5773 = vpack.c.b16 %v5731, %v5729
          %v5774 = vpack.c.b16 %v5734, %v5732
          %v5775 = vpack.c.b16 %v5735, %v5733
          %v5776 = vpack.c.b16 %v5738, %v5736
          %v5777 = vpack.c.b16 %v5739, %v5737
          %v5778 = vpack.c.b16 %v5742, %v5740
          %v5779 = vpack.c.b16 %v5743, %v5741
          %v5780 = vpack.c.b16 %v5746, %v5744
          %v5781 = vpack.c.b16 %v5747, %v5745
          %v5782 = vpack.c.b16 %v5750, %v5748
          %v5783 = vpack.c.b16 %v5751, %v5749
          %5816 = vmatprep.subr.bf16.mxu0 %v5753
          %5817 = vmatpush1.bf16.msra.mxu0 %v5752
          %5818 = vmatprep.subr.bf16.mxu0 %v5755
          %5819 = vmatpush1.bf16.msra.mxu0 %v5754
          %5820 = vmatprep.subr.bf16.mxu0 %v5757
          %5821 = vmatpush1.bf16.msra.mxu0 %v5756
          %5822 = vmatprep.subr.bf16.mxu0 %v5759
          %5823 = vmatpush1.bf16.msra.mxu0 %v5758
          %5824 = vmatprep.subr.bf16.mxu0 %v5761
          %5825 = vmatpush1.bf16.msra.mxu0 %v5760
          %5826 = vmatprep.subr.bf16.mxu0 %v5763
          %5827 = vmatpush1.bf16.msra.mxu0 %v5762
          %5828 = vmatprep.subr.bf16.mxu0 %v5765
          %5829 = vmatpush1.bf16.msra.mxu0 %v5764
          %5830 = vmatprep.subr.bf16.mxu0 %v5767
          %5831 = vmatpush1.bf16.msra.mxu0 %v5766
          %5832 = vmatprep.subr.bf16.mxu0 %v5769
          %5833 = vmatpush1.bf16.msra.mxu0 %v5768
          %5834 = vmatprep.subr.bf16.mxu0 %v5771
          %5835 = vmatpush1.bf16.msra.mxu0 %v5770
          %5836 = vmatprep.subr.bf16.mxu0 %v5773
          %5837 = vmatpush1.bf16.msra.mxu0 %v5772
          %5838 = vmatprep.subr.bf16.mxu0 %v5775
          %5839 = vmatpush1.bf16.msra.mxu0 %v5774
          %5840 = vmatprep.subr.bf16.mxu0 %v5777
          %5841 = vmatpush1.bf16.msra.mxu0 %v5776
          %5842 = vmatprep.subr.bf16.mxu0 %v5779
          %5843 = vmatpush1.bf16.msra.mxu0 %v5778
          %5844 = vmatprep.subr.bf16.mxu0 %v5781
          %5845 = vmatpush1.bf16.msra.mxu0 %v5780
          %5846 = vmatprep.subr.bf16.mxu0 %v5783
          %5847 = vmatpush1.bf16.msra.mxu0 %v5782
          %5848 = vmatprep.mubr.bf16.mxu0 %v5609
          %5849 = vmatmul.mubr.bf16.gmra.mrb[0].mxu0 %v5608
          %v5850 = vpop.f32.mrb[0].mxu0
          %v5851 = vadd.f32 %v5649, %v5850
          %v5852 = vpop.f32.mrb[0].mxu0
          %v5853 = vadd.f32 %v5653, %v5852
          %v5854 = vpop.f32.mrb[0].mxu0
          %v5855 = vadd.f32 %v5649, %v5854
          %v5856 = vpop.f32.mrb[0].mxu0
          %v5857 = vadd.f32 %v5653, %v5856
          %5858 = vmatprep.mubr.bf16.mxu0 %v5611
          %5859 = vmatmul.mubr.bf16.gmra.mrb[0].mxu0 %v5610
          %v5860 = vpop.f32.mrb[0].mxu0
          %v5861 = vadd.f32 %v5649, %v5860
          %v5862 = vpop.f32.mrb[0].mxu0
          %v5863 = vadd.f32 %v5653, %v5862
          %v5864 = vpop.f32.mrb[0].mxu0
          %v5865 = vadd.f32 %v5649, %v5864
          %v5866 = vpop.f32.mrb[0].mxu0
          %v5867 = vadd.f32 %v5653, %v5866
          %5868 = vdwg.mxu0
          %v5869 = vld [vmem:[#allocation35] sm:$0xff]
          %v5870 = vld [vmem:[#allocation35 + $0x8] sm:$0xff]
          %v5871 = vld [vmem:[#allocation35 + $0x10] sm:$0xff]
          %v5872 = vld [vmem:[#allocation35 + $0x18] sm:$0xff]
          %v5873 = vld [vmem:[#allocation35 + $0x20] sm:$0xff]
          %v5874 = vld [vmem:[#allocation35 + $0x28] sm:$0xff]
          %v5875 = vld [vmem:[#allocation35 + $0x30] sm:$0xff]
          %v5876 = vld [vmem:[#allocation35 + $0x38] sm:$0xff]
          %v5877 = vld [vmem:[#allocation35 + $0x40] sm:$0xff]
          %v5878 = vld [vmem:[#allocation35 + $0x48] sm:$0xff]
          %v5879 = vld [vmem:[#allocation35 + $0x50] sm:$0xff]
          %v5880 = vld [vmem:[#allocation35 + $0x58] sm:$0xff]
          %v5881 = vld [vmem:[#allocation35 + $0x60] sm:$0xff]
          %v5882 = vld [vmem:[#allocation35 + $0x68] sm:$0xff]
          %v5883 = vld [vmem:[#allocation35 + $0x70] sm:$0xff]
          %v5884 = vld [vmem:[#allocation35 + $0x78] sm:$0xff]
          %v5885 = vld [vmem:[#allocation35 + $0x80] sm:$0xff]
          %v5886 = vld [vmem:[#allocation35 + $0x88] sm:$0xff]
          %v5887 = vld [vmem:[#allocation35 + $0x90] sm:$0xff]
          %v5888 = vld [vmem:[#allocation35 + $0x98] sm:$0xff]
          %v5889 = vld [vmem:[#allocation35 + $0xa0] sm:$0xff]
          %v5890 = vld [vmem:[#allocation35 + $0xa8] sm:$0xff]
          %v5891 = vld [vmem:[#allocation35 + $0xb0] sm:$0xff]
          %v5892 = vld [vmem:[#allocation35 + $0xb8] sm:$0xff]
          %v5893 = vld [vmem:[#allocation35 + $0xc0] sm:$0xff]
          %v5894 = vld [vmem:[#allocation35 + $0xc8] sm:$0xff]
          %v5895 = vld [vmem:[#allocation35 + $0xd0] sm:$0xff]
          %v5896 = vld [vmem:[#allocation35 + $0xd8] sm:$0xff]
          %v5897 = vld [vmem:[#allocation35 + $0xe0] sm:$0xff]
          %v5898 = vld [vmem:[#allocation35 + $0xe8] sm:$0xff]
          %v5899 = vld [vmem:[#allocation35 + $0xf0] sm:$0xff]
          %v5900 = vld [vmem:[#allocation35 + $0xf8] sm:$0xff]
          %v5901 = vld [vmem:[#allocation36] sm:$0x3]
          %v5903 = vlaneseq
          %v5904 = vshrl.u32 %v5903, 7
          %v5905 = vsub.s32 0, %v5904
          %v5906 = vrot.slane %v5901, %v5905
          %v5907 = vlaneseq
          %v5908 = vshrl.u32 %v5907, 7
          %v5909 = vsub.s32 1, %v5908
          %v5910 = vrot.slane %v5901, %v5909
          %v5945 = vunpack.c.l.b16 %v5869
          %v5946 = vunpack.c.h.b16 %v5869
          %v5947 = vunpack.c.l.b16 %v5870
          %v5948 = vunpack.c.h.b16 %v5870
          %v5949 = vunpack.c.l.b16 %v5871
          %v5950 = vunpack.c.h.b16 %v5871
          %v5951 = vunpack.c.l.b16 %v5872
          %v5952 = vunpack.c.h.b16 %v5872
          %v5953 = vunpack.c.l.b16 %v5873
          %v5954 = vunpack.c.h.b16 %v5873
          %v5955 = vunpack.c.l.b16 %v5874
          %v5956 = vunpack.c.h.b16 %v5874
          %v5957 = vunpack.c.l.b16 %v5875
          %v5958 = vunpack.c.h.b16 %v5875
          %v5959 = vunpack.c.l.b16 %v5876
          %v5960 = vunpack.c.h.b16 %v5876
          %v5961 = vunpack.c.l.b16 %v5877
          %v5962 = vunpack.c.h.b16 %v5877
          %v5963 = vunpack.c.l.b16 %v5878
          %v5964 = vunpack.c.h.b16 %v5878
          %v5965 = vunpack.c.l.b16 %v5879
          %v5966 = vunpack.c.h.b16 %v5879
          %v5967 = vunpack.c.l.b16 %v5880
          %v5968 = vunpack.c.h.b16 %v5880
          %v5969 = vunpack.c.l.b16 %v5881
          %v5970 = vunpack.c.h.b16 %v5881
          %v5971 = vunpack.c.l.b16 %v5882
          %v5972 = vunpack.c.h.b16 %v5882
          %v5973 = vunpack.c.l.b16 %v5883
          %v5974 = vunpack.c.h.b16 %v5883
          %v5975 = vunpack.c.l.b16 %v5884
          %v5976 = vunpack.c.h.b16 %v5884
          %v5977 = vunpack.c.l.b16 %v5885
          %v5978 = vunpack.c.h.b16 %v5885
          %v5979 = vunpack.c.l.b16 %v5886
          %v5980 = vunpack.c.h.b16 %v5886
          %v5981 = vunpack.c.l.b16 %v5887
          %v5982 = vunpack.c.h.b16 %v5887
          %v5983 = vunpack.c.l.b16 %v5888
          %v5984 = vunpack.c.h.b16 %v5888
          %v5985 = vunpack.c.l.b16 %v5889
          %v5986 = vunpack.c.h.b16 %v5889
          %v5987 = vunpack.c.l.b16 %v5890
          %v5988 = vunpack.c.h.b16 %v5890
          %v5989 = vunpack.c.l.b16 %v5891
          %v5990 = vunpack.c.h.b16 %v5891
          %v5991 = vunpack.c.l.b16 %v5892
          %v5992 = vunpack.c.h.b16 %v5892
          %v5993 = vunpack.c.l.b16 %v5893
          %v5994 = vunpack.c.h.b16 %v5893
          %v5995 = vunpack.c.l.b16 %v5894
          %v5996 = vunpack.c.h.b16 %v5894
          %v5997 = vunpack.c.l.b16 %v5895
          %v5998 = vunpack.c.h.b16 %v5895
          %v5999 = vunpack.c.l.b16 %v5896
          %v6000 = vunpack.c.h.b16 %v5896
          %v6001 = vunpack.c.l.b16 %v5897
          %v6002 = vunpack.c.h.b16 %v5897
          %v6003 = vunpack.c.l.b16 %v5898
          %v6004 = vunpack.c.h.b16 %v5898
          %v6005 = vunpack.c.l.b16 %v5899
          %v6006 = vunpack.c.h.b16 %v5899
          %v6007 = vunpack.c.l.b16 %v5900
          %v6008 = vunpack.c.h.b16 %v5900
          %v6009 = vpack.c.b16 %v5947, %v5945
          %v6010 = vpack.c.b16 %v5948, %v5946
          %v6011 = vpack.c.b16 %v5951, %v5949
          %v6012 = vpack.c.b16 %v5952, %v5950
          %v6013 = vpack.c.b16 %v5955, %v5953
          %v6014 = vpack.c.b16 %v5956, %v5954
          %v6015 = vpack.c.b16 %v5959, %v5957
          %v6016 = vpack.c.b16 %v5960, %v5958
          %v6017 = vpack.c.b16 %v5963, %v5961
          %v6018 = vpack.c.b16 %v5964, %v5962
          %v6019 = vpack.c.b16 %v5967, %v5965
          %v6020 = vpack.c.b16 %v5968, %v5966
          %v6021 = vpack.c.b16 %v5971, %v5969
          %v6022 = vpack.c.b16 %v5972, %v5970
          %v6023 = vpack.c.b16 %v5975, %v5973
          %v6024 = vpack.c.b16 %v5976, %v5974
          %v6025 = vpack.c.b16 %v5979, %v5977
          %v6026 = vpack.c.b16 %v5980, %v5978
          %v6027 = vpack.c.b16 %v5983, %v5981
          %v6028 = vpack.c.b16 %v5984, %v5982
          %v6029 = vpack.c.b16 %v5987, %v5985
          %v6030 = vpack.c.b16 %v5988, %v5986
          %v6031 = vpack.c.b16 %v5991, %v5989
          %v6032 = vpack.c.b16 %v5992, %v5990
          %v6033 = vpack.c.b16 %v5995, %v5993
          %v6034 = vpack.c.b16 %v5996, %v5994
          %v6035 = vpack.c.b16 %v5999, %v5997
          %v6036 = vpack.c.b16 %v6000, %v5998
          %v6037 = vpack.c.b16 %v6003, %v6001
          %v6038 = vpack.c.b16 %v6004, %v6002
          %v6039 = vpack.c.b16 %v6007, %v6005
          %v6040 = vpack.c.b16 %v6008, %v6006
          %6073 = vmatprep.subr.bf16.mxu0 %v6010
          %6074 = vmatpush1.bf16.msra.mxu0 %v6009
          %6075 = vmatprep.subr.bf16.mxu0 %v6012
          %6076 = vmatpush1.bf16.msra.mxu0 %v6011
          %6077 = vmatprep.subr.bf16.mxu0 %v6014
          %6078 = vmatpush1.bf16.msra.mxu0 %v6013
          %6079 = vmatprep.subr.bf16.mxu0 %v6016
          %6080 = vmatpush1.bf16.msra.mxu0 %v6015
          %6081 = vmatprep.subr.bf16.mxu0 %v6018
          %6082 = vmatpush1.bf16.msra.mxu0 %v6017
          %6083 = vmatprep.subr.bf16.mxu0 %v6020
          %6084 = vmatpush1.bf16.msra.mxu0 %v6019
          %6085 = vmatprep.subr.bf16.mxu0 %v6022
          %6086 = vmatpush1.bf16.msra.mxu0 %v6021
          %6087 = vmatprep.subr.bf16.mxu0 %v6024
          %6088 = vmatpush1.bf16.msra.mxu0 %v6023
          %6089 = vmatprep.subr.bf16.mxu0 %v6026
          %6090 = vmatpush1.bf16.msra.mxu0 %v6025
          %6091 = vmatprep.subr.bf16.mxu0 %v6028
          %6092 = vmatpush1.bf16.msra.mxu0 %v6027
          %6093 = vmatprep.subr.bf16.mxu0 %v6030
          %6094 = vmatpush1.bf16.msra.mxu0 %v6029
          %6095 = vmatprep.subr.bf16.mxu0 %v6032
          %6096 = vmatpush1.bf16.msra.mxu0 %v6031
          %6097 = vmatprep.subr.bf16.mxu0 %v6034
          %6098 = vmatpush1.bf16.msra.mxu0 %v6033
          %6099 = vmatprep.subr.bf16.mxu0 %v6036
          %6100 = vmatpush1.bf16.msra.mxu0 %v6035
          %6101 = vmatprep.subr.bf16.mxu0 %v6038
          %6102 = vmatpush1.bf16.msra.mxu0 %v6037
          %6103 = vmatprep.subr.bf16.mxu0 %v6040
          %6104 = vmatpush1.bf16.msra.mxu0 %v6039
          %6105 = vmatprep.mubr.bf16.mxu0 %v5609
          %6106 = vmatmul.mubr.bf16.gmra.mrb[0].mxu0 %v5608
          %v6107 = vpop.f32.mrb[0].mxu0
          %v6108 = vadd.f32 %v5906, %v6107
          %v6109 = vpop.f32.mrb[0].mxu0
          %v6110 = vadd.f32 %v5910, %v6109
          %v6111 = vpop.f32.mrb[0].mxu0
          %v6112 = vadd.f32 %v5906, %v6111
          %v6113 = vpop.f32.mrb[0].mxu0
          %v6114 = vadd.f32 %v5910, %v6113
          %6115 = vmatprep.mubr.bf16.mxu0 %v5611
          %6116 = vmatmul.mubr.bf16.gmra.mrb[0].mxu0 %v5610
          %v6117 = vpop.f32.mrb[0].mxu0
          %v6118 = vadd.f32 %v5906, %v6117
          %v6119 = vpop.f32.mrb[0].mxu0
          %v6120 = vadd.f32 %v5910, %v6119
          %v6121 = vpop.f32.mrb[0].mxu0
          %v6122 = vadd.f32 %v5906, %v6121
          %v6123 = vpop.f32.mrb[0].mxu0
          %v6124 = vadd.f32 %v5910, %v6123
          %6125 = vdwg.mxu0
          %v6126 = vld [vmem:[#allocation30] sm:$0x1]
          %v6127 = vpack.c.bf16 %v6126, %v6126
          %v6128 = vpack.c.bf16 %v5855, %v5851
          %v6129 = vpack.c.bf16 %v5865, %v5861
          %v6130 = vpack.c.bf16 %v6112, %v6108
          %v6131 = vpack.c.bf16 %v6122, %v6118
          %6132 = vmatprep.subr.bf16.mxu0 0
          %6133 = vmatpush1.bf16.xpose.msra.mxu0 %v6128
          %6134 = vmatprep.subr.bf16.mxu0 0
          %6135 = vmatpush1.bf16.xpose.msra.mxu0 0
          %6136 = vmatprep.subr.bf16.mxu0 0
          %6137 = vmatpush1.bf16.xpose.msra.mxu0 0
          %6138 = vmatprep.subr.bf16.mxu0 0
          %6139 = vmatpush1.bf16.xpose.msra.mxu0 0
          %6140 = vmatprep.subr.bf16.mxu0 0
          %6141 = vmatpush1.bf16.xpose.msra.mxu0 0
          %6142 = vmatprep.subr.bf16.mxu0 0
          %6143 = vmatpush1.bf16.xpose.msra.mxu0 0
          %6144 = vmatprep.subr.bf16.mxu0 0
          %6145 = vmatpush1.bf16.xpose.msra.mxu0 0
          %6146 = vmatprep.subr.bf16.mxu0 0
          %6147 = vmatpush1.bf16.xpose.msra.mxu0 0
          %6148 = vmatprep.subr.bf16.mxu0 0
          %6149 = vmatpush1.bf16.xpose.msra.mxu0 0
          %6150 = vmatprep.subr.bf16.mxu0 0
          %6151 = vmatpush1.bf16.xpose.msra.mxu0 0
          %6152 = vmatprep.subr.bf16.mxu0 0
          %6153 = vmatpush1.bf16.xpose.msra.mxu0 0
          %6154 = vmatprep.subr.bf16.mxu0 0
          %6155 = vmatpush1.bf16.xpose.msra.mxu0 0
          %6156 = vmatprep.subr.bf16.mxu0 0
          %6157 = vmatpush1.bf16.xpose.msra.mxu0 0
          %6158 = vmatprep.subr.bf16.mxu0 0
          %6159 = vmatpush1.bf16.xpose.msra.mxu0 0
          %6160 = vmatprep.subr.bf16.mxu0 0
          %6161 = vmatpush1.bf16.xpose.msra.mxu0 0
          %6162 = vmatprep.subr.bf16.mxu0 0
          %6163 = vmatpush1.bf16.xpose.msra.mxu0 0
          %6164 = vmatprep.mubr.bf16.mxu0 0
          %6165 = vmatmul.mubr.bf16.gmra.mrb[0].mxu0 %v6127
          %v6166 = vpop.f32.mrb[0].mxu0
          %v6167 = vadd.f32 0.0, %v6166
          %v6168 = vpop.f32.mrb[0].mxu0
          %v6169 = vpop.f32.mrb[0].mxu0
          %v6170 = vpop.f32.mrb[0].mxu0
          %6171 = vdwg.mxu0
          %6172 = vmatprep.subr.bf16.mxu0 0
          %6173 = vmatpush1.bf16.xpose.msra.mxu0 %v6129
          %6174 = vmatprep.subr.bf16.mxu0 0
          %6175 = vmatpush1.bf16.xpose.msra.mxu0 0
          %6176 = vmatprep.subr.bf16.mxu0 0
          %6177 = vmatpush1.bf16.xpose.msra.mxu0 0
          %6178 = vmatprep.subr.bf16.mxu0 0
          %6179 = vmatpush1.bf16.xpose.msra.mxu0 0
          %6180 = vmatprep.subr.bf16.mxu0 0
          %6181 = vmatpush1.bf16.xpose.msra.mxu0 0
          %6182 = vmatprep.subr.bf16.mxu0 0
          %6183 = vmatpush1.bf16.xpose.msra.mxu0 0
          %6184 = vmatprep.subr.bf16.mxu0 0
          %6185 = vmatpush1.bf16.xpose.msra.mxu0 0
          %6186 = vmatprep.subr.bf16.mxu0 0
          %6187 = vmatpush1.bf16.xpose.msra.mxu0 0
          %6188 = vmatprep.subr.bf16.mxu0 0
          %6189 = vmatpush1.bf16.xpose.msra.mxu0 0
          %6190 = vmatprep.subr.bf16.mxu0 0
          %6191 = vmatpush1.bf16.xpose.msra.mxu0 0
          %6192 = vmatprep.subr.bf16.mxu0 0
          %6193 = vmatpush1.bf16.xpose.msra.mxu0 0
          %6194 = vmatprep.subr.bf16.mxu0 0
          %6195 = vmatpush1.bf16.xpose.msra.mxu0 0
          %6196 = vmatprep.subr.bf16.mxu0 0
          %6197 = vmatpush1.bf16.xpose.msra.mxu0 0
          %6198 = vmatprep.subr.bf16.mxu0 0
          %6199 = vmatpush1.bf16.xpose.msra.mxu0 0
          %6200 = vmatprep.subr.bf16.mxu0 0
          %6201 = vmatpush1.bf16.xpose.msra.mxu0 0
          %6202 = vmatprep.subr.bf16.mxu0 0
          %6203 = vmatpush1.bf16.xpose.msra.mxu0 0
          %6204 = vmatprep.mubr.bf16.mxu0 0
          %6205 = vmatmul.mubr.bf16.gmra.mrb[0].mxu0 %v6127
          %v6206 = vpop.f32.mrb[0].mxu0
          %v6207 = vadd.f32 0.0, %v6206
          %v6208 = vpop.f32.mrb[0].mxu0
          %v6209 = vpop.f32.mrb[0].mxu0
          %v6210 = vpop.f32.mrb[0].mxu0
          %6211 = vdwg.mxu0
          %vm6212 = vcmask 122880
          %v6213 = vsel %vm6212, %v6167, -inf
          %6214 = vmax.xlane.f32.xlu0 %v6213
          %v6215 = vpop.xlane.xlu0 %6214
          %v6216 = vsel %vm6212, %v6207, -inf
          %6217 = vmax.xlane.f32.xlu0 %v6216
          %v6218 = vpop.xlane.xlu0 %6217
          %v6219 = vsub.f32 %v6167, %v6215
          %v6220 = vsub.f32 %v6207, %v6218
          %v6221 = vmul.f32 %v6219, 1.442695
          %v6222 = vpow.pop %v6221
          %v6223 = vmul.f32 %v6220, 1.442695
          %v6224 = vpow.pop %v6223
          %v6225 = vsel %vm6212, %v6222, 0.0
          %6226 = vadd.xlane.f32.xlu0 %v6225
          %v6227 = vpop.xlane.xlu0 %6226
          %v6228 = vsel %vm6212, %v6224, 0.0
          %6229 = vadd.xlane.f32.xlu0 %v6228
          %v6230 = vpop.xlane.xlu0 %6229
          %v6231 = vrcp.pop %v6227
          %v6232 = vrcp.pop %v6230
          %v6233 = vmul.f32 %v6222, %v6231
          %v6234 = vmul.f32 %v6224, %v6232
          %v6235 = vpack.c.bf16 %v6233, %v6233
          %v6236 = vpack.c.bf16 %v6234, %v6234
          %v6238 = vsel %vm2416, %v6235, 0
          %6240 = vmatprep.subr.bf16.mxu0 0
          %6241 = vmatpush1.bf16.msra.mxu0 %v6130
          %6242 = vmatprep.subr.bf16.mxu0 0
          %6243 = vmatpush1.bf16.msra.mxu0 0
          %6244 = vmatprep.subr.bf16.mxu0 0
          %6245 = vmatpush1.bf16.msra.mxu0 0
          %6246 = vmatprep.subr.bf16.mxu0 0
          %6247 = vmatpush1.bf16.msra.mxu0 0
          %6248 = vmatprep.subr.bf16.mxu0 0
          %6249 = vmatpush1.bf16.msra.mxu0 0
          %6250 = vmatprep.subr.bf16.mxu0 0
          %6251 = vmatpush1.bf16.msra.mxu0 0
          %6252 = vmatprep.subr.bf16.mxu0 0
          %6253 = vmatpush1.bf16.msra.mxu0 0
          %6254 = vmatprep.subr.bf16.mxu0 0
          %6255 = vmatpush1.bf16.msra.mxu0 0
          %6256 = vmatprep.subr.bf16.mxu0 0
          %6257 = vmatpush1.bf16.msra.mxu0 0
          %6258 = vmatprep.subr.bf16.mxu0 0
          %6259 = vmatpush1.bf16.msra.mxu0 0
          %6260 = vmatprep.subr.bf16.mxu0 0
          %6261 = vmatpush1.bf16.msra.mxu0 0
          %6262 = vmatprep.subr.bf16.mxu0 0
          %6263 = vmatpush1.bf16.msra.mxu0 0
          %6264 = vmatprep.subr.bf16.mxu0 0
          %6265 = vmatpush1.bf16.msra.mxu0 0
          %6266 = vmatprep.subr.bf16.mxu0 0
          %6267 = vmatpush1.bf16.msra.mxu0 0
          %6268 = vmatprep.subr.bf16.mxu0 0
          %6269 = vmatpush1.bf16.msra.mxu0 0
          %6270 = vmatprep.subr.bf16.mxu0 0
          %6271 = vmatpush1.bf16.msra.mxu0 0
          %6272 = vmatprep.mubr.bf16.mxu0 0
          %6273 = vmatmul.mubr.bf16.gmra.mrb[0].mxu0 %v6238
          %v6274 = vpop.f32.mrb[0].mxu0
          %v6275 = vadd.f32 0.0, %v6274
          %v6276 = vpop.f32.mrb[0].mxu0
          %v6277 = vpop.f32.mrb[0].mxu0
          %v6278 = vpop.f32.mrb[0].mxu0
          %6279 = vdwg.mxu0
          %v6281 = vsel %vm2416, %v6236, 0
          %6283 = vmatprep.subr.bf16.mxu0 0
          %6284 = vmatpush1.bf16.msra.mxu0 %v6131
          %6285 = vmatprep.subr.bf16.mxu0 0
          %6286 = vmatpush1.bf16.msra.mxu0 0
          %6287 = vmatprep.subr.bf16.mxu0 0
          %6288 = vmatpush1.bf16.msra.mxu0 0
          %6289 = vmatprep.subr.bf16.mxu0 0
          %6290 = vmatpush1.bf16.msra.mxu0 0
          %6291 = vmatprep.subr.bf16.mxu0 0
          %6292 = vmatpush1.bf16.msra.mxu0 0
          %6293 = vmatprep.subr.bf16.mxu0 0
          %6294 = vmatpush1.bf16.msra.mxu0 0
          %6295 = vmatprep.subr.bf16.mxu0 0
          %6296 = vmatpush1.bf16.msra.mxu0 0
          %6297 = vmatprep.subr.bf16.mxu0 0
          %6298 = vmatpush1.bf16.msra.mxu0 0
          %6299 = vmatprep.subr.bf16.mxu0 0
          %6300 = vmatpush1.bf16.msra.mxu0 0
          %6301 = vmatprep.subr.bf16.mxu0 0
          %6302 = vmatpush1.bf16.msra.mxu0 0
          %6303 = vmatprep.subr.bf16.mxu0 0
          %6304 = vmatpush1.bf16.msra.mxu0 0
          %6305 = vmatprep.subr.bf16.mxu0 0
          %6306 = vmatpush1.bf16.msra.mxu0 0
          %6307 = vmatprep.subr.bf16.mxu0 0
          %6308 = vmatpush1.bf16.msra.mxu0 0
          %6309 = vmatprep.subr.bf16.mxu0 0
          %6310 = vmatpush1.bf16.msra.mxu0 0
          %6311 = vmatprep.subr.bf16.mxu0 0
          %6312 = vmatpush1.bf16.msra.mxu0 0
          %6313 = vmatprep.subr.bf16.mxu0 0
          %6314 = vmatpush1.bf16.msra.mxu0 0
          %6315 = vmatprep.mubr.bf16.mxu0 0
          %6316 = vmatmul.mubr.bf16.gmra.mrb[0].mxu0 %v6281
          %v6317 = vpop.f32.mrb[0].mxu0
          %v6318 = vadd.f32 0.0, %v6317
          %v6319 = vpop.f32.mrb[0].mxu0
          %v6320 = vpop.f32.mrb[0].mxu0
          %v6321 = vpop.f32.mrb[0].mxu0
          %6322 = vdwg.mxu0
          %v6323 = vld [vmem:[#allocation30 + $0x1] sm:$0x1]
          %v6324 = vpack.c.bf16 %v6323, %v6323
          %v6325 = vpack.c.bf16 %v5857, %v5853
          %v6326 = vpack.c.bf16 %v5867, %v5863
          %v6327 = vpack.c.bf16 %v6114, %v6110
          %v6328 = vpack.c.bf16 %v6124, %v6120
          %6329 = vmatprep.subr.bf16.mxu0 0
          %6330 = vmatpush1.bf16.xpose.msra.mxu0 %v6325
          %6331 = vmatprep.subr.bf16.mxu0 0
          %6332 = vmatpush1.bf16.xpose.msra.mxu0 0
          %6333 = vmatprep.subr.bf16.mxu0 0
          %6334 = vmatpush1.bf16.xpose.msra.mxu0 0
          %6335 = vmatprep.subr.bf16.mxu0 0
          %6336 = vmatpush1.bf16.xpose.msra.mxu0 0
          %6337 = vmatprep.subr.bf16.mxu0 0
          %6338 = vmatpush1.bf16.xpose.msra.mxu0 0
          %6339 = vmatprep.subr.bf16.mxu0 0
          %6340 = vmatpush1.bf16.xpose.msra.mxu0 0
          %6341 = vmatprep.subr.bf16.mxu0 0
          %6342 = vmatpush1.bf16.xpose.msra.mxu0 0
          %6343 = vmatprep.subr.bf16.mxu0 0
          %6344 = vmatpush1.bf16.xpose.msra.mxu0 0
          %6345 = vmatprep.subr.bf16.mxu0 0
          %6346 = vmatpush1.bf16.xpose.msra.mxu0 0
          %6347 = vmatprep.subr.bf16.mxu0 0
          %6348 = vmatpush1.bf16.xpose.msra.mxu0 0
          %6349 = vmatprep.subr.bf16.mxu0 0
          %6350 = vmatpush1.bf16.xpose.msra.mxu0 0
          %6351 = vmatprep.subr.bf16.mxu0 0
          %6352 = vmatpush1.bf16.xpose.msra.mxu0 0
          %6353 = vmatprep.subr.bf16.mxu0 0
          %6354 = vmatpush1.bf16.xpose.msra.mxu0 0
          %6355 = vmatprep.subr.bf16.mxu0 0
          %6356 = vmatpush1.bf16.xpose.msra.mxu0 0
          %6357 = vmatprep.subr.bf16.mxu0 0
          %6358 = vmatpush1.bf16.xpose.msra.mxu0 0
          %6359 = vmatprep.subr.bf16.mxu0 0
          %6360 = vmatpush1.bf16.xpose.msra.mxu0 0
          %6361 = vmatprep.mubr.bf16.mxu0 0
          %6362 = vmatmul.mubr.bf16.gmra.mrb[0].mxu0 %v6324
          %v6363 = vpop.f32.mrb[0].mxu0
          %v6364 = vadd.f32 0.0, %v6363
          %v6365 = vpop.f32.mrb[0].mxu0
          %v6366 = vpop.f32.mrb[0].mxu0
          %v6367 = vpop.f32.mrb[0].mxu0
          %6368 = vdwg.mxu0
          %6369 = vmatprep.subr.bf16.mxu0 0
          %6370 = vmatpush1.bf16.xpose.msra.mxu0 %v6326
          %6371 = vmatprep.subr.bf16.mxu0 0
          %6372 = vmatpush1.bf16.xpose.msra.mxu0 0
          %6373 = vmatprep.subr.bf16.mxu0 0
          %6374 = vmatpush1.bf16.xpose.msra.mxu0 0
          %6375 = vmatprep.subr.bf16.mxu0 0
          %6376 = vmatpush1.bf16.xpose.msra.mxu0 0
          %6377 = vmatprep.subr.bf16.mxu0 0
          %6378 = vmatpush1.bf16.xpose.msra.mxu0 0
          %6379 = vmatprep.subr.bf16.mxu0 0
          %6380 = vmatpush1.bf16.xpose.msra.mxu0 0
          %6381 = vmatprep.subr.bf16.mxu0 0
          %6382 = vmatpush1.bf16.xpose.msra.mxu0 0
          %6383 = vmatprep.subr.bf16.mxu0 0
          %6384 = vmatpush1.bf16.xpose.msra.mxu0 0
          %6385 = vmatprep.subr.bf16.mxu0 0
          %6386 = vmatpush1.bf16.xpose.msra.mxu0 0
          %6387 = vmatprep.subr.bf16.mxu0 0
          %6388 = vmatpush1.bf16.xpose.msra.mxu0 0
          %6389 = vmatprep.subr.bf16.mxu0 0
          %6390 = vmatpush1.bf16.xpose.msra.mxu0 0
          %6391 = vmatprep.subr.bf16.mxu0 0
          %6392 = vmatpush1.bf16.xpose.msra.mxu0 0
          %6393 = vmatprep.subr.bf16.mxu0 0
          %6394 = vmatpush1.bf16.xpose.msra.mxu0 0
          %6395 = vmatprep.subr.bf16.mxu0 0
          %6396 = vmatpush1.bf16.xpose.msra.mxu0 0
          %6397 = vmatprep.subr.bf16.mxu0 0
          %6398 = vmatpush1.bf16.xpose.msra.mxu0 0
          %6399 = vmatprep.subr.bf16.mxu0 0
          %6400 = vmatpush1.bf16.xpose.msra.mxu0 0
          %6401 = vmatprep.mubr.bf16.mxu0 0
          %6402 = vmatmul.mubr.bf16.gmra.mrb[0].mxu0 %v6324
          %v6403 = vpop.f32.mrb[0].mxu0
          %v6404 = vadd.f32 0.0, %v6403
          %v6405 = vpop.f32.mrb[0].mxu0
          %v6406 = vpop.f32.mrb[0].mxu0
          %v6407 = vpop.f32.mrb[0].mxu0
          %6408 = vdwg.mxu0
          %v6409 = vsel %vm6212, %v6364, -inf
          %6410 = vmax.xlane.f32.xlu0 %v6409
          %v6411 = vpop.xlane.xlu0 %6410
          %v6412 = vsel %vm6212, %v6404, -inf
          %6413 = vmax.xlane.f32.xlu0 %v6412
          %v6414 = vpop.xlane.xlu0 %6413
          %v6415 = vsub.f32 %v6364, %v6411
          %v6416 = vsub.f32 %v6404, %v6414
          %v6417 = vmul.f32 %v6415, 1.442695
          %v6418 = vpow.pop %v6417
          %v6419 = vmul.f32 %v6416, 1.442695
          %v6420 = vpow.pop %v6419
          %v6421 = vsel %vm6212, %v6418, 0.0
          %6422 = vadd.xlane.f32.xlu0 %v6421
          %v6423 = vpop.xlane.xlu0 %6422
          %v6424 = vsel %vm6212, %v6420, 0.0
          %6425 = vadd.xlane.f32.xlu0 %v6424
          %v6426 = vpop.xlane.xlu0 %6425
          %v6427 = vrcp.pop %v6423
          %v6428 = vrcp.pop %v6426
          %v6429 = vmul.f32 %v6418, %v6427
          %v6430 = vmul.f32 %v6420, %v6428
          %v6431 = vpack.c.bf16 %v6429, %v6429
          %v6432 = vpack.c.bf16 %v6430, %v6430
          %v6434 = vsel %vm2416, %v6431, 0
          %6436 = vmatprep.subr.bf16.mxu0 0
          %6437 = vmatpush1.bf16.msra.mxu0 %v6327
          %6438 = vmatprep.subr.bf16.mxu0 0
          %6439 = vmatpush1.bf16.msra.mxu0 0
          %6440 = vmatprep.subr.bf16.mxu0 0
          %6441 = vmatpush1.bf16.msra.mxu0 0
          %6442 = vmatprep.subr.bf16.mxu0 0
          %6443 = vmatpush1.bf16.msra.mxu0 0
          %6444 = vmatprep.subr.bf16.mxu0 0
          %6445 = vmatpush1.bf16.msra.mxu0 0
          %6446 = vmatprep.subr.bf16.mxu0 0
          %6447 = vmatpush1.bf16.msra.mxu0 0
          %6448 = vmatprep.subr.bf16.mxu0 0
          %6449 = vmatpush1.bf16.msra.mxu0 0
          %6450 = vmatprep.subr.bf16.mxu0 0
          %6451 = vmatpush1.bf16.msra.mxu0 0
          %6452 = vmatprep.subr.bf16.mxu0 0
          %6453 = vmatpush1.bf16.msra.mxu0 0
          %6454 = vmatprep.subr.bf16.mxu0 0
          %6455 = vmatpush1.bf16.msra.mxu0 0
          %6456 = vmatprep.subr.bf16.mxu0 0
          %6457 = vmatpush1.bf16.msra.mxu0 0
          %6458 = vmatprep.subr.bf16.mxu0 0
          %6459 = vmatpush1.bf16.msra.mxu0 0
          %6460 = vmatprep.subr.bf16.mxu0 0
          %6461 = vmatpush1.bf16.msra.mxu0 0
          %6462 = vmatprep.subr.bf16.mxu0 0
          %6463 = vmatpush1.bf16.msra.mxu0 0
          %6464 = vmatprep.subr.bf16.mxu0 0
          %6465 = vmatpush1.bf16.msra.mxu0 0
          %6466 = vmatprep.subr.bf16.mxu0 0
          %6467 = vmatpush1.bf16.msra.mxu0 0
          %6468 = vmatprep.mubr.bf16.mxu0 0
          %6469 = vmatmul.mubr.bf16.gmra.mrb[0].mxu0 %v6434
          %v6470 = vpop.f32.mrb[0].mxu0
          %v6471 = vadd.f32 0.0, %v6470
          %v6472 = vpop.f32.mrb[0].mxu0
          %v6473 = vpop.f32.mrb[0].mxu0
          %v6474 = vpop.f32.mrb[0].mxu0
          %6475 = vdwg.mxu0
          %v6477 = vsel %vm2416, %v6432, 0
          %6479 = vmatprep.subr.bf16.mxu0 0
          %6480 = vmatpush1.bf16.msra.mxu0 %v6328
          %6481 = vmatprep.subr.bf16.mxu0 0
          %6482 = vmatpush1.bf16.msra.mxu0 0
          %6483 = vmatprep.subr.bf16.mxu0 0
          %6484 = vmatpush1.bf16.msra.mxu0 0
          %6485 = vmatprep.subr.bf16.mxu0 0
          %6486 = vmatpush1.bf16.msra.mxu0 0
          %6487 = vmatprep.subr.bf16.mxu0 0
          %6488 = vmatpush1.bf16.msra.mxu0 0
          %6489 = vmatprep.subr.bf16.mxu0 0
          %6490 = vmatpush1.bf16.msra.mxu0 0
          %6491 = vmatprep.subr.bf16.mxu0 0
          %6492 = vmatpush1.bf16.msra.mxu0 0
          %6493 = vmatprep.subr.bf16.mxu0 0
          %6494 = vmatpush1.bf16.msra.mxu0 0
          %6495 = vmatprep.subr.bf16.mxu0 0
          %6496 = vmatpush1.bf16.msra.mxu0 0
          %6497 = vmatprep.subr.bf16.mxu0 0
          %6498 = vmatpush1.bf16.msra.mxu0 0
          %6499 = vmatprep.subr.bf16.mxu0 0
          %6500 = vmatpush1.bf16.msra.mxu0 0
          %6501 = vmatprep.subr.bf16.mxu0 0
          %6502 = vmatpush1.bf16.msra.mxu0 0
          %6503 = vmatprep.subr.bf16.mxu0 0
          %6504 = vmatpush1.bf16.msra.mxu0 0
          %6505 = vmatprep.subr.bf16.mxu0 0
          %6506 = vmatpush1.bf16.msra.mxu0 0
          %6507 = vmatprep.subr.bf16.mxu0 0
          %6508 = vmatpush1.bf16.msra.mxu0 0
          %6509 = vmatprep.subr.bf16.mxu0 0
          %6510 = vmatpush1.bf16.msra.mxu0 0
          %6511 = vmatprep.mubr.bf16.mxu0 0
          %6512 = vmatmul.mubr.bf16.gmra.mrb[0].mxu0 %v6477
          %v6513 = vpop.f32.mrb[0].mxu0
          %v6514 = vadd.f32 0.0, %v6513
          %v6515 = vpop.f32.mrb[0].mxu0
          %v6516 = vpop.f32.mrb[0].mxu0
          %v6517 = vpop.f32.mrb[0].mxu0
          %6518 = vdwg.mxu0
          %v6519 = vpack.c.bf16 %v6275, %v6275
          %v6520 = vpack.c.bf16 %v6471, %v6471
          %v6521 = vpack.c.bf16 %v6318, %v6318
          %v6522 = vpack.c.bf16 %v6514, %v6514
          %v6523 = vld [vmem:[#allocation38] sm:$0xf]
          %v6524 = vld [vmem:[#allocation38 + $0x4] sm:$0xf]
          %v6525 = vld [vmem:[#allocation38 + $0x8] sm:$0xf]
          %v6526 = vld [vmem:[#allocation38 + $0xc] sm:$0xf]
          %v6527 = vld [vmem:[#allocation38 + $0x10] sm:$0xf]
          %v6528 = vld [vmem:[#allocation38 + $0x14] sm:$0xf]
          %v6529 = vld [vmem:[#allocation38 + $0x18] sm:$0xf]
          %v6530 = vld [vmem:[#allocation38 + $0x1c] sm:$0xf]
          %v6531 = vld [vmem:[#allocation38 + $0x20] sm:$0xf]
          %v6532 = vld [vmem:[#allocation38 + $0x24] sm:$0xf]
          %v6533 = vld [vmem:[#allocation38 + $0x28] sm:$0xf]
          %v6534 = vld [vmem:[#allocation38 + $0x2c] sm:$0xf]
          %v6535 = vld [vmem:[#allocation38 + $0x30] sm:$0xf]
          %v6536 = vld [vmem:[#allocation38 + $0x34] sm:$0xf]
          %v6537 = vld [vmem:[#allocation38 + $0x38] sm:$0xf]
          %v6538 = vld [vmem:[#allocation38 + $0x3c] sm:$0xf]
          %v6539 = vld [vmem:[#allocation38 + $0x40] sm:$0xf]
          %v6540 = vld [vmem:[#allocation38 + $0x44] sm:$0xf]
          %v6541 = vld [vmem:[#allocation38 + $0x48] sm:$0xf]
          %v6542 = vld [vmem:[#allocation38 + $0x4c] sm:$0xf]
          %v6543 = vld [vmem:[#allocation38 + $0x50] sm:$0xf]
          %v6544 = vld [vmem:[#allocation38 + $0x54] sm:$0xf]
          %v6545 = vld [vmem:[#allocation38 + $0x58] sm:$0xf]
          %v6546 = vld [vmem:[#allocation38 + $0x5c] sm:$0xf]
          %v6547 = vld [vmem:[#allocation38 + $0x60] sm:$0xf]
          %v6548 = vld [vmem:[#allocation38 + $0x64] sm:$0xf]
          %v6549 = vld [vmem:[#allocation38 + $0x68] sm:$0xf]
          %v6550 = vld [vmem:[#allocation38 + $0x6c] sm:$0xf]
          %v6551 = vld [vmem:[#allocation38 + $0x70] sm:$0xf]
          %v6552 = vld [vmem:[#allocation38 + $0x74] sm:$0xf]
          %v6553 = vld [vmem:[#allocation38 + $0x78] sm:$0xf]
          %v6554 = vld [vmem:[#allocation38 + $0x7c] sm:$0xf]
          %v6555 = vld [vmem:[#allocation39] sm:$0x1]
          %v6560 = vunpack.c.l.b16 %v6519
          %v6561 = vunpack.c.l.b16 %v6520
          %v6562 = vunpack.c.l.b16 %v6521
          %v6563 = vunpack.c.l.b16 %v6522
          %v6564 = vrot.slane %v6562, 7
          %vm6565 = vcmask 1041409
          %v6566 = vsel %vm6565, %v6564, %v6560
          %v6567 = vrot.slane %v6563, 7
          %v6568 = vsel %vm6565, %v6567, %v6561
          %v6569 = vpack.c.b16 %v6566, %v6566
          %v6570 = vpack.c.b16 %v6568, %v6568
          %v6605 = vunpack.c.l.b16 %v6523
          %v6606 = vunpack.c.l.b16 %v6524
          %v6607 = vunpack.c.l.b16 %v6525
          %v6608 = vunpack.c.l.b16 %v6526
          %v6609 = vunpack.c.l.b16 %v6527
          %v6610 = vunpack.c.l.b16 %v6528
          %v6611 = vunpack.c.l.b16 %v6529
          %v6612 = vunpack.c.l.b16 %v6530
          %v6613 = vunpack.c.l.b16 %v6531
          %v6614 = vunpack.c.l.b16 %v6532
          %v6615 = vunpack.c.l.b16 %v6533
          %v6616 = vunpack.c.l.b16 %v6534
          %v6617 = vunpack.c.l.b16 %v6535
          %v6618 = vunpack.c.l.b16 %v6536
          %v6619 = vunpack.c.l.b16 %v6537
          %v6620 = vunpack.c.l.b16 %v6538
          %v6621 = vunpack.c.l.b16 %v6539
          %v6622 = vunpack.c.l.b16 %v6540
          %v6623 = vunpack.c.l.b16 %v6541
          %v6624 = vunpack.c.l.b16 %v6542
          %v6625 = vunpack.c.l.b16 %v6543
          %v6626 = vunpack.c.l.b16 %v6544
          %v6627 = vunpack.c.l.b16 %v6545
          %v6628 = vunpack.c.l.b16 %v6546
          %v6629 = vunpack.c.l.b16 %v6547
          %v6630 = vunpack.c.l.b16 %v6548
          %v6631 = vunpack.c.l.b16 %v6549
          %v6632 = vunpack.c.l.b16 %v6550
          %v6633 = vunpack.c.l.b16 %v6551
          %v6634 = vunpack.c.l.b16 %v6552
          %v6635 = vunpack.c.l.b16 %v6553
          %v6636 = vunpack.c.l.b16 %v6554
          %v6637 = vpack.c.b16 %v6606, %v6605
          %v6638 = vpack.c.b16 %v6608, %v6607
          %v6639 = vpack.c.b16 %v6610, %v6609
          %v6640 = vpack.c.b16 %v6612, %v6611
          %v6641 = vpack.c.b16 %v6614, %v6613
          %v6642 = vpack.c.b16 %v6616, %v6615
          %v6643 = vpack.c.b16 %v6618, %v6617
          %v6644 = vpack.c.b16 %v6620, %v6619
          %v6645 = vpack.c.b16 %v6622, %v6621
          %v6646 = vpack.c.b16 %v6624, %v6623
          %v6647 = vpack.c.b16 %v6626, %v6625
          %v6648 = vpack.c.b16 %v6628, %v6627
          %v6649 = vpack.c.b16 %v6630, %v6629
          %v6650 = vpack.c.b16 %v6632, %v6631
          %v6651 = vpack.c.b16 %v6634, %v6633
          %v6652 = vpack.c.b16 %v6636, %v6635
          %v6670 = vcombine.low %v6555, %v6555
          %v6672 = vunpack.c.l.s4 1966171168
          %v6673 = vunpack.c.0.s8 %v6672
          %v6674 = vlaneseq
          %v6675 = vshrl.u32 %v6674, 7
          %v6676 = vsub.s32 %v6673, %v6675
          %v6677 = vrot.slane %v6670, %v6676
          %v6679 = vunpack.c.l.s4 1966171168
          %v6680 = vunpack.c.0.s8 %v6679
          %v6681 = vlaneseq
          %v6682 = vshrl.u32 %v6681, 7
          %v6683 = vsub.s32 %v6680, %v6682
          %v6684 = vrot.slane %v6677, %v6683
          %6686 = vmatprep.subr.bf16.mxu0 0
          %6687 = vmatpush1.bf16.msra.mxu0 %v6637
          %6688 = vmatprep.subr.bf16.mxu0 0
          %6689 = vmatpush1.bf16.msra.mxu0 %v6638
          %6690 = vmatprep.subr.bf16.mxu0 0
          %6691 = vmatpush1.bf16.msra.mxu0 %v6639
          %6692 = vmatprep.subr.bf16.mxu0 0
          %6693 = vmatpush1.bf16.msra.mxu0 %v6640
          %6694 = vmatprep.subr.bf16.mxu0 0
          %6695 = vmatpush1.bf16.msra.mxu0 %v6641
          %6696 = vmatprep.subr.bf16.mxu0 0
          %6697 = vmatpush1.bf16.msra.mxu0 %v6642
          %6698 = vmatprep.subr.bf16.mxu0 0
          %6699 = vmatpush1.bf16.msra.mxu0 %v6643
          %6700 = vmatprep.subr.bf16.mxu0 0
          %6701 = vmatpush1.bf16.msra.mxu0 %v6644
          %6702 = vmatprep.subr.bf16.mxu0 0
          %6703 = vmatpush1.bf16.msra.mxu0 %v6645
          %6704 = vmatprep.subr.bf16.mxu0 0
          %6705 = vmatpush1.bf16.msra.mxu0 %v6646
          %6706 = vmatprep.subr.bf16.mxu0 0
          %6707 = vmatpush1.bf16.msra.mxu0 %v6647
          %6708 = vmatprep.subr.bf16.mxu0 0
          %6709 = vmatpush1.bf16.msra.mxu0 %v6648
          %6710 = vmatprep.subr.bf16.mxu0 0
          %6711 = vmatpush1.bf16.msra.mxu0 %v6649
          %6712 = vmatprep.subr.bf16.mxu0 0
          %6713 = vmatpush1.bf16.msra.mxu0 %v6650
          %6714 = vmatprep.subr.bf16.mxu0 0
          %6715 = vmatpush1.bf16.msra.mxu0 %v6651
          %6716 = vmatprep.subr.bf16.mxu0 0
          %6717 = vmatpush1.bf16.msra.mxu0 %v6652
          %6718 = vmatprep.mubr.bf16.mxu0 %v6570
          %6719 = vmatmul.mubr.bf16.gmra.mrb[0].mxu0 %v6569
          %v6720 = vpop.f32.mrb[0].mxu0
          %v6721 = vadd.f32 %v6684, %v6720
          %v6722 = vpop.f32.mrb[0].mxu0
          %v6723 = vpop.f32.mrb[0].mxu0
          %v6724 = vpop.f32.mrb[0].mxu0
          %6725 = vdwg.mxu0
          %v6728 = vunpack.c.l.s4 1966171168
          %v6729 = vunpack.c.0.s8 %v6728
          %v6730 = vlaneseq
          %v6731 = vshrl.u32 %v6730, 7
          %v6732 = vsub.s32 %v6729, %v6731
          %v6733 = vrot.slane %v6721, %v6732
          %v6734 = vcombine.high %v6733, %v6733
          %v6736 = vunpack.c.l.s4 1966171168
          %v6737 = vunpack.c.0.s8 %v6736
          %v6738 = vlaneseq
          %v6739 = vshrl.u32 %v6738, 7
          %v6740 = vsub.s32 %v6737, %v6739
          %v6741 = vrot.slane %v6733, %v6740
          %v6743 = vunpack.c.l.s4 1966171168
          %v6744 = vunpack.c.0.s8 %v6743
          %v6745 = vlaneseq
          %v6746 = vshrl.u32 %v6745, 7
          %v6747 = vsub.s32 %v6744, %v6746
          %v6748 = vrot.slane %v6734, %v6747
          %6751 = vst [vmem:[#allocation41] sm:$0x1] %v6741
          %6752 = vst [vmem:[#allocation41 + $0x1] sm:$0x1] %v6748
        $region220: #{tpu_custom_call.1} parent=115 // pred_fallthru
          _
        // Predicated region
        $region221: #{tpu_custom_call.1} parent=115 // pred_check
          %p6753 = pneg %p638
        $region222: #{tpu_custom_call.1} parent=115 // pred_check_branch
          %6755 = sbr.rel (%p6753) target = $region224
        $region223: #{tpu_custom_call.1} parent=115 // pred_region
          %s6757 = ssub.s32 32, 32
          %6758 = vsyncadd [#allocation5], %s6757
          %s6759 = sshll.u32 [#allocation41], 4
          %s6760 = int_to_ptr.vmem [resolvable:$true] %s6759
          %6765 = dma.vmem_to_hbm [thread:$0]  %s6760, 32, %s24, [#allocation5], 16, 16, 1
        $region224: #{tpu_custom_call.1} parent=115 // pred_fallthru
          _
        // Predicated region
        $region225: #{tpu_custom_call.1} parent=115 // pred_check
          %p6766 = pneg %p638
        $region226: #{tpu_custom_call.1} parent=115 // pred_check_branch
          %6768 = sbr.rel (%p6766) target = $region228
        $region227: #{tpu_custom_call.1} parent=115 // pred_region
          %6769 = dma.done [#allocation5], 32
        $region228: #{tpu_custom_call.1} parent=115 // pred_fallthru
          _
      $region116: #{tpu_custom_call.1} parent=5 // pred_fallthru
        _
      %p6770 = scmp.le.s32.totalorder 2, %s56
      // Predicated region
      $region229: #{tpu_custom_call.1} parent=5 // pred_check
        %p6771 = pneg %p6770
      $region230: #{tpu_custom_call.1} parent=5 // pred_check_branch
        %6773 = sbr.rel (%p6771) target = $region232
      $region231: #{tpu_custom_call.1} parent=5 // pred_region
        %s6774 = ssub.s32 %s56, 2
      $region232: #{tpu_custom_call.1} parent=5 // pred_fallthru
        _
    $region6: #{tpu_custom_call.1} parent=1 // loop_footer
      %s60 = sadd.s32 1, %s56
    $region7: #{tpu_custom_call.1} parent=1 // loop_footer_branch
      %55 = sbr.rel target = $region3
    $region8: #{tpu_custom_call.1} parent=1 // loop_exit
      _
    %6775 = vsyncpa [#allocation4], 1
    %s6776 = scalar_lea.sflag [#allocation4], 1
    %6777 = vsyncpa %s6776, 1
    %6778 = vsyncpa [#allocation7], 1
    %6779 = vsyncpa [#allocation10], 1
    %s6780 = scalar_lea.sflag [#allocation10], 1
    %6781 = vsyncpa %s6780, 1
    %6782 = vsyncpa [#allocation13], 1
    %s6783 = scalar_lea.sflag [#allocation13], 1
    %6784 = vsyncpa %s6783, 1
    %6785 = vsyncpa [#allocation16], 1
    %s6786 = scalar_lea.sflag [#allocation16], 1
    %6787 = vsyncpa %s6786, 1
    %6788 = vsyncpa [#allocation19], 1
    %s6789 = scalar_lea.sflag [#allocation19], 1
    %6790 = vsyncpa %s6789, 1
    %6791 = vsyncpa [#allocation22], 1
    %s6792 = scalar_lea.sflag [#allocation22], 1
    %6793 = vsyncpa %s6792, 1
    %6794 = vsyncpa [#allocation25], 1
    %s6795 = scalar_lea.sflag [#allocation25], 1
    %6796 = vsyncpa %s6795, 1
    %6797 = vsyncpa [#allocation28], 1
    %6798 = vsyncpa [#allocation31], 1
    %6799 = vsyncpa [#allocation34], 1
    %6800 = vsyncpa [#allocation37], 1
    %6801 = vsyncpa [#allocation40], 1
    %6802 = vsyncpa [#allocation5], 1
    %s6803 = scalar_lea.sflag [#allocation5], 1
    %6804 = vsyncpa %s6803, 1

</llo_original>
